<compile_context>
chip_gen: v6e
topology: v6e:2x2x1
jax: 0.10.0
libtpu: 0.0.40
codegen_flags: <defaults>
</compile_context>

<pallas_src>
import math

import jax
import jax.numpy as jnp
from jax.experimental import pallas as pl
from jax.experimental.pallas import tpu as pltpu


# ---------------------------------------------------------------------------
# Pallas kernel
# ---------------------------------------------------------------------------
def _make_kernel(num_heads: int, d1: int, d2: int, compute_dtype):
    nh = num_heads
    cdt = compute_dtype

    def kernel(
        # data (one batch block per grid step)
        x_ref, k_ref, v_ref, ok_ref, ov_ref, mask_ref, omask_ref,
        # text attention weights
        wq1_ref, bq1_ref, wk1_ref, bk1_ref, wv1_ref, bv1_ref,
        # object attention weights
        wq2_ref, bq2_ref, wk2_ref, bk2_ref, wv2_ref, bv2_ref,
        # output dense (un-split) + layernorm
        wd_ref, bd_ref, gamma_ref, beta_ref,
        # outputs
        out_ref, logit1_ref, logit2_ref,
        # scratch: per-head contexts laid out at their dense-input column offset
        ctx_ref,
    ):
        Bb, Lq, H = x_ref.shape
        Lk = k_ref.shape[1]
        Lo = ok_ref.shape[1]
        M = Bb * Lq
        hd1 = d1 // nh
        hd2 = d2 // nh

        # Flatten the batch block into the matmul M dim.  These reshapes keep
        # the lane (minor) dim intact, so they are layout-free; requires
        # Lq/Lk/Lo to be multiples of 8 at production shapes.
        xf = x_ref[...].reshape(M, H)                     # f32 (kept for residual)
        kf = k_ref[...].reshape(Bb * Lk, H)
        vf = v_ref[...].reshape(Bb * Lk, H)
        okf = ok_ref[...].reshape(Bb * Lo, ok_ref.shape[2])
        ovf = ov_ref[...].reshape(Bb * Lo, ov_ref.shape[2])

        def project(inp, w_ref, b_ref, scale=None):
            # compute-dtype operands, f32 MXU accumulation, f32 bias/scale.
            y = jnp.dot(inp.astype(cdt), w_ref[...],
                        preferred_element_type=jnp.float32) + b_ref[...]
            if scale is not None:
                y = y * scale                  # 1/sqrt(hd) folded into Q in f32
            return y.astype(cdt)

        q1 = project(xf, wq1_ref, bq1_ref, 1.0 / math.sqrt(hd1)).reshape(Bb, Lq, d1)
        k1 = project(kf, wk1_ref, bk1_ref).reshape(Bb, Lk, d1)
        v1 = project(vf, wv1_ref, bv1_ref).reshape(Bb, Lk, d1)
        q2 = project(xf, wq2_ref, bq2_ref, 1.0 / math.sqrt(hd2)).reshape(Bb, Lq, d2)
        k2 = project(okf, wk2_ref, bk2_ref).reshape(Bb, Lo, d2)
        v2 = project(ovf, wv2_ref, bv2_ref).reshape(Bb, Lo, d2)

        def attend(q, k, v, mask, hd, col0, logit_ref):
            Lkv = k.shape[1]
            # Hoisted: broadcast the additive mask once per modality (JAX does
            # not CSE broadcast_in_dim across the unrolled head loop).
            m_b = jnp.broadcast_to(mask, (Bb, Lq, Lkv))
            for h in range(nh):
                qh = q[:, :, h * hd:(h + 1) * hd]         # (Bb, Lq, hd)
                kh = k[:, :, h * hd:(h + 1) * hd]         # (Bb, Lkv, hd)
                vh = v[:, :, h * hd:(h + 1) * hd]
                # f32-accumulated scores; mask added (and logits stored) in f32.
                s = jnp.einsum("bqd,bkd->bqk", qh, kh,
                               preferred_element_type=jnp.float32) + m_b
                logit_ref[:, h, :, :] = s
                smax = jnp.max(s, axis=-1, keepdims=True)
                e = jnp.exp(s - smax)
                denom = jnp.sum(e, axis=-1, keepdims=True)
                # EUP approx reciprocal + one Newton step: ~f32 accuracy while
                # the divide leaves the VALU slot.
                r = pl.reciprocal(denom, approx=True)
                r = r * (2.0 - denom * r)
                p = (e * r).astype(cdt)
                ctx = jnp.einsum("bqk,bkd->bqd", p, vh,
                                 preferred_element_type=jnp.float32)
                # Scatter this head's context into the dense-input scratch at
                # its static column offset (masked stores when hd < 128 — fine).
                c0 = col0 + h * hd
                ctx_ref[:, c0:c0 + hd] = ctx.reshape(M, hd).astype(cdt)

        attend(q1, k1, v1, mask_ref[...], hd1, 0, logit1_ref)
        attend(q2, k2, v2, omask_ref[...], hd2, d1, logit2_ref)

        # MBertOutput (use_aoa=False, dropout=0): ONE big-K dense, then
        # residual + LayerNorm(eps=1e-12), all in f32.
        hs = jnp.dot(ctx_ref[...], wd_ref[...],
                     preferred_element_type=jnp.float32) + bd_ref[...]
        y = hs + xf
        mean = jnp.mean(y, axis=-1, keepdims=True)
        var = jnp.mean((y - mean) ** 2, axis=-1, keepdims=True)
        yn = (y - mean) * jax.lax.rsqrt(var + 1e-12)
        out_ref[...] = (yn * gamma_ref[...] + beta_ref[...]).reshape(Bb, Lq, H)

    return kernel


# ---------------------------------------------------------------------------
# Wrapper
# ---------------------------------------------------------------------------
def _vmem_limit_bytes():
    # Generation-aware scoped-VMEM limit: ~7/8 of physical, capped at 112 MiB.
    # v5e/v6e (128 MiB physical) -> 112 MiB; v7x (64 MiB) -> 56 MiB.
    try:
        cap = getattr(pltpu.get_tpu_info(), "vmem_capacity_bytes", None)
    except Exception:
        cap = None
    if not cap:
        cap = 64 * 1024 * 1024          # conservative fallback (v7x physical)
    return int(min(cap * 7 // 8, 112 * 1024 * 1024))


def multimodal_mh_block(x, key, value, obj_key, obj_value, mask, obj_mask,
                        params, num_heads, *, block_b=None,
                        compute_dtype=jnp.float32, buffered_weights=True):
    B, Lq, H = x.shape
    Lk = key.shape[1]
    Lo = obj_key.shape[1]
    OH = obj_key.shape[2]
    nh = num_heads
    D1 = params["wq1"].shape[1]
    D2 = params["wq2"].shape[1]
    cdt = compute_dtype

    # >=2 grid steps so the 'parallel' batch axis shards across the two v7x
    # TensorCores and the BlockSpec double-buffering overlaps the HBM traffic
    # (logit writeback is the largest HBM write); ~4 steps when B permits.
    if block_b is None:
        if B % 4 == 0 and B >= 8:
            block_b = B // 4
        elif B % 2 == 0:
            block_b = B // 2
        else:
            block_b = 1
    assert B % block_b == 0
    grid = (B // block_b,)

    # MXU operands in compute dtype.  x stays f32 (needed exactly for the
    # residual); biases, masks, softmax and LayerNorm stay f32.
    key, value = key.astype(cdt), value.astype(cdt)
    obj_key, obj_value = obj_key.astype(cdt), obj_value.astype(cdt)
    wc = lambda w: w.astype(cdt)
    weights = [
        wc(params["wq1"]), params["bq1"], wc(params["wk1"]), params["bk1"],
        wc(params["wv1"]), params["bv1"],
        wc(params["wq2"]), params["bq2"], wc(params["wk2"]), params["bk2"],
        wc(params["wv2"]), params["bv2"],
        wc(params["wd"]), params["bd"], params["gamma"], params["beta"],
    ]

    # Weight specs: constant index_map (never re-DMA'd across grid steps) and
    # single-buffered so they don't pay 2x VMEM residency at production H.
    pipeline_mode = pl.Buffered(1) if buffered_weights else None

    def const_spec(arr):
        nd = arr.ndim
        if pipeline_mode is None:
            return pl.BlockSpec(arr.shape, lambda i, _nd=nd: (0,) * _nd)
        return pl.BlockSpec(arr.shape, lambda i, _nd=nd: (0,) * _nd,
                            pipeline_mode=pipeline_mode)

    weight_specs = [const_spec(w) for w in weights]

    data_specs = [
        pl.BlockSpec((block_b, Lq, H), lambda i: (i, 0, 0)),    # x
        pl.BlockSpec((block_b, Lk, H), lambda i: (i, 0, 0)),    # key
        pl.BlockSpec((block_b, Lk, H), lambda i: (i, 0, 0)),    # value
        pl.BlockSpec((block_b, Lo, OH), lambda i: (i, 0, 0)),   # obj_key
        pl.BlockSpec((block_b, Lo, OH), lambda i: (i, 0, 0)),   # obj_value
        pl.BlockSpec((block_b, 1, Lk), lambda i: (i, 0, 0)),    # mask
        pl.BlockSpec((block_b, 1, Lo), lambda i: (i, 0, 0)),    # obj_mask
    ]

    # NOTE: at production sequence lengths add an Lq tile axis to the grid (or
    # write the logits via memory_space=pl.ANY + manual DMA) so the
    # (block_b, nh, Lq, Lk) logit blocks don't blow the 64 MiB v7x VMEM.
    out_shapes = (
        jax.ShapeDtypeStruct((B, Lq, H), jnp.float32),
        jax.ShapeDtypeStruct((B, nh, Lq, Lk), jnp.float32),
        jax.ShapeDtypeStruct((B, nh, Lq, Lo), jnp.float32),
    )
    out_specs = (
        pl.BlockSpec((block_b, Lq, H), lambda i: (i, 0, 0)),
        pl.BlockSpec((block_b, nh, Lq, Lk), lambda i: (i, 0, 0, 0)),
        pl.BlockSpec((block_b, nh, Lq, Lo), lambda i: (i, 0, 0, 0)),
    )

    fn = pl.pallas_call(
        _make_kernel(nh, D1, D2, cdt),
        out_shape=out_shapes,
        grid_spec=pltpu.PrefetchScalarGridSpec(
            num_scalar_prefetch=0,
            grid=grid,
            in_specs=data_specs + weight_specs,
            out_specs=out_specs,
            scratch_shapes=[pltpu.VMEM((block_b * Lq, D1 + D2), cdt)],
        ),
        compiler_params=pltpu.CompilerParams(
            dimension_semantics=("parallel",),
            vmem_limit_bytes=_vmem_limit_bytes(),
        ),
    )
    args = [x, key, value, obj_key, obj_value, mask, obj_mask] + weights
    return fn(*args)


# ---------------------------------------------------------------------------
# Pure-JAX reference (mirrors the PyTorch module semantics, f32)
# ---------------------------------------------------------------------------
def reference(x, key, value, obj_key, obj_value, mask, obj_mask, params, nh):
    def attn(q_in, k_in, v_in, wq, bq, wk, bk, wv, bv, m):
        q = q_in @ wq + bq
        k = k_in @ wk + bk
        v = v_in @ wv + bv
        B, Lq, D = q.shape
        Lk = k.shape[1]
        hd = D // nh
        qh = q.reshape(B, Lq, nh, hd).transpose(0, 2, 1, 3)
        kh = k.reshape(B, Lk, nh, hd).transpose(0, 2, 1, 3)
        vh = v.reshape(B, Lk, nh, hd).transpose(0, 2, 1, 3)
        s = jnp.einsum("bhqd,bhkd->bhqk", qh, kh) / math.sqrt(hd)
        s = s + m[:, None, :, :]
        p = jax.nn.softmax(s, axis=-1)
        ctx = jnp.einsum("bhqk,bhkd->bhqd", p, vh)
        ctx = ctx.transpose(0, 2, 1, 3).reshape(B, Lq, D)
        return ctx, s

    c1, s1 = attn(x, key, value, params["wq1"], params["bq1"],
                  params["wk1"], params["bk1"], params["wv1"], params["bv1"], mask)
    c2, s2 = attn(x, obj_key, obj_value, params["wq2"], params["bq2"],
                  params["wk2"], params["bk2"], params["wv2"], params["bv2"], obj_mask)
    hs = jnp.concatenate([c1, c2], axis=-1) @ params["wd"] + params["bd"]
    y = hs + x
    mean = jnp.mean(y, axis=-1, keepdims=True)
    var = jnp.mean((y - mean) ** 2, axis=-1, keepdims=True)
    yn = (y - mean) / jnp.sqrt(var + 1e-12)
    return yn * params["gamma"] + params["beta"], s1, s2


# ---------------------------------------------------------------------------
# Main
# ---------------------------------------------------------------------------
if __name__ == "__main__":
    B, Lq, Lk, Lo = 2, 8, 8, 8
    H, OH, NH = 32, 16, 4  # hidden, obj_hidden, num_attention_heads

    root = jax.random.PRNGKey(0)
    keys = iter(jax.random.split(root, 32))

    def linear(in_dim, out_dim):
        bound = 1.0 / math.sqrt(in_dim)
        w = jax.random.uniform(next(keys), (in_dim, out_dim), jnp.float32, -bound, bound)
        b = jax.random.uniform(next(keys), (1, out_dim), jnp.float32, -bound, bound)
        return w, b

    params = {}
    # text BertAttention: Q/K/V all H -> H
    params["wq1"], params["bq1"] = linear(H, H)
    params["wk1"], params["bk1"] = linear(H, H)
    params["wv1"], params["bv1"] = linear(H, H)
    # object BertAttention: Q is H -> OH (q_hidden_size=hidden_size), K/V are OH -> OH
    params["wq2"], params["bq2"] = linear(H, OH)
    params["wk2"], params["bk2"] = linear(OH, OH)
    params["wv2"], params["bv2"] = linear(OH, OH)
    # MBertOutput dense: (H + OH) -> H, LayerNorm(H)
    params["wd"], params["bd"] = linear(H + OH, H)
    params["gamma"] = jnp.ones((1, H), jnp.float32)
    params["beta"] = jnp.zeros((1, H), jnp.float32)

    x = jax.random.normal(next(keys), (B, Lq, H), jnp.float32)
    key = jax.random.normal(next(keys), (B, Lk, H), jnp.float32)
    value = jax.random.normal(next(keys), (B, Lk, H), jnp.float32)
    obj_key = jax.random.normal(next(keys), (B, Lo, OH), jnp.float32)
    obj_value = jax.random.normal(next(keys), (B, Lo, OH), jnp.float32)

    # additive attention masks (0 = keep, -1e9 = masked), like BERT's extended mask
    mask = jnp.zeros((B, 1, Lk), jnp.float32).at[:, :, -2:].set(-1e9)
    obj_mask = jnp.zeros((B, 1, Lo), jnp.float32).at[:, :, -1:].set(-1e9)

    ref_out, ref_l1, ref_l2 = reference(
        x, key, value, obj_key, obj_value, mask, obj_mask, params, NH)

    def run(compute_dtype, buffered):
        return multimodal_mh_block(
            x, key, value, obj_key, obj_value, mask, obj_mask, params, NH,
            compute_dtype=compute_dtype, buffered_weights=buffered)

    # f32 compute path: must hold the 1e-4 tolerance against the reference.
    buffered_ok = True
    try:
        out, l1, l2 = run(jnp.float32, True)
        jax.block_until_ready((out, l1, l2))
    except Exception:
        # pl.Buffered(1) weight residency not supported by this build ->
        # fall back to default double-buffered weight specs (same numerics).
        buffered_ok = False
        out, l1, l2 = run(jnp.float32, False)
        jax.block_until_ready((out, l1, l2))

    assert jnp.allclose(out, ref_out, atol=1e-4, rtol=1e-4)
    assert jnp.allclose(l1, ref_l1, atol=1e-4, rtol=1e-4)
    assert jnp.allclose(l2, ref_l2, atol=1e-4, rtol=1e-4)

    # bf16 MXU-operand path (production setting): f32 accumulation and f32
    # softmax / mask / LayerNorm; validated at bf16 tolerance.
    out_bf, l1_bf, l2_bf = run(jnp.bfloat16, buffered_ok)
    jax.block_until_ready((out_bf, l1_bf, l2_bf))
    assert jnp.allclose(out_bf, ref_out, atol=1e-1, rtol=1e-1)
    assert jnp.allclose(l1_bf, ref_l1, atol=1e-1, rtol=1e-1)
    assert jnp.allclose(l2_bf, ref_l2, atol=1e-1, rtol=1e-1)

    print("KERNEL_OK")
</pallas_src>

<mosaic_0001>
module attributes {stable_mosaic.version = 11 : i64} {
  func.func @kernel(%arg0: i32, %arg1: memref<1x8x32xf32, #tpu.memory_space<vmem>>, %arg2: memref<1x8x32xf32, #tpu.memory_space<vmem>>, %arg3: memref<1x8x32xf32, #tpu.memory_space<vmem>>, %arg4: memref<1x8x16xf32, #tpu.memory_space<vmem>>, %arg5: memref<1x8x16xf32, #tpu.memory_space<vmem>>, %arg6: memref<1x1x8xf32, #tpu.memory_space<vmem>>, %arg7: memref<1x1x8xf32, #tpu.memory_space<vmem>>, %arg8: memref<32x32xf32, #tpu.memory_space<vmem>>, %arg9: memref<1x32xf32, #tpu.memory_space<vmem>>, %arg10: memref<32x32xf32, #tpu.memory_space<vmem>>, %arg11: memref<1x32xf32, #tpu.memory_space<vmem>>, %arg12: memref<32x32xf32, #tpu.memory_space<vmem>>, %arg13: memref<1x32xf32, #tpu.memory_space<vmem>>, %arg14: memref<32x16xf32, #tpu.memory_space<vmem>>, %arg15: memref<1x16xf32, #tpu.memory_space<vmem>>, %arg16: memref<16x16xf32, #tpu.memory_space<vmem>>, %arg17: memref<1x16xf32, #tpu.memory_space<vmem>>, %arg18: memref<16x16xf32, #tpu.memory_space<vmem>>, %arg19: memref<1x16xf32, #tpu.memory_space<vmem>>, %arg20: memref<48x32xf32, #tpu.memory_space<vmem>>, %arg21: memref<1x32xf32, #tpu.memory_space<vmem>>, %arg22: memref<1x32xf32, #tpu.memory_space<vmem>>, %arg23: memref<1x32xf32, #tpu.memory_space<vmem>>, %arg24: memref<1x8x32xf32, #tpu.memory_space<vmem>>, %arg25: memref<1x4x8x8xf32, #tpu.memory_space<vmem>>, %arg26: memref<1x4x8x8xf32, #tpu.memory_space<vmem>>, %arg27: memref<8x48xf32, #tpu.memory_space<vmem>>) attributes {dimension_semantics = [#tpu.dimension_semantics<parallel>], iteration_bounds = array<i64: 2>, scalar_prefetch = 0 : i64, scratch_operands = 1 : i64, tpu.core_type = #tpu.core_type<tc>, window_params = [{transform_indices = @transform_0, window_bounds = array<i64: 1, 8, 32>}, {transform_indices = @transform_1, window_bounds = array<i64: 1, 8, 32>}, {transform_indices = @transform_2, window_bounds = array<i64: 1, 8, 32>}, {transform_indices = @transform_3, window_bounds = array<i64: 1, 8, 16>}, {transform_indices = @transform_4, window_bounds = array<i64: 1, 8, 16>}, {transform_indices = @transform_5, window_bounds = array<i64: 1, 1, 8>}, {transform_indices = @transform_6, window_bounds = array<i64: 1, 1, 8>}, {pipeline_mode = #tpu.pipeline_mode<synchronous>, transform_indices = @transform_7, window_bounds = array<i64: 32, 32>}, {pipeline_mode = #tpu.pipeline_mode<synchronous>, transform_indices = @transform_8, window_bounds = array<i64: 1, 32>}, {pipeline_mode = #tpu.pipeline_mode<synchronous>, transform_indices = @transform_9, window_bounds = array<i64: 32, 32>}, {pipeline_mode = #tpu.pipeline_mode<synchronous>, transform_indices = @transform_10, window_bounds = array<i64: 1, 32>}, {pipeline_mode = #tpu.pipeline_mode<synchronous>, transform_indices = @transform_11, window_bounds = array<i64: 32, 32>}, {pipeline_mode = #tpu.pipeline_mode<synchronous>, transform_indices = @transform_12, window_bounds = array<i64: 1, 32>}, {pipeline_mode = #tpu.pipeline_mode<synchronous>, transform_indices = @transform_13, window_bounds = array<i64: 32, 16>}, {pipeline_mode = #tpu.pipeline_mode<synchronous>, transform_indices = @transform_14, window_bounds = array<i64: 1, 16>}, {pipeline_mode = #tpu.pipeline_mode<synchronous>, transform_indices = @transform_15, window_bounds = array<i64: 16, 16>}, {pipeline_mode = #tpu.pipeline_mode<synchronous>, transform_indices = @transform_16, window_bounds = array<i64: 1, 16>}, {pipeline_mode = #tpu.pipeline_mode<synchronous>, transform_indices = @transform_17, window_bounds = array<i64: 16, 16>}, {pipeline_mode = #tpu.pipeline_mode<synchronous>, transform_indices = @transform_18, window_bounds = array<i64: 1, 16>}, {pipeline_mode = #tpu.pipeline_mode<synchronous>, transform_indices = @transform_19, window_bounds = array<i64: 48, 32>}, {pipeline_mode = #tpu.pipeline_mode<synchronous>, transform_indices = @transform_20, window_bounds = array<i64: 1, 32>}, {pipeline_mode = #tpu.pipeline_mode<synchronous>, transform_indices = @transform_21, window_bounds = array<i64: 1, 32>}, {pipeline_mode = #tpu.pipeline_mode<synchronous>, transform_indices = @transform_22, window_bounds = array<i64: 1, 32>}, {transform_indices = @transform_23, window_bounds = array<i64: 1, 8, 32>}, {transform_indices = @transform_24, window_bounds = array<i64: 1, 4, 8, 8>}, {transform_indices = @transform_25, window_bounds = array<i64: 1, 4, 8, 8>}]} {
    %c0 = arith.constant 0 : index
    %c0_0 = arith.constant 0 : index
    %c0_1 = arith.constant 0 : index
    %0 = vector.load %arg1[%c0, %c0_0, %c0_1] : memref<1x8x32xf32, #tpu.memory_space<vmem>>, vector<1x8x32xf32>
    %1 = vector.shape_cast %0 : vector<1x8x32xf32> to vector<8x32xf32>
    %c0_2 = arith.constant 0 : index
    %c0_3 = arith.constant 0 : index
    %c0_4 = arith.constant 0 : index
    %2 = vector.load %arg2[%c0_2, %c0_3, %c0_4] : memref<1x8x32xf32, #tpu.memory_space<vmem>>, vector<1x8x32xf32>
    %3 = vector.shape_cast %2 : vector<1x8x32xf32> to vector<8x32xf32>
    %c0_5 = arith.constant 0 : index
    %c0_6 = arith.constant 0 : index
    %c0_7 = arith.constant 0 : index
    %4 = vector.load %arg3[%c0_5, %c0_6, %c0_7] : memref<1x8x32xf32, #tpu.memory_space<vmem>>, vector<1x8x32xf32>
    %5 = vector.shape_cast %4 : vector<1x8x32xf32> to vector<8x32xf32>
    %c0_8 = arith.constant 0 : index
    %c0_9 = arith.constant 0 : index
    %c0_10 = arith.constant 0 : index
    %6 = vector.load %arg4[%c0_8, %c0_9, %c0_10] : memref<1x8x16xf32, #tpu.memory_space<vmem>>, vector<1x8x16xf32>
    %7 = vector.shape_cast %6 : vector<1x8x16xf32> to vector<8x16xf32>
    %c0_11 = arith.constant 0 : index
    %c0_12 = arith.constant 0 : index
    %c0_13 = arith.constant 0 : index
    %8 = vector.load %arg5[%c0_11, %c0_12, %c0_13] : memref<1x8x16xf32, #tpu.memory_space<vmem>>, vector<1x8x16xf32>
    %9 = vector.shape_cast %8 : vector<1x8x16xf32> to vector<8x16xf32>
    %c0_14 = arith.constant 0 : index
    %c0_15 = arith.constant 0 : index
    %10 = vector.load %arg8[%c0_14, %c0_15] : memref<32x32xf32, #tpu.memory_space<vmem>>, vector<32x32xf32>
    %cst = arith.constant dense<0.000000e+00> : vector<8x32xf32>
    %11 = tpu.matmul %1, %10, %cst {dimension_numbers = #tpu.dot_dimension_numbers<[1], [0], [0], [1], [0, 0, 1, 1], [], []>} : vector<8x32xf32>, vector<32x32xf32>, vector<8x32xf32> -> vector<8x32xf32>
    %c0_16 = arith.constant 0 : index
    %c0_17 = arith.constant 0 : index
    %12 = vector.load %arg9[%c0_16, %c0_17] : memref<1x32xf32, #tpu.memory_space<vmem>>, vector<1x32xf32>
    %13 = vector.broadcast %12 : vector<1x32xf32> to vector<8x32xf32>
    %14 = arith.addf %11, %13 : vector<8x32xf32>
    %cst_18 = arith.constant 0.353553385 : f32
    %15 = vector.broadcast %cst_18 : f32 to vector<8x32xf32>
    %16 = arith.mulf %14, %15 : vector<8x32xf32>
    %17 = vector.shape_cast %16 : vector<8x32xf32> to vector<1x8x32xf32>
    %c0_19 = arith.constant 0 : index
    %c0_20 = arith.constant 0 : index
    %18 = vector.load %arg10[%c0_19, %c0_20] : memref<32x32xf32, #tpu.memory_space<vmem>>, vector<32x32xf32>
    %cst_21 = arith.constant dense<0.000000e+00> : vector<8x32xf32>
    %19 = tpu.matmul %3, %18, %cst_21 {dimension_numbers = #tpu.dot_dimension_numbers<[1], [0], [0], [1], [0, 0, 1, 1], [], []>} : vector<8x32xf32>, vector<32x32xf32>, vector<8x32xf32> -> vector<8x32xf32>
    %c0_22 = arith.constant 0 : index
    %c0_23 = arith.constant 0 : index
    %20 = vector.load %arg11[%c0_22, %c0_23] : memref<1x32xf32, #tpu.memory_space<vmem>>, vector<1x32xf32>
    %21 = vector.broadcast %20 : vector<1x32xf32> to vector<8x32xf32>
    %22 = arith.addf %19, %21 : vector<8x32xf32>
    %23 = vector.shape_cast %22 : vector<8x32xf32> to vector<1x8x32xf32>
    %c0_24 = arith.constant 0 : index
    %c0_25 = arith.constant 0 : index
    %24 = vector.load %arg12[%c0_24, %c0_25] : memref<32x32xf32, #tpu.memory_space<vmem>>, vector<32x32xf32>
    %cst_26 = arith.constant dense<0.000000e+00> : vector<8x32xf32>
    %25 = tpu.matmul %5, %24, %cst_26 {dimension_numbers = #tpu.dot_dimension_numbers<[1], [0], [0], [1], [0, 0, 1, 1], [], []>} : vector<8x32xf32>, vector<32x32xf32>, vector<8x32xf32> -> vector<8x32xf32>
    %c0_27 = arith.constant 0 : index
    %c0_28 = arith.constant 0 : index
    %26 = vector.load %arg13[%c0_27, %c0_28] : memref<1x32xf32, #tpu.memory_space<vmem>>, vector<1x32xf32>
    %27 = vector.broadcast %26 : vector<1x32xf32> to vector<8x32xf32>
    %28 = arith.addf %25, %27 : vector<8x32xf32>
    %29 = vector.shape_cast %28 : vector<8x32xf32> to vector<1x8x32xf32>
    %c0_29 = arith.constant 0 : index
    %c0_30 = arith.constant 0 : index
    %30 = vector.load %arg14[%c0_29, %c0_30] : memref<32x16xf32, #tpu.memory_space<vmem>>, vector<32x16xf32>
    %cst_31 = arith.constant dense<0.000000e+00> : vector<8x16xf32>
    %31 = tpu.matmul %1, %30, %cst_31 {dimension_numbers = #tpu.dot_dimension_numbers<[1], [0], [0], [1], [0, 0, 1, 1], [], []>} : vector<8x32xf32>, vector<32x16xf32>, vector<8x16xf32> -> vector<8x16xf32>
    %c0_32 = arith.constant 0 : index
    %c0_33 = arith.constant 0 : index
    %32 = vector.load %arg15[%c0_32, %c0_33] : memref<1x16xf32, #tpu.memory_space<vmem>>, vector<1x16xf32>
    %33 = vector.broadcast %32 : vector<1x16xf32> to vector<8x16xf32>
    %34 = arith.addf %31, %33 : vector<8x16xf32>
    %cst_34 = arith.constant 5.000000e-01 : f32
    %35 = vector.broadcast %cst_34 : f32 to vector<8x16xf32>
    %36 = arith.mulf %34, %35 : vector<8x16xf32>
    %37 = vector.shape_cast %36 : vector<8x16xf32> to vector<1x8x16xf32>
    %c0_35 = arith.constant 0 : index
    %c0_36 = arith.constant 0 : index
    %38 = vector.load %arg16[%c0_35, %c0_36] : memref<16x16xf32, #tpu.memory_space<vmem>>, vector<16x16xf32>
    %cst_37 = arith.constant dense<0.000000e+00> : vector<8x16xf32>
    %39 = tpu.matmul %7, %38, %cst_37 {dimension_numbers = #tpu.dot_dimension_numbers<[1], [0], [0], [1], [0, 0, 1, 1], [], []>} : vector<8x16xf32>, vector<16x16xf32>, vector<8x16xf32> -> vector<8x16xf32>
    %c0_38 = arith.constant 0 : index
    %c0_39 = arith.constant 0 : index
    %40 = vector.load %arg17[%c0_38, %c0_39] : memref<1x16xf32, #tpu.memory_space<vmem>>, vector<1x16xf32>
    %41 = vector.broadcast %40 : vector<1x16xf32> to vector<8x16xf32>
    %42 = arith.addf %39, %41 : vector<8x16xf32>
    %43 = vector.shape_cast %42 : vector<8x16xf32> to vector<1x8x16xf32>
    %c0_40 = arith.constant 0 : index
    %c0_41 = arith.constant 0 : index
    %44 = vector.load %arg18[%c0_40, %c0_41] : memref<16x16xf32, #tpu.memory_space<vmem>>, vector<16x16xf32>
    %cst_42 = arith.constant dense<0.000000e+00> : vector<8x16xf32>
    %45 = tpu.matmul %9, %44, %cst_42 {dimension_numbers = #tpu.dot_dimension_numbers<[1], [0], [0], [1], [0, 0, 1, 1], [], []>} : vector<8x16xf32>, vector<16x16xf32>, vector<8x16xf32> -> vector<8x16xf32>
    %c0_43 = arith.constant 0 : index
    %c0_44 = arith.constant 0 : index
    %46 = vector.load %arg19[%c0_43, %c0_44] : memref<1x16xf32, #tpu.memory_space<vmem>>, vector<1x16xf32>
    %47 = vector.broadcast %46 : vector<1x16xf32> to vector<8x16xf32>
    %48 = arith.addf %45, %47 : vector<8x16xf32>
    %49 = vector.shape_cast %48 : vector<8x16xf32> to vector<1x8x16xf32>
    %c0_45 = arith.constant 0 : index
    %c0_46 = arith.constant 0 : index
    %c0_47 = arith.constant 0 : index
    %50 = vector.load %arg6[%c0_45, %c0_46, %c0_47] : memref<1x1x8xf32, #tpu.memory_space<vmem>>, vector<1x1x8xf32>
    %51 = vector.shape_cast %50 : vector<1x1x8xf32> to vector<1x1x8xf32>
    %52 = vector.broadcast %51 : vector<1x1x8xf32> to vector<1x8x8xf32>
    %53 = vector.extract_strided_slice %17 {offsets = [0, 0, 0], sizes = [1, 8, 8], strides = [1, 1, 1]} : vector<1x8x32xf32> to vector<1x8x8xf32>
    %54 = vector.extract_strided_slice %23 {offsets = [0, 0, 0], sizes = [1, 8, 8], strides = [1, 1, 1]} : vector<1x8x32xf32> to vector<1x8x8xf32>
    %55 = vector.extract_strided_slice %29 {offsets = [0, 0, 0], sizes = [1, 8, 8], strides = [1, 1, 1]} : vector<1x8x32xf32> to vector<1x8x8xf32>
    "tpu.trace_start"() <{level = 10 : i32, message = "bqd,bkd->bqk"}> : () -> ()
    %cst_48 = arith.constant dense<0.000000e+00> : vector<1x8x8xf32>
    %56 = tpu.matmul %53, %54, %cst_48 {dimension_numbers = #tpu.dot_dimension_numbers<[2], [2], [1], [1], [0, 0, 0, 1, 1, 1], [0], [0]>} : vector<1x8x8xf32>, vector<1x8x8xf32>, vector<1x8x8xf32> -> vector<1x8x8xf32>
    "tpu.trace_stop"() : () -> ()
    %57 = arith.addf %56, %52 : vector<1x8x8xf32>
    %c0_49 = arith.constant 0 : index
    %c0_50 = arith.constant 0 : index
    %c0_51 = arith.constant 0 : index
    %c0_52 = arith.constant 0 : index
    %58 = vector.load %arg25[%c0_49, %c0_50, %c0_51, %c0_52] : memref<1x4x8x8xf32, #tpu.memory_space<vmem>>, vector<1x1x8x8xf32>
    %59 = vector.shape_cast %58 : vector<1x1x8x8xf32> to vector<1x8x8xf32>
    %60 = vector.shape_cast %57 : vector<1x8x8xf32> to vector<1x1x8x8xf32>
    tpu.vector_store %arg25[%c0_49, %c0_50, %c0_51, %c0_52], %60 {strides = array<i32>} : memref<1x4x8x8xf32, #tpu.memory_space<vmem>>, vector<1x1x8x8xf32>,
    %cst_53 = arith.constant dense<0xFF800000> : vector<1x8xf32>
    %61 = vector.multi_reduction <maximumf>, %57, %cst_53 [2] : vector<1x8x8xf32> to vector<1x8xf32>
    %62 = vector.shape_cast %61 : vector<1x8xf32> to vector<1x8x1xf32>
    %63 = vector.broadcast %62 : vector<1x8x1xf32> to vector<1x8x8xf32>
    %64 = arith.subf %57, %63 : vector<1x8x8xf32>
    %65 = math.exp %64 : vector<1x8x8xf32>
    %cst_54 = arith.constant dense<0.000000e+00> : vector<1x8xf32>
    %66 = vector.multi_reduction <add>, %65, %cst_54 [2] : vector<1x8x8xf32> to vector<1x8xf32>
    %67 = vector.shape_cast %66 : vector<1x8xf32> to vector<1x8x1xf32>
    %68 = tpu.reciprocal %67 {approx = true} : vector<1x8x1xf32> -> vector<1x8x1xf32>
    %69 = arith.mulf %67, %68 : vector<1x8x1xf32>
    %cst_55 = arith.constant 2.000000e+00 : f32
    %70 = vector.broadcast %cst_55 : f32 to vector<1x8x1xf32>
    %71 = arith.subf %70, %69 : vector<1x8x1xf32>
    %72 = arith.mulf %68, %71 : vector<1x8x1xf32>
    %73 = vector.broadcast %72 : vector<1x8x1xf32> to vector<1x8x8xf32>
    %74 = arith.mulf %65, %73 : vector<1x8x8xf32>
    "tpu.trace_start"() <{level = 10 : i32, message = "bqk,bkd->bqd"}> : () -> ()
    %cst_56 = arith.constant dense<0.000000e+00> : vector<1x8x8xf32>
    %75 = tpu.matmul %74, %55, %cst_56 {dimension_numbers = #tpu.dot_dimension_numbers<[2], [1], [1], [2], [0, 0, 0, 1, 1, 2], [0], [0]>} : vector<1x8x8xf32>, vector<1x8x8xf32>, vector<1x8x8xf32> -> vector<1x8x8xf32>
    "tpu.trace_stop"() : () -> ()
    %76 = vector.shape_cast %75 : vector<1x8x8xf32> to vector<8x8xf32>
    %c0_57 = arith.constant 0 : index
    %c0_58 = arith.constant 0 : index
    %77 = vector.load %arg27[%c0_57, %c0_58] : memref<8x48xf32, #tpu.memory_space<vmem>>, vector<8x8xf32>
    tpu.vector_store %arg27[%c0_57, %c0_58], %76 {strides = array<i32>} : memref<8x48xf32, #tpu.memory_space<vmem>>, vector<8x8xf32>,
    %78 = vector.extract_strided_slice %17 {offsets = [0, 0, 8], sizes = [1, 8, 8], strides = [1, 1, 1]} : vector<1x8x32xf32> to vector<1x8x8xf32>
    %79 = vector.extract_strided_slice %23 {offsets = [0, 0, 8], sizes = [1, 8, 8], strides = [1, 1, 1]} : vector<1x8x32xf32> to vector<1x8x8xf32>
    %80 = vector.extract_strided_slice %29 {offsets = [0, 0, 8], sizes = [1, 8, 8], strides = [1, 1, 1]} : vector<1x8x32xf32> to vector<1x8x8xf32>
    "tpu.trace_start"() <{level = 10 : i32, message = "bqd,bkd->bqk"}> : () -> ()
    %cst_59 = arith.constant dense<0.000000e+00> : vector<1x8x8xf32>
    %81 = tpu.matmul %78, %79, %cst_59 {dimension_numbers = #tpu.dot_dimension_numbers<[2], [2], [1], [1], [0, 0, 0, 1, 1, 1], [0], [0]>} : vector<1x8x8xf32>, vector<1x8x8xf32>, vector<1x8x8xf32> -> vector<1x8x8xf32>
    "tpu.trace_stop"() : () -> ()
    %82 = arith.addf %81, %52 : vector<1x8x8xf32>
    %c0_60 = arith.constant 0 : index
    %c1 = arith.constant 1 : index
    %c0_61 = arith.constant 0 : index
    %c0_62 = arith.constant 0 : index
    %83 = vector.load %arg25[%c0_60, %c1, %c0_61, %c0_62] : memref<1x4x8x8xf32, #tpu.memory_space<vmem>>, vector<1x1x8x8xf32>
    %84 = vector.shape_cast %83 : vector<1x1x8x8xf32> to vector<1x8x8xf32>
    %85 = vector.shape_cast %82 : vector<1x8x8xf32> to vector<1x1x8x8xf32>
    tpu.vector_store %arg25[%c0_60, %c1, %c0_61, %c0_62], %85 {strides = array<i32>} : memref<1x4x8x8xf32, #tpu.memory_space<vmem>>, vector<1x1x8x8xf32>,
    %cst_63 = arith.constant dense<0xFF800000> : vector<1x8xf32>
    %86 = vector.multi_reduction <maximumf>, %82, %cst_63 [2] : vector<1x8x8xf32> to vector<1x8xf32>
    %87 = vector.shape_cast %86 : vector<1x8xf32> to vector<1x8x1xf32>
    %88 = vector.broadcast %87 : vector<1x8x1xf32> to vector<1x8x8xf32>
    %89 = arith.subf %82, %88 : vector<1x8x8xf32>
    %90 = math.exp %89 : vector<1x8x8xf32>
    %cst_64 = arith.constant dense<0.000000e+00> : vector<1x8xf32>
    %91 = vector.multi_reduction <add>, %90, %cst_64 [2] : vector<1x8x8xf32> to vector<1x8xf32>
    %92 = vector.shape_cast %91 : vector<1x8xf32> to vector<1x8x1xf32>
    %93 = tpu.reciprocal %92 {approx = true} : vector<1x8x1xf32> -> vector<1x8x1xf32>
    %94 = arith.mulf %92, %93 : vector<1x8x1xf32>
    %cst_65 = arith.constant 2.000000e+00 : f32
    %95 = vector.broadcast %cst_65 : f32 to vector<1x8x1xf32>
    %96 = arith.subf %95, %94 : vector<1x8x1xf32>
    %97 = arith.mulf %93, %96 : vector<1x8x1xf32>
    %98 = vector.broadcast %97 : vector<1x8x1xf32> to vector<1x8x8xf32>
    %99 = arith.mulf %90, %98 : vector<1x8x8xf32>
    "tpu.trace_start"() <{level = 10 : i32, message = "bqk,bkd->bqd"}> : () -> ()
    %cst_66 = arith.constant dense<0.000000e+00> : vector<1x8x8xf32>
    %100 = tpu.matmul %99, %80, %cst_66 {dimension_numbers = #tpu.dot_dimension_numbers<[2], [1], [1], [2], [0, 0, 0, 1, 1, 2], [0], [0]>} : vector<1x8x8xf32>, vector<1x8x8xf32>, vector<1x8x8xf32> -> vector<1x8x8xf32>
    "tpu.trace_stop"() : () -> ()
    %101 = vector.shape_cast %100 : vector<1x8x8xf32> to vector<8x8xf32>
    %c0_67 = arith.constant 0 : index
    %c8 = arith.constant 8 : index
    %102 = vector.load %arg27[%c0_67, %c8] : memref<8x48xf32, #tpu.memory_space<vmem>>, vector<8x8xf32>
    tpu.vector_store %arg27[%c0_67, %c8], %101 {strides = array<i32>} : memref<8x48xf32, #tpu.memory_space<vmem>>, vector<8x8xf32>,
    %103 = vector.extract_strided_slice %17 {offsets = [0, 0, 16], sizes = [1, 8, 8], strides = [1, 1, 1]} : vector<1x8x32xf32> to vector<1x8x8xf32>
    %104 = vector.extract_strided_slice %23 {offsets = [0, 0, 16], sizes = [1, 8, 8], strides = [1, 1, 1]} : vector<1x8x32xf32> to vector<1x8x8xf32>
    %105 = vector.extract_strided_slice %29 {offsets = [0, 0, 16], sizes = [1, 8, 8], strides = [1, 1, 1]} : vector<1x8x32xf32> to vector<1x8x8xf32>
    "tpu.trace_start"() <{level = 10 : i32, message = "bqd,bkd->bqk"}> : () -> ()
    %cst_68 = arith.constant dense<0.000000e+00> : vector<1x8x8xf32>
    %106 = tpu.matmul %103, %104, %cst_68 {dimension_numbers = #tpu.dot_dimension_numbers<[2], [2], [1], [1], [0, 0, 0, 1, 1, 1], [0], [0]>} : vector<1x8x8xf32>, vector<1x8x8xf32>, vector<1x8x8xf32> -> vector<1x8x8xf32>
    "tpu.trace_stop"() : () -> ()
    %107 = arith.addf %106, %52 : vector<1x8x8xf32>
    %c0_69 = arith.constant 0 : index
    %c2 = arith.constant 2 : index
    %c0_70 = arith.constant 0 : index
    %c0_71 = arith.constant 0 : index
    %108 = vector.load %arg25[%c0_69, %c2, %c0_70, %c0_71] : memref<1x4x8x8xf32, #tpu.memory_space<vmem>>, vector<1x1x8x8xf32>
    %109 = vector.shape_cast %108 : vector<1x1x8x8xf32> to vector<1x8x8xf32>
    %110 = vector.shape_cast %107 : vector<1x8x8xf32> to vector<1x1x8x8xf32>
    tpu.vector_store %arg25[%c0_69, %c2, %c0_70, %c0_71], %110 {strides = array<i32>} : memref<1x4x8x8xf32, #tpu.memory_space<vmem>>, vector<1x1x8x8xf32>,
    %cst_72 = arith.constant dense<0xFF800000> : vector<1x8xf32>
    %111 = vector.multi_reduction <maximumf>, %107, %cst_72 [2] : vector<1x8x8xf32> to vector<1x8xf32>
    %112 = vector.shape_cast %111 : vector<1x8xf32> to vector<1x8x1xf32>
    %113 = vector.broadcast %112 : vector<1x8x1xf32> to vector<1x8x8xf32>
    %114 = arith.subf %107, %113 : vector<1x8x8xf32>
    %115 = math.exp %114 : vector<1x8x8xf32>
    %cst_73 = arith.constant dense<0.000000e+00> : vector<1x8xf32>
    %116 = vector.multi_reduction <add>, %115, %cst_73 [2] : vector<1x8x8xf32> to vector<1x8xf32>
    %117 = vector.shape_cast %116 : vector<1x8xf32> to vector<1x8x1xf32>
    %118 = tpu.reciprocal %117 {approx = true} : vector<1x8x1xf32> -> vector<1x8x1xf32>
    %119 = arith.mulf %117, %118 : vector<1x8x1xf32>
    %cst_74 = arith.constant 2.000000e+00 : f32
    %120 = vector.broadcast %cst_74 : f32 to vector<1x8x1xf32>
    %121 = arith.subf %120, %119 : vector<1x8x1xf32>
    %122 = arith.mulf %118, %121 : vector<1x8x1xf32>
    %123 = vector.broadcast %122 : vector<1x8x1xf32> to vector<1x8x8xf32>
    %124 = arith.mulf %115, %123 : vector<1x8x8xf32>
    "tpu.trace_start"() <{level = 10 : i32, message = "bqk,bkd->bqd"}> : () -> ()
    %cst_75 = arith.constant dense<0.000000e+00> : vector<1x8x8xf32>
    %125 = tpu.matmul %124, %105, %cst_75 {dimension_numbers = #tpu.dot_dimension_numbers<[2], [1], [1], [2], [0, 0, 0, 1, 1, 2], [0], [0]>} : vector<1x8x8xf32>, vector<1x8x8xf32>, vector<1x8x8xf32> -> vector<1x8x8xf32>
    "tpu.trace_stop"() : () -> ()
    %126 = vector.shape_cast %125 : vector<1x8x8xf32> to vector<8x8xf32>
    %c0_76 = arith.constant 0 : index
    %c16 = arith.constant 16 : index
    %127 = vector.load %arg27[%c0_76, %c16] : memref<8x48xf32, #tpu.memory_space<vmem>>, vector<8x8xf32>
    tpu.vector_store %arg27[%c0_76, %c16], %126 {strides = array<i32>} : memref<8x48xf32, #tpu.memory_space<vmem>>, vector<8x8xf32>,
    %128 = vector.extract_strided_slice %17 {offsets = [0, 0, 24], sizes = [1, 8, 8], strides = [1, 1, 1]} : vector<1x8x32xf32> to vector<1x8x8xf32>
    %129 = vector.extract_strided_slice %23 {offsets = [0, 0, 24], sizes = [1, 8, 8], strides = [1, 1, 1]} : vector<1x8x32xf32> to vector<1x8x8xf32>
    %130 = vector.extract_strided_slice %29 {offsets = [0, 0, 24], sizes = [1, 8, 8], strides = [1, 1, 1]} : vector<1x8x32xf32> to vector<1x8x8xf32>
    "tpu.trace_start"() <{level = 10 : i32, message = "bqd,bkd->bqk"}> : () -> ()
    %cst_77 = arith.constant dense<0.000000e+00> : vector<1x8x8xf32>
    %131 = tpu.matmul %128, %129, %cst_77 {dimension_numbers = #tpu.dot_dimension_numbers<[2], [2], [1], [1], [0, 0, 0, 1, 1, 1], [0], [0]>} : vector<1x8x8xf32>, vector<1x8x8xf32>, vector<1x8x8xf32> -> vector<1x8x8xf32>
    "tpu.trace_stop"() : () -> ()
    %132 = arith.addf %131, %52 : vector<1x8x8xf32>
    %c0_78 = arith.constant 0 : index
    %c3 = arith.constant 3 : index
    %c0_79 = arith.constant 0 : index
    %c0_80 = arith.constant 0 : index
    %133 = vector.load %arg25[%c0_78, %c3, %c0_79, %c0_80] : memref<1x4x8x8xf32, #tpu.memory_space<vmem>>, vector<1x1x8x8xf32>
    %134 = vector.shape_cast %133 : vector<1x1x8x8xf32> to vector<1x8x8xf32>
    %135 = vector.shape_cast %132 : vector<1x8x8xf32> to vector<1x1x8x8xf32>
    tpu.vector_store %arg25[%c0_78, %c3, %c0_79, %c0_80], %135 {strides = array<i32>} : memref<1x4x8x8xf32, #tpu.memory_space<vmem>>, vector<1x1x8x8xf32>,
    %cst_81 = arith.constant dense<0xFF800000> : vector<1x8xf32>
    %136 = vector.multi_reduction <maximumf>, %132, %cst_81 [2] : vector<1x8x8xf32> to vector<1x8xf32>
    %137 = vector.shape_cast %136 : vector<1x8xf32> to vector<1x8x1xf32>
    %138 = vector.broadcast %137 : vector<1x8x1xf32> to vector<1x8x8xf32>
    %139 = arith.subf %132, %138 : vector<1x8x8xf32>
    %140 = math.exp %139 : vector<1x8x8xf32>
    %cst_82 = arith.constant dense<0.000000e+00> : vector<1x8xf32>
    %141 = vector.multi_reduction <add>, %140, %cst_82 [2] : vector<1x8x8xf32> to vector<1x8xf32>
    %142 = vector.shape_cast %141 : vector<1x8xf32> to vector<1x8x1xf32>
    %143 = tpu.reciprocal %142 {approx = true} : vector<1x8x1xf32> -> vector<1x8x1xf32>
    %144 = arith.mulf %142, %143 : vector<1x8x1xf32>
    %cst_83 = arith.constant 2.000000e+00 : f32
    %145 = vector.broadcast %cst_83 : f32 to vector<1x8x1xf32>
    %146 = arith.subf %145, %144 : vector<1x8x1xf32>
    %147 = arith.mulf %143, %146 : vector<1x8x1xf32>
    %148 = vector.broadcast %147 : vector<1x8x1xf32> to vector<1x8x8xf32>
    %149 = arith.mulf %140, %148 : vector<1x8x8xf32>
    "tpu.trace_start"() <{level = 10 : i32, message = "bqk,bkd->bqd"}> : () -> ()
    %cst_84 = arith.constant dense<0.000000e+00> : vector<1x8x8xf32>
    %150 = tpu.matmul %149, %130, %cst_84 {dimension_numbers = #tpu.dot_dimension_numbers<[2], [1], [1], [2], [0, 0, 0, 1, 1, 2], [0], [0]>} : vector<1x8x8xf32>, vector<1x8x8xf32>, vector<1x8x8xf32> -> vector<1x8x8xf32>
    "tpu.trace_stop"() : () -> ()
    %151 = vector.shape_cast %150 : vector<1x8x8xf32> to vector<8x8xf32>
    %c0_85 = arith.constant 0 : index
    %c24 = arith.constant 24 : index
    %152 = vector.load %arg27[%c0_85, %c24] : memref<8x48xf32, #tpu.memory_space<vmem>>, vector<8x8xf32>
    tpu.vector_store %arg27[%c0_85, %c24], %151 {strides = array<i32>} : memref<8x48xf32, #tpu.memory_space<vmem>>, vector<8x8xf32>,
    %c0_86 = arith.constant 0 : index
    %c0_87 = arith.constant 0 : index
    %c0_88 = arith.constant 0 : index
    %153 = vector.load %arg7[%c0_86, %c0_87, %c0_88] : memref<1x1x8xf32, #tpu.memory_space<vmem>>, vector<1x1x8xf32>
    %154 = vector.shape_cast %153 : vector<1x1x8xf32> to vector<1x1x8xf32>
    %155 = vector.broadcast %154 : vector<1x1x8xf32> to vector<1x8x8xf32>
    %156 = vector.extract_strided_slice %37 {offsets = [0, 0, 0], sizes = [1, 8, 4], strides = [1, 1, 1]} : vector<1x8x16xf32> to vector<1x8x4xf32>
    %157 = vector.extract_strided_slice %43 {offsets = [0, 0, 0], sizes = [1, 8, 4], strides = [1, 1, 1]} : vector<1x8x16xf32> to vector<1x8x4xf32>
    %158 = vector.extract_strided_slice %49 {offsets = [0, 0, 0], sizes = [1, 8, 4], strides = [1, 1, 1]} : vector<1x8x16xf32> to vector<1x8x4xf32>
    "tpu.trace_start"() <{level = 10 : i32, message = "bqd,bkd->bqk"}> : () -> ()
    %cst_89 = arith.constant dense<0.000000e+00> : vector<1x8x8xf32>
    %159 = tpu.matmul %156, %157, %cst_89 {dimension_numbers = #tpu.dot_dimension_numbers<[2], [2], [1], [1], [0, 0, 0, 1, 1, 1], [0], [0]>} : vector<1x8x4xf32>, vector<1x8x4xf32>, vector<1x8x8xf32> -> vector<1x8x8xf32>
    "tpu.trace_stop"() : () -> ()
    %160 = arith.addf %159, %155 : vector<1x8x8xf32>
    %c0_90 = arith.constant 0 : index
    %c0_91 = arith.constant 0 : index
    %c0_92 = arith.constant 0 : index
    %c0_93 = arith.constant 0 : index
    %161 = vector.load %arg26[%c0_90, %c0_91, %c0_92, %c0_93] : memref<1x4x8x8xf32, #tpu.memory_space<vmem>>, vector<1x1x8x8xf32>
    %162 = vector.shape_cast %161 : vector<1x1x8x8xf32> to vector<1x8x8xf32>
    %163 = vector.shape_cast %160 : vector<1x8x8xf32> to vector<1x1x8x8xf32>
    tpu.vector_store %arg26[%c0_90, %c0_91, %c0_92, %c0_93], %163 {strides = array<i32>} : memref<1x4x8x8xf32, #tpu.memory_space<vmem>>, vector<1x1x8x8xf32>,
    %cst_94 = arith.constant dense<0xFF800000> : vector<1x8xf32>
    %164 = vector.multi_reduction <maximumf>, %160, %cst_94 [2] : vector<1x8x8xf32> to vector<1x8xf32>
    %165 = vector.shape_cast %164 : vector<1x8xf32> to vector<1x8x1xf32>
    %166 = vector.broadcast %165 : vector<1x8x1xf32> to vector<1x8x8xf32>
    %167 = arith.subf %160, %166 : vector<1x8x8xf32>
    %168 = math.exp %167 : vector<1x8x8xf32>
    %cst_95 = arith.constant dense<0.000000e+00> : vector<1x8xf32>
    %169 = vector.multi_reduction <add>, %168, %cst_95 [2] : vector<1x8x8xf32> to vector<1x8xf32>
    %170 = vector.shape_cast %169 : vector<1x8xf32> to vector<1x8x1xf32>
    %171 = tpu.reciprocal %170 {approx = true} : vector<1x8x1xf32> -> vector<1x8x1xf32>
    %172 = arith.mulf %170, %171 : vector<1x8x1xf32>
    %cst_96 = arith.constant 2.000000e+00 : f32
    %173 = vector.broadcast %cst_96 : f32 to vector<1x8x1xf32>
    %174 = arith.subf %173, %172 : vector<1x8x1xf32>
    %175 = arith.mulf %171, %174 : vector<1x8x1xf32>
    %176 = vector.broadcast %175 : vector<1x8x1xf32> to vector<1x8x8xf32>
    %177 = arith.mulf %168, %176 : vector<1x8x8xf32>
    "tpu.trace_start"() <{level = 10 : i32, message = "bqk,bkd->bqd"}> : () -> ()
    %cst_97 = arith.constant dense<0.000000e+00> : vector<1x8x4xf32>
    %178 = tpu.matmul %177, %158, %cst_97 {dimension_numbers = #tpu.dot_dimension_numbers<[2], [1], [1], [2], [0, 0, 0, 1, 1, 2], [0], [0]>} : vector<1x8x8xf32>, vector<1x8x4xf32>, vector<1x8x4xf32> -> vector<1x8x4xf32>
    "tpu.trace_stop"() : () -> ()
    %179 = vector.shape_cast %178 : vector<1x8x4xf32> to vector<8x4xf32>
    %c0_98 = arith.constant 0 : index
    %c32 = arith.constant 32 : index
    %180 = vector.load %arg27[%c0_98, %c32] : memref<8x48xf32, #tpu.memory_space<vmem>>, vector<8x4xf32>
    tpu.vector_store %arg27[%c0_98, %c32], %179 {strides = array<i32>} : memref<8x48xf32, #tpu.memory_space<vmem>>, vector<8x4xf32>,
    %181 = vector.extract_strided_slice %37 {offsets = [0, 0, 4], sizes = [1, 8, 4], strides = [1, 1, 1]} : vector<1x8x16xf32> to vector<1x8x4xf32>
    %182 = vector.extract_strided_slice %43 {offsets = [0, 0, 4], sizes = [1, 8, 4], strides = [1, 1, 1]} : vector<1x8x16xf32> to vector<1x8x4xf32>
    %183 = vector.extract_strided_slice %49 {offsets = [0, 0, 4], sizes = [1, 8, 4], strides = [1, 1, 1]} : vector<1x8x16xf32> to vector<1x8x4xf32>
    "tpu.trace_start"() <{level = 10 : i32, message = "bqd,bkd->bqk"}> : () -> ()
    %cst_99 = arith.constant dense<0.000000e+00> : vector<1x8x8xf32>
    %184 = tpu.matmul %181, %182, %cst_99 {dimension_numbers = #tpu.dot_dimension_numbers<[2], [2], [1], [1], [0, 0, 0, 1, 1, 1], [0], [0]>} : vector<1x8x4xf32>, vector<1x8x4xf32>, vector<1x8x8xf32> -> vector<1x8x8xf32>
    "tpu.trace_stop"() : () -> ()
    %185 = arith.addf %184, %155 : vector<1x8x8xf32>
    %c0_100 = arith.constant 0 : index
    %c1_101 = arith.constant 1 : index
    %c0_102 = arith.constant 0 : index
    %c0_103 = arith.constant 0 : index
    %186 = vector.load %arg26[%c0_100, %c1_101, %c0_102, %c0_103] : memref<1x4x8x8xf32, #tpu.memory_space<vmem>>, vector<1x1x8x8xf32>
    %187 = vector.shape_cast %186 : vector<1x1x8x8xf32> to vector<1x8x8xf32>
    %188 = vector.shape_cast %185 : vector<1x8x8xf32> to vector<1x1x8x8xf32>
    tpu.vector_store %arg26[%c0_100, %c1_101, %c0_102, %c0_103], %188 {strides = array<i32>} : memref<1x4x8x8xf32, #tpu.memory_space<vmem>>, vector<1x1x8x8xf32>,
    %cst_104 = arith.constant dense<0xFF800000> : vector<1x8xf32>
    %189 = vector.multi_reduction <maximumf>, %185, %cst_104 [2] : vector<1x8x8xf32> to vector<1x8xf32>
    %190 = vector.shape_cast %189 : vector<1x8xf32> to vector<1x8x1xf32>
    %191 = vector.broadcast %190 : vector<1x8x1xf32> to vector<1x8x8xf32>
    %192 = arith.subf %185, %191 : vector<1x8x8xf32>
    %193 = math.exp %192 : vector<1x8x8xf32>
    %cst_105 = arith.constant dense<0.000000e+00> : vector<1x8xf32>
    %194 = vector.multi_reduction <add>, %193, %cst_105 [2] : vector<1x8x8xf32> to vector<1x8xf32>
    %195 = vector.shape_cast %194 : vector<1x8xf32> to vector<1x8x1xf32>
    %196 = tpu.reciprocal %195 {approx = true} : vector<1x8x1xf32> -> vector<1x8x1xf32>
    %197 = arith.mulf %195, %196 : vector<1x8x1xf32>
    %cst_106 = arith.constant 2.000000e+00 : f32
    %198 = vector.broadcast %cst_106 : f32 to vector<1x8x1xf32>
    %199 = arith.subf %198, %197 : vector<1x8x1xf32>
    %200 = arith.mulf %196, %199 : vector<1x8x1xf32>
    %201 = vector.broadcast %200 : vector<1x8x1xf32> to vector<1x8x8xf32>
    %202 = arith.mulf %193, %201 : vector<1x8x8xf32>
    "tpu.trace_start"() <{level = 10 : i32, message = "bqk,bkd->bqd"}> : () -> ()
    %cst_107 = arith.constant dense<0.000000e+00> : vector<1x8x4xf32>
    %203 = tpu.matmul %202, %183, %cst_107 {dimension_numbers = #tpu.dot_dimension_numbers<[2], [1], [1], [2], [0, 0, 0, 1, 1, 2], [0], [0]>} : vector<1x8x8xf32>, vector<1x8x4xf32>, vector<1x8x4xf32> -> vector<1x8x4xf32>
    "tpu.trace_stop"() : () -> ()
    %204 = vector.shape_cast %203 : vector<1x8x4xf32> to vector<8x4xf32>
    %c0_108 = arith.constant 0 : index
    %c36 = arith.constant 36 : index
    %205 = vector.load %arg27[%c0_108, %c36] : memref<8x48xf32, #tpu.memory_space<vmem>>, vector<8x4xf32>
    tpu.vector_store %arg27[%c0_108, %c36], %204 {strides = array<i32>} : memref<8x48xf32, #tpu.memory_space<vmem>>, vector<8x4xf32>,
    %206 = vector.extract_strided_slice %37 {offsets = [0, 0, 8], sizes = [1, 8, 4], strides = [1, 1, 1]} : vector<1x8x16xf32> to vector<1x8x4xf32>
    %207 = vector.extract_strided_slice %43 {offsets = [0, 0, 8], sizes = [1, 8, 4], strides = [1, 1, 1]} : vector<1x8x16xf32> to vector<1x8x4xf32>
    %208 = vector.extract_strided_slice %49 {offsets = [0, 0, 8], sizes = [1, 8, 4], strides = [1, 1, 1]} : vector<1x8x16xf32> to vector<1x8x4xf32>
    "tpu.trace_start"() <{level = 10 : i32, message = "bqd,bkd->bqk"}> : () -> ()
    %cst_109 = arith.constant dense<0.000000e+00> : vector<1x8x8xf32>
    %209 = tpu.matmul %206, %207, %cst_109 {dimension_numbers = #tpu.dot_dimension_numbers<[2], [2], [1], [1], [0, 0, 0, 1, 1, 1], [0], [0]>} : vector<1x8x4xf32>, vector<1x8x4xf32>, vector<1x8x8xf32> -> vector<1x8x8xf32>
    "tpu.trace_stop"() : () -> ()
    %210 = arith.addf %209, %155 : vector<1x8x8xf32>
    %c0_110 = arith.constant 0 : index
    %c2_111 = arith.constant 2 : index
    %c0_112 = arith.constant 0 : index
    %c0_113 = arith.constant 0 : index
    %211 = vector.load %arg26[%c0_110, %c2_111, %c0_112, %c0_113] : memref<1x4x8x8xf32, #tpu.memory_space<vmem>>, vector<1x1x8x8xf32>
    %212 = vector.shape_cast %211 : vector<1x1x8x8xf32> to vector<1x8x8xf32>
    %213 = vector.shape_cast %210 : vector<1x8x8xf32> to vector<1x1x8x8xf32>
    tpu.vector_store %arg26[%c0_110, %c2_111, %c0_112, %c0_113], %213 {strides = array<i32>} : memref<1x4x8x8xf32, #tpu.memory_space<vmem>>, vector<1x1x8x8xf32>,
    %cst_114 = arith.constant dense<0xFF800000> : vector<1x8xf32>
    %214 = vector.multi_reduction <maximumf>, %210, %cst_114 [2] : vector<1x8x8xf32> to vector<1x8xf32>
    %215 = vector.shape_cast %214 : vector<1x8xf32> to vector<1x8x1xf32>
    %216 = vector.broadcast %215 : vector<1x8x1xf32> to vector<1x8x8xf32>
    %217 = arith.subf %210, %216 : vector<1x8x8xf32>
    %218 = math.exp %217 : vector<1x8x8xf32>
    %cst_115 = arith.constant dense<0.000000e+00> : vector<1x8xf32>
    %219 = vector.multi_reduction <add>, %218, %cst_115 [2] : vector<1x8x8xf32> to vector<1x8xf32>
    %220 = vector.shape_cast %219 : vector<1x8xf32> to vector<1x8x1xf32>
    %221 = tpu.reciprocal %220 {approx = true} : vector<1x8x1xf32> -> vector<1x8x1xf32>
    %222 = arith.mulf %220, %221 : vector<1x8x1xf32>
    %cst_116 = arith.constant 2.000000e+00 : f32
    %223 = vector.broadcast %cst_116 : f32 to vector<1x8x1xf32>
    %224 = arith.subf %223, %222 : vector<1x8x1xf32>
    %225 = arith.mulf %221, %224 : vector<1x8x1xf32>
    %226 = vector.broadcast %225 : vector<1x8x1xf32> to vector<1x8x8xf32>
    %227 = arith.mulf %218, %226 : vector<1x8x8xf32>
    "tpu.trace_start"() <{level = 10 : i32, message = "bqk,bkd->bqd"}> : () -> ()
    %cst_117 = arith.constant dense<0.000000e+00> : vector<1x8x4xf32>
    %228 = tpu.matmul %227, %208, %cst_117 {dimension_numbers = #tpu.dot_dimension_numbers<[2], [1], [1], [2], [0, 0, 0, 1, 1, 2], [0], [0]>} : vector<1x8x8xf32>, vector<1x8x4xf32>, vector<1x8x4xf32> -> vector<1x8x4xf32>
    "tpu.trace_stop"() : () -> ()
    %229 = vector.shape_cast %228 : vector<1x8x4xf32> to vector<8x4xf32>
    %c0_118 = arith.constant 0 : index
    %c40 = arith.constant 40 : index
    %230 = vector.load %arg27[%c0_118, %c40] : memref<8x48xf32, #tpu.memory_space<vmem>>, vector<8x4xf32>
    tpu.vector_store %arg27[%c0_118, %c40], %229 {strides = array<i32>} : memref<8x48xf32, #tpu.memory_space<vmem>>, vector<8x4xf32>,
    %231 = vector.extract_strided_slice %37 {offsets = [0, 0, 12], sizes = [1, 8, 4], strides = [1, 1, 1]} : vector<1x8x16xf32> to vector<1x8x4xf32>
    %232 = vector.extract_strided_slice %43 {offsets = [0, 0, 12], sizes = [1, 8, 4], strides = [1, 1, 1]} : vector<1x8x16xf32> to vector<1x8x4xf32>
    %233 = vector.extract_strided_slice %49 {offsets = [0, 0, 12], sizes = [1, 8, 4], strides = [1, 1, 1]} : vector<1x8x16xf32> to vector<1x8x4xf32>
    "tpu.trace_start"() <{level = 10 : i32, message = "bqd,bkd->bqk"}> : () -> ()
    %cst_119 = arith.constant dense<0.000000e+00> : vector<1x8x8xf32>
    %234 = tpu.matmul %231, %232, %cst_119 {dimension_numbers = #tpu.dot_dimension_numbers<[2], [2], [1], [1], [0, 0, 0, 1, 1, 1], [0], [0]>} : vector<1x8x4xf32>, vector<1x8x4xf32>, vector<1x8x8xf32> -> vector<1x8x8xf32>
    "tpu.trace_stop"() : () -> ()
    %235 = arith.addf %234, %155 : vector<1x8x8xf32>
    %c0_120 = arith.constant 0 : index
    %c3_121 = arith.constant 3 : index
    %c0_122 = arith.constant 0 : index
    %c0_123 = arith.constant 0 : index
    %236 = vector.load %arg26[%c0_120, %c3_121, %c0_122, %c0_123] : memref<1x4x8x8xf32, #tpu.memory_space<vmem>>, vector<1x1x8x8xf32>
    %237 = vector.shape_cast %236 : vector<1x1x8x8xf32> to vector<1x8x8xf32>
    %238 = vector.shape_cast %235 : vector<1x8x8xf32> to vector<1x1x8x8xf32>
    tpu.vector_store %arg26[%c0_120, %c3_121, %c0_122, %c0_123], %238 {strides = array<i32>} : memref<1x4x8x8xf32, #tpu.memory_space<vmem>>, vector<1x1x8x8xf32>,
    %cst_124 = arith.constant dense<0xFF800000> : vector<1x8xf32>
    %239 = vector.multi_reduction <maximumf>, %235, %cst_124 [2] : vector<1x8x8xf32> to vector<1x8xf32>
    %240 = vector.shape_cast %239 : vector<1x8xf32> to vector<1x8x1xf32>
    %241 = vector.broadcast %240 : vector<1x8x1xf32> to vector<1x8x8xf32>
    %242 = arith.subf %235, %241 : vector<1x8x8xf32>
    %243 = math.exp %242 : vector<1x8x8xf32>
    %cst_125 = arith.constant dense<0.000000e+00> : vector<1x8xf32>
    %244 = vector.multi_reduction <add>, %243, %cst_125 [2] : vector<1x8x8xf32> to vector<1x8xf32>
    %245 = vector.shape_cast %244 : vector<1x8xf32> to vector<1x8x1xf32>
    %246 = tpu.reciprocal %245 {approx = true} : vector<1x8x1xf32> -> vector<1x8x1xf32>
    %247 = arith.mulf %245, %246 : vector<1x8x1xf32>
    %cst_126 = arith.constant 2.000000e+00 : f32
    %248 = vector.broadcast %cst_126 : f32 to vector<1x8x1xf32>
    %249 = arith.subf %248, %247 : vector<1x8x1xf32>
    %250 = arith.mulf %246, %249 : vector<1x8x1xf32>
    %251 = vector.broadcast %250 : vector<1x8x1xf32> to vector<1x8x8xf32>
    %252 = arith.mulf %243, %251 : vector<1x8x8xf32>
    "tpu.trace_start"() <{level = 10 : i32, message = "bqk,bkd->bqd"}> : () -> ()
    %cst_127 = arith.constant dense<0.000000e+00> : vector<1x8x4xf32>
    %253 = tpu.matmul %252, %233, %cst_127 {dimension_numbers = #tpu.dot_dimension_numbers<[2], [1], [1], [2], [0, 0, 0, 1, 1, 2], [0], [0]>} : vector<1x8x8xf32>, vector<1x8x4xf32>, vector<1x8x4xf32> -> vector<1x8x4xf32>
    "tpu.trace_stop"() : () -> ()
    %254 = vector.shape_cast %253 : vector<1x8x4xf32> to vector<8x4xf32>
    %c0_128 = arith.constant 0 : index
    %c44 = arith.constant 44 : index
    %255 = vector.load %arg27[%c0_128, %c44] : memref<8x48xf32, #tpu.memory_space<vmem>>, vector<8x4xf32>
    tpu.vector_store %arg27[%c0_128, %c44], %254 {strides = array<i32>} : memref<8x48xf32, #tpu.memory_space<vmem>>, vector<8x4xf32>,
    %c0_129 = arith.constant 0 : index
    %c0_130 = arith.constant 0 : index
    %256 = vector.load %arg27[%c0_129, %c0_130] : memref<8x48xf32, #tpu.memory_space<vmem>>, vector<8x48xf32>
    %c0_131 = arith.constant 0 : index
    %c0_132 = arith.constant 0 : index
    %257 = vector.load %arg20[%c0_131, %c0_132] : memref<48x32xf32, #tpu.memory_space<vmem>>, vector<48x32xf32>
    %cst_133 = arith.constant dense<0.000000e+00> : vector<8x32xf32>
    %258 = tpu.matmul %256, %257, %cst_133 {dimension_numbers = #tpu.dot_dimension_numbers<[1], [0], [0], [1], [0, 0, 1, 1], [], []>} : vector<8x48xf32>, vector<48x32xf32>, vector<8x32xf32> -> vector<8x32xf32>
    %c0_134 = arith.constant 0 : index
    %c0_135 = arith.constant 0 : index
    %259 = vector.load %arg21[%c0_134, %c0_135] : memref<1x32xf32, #tpu.memory_space<vmem>>, vector<1x32xf32>
    %260 = vector.broadcast %259 : vector<1x32xf32> to vector<8x32xf32>
    %261 = arith.addf %258, %260 : vector<8x32xf32>
    %262 = arith.addf %261, %1 : vector<8x32xf32>
    %cst_136 = arith.constant dense<0.000000e+00> : vector<8xf32>
    %263 = vector.multi_reduction <add>, %262, %cst_136 [1] : vector<8x32xf32> to vector<8xf32>
    %264 = vector.shape_cast %263 : vector<8xf32> to vector<8x1xf32>
    %cst_137 = arith.constant 3.200000e+01 : f32
    %265 = vector.broadcast %cst_137 : f32 to vector<8x1xf32>
    %266 = arith.divf %264, %265 : vector<8x1xf32>
    %267 = vector.broadcast %266 : vector<8x1xf32> to vector<8x32xf32>
    %268 = arith.subf %262, %267 : vector<8x32xf32>
    %269 = arith.mulf %268, %268 : vector<8x32xf32>
    %cst_138 = arith.constant dense<0.000000e+00> : vector<8xf32>
    %270 = vector.multi_reduction <add>, %269, %cst_138 [1] : vector<8x32xf32> to vector<8xf32>
    %271 = vector.shape_cast %270 : vector<8xf32> to vector<8x1xf32>
    %cst_139 = arith.constant 3.200000e+01 : f32
    %272 = vector.broadcast %cst_139 : f32 to vector<8x1xf32>
    %273 = arith.divf %271, %272 : vector<8x1xf32>
    %274 = vector.broadcast %266 : vector<8x1xf32> to vector<8x32xf32>
    %275 = arith.subf %262, %274 : vector<8x32xf32>
    %cst_140 = arith.constant 9.99999996E-13 : f32
    %276 = vector.broadcast %cst_140 : f32 to vector<8x1xf32>
    %277 = arith.addf %273, %276 : vector<8x1xf32>
    %278 = math.rsqrt %277 : vector<8x1xf32>
    %279 = vector.broadcast %278 : vector<8x1xf32> to vector<8x32xf32>
    %280 = arith.mulf %275, %279 : vector<8x32xf32>
    %c0_141 = arith.constant 0 : index
    %c0_142 = arith.constant 0 : index
    %281 = vector.load %arg22[%c0_141, %c0_142] : memref<1x32xf32, #tpu.memory_space<vmem>>, vector<1x32xf32>
    %282 = vector.broadcast %281 : vector<1x32xf32> to vector<8x32xf32>
    %283 = arith.mulf %280, %282 : vector<8x32xf32>
    %c0_143 = arith.constant 0 : index
    %c0_144 = arith.constant 0 : index
    %284 = vector.load %arg23[%c0_143, %c0_144] : memref<1x32xf32, #tpu.memory_space<vmem>>, vector<1x32xf32>
    %285 = vector.broadcast %284 : vector<1x32xf32> to vector<8x32xf32>
    %286 = arith.addf %283, %285 : vector<8x32xf32>
    %287 = vector.shape_cast %286 : vector<8x32xf32> to vector<1x8x32xf32>
    %c0_145 = arith.constant 0 : index
    %c0_146 = arith.constant 0 : index
    %c0_147 = arith.constant 0 : index
    %288 = vector.load %arg24[%c0_145, %c0_146, %c0_147] : memref<1x8x32xf32, #tpu.memory_space<vmem>>, vector<1x8x32xf32>
    tpu.vector_store %arg24[%c0_145, %c0_146, %c0_147], %287 {strides = array<i32>} : memref<1x8x32xf32, #tpu.memory_space<vmem>>, vector<1x8x32xf32>,
    return
  }
  func.func @transform_0(%arg0: i32) -> (i32, i32, i32) {
    %c0_i32 = arith.constant 0 : i32
    %c0_i32_0 = arith.constant 0 : i32
    %c0_i32_1 = arith.constant 0 : i32
    return %arg0, %c0_i32, %c0_i32_0 : i32, i32, i32
  }
  func.func @transform_1(%arg0: i32) -> (i32, i32, i32) {
    %c0_i32 = arith.constant 0 : i32
    %c0_i32_0 = arith.constant 0 : i32
    %c0_i32_1 = arith.constant 0 : i32
    return %arg0, %c0_i32, %c0_i32_0 : i32, i32, i32
  }
  func.func @transform_2(%arg0: i32) -> (i32, i32, i32) {
    %c0_i32 = arith.constant 0 : i32
    %c0_i32_0 = arith.constant 0 : i32
    %c0_i32_1 = arith.constant 0 : i32
    return %arg0, %c0_i32, %c0_i32_0 : i32, i32, i32
  }
  func.func @transform_3(%arg0: i32) -> (i32, i32, i32) {
    %c0_i32 = arith.constant 0 : i32
    %c0_i32_0 = arith.constant 0 : i32
    %c0_i32_1 = arith.constant 0 : i32
    return %arg0, %c0_i32, %c0_i32_0 : i32, i32, i32
  }
  func.func @transform_4(%arg0: i32) -> (i32, i32, i32) {
    %c0_i32 = arith.constant 0 : i32
    %c0_i32_0 = arith.constant 0 : i32
    %c0_i32_1 = arith.constant 0 : i32
    return %arg0, %c0_i32, %c0_i32_0 : i32, i32, i32
  }
  func.func @transform_5(%arg0: i32) -> (i32, i32, i32) {
    %c0_i32 = arith.constant 0 : i32
    %c0_i32_0 = arith.constant 0 : i32
    %c0_i32_1 = arith.constant 0 : i32
    return %arg0, %c0_i32, %c0_i32_0 : i32, i32, i32
  }
  func.func @transform_6(%arg0: i32) -> (i32, i32, i32) {
    %c0_i32 = arith.constant 0 : i32
    %c0_i32_0 = arith.constant 0 : i32
    %c0_i32_1 = arith.constant 0 : i32
    return %arg0, %c0_i32, %c0_i32_0 : i32, i32, i32
  }
  func.func @transform_7(%arg0: i32) -> (i32, i32) {
    %c0_i32 = arith.constant 0 : i32
    %c0_i32_0 = arith.constant 0 : i32
    %c0_i32_1 = arith.constant 0 : i32
    return %c0_i32, %c0_i32_0 : i32, i32
  }
  func.func @transform_8(%arg0: i32) -> (i32, i32) {
    %c0_i32 = arith.constant 0 : i32
    %c0_i32_0 = arith.constant 0 : i32
    %c0_i32_1 = arith.constant 0 : i32
    return %c0_i32, %c0_i32_0 : i32, i32
  }
  func.func @transform_9(%arg0: i32) -> (i32, i32) {
    %c0_i32 = arith.constant 0 : i32
    %c0_i32_0 = arith.constant 0 : i32
    %c0_i32_1 = arith.constant 0 : i32
    return %c0_i32, %c0_i32_0 : i32, i32
  }
  func.func @transform_10(%arg0: i32) -> (i32, i32) {
    %c0_i32 = arith.constant 0 : i32
    %c0_i32_0 = arith.constant 0 : i32
    %c0_i32_1 = arith.constant 0 : i32
    return %c0_i32, %c0_i32_0 : i32, i32
  }
  func.func @transform_11(%arg0: i32) -> (i32, i32) {
    %c0_i32 = arith.constant 0 : i32
    %c0_i32_0 = arith.constant 0 : i32
    %c0_i32_1 = arith.constant 0 : i32
    return %c0_i32, %c0_i32_0 : i32, i32
  }
  func.func @transform_12(%arg0: i32) -> (i32, i32) {
    %c0_i32 = arith.constant 0 : i32
    %c0_i32_0 = arith.constant 0 : i32
    %c0_i32_1 = arith.constant 0 : i32
    return %c0_i32, %c0_i32_0 : i32, i32
  }
  func.func @transform_13(%arg0: i32) -> (i32, i32) {
    %c0_i32 = arith.constant 0 : i32
    %c0_i32_0 = arith.constant 0 : i32
    %c0_i32_1 = arith.constant 0 : i32
    return %c0_i32, %c0_i32_0 : i32, i32
  }
  func.func @transform_14(%arg0: i32) -> (i32, i32) {
    %c0_i32 = arith.constant 0 : i32
    %c0_i32_0 = arith.constant 0 : i32
    %c0_i32_1 = arith.constant 0 : i32
    return %c0_i32, %c0_i32_0 : i32, i32
  }
  func.func @transform_15(%arg0: i32) -> (i32, i32) {
    %c0_i32 = arith.constant 0 : i32
    %c0_i32_0 = arith.constant 0 : i32
    %c0_i32_1 = arith.constant 0 : i32
    return %c0_i32, %c0_i32_0 : i32, i32
  }
  func.func @transform_16(%arg0: i32) -> (i32, i32) {
    %c0_i32 = arith.constant 0 : i32
    %c0_i32_0 = arith.constant 0 : i32
    %c0_i32_1 = arith.constant 0 : i32
    return %c0_i32, %c0_i32_0 : i32, i32
  }
  func.func @transform_17(%arg0: i32) -> (i32, i32) {
    %c0_i32 = arith.constant 0 : i32
    %c0_i32_0 = arith.constant 0 : i32
    %c0_i32_1 = arith.constant 0 : i32
    return %c0_i32, %c0_i32_0 : i32, i32
  }
  func.func @transform_18(%arg0: i32) -> (i32, i32) {
    %c0_i32 = arith.constant 0 : i32
    %c0_i32_0 = arith.constant 0 : i32
    %c0_i32_1 = arith.constant 0 : i32
    return %c0_i32, %c0_i32_0 : i32, i32
  }
  func.func @transform_19(%arg0: i32) -> (i32, i32) {
    %c0_i32 = arith.constant 0 : i32
    %c0_i32_0 = arith.constant 0 : i32
    %c0_i32_1 = arith.constant 0 : i32
    return %c0_i32, %c0_i32_0 : i32, i32
  }
  func.func @transform_20(%arg0: i32) -> (i32, i32) {
    %c0_i32 = arith.constant 0 : i32
    %c0_i32_0 = arith.constant 0 : i32
    %c0_i32_1 = arith.constant 0 : i32
    return %c0_i32, %c0_i32_0 : i32, i32
  }
  func.func @transform_21(%arg0: i32) -> (i32, i32) {
    %c0_i32 = arith.constant 0 : i32
    %c0_i32_0 = arith.constant 0 : i32
    %c0_i32_1 = arith.constant 0 : i32
    return %c0_i32, %c0_i32_0 : i32, i32
  }
  func.func @transform_22(%arg0: i32) -> (i32, i32) {
    %c0_i32 = arith.constant 0 : i32
    %c0_i32_0 = arith.constant 0 : i32
    %c0_i32_1 = arith.constant 0 : i32
    return %c0_i32, %c0_i32_0 : i32, i32
  }
  func.func @transform_23(%arg0: i32) -> (i32, i32, i32) {
    %c0_i32 = arith.constant 0 : i32
    %c0_i32_0 = arith.constant 0 : i32
    %c0_i32_1 = arith.constant 0 : i32
    return %arg0, %c0_i32, %c0_i32_0 : i32, i32, i32
  }
  func.func @transform_24(%arg0: i32) -> (i32, i32, i32, i32) {
    %c0_i32 = arith.constant 0 : i32
    %c0_i32_0 = arith.constant 0 : i32
    %c0_i32_1 = arith.constant 0 : i32
    %c0_i32_2 = arith.constant 0 : i32
    return %arg0, %c0_i32, %c0_i32_0, %c0_i32_1 : i32, i32, i32, i32
  }
  func.func @transform_25(%arg0: i32) -> (i32, i32, i32, i32) {
    %c0_i32 = arith.constant 0 : i32
    %c0_i32_0 = arith.constant 0 : i32
    %c0_i32_1 = arith.constant 0 : i32
    %c0_i32_2 = arith.constant 0 : i32
    return %arg0, %c0_i32, %c0_i32_0, %c0_i32_1 : i32, i32, i32, i32
  }
}

module attributes {stable_mosaic.version = 11 : i64} {
  func.func @kernel(%arg0: i32, %arg1: memref<1x8x32xf32, #tpu.memory_space<vmem>>, %arg2: memref<1x8x32xf32, #tpu.memory_space<vmem>>, %arg3: memref<1x8x32xf32, #tpu.memory_space<vmem>>, %arg4: memref<1x8x16xf32, #tpu.memory_space<vmem>>, %arg5: memref<1x8x16xf32, #tpu.memory_space<vmem>>, %arg6: memref<1x1x8xf32, #tpu.memory_space<vmem>>, %arg7: memref<1x1x8xf32, #tpu.memory_space<vmem>>, %arg8: memref<32x32xf32, #tpu.memory_space<vmem>>, %arg9: memref<1x32xf32, #tpu.memory_space<vmem>>, %arg10: memref<32x32xf32, #tpu.memory_space<vmem>>, %arg11: memref<1x32xf32, #tpu.memory_space<vmem>>, %arg12: memref<32x32xf32, #tpu.memory_space<vmem>>, %arg13: memref<1x32xf32, #tpu.memory_space<vmem>>, %arg14: memref<32x16xf32, #tpu.memory_space<vmem>>, %arg15: memref<1x16xf32, #tpu.memory_space<vmem>>, %arg16: memref<16x16xf32, #tpu.memory_space<vmem>>, %arg17: memref<1x16xf32, #tpu.memory_space<vmem>>, %arg18: memref<16x16xf32, #tpu.memory_space<vmem>>, %arg19: memref<1x16xf32, #tpu.memory_space<vmem>>, %arg20: memref<48x32xf32, #tpu.memory_space<vmem>>, %arg21: memref<1x32xf32, #tpu.memory_space<vmem>>, %arg22: memref<1x32xf32, #tpu.memory_space<vmem>>, %arg23: memref<1x32xf32, #tpu.memory_space<vmem>>, %arg24: memref<1x8x32xf32, #tpu.memory_space<vmem>>, %arg25: memref<1x4x8x8xf32, #tpu.memory_space<vmem>>, %arg26: memref<1x4x8x8xf32, #tpu.memory_space<vmem>>, %arg27: memref<8x48xf32, #tpu.memory_space<vmem>>) attributes {dimension_semantics = [#tpu.dimension_semantics<parallel>], iteration_bounds = array<i64: 2>, scalar_prefetch = 0 : i64, scratch_operands = 1 : i64, tpu.core_type = #tpu.core_type<tc>, window_params = [{transform_indices = @transform_0, window_bounds = array<i64: 1, 8, 32>}, {transform_indices = @transform_1, window_bounds = array<i64: 1, 8, 32>}, {transform_indices = @transform_2, window_bounds = array<i64: 1, 8, 32>}, {transform_indices = @transform_3, window_bounds = array<i64: 1, 8, 16>}, {transform_indices = @transform_4, window_bounds = array<i64: 1, 8, 16>}, {transform_indices = @transform_5, window_bounds = array<i64: 1, 1, 8>}, {transform_indices = @transform_6, window_bounds = array<i64: 1, 1, 8>}, {pipeline_mode = #tpu.pipeline_mode<synchronous>, transform_indices = @transform_7, window_bounds = array<i64: 32, 32>}, {pipeline_mode = #tpu.pipeline_mode<synchronous>, transform_indices = @transform_8, window_bounds = array<i64: 1, 32>}, {pipeline_mode = #tpu.pipeline_mode<synchronous>, transform_indices = @transform_9, window_bounds = array<i64: 32, 32>}, {pipeline_mode = #tpu.pipeline_mode<synchronous>, transform_indices = @transform_10, window_bounds = array<i64: 1, 32>}, {pipeline_mode = #tpu.pipeline_mode<synchronous>, transform_indices = @transform_11, window_bounds = array<i64: 32, 32>}, {pipeline_mode = #tpu.pipeline_mode<synchronous>, transform_indices = @transform_12, window_bounds = array<i64: 1, 32>}, {pipeline_mode = #tpu.pipeline_mode<synchronous>, transform_indices = @transform_13, window_bounds = array<i64: 32, 16>}, {pipeline_mode = #tpu.pipeline_mode<synchronous>, transform_indices = @transform_14, window_bounds = array<i64: 1, 16>}, {pipeline_mode = #tpu.pipeline_mode<synchronous>, transform_indices = @transform_15, window_bounds = array<i64: 16, 16>}, {pipeline_mode = #tpu.pipeline_mode<synchronous>, transform_indices = @transform_16, window_bounds = array<i64: 1, 16>}, {pipeline_mode = #tpu.pipeline_mode<synchronous>, transform_indices = @transform_17, window_bounds = array<i64: 16, 16>}, {pipeline_mode = #tpu.pipeline_mode<synchronous>, transform_indices = @transform_18, window_bounds = array<i64: 1, 16>}, {pipeline_mode = #tpu.pipeline_mode<synchronous>, transform_indices = @transform_19, window_bounds = array<i64: 48, 32>}, {pipeline_mode = #tpu.pipeline_mode<synchronous>, transform_indices = @transform_20, window_bounds = array<i64: 1, 32>}, {pipeline_mode = #tpu.pipeline_mode<synchronous>, transform_indices = @transform_21, window_bounds = array<i64: 1, 32>}, {pipeline_mode = #tpu.pipeline_mode<synchronous>, transform_indices = @transform_22, window_bounds = array<i64: 1, 32>}, {transform_indices = @transform_23, window_bounds = array<i64: 1, 8, 32>}, {transform_indices = @transform_24, window_bounds = array<i64: 1, 4, 8, 8>}, {transform_indices = @transform_25, window_bounds = array<i64: 1, 4, 8, 8>}]} {
    %c0 = arith.constant 0 : index
    %c0_0 = arith.constant 0 : index
    %c0_1 = arith.constant 0 : index
    %0 = vector.load %arg1[%c0, %c0_0, %c0_1] : memref<1x8x32xf32, #tpu.memory_space<vmem>>, vector<1x8x32xf32>
    %1 = vector.shape_cast %0 : vector<1x8x32xf32> to vector<8x32xf32>
    %c0_2 = arith.constant 0 : index
    %c0_3 = arith.constant 0 : index
    %c0_4 = arith.constant 0 : index
    %2 = vector.load %arg2[%c0_2, %c0_3, %c0_4] : memref<1x8x32xf32, #tpu.memory_space<vmem>>, vector<1x8x32xf32>
    %3 = vector.shape_cast %2 : vector<1x8x32xf32> to vector<8x32xf32>
    %c0_5 = arith.constant 0 : index
    %c0_6 = arith.constant 0 : index
    %c0_7 = arith.constant 0 : index
    %4 = vector.load %arg3[%c0_5, %c0_6, %c0_7] : memref<1x8x32xf32, #tpu.memory_space<vmem>>, vector<1x8x32xf32>
    %5 = vector.shape_cast %4 : vector<1x8x32xf32> to vector<8x32xf32>
    %c0_8 = arith.constant 0 : index
    %c0_9 = arith.constant 0 : index
    %c0_10 = arith.constant 0 : index
    %6 = vector.load %arg4[%c0_8, %c0_9, %c0_10] : memref<1x8x16xf32, #tpu.memory_space<vmem>>, vector<1x8x16xf32>
    %7 = vector.shape_cast %6 : vector<1x8x16xf32> to vector<8x16xf32>
    %c0_11 = arith.constant 0 : index
    %c0_12 = arith.constant 0 : index
    %c0_13 = arith.constant 0 : index
    %8 = vector.load %arg5[%c0_11, %c0_12, %c0_13] : memref<1x8x16xf32, #tpu.memory_space<vmem>>, vector<1x8x16xf32>
    %9 = vector.shape_cast %8 : vector<1x8x16xf32> to vector<8x16xf32>
    %c0_14 = arith.constant 0 : index
    %c0_15 = arith.constant 0 : index
    %10 = vector.load %arg8[%c0_14, %c0_15] : memref<32x32xf32, #tpu.memory_space<vmem>>, vector<32x32xf32>
    %cst = arith.constant dense<0.000000e+00> : vector<8x32xf32>
    %11 = tpu.matmul %1, %10, %cst {dimension_numbers = #tpu.dot_dimension_numbers<[1], [0], [0], [1], [0, 0, 1, 1], [], []>} : vector<8x32xf32>, vector<32x32xf32>, vector<8x32xf32> -> vector<8x32xf32>
    %c0_16 = arith.constant 0 : index
    %c0_17 = arith.constant 0 : index
    %12 = vector.load %arg9[%c0_16, %c0_17] : memref<1x32xf32, #tpu.memory_space<vmem>>, vector<1x32xf32>
    %13 = vector.broadcast %12 : vector<1x32xf32> to vector<8x32xf32>
    %14 = arith.addf %11, %13 : vector<8x32xf32>
    %cst_18 = arith.constant 0.353553385 : f32
    %15 = vector.broadcast %cst_18 : f32 to vector<8x32xf32>
    %16 = arith.mulf %14, %15 : vector<8x32xf32>
    %17 = vector.shape_cast %16 : vector<8x32xf32> to vector<1x8x32xf32>
    %c0_19 = arith.constant 0 : index
    %c0_20 = arith.constant 0 : index
    %18 = vector.load %arg10[%c0_19, %c0_20] : memref<32x32xf32, #tpu.memory_space<vmem>>, vector<32x32xf32>
    %cst_21 = arith.constant dense<0.000000e+00> : vector<8x32xf32>
    %19 = tpu.matmul %3, %18, %cst_21 {dimension_numbers = #tpu.dot_dimension_numbers<[1], [0], [0], [1], [0, 0, 1, 1], [], []>} : vector<8x32xf32>, vector<32x32xf32>, vector<8x32xf32> -> vector<8x32xf32>
    %c0_22 = arith.constant 0 : index
    %c0_23 = arith.constant 0 : index
    %20 = vector.load %arg11[%c0_22, %c0_23] : memref<1x32xf32, #tpu.memory_space<vmem>>, vector<1x32xf32>
    %21 = vector.broadcast %20 : vector<1x32xf32> to vector<8x32xf32>
    %22 = arith.addf %19, %21 : vector<8x32xf32>
    %23 = vector.shape_cast %22 : vector<8x32xf32> to vector<1x8x32xf32>
    %c0_24 = arith.constant 0 : index
    %c0_25 = arith.constant 0 : index
    %24 = vector.load %arg12[%c0_24, %c0_25] : memref<32x32xf32, #tpu.memory_space<vmem>>, vector<32x32xf32>
    %cst_26 = arith.constant dense<0.000000e+00> : vector<8x32xf32>
    %25 = tpu.matmul %5, %24, %cst_26 {dimension_numbers = #tpu.dot_dimension_numbers<[1], [0], [0], [1], [0, 0, 1, 1], [], []>} : vector<8x32xf32>, vector<32x32xf32>, vector<8x32xf32> -> vector<8x32xf32>
    %c0_27 = arith.constant 0 : index
    %c0_28 = arith.constant 0 : index
    %26 = vector.load %arg13[%c0_27, %c0_28] : memref<1x32xf32, #tpu.memory_space<vmem>>, vector<1x32xf32>
    %27 = vector.broadcast %26 : vector<1x32xf32> to vector<8x32xf32>
    %28 = arith.addf %25, %27 : vector<8x32xf32>
    %29 = vector.shape_cast %28 : vector<8x32xf32> to vector<1x8x32xf32>
    %c0_29 = arith.constant 0 : index
    %c0_30 = arith.constant 0 : index
    %30 = vector.load %arg14[%c0_29, %c0_30] : memref<32x16xf32, #tpu.memory_space<vmem>>, vector<32x16xf32>
    %cst_31 = arith.constant dense<0.000000e+00> : vector<8x16xf32>
    %31 = tpu.matmul %1, %30, %cst_31 {dimension_numbers = #tpu.dot_dimension_numbers<[1], [0], [0], [1], [0, 0, 1, 1], [], []>} : vector<8x32xf32>, vector<32x16xf32>, vector<8x16xf32> -> vector<8x16xf32>
    %c0_32 = arith.constant 0 : index
    %c0_33 = arith.constant 0 : index
    %32 = vector.load %arg15[%c0_32, %c0_33] : memref<1x16xf32, #tpu.memory_space<vmem>>, vector<1x16xf32>
    %33 = vector.broadcast %32 : vector<1x16xf32> to vector<8x16xf32>
    %34 = arith.addf %31, %33 : vector<8x16xf32>
    %cst_34 = arith.constant 5.000000e-01 : f32
    %35 = vector.broadcast %cst_34 : f32 to vector<8x16xf32>
    %36 = arith.mulf %34, %35 : vector<8x16xf32>
    %37 = vector.shape_cast %36 : vector<8x16xf32> to vector<1x8x16xf32>
    %c0_35 = arith.constant 0 : index
    %c0_36 = arith.constant 0 : index
    %38 = vector.load %arg16[%c0_35, %c0_36] : memref<16x16xf32, #tpu.memory_space<vmem>>, vector<16x16xf32>
    %cst_37 = arith.constant dense<0.000000e+00> : vector<8x16xf32>
    %39 = tpu.matmul %7, %38, %cst_37 {dimension_numbers = #tpu.dot_dimension_numbers<[1], [0], [0], [1], [0, 0, 1, 1], [], []>} : vector<8x16xf32>, vector<16x16xf32>, vector<8x16xf32> -> vector<8x16xf32>
    %c0_38 = arith.constant 0 : index
    %c0_39 = arith.constant 0 : index
    %40 = vector.load %arg17[%c0_38, %c0_39] : memref<1x16xf32, #tpu.memory_space<vmem>>, vector<1x16xf32>
    %41 = vector.broadcast %40 : vector<1x16xf32> to vector<8x16xf32>
    %42 = arith.addf %39, %41 : vector<8x16xf32>
    %43 = vector.shape_cast %42 : vector<8x16xf32> to vector<1x8x16xf32>
    %c0_40 = arith.constant 0 : index
    %c0_41 = arith.constant 0 : index
    %44 = vector.load %arg18[%c0_40, %c0_41] : memref<16x16xf32, #tpu.memory_space<vmem>>, vector<16x16xf32>
    %cst_42 = arith.constant dense<0.000000e+00> : vector<8x16xf32>
    %45 = tpu.matmul %9, %44, %cst_42 {dimension_numbers = #tpu.dot_dimension_numbers<[1], [0], [0], [1], [0, 0, 1, 1], [], []>} : vector<8x16xf32>, vector<16x16xf32>, vector<8x16xf32> -> vector<8x16xf32>
    %c0_43 = arith.constant 0 : index
    %c0_44 = arith.constant 0 : index
    %46 = vector.load %arg19[%c0_43, %c0_44] : memref<1x16xf32, #tpu.memory_space<vmem>>, vector<1x16xf32>
    %47 = vector.broadcast %46 : vector<1x16xf32> to vector<8x16xf32>
    %48 = arith.addf %45, %47 : vector<8x16xf32>
    %49 = vector.shape_cast %48 : vector<8x16xf32> to vector<1x8x16xf32>
    %c0_45 = arith.constant 0 : index
    %c0_46 = arith.constant 0 : index
    %c0_47 = arith.constant 0 : index
    %50 = vector.load %arg6[%c0_45, %c0_46, %c0_47] : memref<1x1x8xf32, #tpu.memory_space<vmem>>, vector<1x1x8xf32>
    %51 = vector.shape_cast %50 : vector<1x1x8xf32> to vector<1x1x8xf32>
    %52 = vector.broadcast %51 : vector<1x1x8xf32> to vector<1x8x8xf32>
    %53 = vector.extract_strided_slice %17 {offsets = [0, 0, 0], sizes = [1, 8, 8], strides = [1, 1, 1]} : vector<1x8x32xf32> to vector<1x8x8xf32>
    %54 = vector.extract_strided_slice %23 {offsets = [0, 0, 0], sizes = [1, 8, 8], strides = [1, 1, 1]} : vector<1x8x32xf32> to vector<1x8x8xf32>
    %55 = vector.extract_strided_slice %29 {offsets = [0, 0, 0], sizes = [1, 8, 8], strides = [1, 1, 1]} : vector<1x8x32xf32> to vector<1x8x8xf32>
    "tpu.trace_start"() <{level = 10 : i32, message = "bqd,bkd->bqk"}> : () -> ()
    %cst_48 = arith.constant dense<0.000000e+00> : vector<1x8x8xf32>
    %56 = tpu.matmul %53, %54, %cst_48 {dimension_numbers = #tpu.dot_dimension_numbers<[2], [2], [1], [1], [0, 0, 0, 1, 1, 1], [0], [0]>} : vector<1x8x8xf32>, vector<1x8x8xf32>, vector<1x8x8xf32> -> vector<1x8x8xf32>
    "tpu.trace_stop"() : () -> ()
    %57 = arith.addf %56, %52 : vector<1x8x8xf32>
    %c0_49 = arith.constant 0 : index
    %c0_50 = arith.constant 0 : index
    %c0_51 = arith.constant 0 : index
    %c0_52 = arith.constant 0 : index
    %58 = vector.load %arg25[%c0_49, %c0_50, %c0_51, %c0_52] : memref<1x4x8x8xf32, #tpu.memory_space<vmem>>, vector<1x1x8x8xf32>
    %59 = vector.shape_cast %58 : vector<1x1x8x8xf32> to vector<1x8x8xf32>
    %60 = vector.shape_cast %57 : vector<1x8x8xf32> to vector<1x1x8x8xf32>
    tpu.vector_store %arg25[%c0_49, %c0_50, %c0_51, %c0_52], %60 {strides = array<i32>} : memref<1x4x8x8xf32, #tpu.memory_space<vmem>>, vector<1x1x8x8xf32>,
    %cst_53 = arith.constant dense<0xFF800000> : vector<1x8xf32>
    %61 = vector.multi_reduction <maximumf>, %57, %cst_53 [2] : vector<1x8x8xf32> to vector<1x8xf32>
    %62 = vector.shape_cast %61 : vector<1x8xf32> to vector<1x8x1xf32>
    %63 = vector.broadcast %62 : vector<1x8x1xf32> to vector<1x8x8xf32>
    %64 = arith.subf %57, %63 : vector<1x8x8xf32>
    %65 = math.exp %64 : vector<1x8x8xf32>
    %cst_54 = arith.constant dense<0.000000e+00> : vector<1x8xf32>
    %66 = vector.multi_reduction <add>, %65, %cst_54 [2] : vector<1x8x8xf32> to vector<1x8xf32>
    %67 = vector.shape_cast %66 : vector<1x8xf32> to vector<1x8x1xf32>
    %68 = tpu.reciprocal %67 {approx = true} : vector<1x8x1xf32> -> vector<1x8x1xf32>
    %69 = arith.mulf %67, %68 : vector<1x8x1xf32>
    %cst_55 = arith.constant 2.000000e+00 : f32
    %70 = vector.broadcast %cst_55 : f32 to vector<1x8x1xf32>
    %71 = arith.subf %70, %69 : vector<1x8x1xf32>
    %72 = arith.mulf %68, %71 : vector<1x8x1xf32>
    %73 = vector.broadcast %72 : vector<1x8x1xf32> to vector<1x8x8xf32>
    %74 = arith.mulf %65, %73 : vector<1x8x8xf32>
    "tpu.trace_start"() <{level = 10 : i32, message = "bqk,bkd->bqd"}> : () -> ()
    %cst_56 = arith.constant dense<0.000000e+00> : vector<1x8x8xf32>
    %75 = tpu.matmul %74, %55, %cst_56 {dimension_numbers = #tpu.dot_dimension_numbers<[2], [1], [1], [2], [0, 0, 0, 1, 1, 2], [0], [0]>} : vector<1x8x8xf32>, vector<1x8x8xf32>, vector<1x8x8xf32> -> vector<1x8x8xf32>
    "tpu.trace_stop"() : () -> ()
    %76 = vector.shape_cast %75 : vector<1x8x8xf32> to vector<8x8xf32>
    %c0_57 = arith.constant 0 : index
    %c0_58 = arith.constant 0 : index
    %77 = vector.load %arg27[%c0_57, %c0_58] : memref<8x48xf32, #tpu.memory_space<vmem>>, vector<8x8xf32>
    tpu.vector_store %arg27[%c0_57, %c0_58], %76 {strides = array<i32>} : memref<8x48xf32, #tpu.memory_space<vmem>>, vector<8x8xf32>,
    %78 = vector.extract_strided_slice %17 {offsets = [0, 0, 8], sizes = [1, 8, 8], strides = [1, 1, 1]} : vector<1x8x32xf32> to vector<1x8x8xf32>
    %79 = vector.extract_strided_slice %23 {offsets = [0, 0, 8], sizes = [1, 8, 8], strides = [1, 1, 1]} : vector<1x8x32xf32> to vector<1x8x8xf32>
    %80 = vector.extract_strided_slice %29 {offsets = [0, 0, 8], sizes = [1, 8, 8], strides = [1, 1, 1]} : vector<1x8x32xf32> to vector<1x8x8xf32>
    "tpu.trace_start"() <{level = 10 : i32, message = "bqd,bkd->bqk"}> : () -> ()
    %cst_59 = arith.constant dense<0.000000e+00> : vector<1x8x8xf32>
    %81 = tpu.matmul %78, %79, %cst_59 {dimension_numbers = #tpu.dot_dimension_numbers<[2], [2], [1], [1], [0, 0, 0, 1, 1, 1], [0], [0]>} : vector<1x8x8xf32>, vector<1x8x8xf32>, vector<1x8x8xf32> -> vector<1x8x8xf32>
    "tpu.trace_stop"() : () -> ()
    %82 = arith.addf %81, %52 : vector<1x8x8xf32>
    %c0_60 = arith.constant 0 : index
    %c1 = arith.constant 1 : index
    %c0_61 = arith.constant 0 : index
    %c0_62 = arith.constant 0 : index
    %83 = vector.load %arg25[%c0_60, %c1, %c0_61, %c0_62] : memref<1x4x8x8xf32, #tpu.memory_space<vmem>>, vector<1x1x8x8xf32>
    %84 = vector.shape_cast %83 : vector<1x1x8x8xf32> to vector<1x8x8xf32>
    %85 = vector.shape_cast %82 : vector<1x8x8xf32> to vector<1x1x8x8xf32>
    tpu.vector_store %arg25[%c0_60, %c1, %c0_61, %c0_62], %85 {strides = array<i32>} : memref<1x4x8x8xf32, #tpu.memory_space<vmem>>, vector<1x1x8x8xf32>,
    %cst_63 = arith.constant dense<0xFF800000> : vector<1x8xf32>
    %86 = vector.multi_reduction <maximumf>, %82, %cst_63 [2] : vector<1x8x8xf32> to vector<1x8xf32>
    %87 = vector.shape_cast %86 : vector<1x8xf32> to vector<1x8x1xf32>
    %88 = vector.broadcast %87 : vector<1x8x1xf32> to vector<1x8x8xf32>
    %89 = arith.subf %82, %88 : vector<1x8x8xf32>
    %90 = math.exp %89 : vector<1x8x8xf32>
    %cst_64 = arith.constant dense<0.000000e+00> : vector<1x8xf32>
    %91 = vector.multi_reduction <add>, %90, %cst_64 [2] : vector<1x8x8xf32> to vector<1x8xf32>
    %92 = vector.shape_cast %91 : vector<1x8xf32> to vector<1x8x1xf32>
    %93 = tpu.reciprocal %92 {approx = true} : vector<1x8x1xf32> -> vector<1x8x1xf32>
    %94 = arith.mulf %92, %93 : vector<1x8x1xf32>
    %cst_65 = arith.constant 2.000000e+00 : f32
    %95 = vector.broadcast %cst_65 : f32 to vector<1x8x1xf32>
    %96 = arith.subf %95, %94 : vector<1x8x1xf32>
    %97 = arith.mulf %93, %96 : vector<1x8x1xf32>
    %98 = vector.broadcast %97 : vector<1x8x1xf32> to vector<1x8x8xf32>
    %99 = arith.mulf %90, %98 : vector<1x8x8xf32>
    "tpu.trace_start"() <{level = 10 : i32, message = "bqk,bkd->bqd"}> : () -> ()
    %cst_66 = arith.constant dense<0.000000e+00> : vector<1x8x8xf32>
    %100 = tpu.matmul %99, %80, %cst_66 {dimension_numbers = #tpu.dot_dimension_numbers<[2], [1], [1], [2], [0, 0, 0, 1, 1, 2], [0], [0]>} : vector<1x8x8xf32>, vector<1x8x8xf32>, vector<1x8x8xf32> -> vector<1x8x8xf32>
    "tpu.trace_stop"() : () -> ()
    %101 = vector.shape_cast %100 : vector<1x8x8xf32> to vector<8x8xf32>
    %c0_67 = arith.constant 0 : index
    %c8 = arith.constant 8 : index
    %102 = vector.load %arg27[%c0_67, %c8] : memref<8x48xf32, #tpu.memory_space<vmem>>, vector<8x8xf32>
    tpu.vector_store %arg27[%c0_67, %c8], %101 {strides = array<i32>} : memref<8x48xf32, #tpu.memory_space<vmem>>, vector<8x8xf32>,
    %103 = vector.extract_strided_slice %17 {offsets = [0, 0, 16], sizes = [1, 8, 8], strides = [1, 1, 1]} : vector<1x8x32xf32> to vector<1x8x8xf32>
    %104 = vector.extract_strided_slice %23 {offsets = [0, 0, 16], sizes = [1, 8, 8], strides = [1, 1, 1]} : vector<1x8x32xf32> to vector<1x8x8xf32>
    %105 = vector.extract_strided_slice %29 {offsets = [0, 0, 16], sizes = [1, 8, 8], strides = [1, 1, 1]} : vector<1x8x32xf32> to vector<1x8x8xf32>
    "tpu.trace_start"() <{level = 10 : i32, message = "bqd,bkd->bqk"}> : () -> ()
    %cst_68 = arith.constant dense<0.000000e+00> : vector<1x8x8xf32>
    %106 = tpu.matmul %103, %104, %cst_68 {dimension_numbers = #tpu.dot_dimension_numbers<[2], [2], [1], [1], [0, 0, 0, 1, 1, 1], [0], [0]>} : vector<1x8x8xf32>, vector<1x8x8xf32>, vector<1x8x8xf32> -> vector<1x8x8xf32>
    "tpu.trace_stop"() : () -> ()
    %107 = arith.addf %106, %52 : vector<1x8x8xf32>
    %c0_69 = arith.constant 0 : index
    %c2 = arith.constant 2 : index
    %c0_70 = arith.constant 0 : index
    %c0_71 = arith.constant 0 : index
    %108 = vector.load %arg25[%c0_69, %c2, %c0_70, %c0_71] : memref<1x4x8x8xf32, #tpu.memory_space<vmem>>, vector<1x1x8x8xf32>
    %109 = vector.shape_cast %108 : vector<1x1x8x8xf32> to vector<1x8x8xf32>
    %110 = vector.shape_cast %107 : vector<1x8x8xf32> to vector<1x1x8x8xf32>
    tpu.vector_store %arg25[%c0_69, %c2, %c0_70, %c0_71], %110 {strides = array<i32>} : memref<1x4x8x8xf32, #tpu.memory_space<vmem>>, vector<1x1x8x8xf32>,
    %cst_72 = arith.constant dense<0xFF800000> : vector<1x8xf32>
    %111 = vector.multi_reduction <maximumf>, %107, %cst_72 [2] : vector<1x8x8xf32> to vector<1x8xf32>
    %112 = vector.shape_cast %111 : vector<1x8xf32> to vector<1x8x1xf32>
    %113 = vector.broadcast %112 : vector<1x8x1xf32> to vector<1x8x8xf32>
    %114 = arith.subf %107, %113 : vector<1x8x8xf32>
    %115 = math.exp %114 : vector<1x8x8xf32>
    %cst_73 = arith.constant dense<0.000000e+00> : vector<1x8xf32>
    %116 = vector.multi_reduction <add>, %115, %cst_73 [2] : vector<1x8x8xf32> to vector<1x8xf32>
    %117 = vector.shape_cast %116 : vector<1x8xf32> to vector<1x8x1xf32>
    %118 = tpu.reciprocal %117 {approx = true} : vector<1x8x1xf32> -> vector<1x8x1xf32>
    %119 = arith.mulf %117, %118 : vector<1x8x1xf32>
    %cst_74 = arith.constant 2.000000e+00 : f32
    %120 = vector.broadcast %cst_74 : f32 to vector<1x8x1xf32>
    %121 = arith.subf %120, %119 : vector<1x8x1xf32>
    %122 = arith.mulf %118, %121 : vector<1x8x1xf32>
    %123 = vector.broadcast %122 : vector<1x8x1xf32> to vector<1x8x8xf32>
    %124 = arith.mulf %115, %123 : vector<1x8x8xf32>
    "tpu.trace_start"() <{level = 10 : i32, message = "bqk,bkd->bqd"}> : () -> ()
    %cst_75 = arith.constant dense<0.000000e+00> : vector<1x8x8xf32>
    %125 = tpu.matmul %124, %105, %cst_75 {dimension_numbers = #tpu.dot_dimension_numbers<[2], [1], [1], [2], [0, 0, 0, 1, 1, 2], [0], [0]>} : vector<1x8x8xf32>, vector<1x8x8xf32>, vector<1x8x8xf32> -> vector<1x8x8xf32>
    "tpu.trace_stop"() : () -> ()
    %126 = vector.shape_cast %125 : vector<1x8x8xf32> to vector<8x8xf32>
    %c0_76 = arith.constant 0 : index
    %c16 = arith.constant 16 : index
    %127 = vector.load %arg27[%c0_76, %c16] : memref<8x48xf32, #tpu.memory_space<vmem>>, vector<8x8xf32>
    tpu.vector_store %arg27[%c0_76, %c16], %126 {strides = array<i32>} : memref<8x48xf32, #tpu.memory_space<vmem>>, vector<8x8xf32>,
    %128 = vector.extract_strided_slice %17 {offsets = [0, 0, 24], sizes = [1, 8, 8], strides = [1, 1, 1]} : vector<1x8x32xf32> to vector<1x8x8xf32>
    %129 = vector.extract_strided_slice %23 {offsets = [0, 0, 24], sizes = [1, 8, 8], strides = [1, 1, 1]} : vector<1x8x32xf32> to vector<1x8x8xf32>
    %130 = vector.extract_strided_slice %29 {offsets = [0, 0, 24], sizes = [1, 8, 8], strides = [1, 1, 1]} : vector<1x8x32xf32> to vector<1x8x8xf32>
    "tpu.trace_start"() <{level = 10 : i32, message = "bqd,bkd->bqk"}> : () -> ()
    %cst_77 = arith.constant dense<0.000000e+00> : vector<1x8x8xf32>
    %131 = tpu.matmul %128, %129, %cst_77 {dimension_numbers = #tpu.dot_dimension_numbers<[2], [2], [1], [1], [0, 0, 0, 1, 1, 1], [0], [0]>} : vector<1x8x8xf32>, vector<1x8x8xf32>, vector<1x8x8xf32> -> vector<1x8x8xf32>
    "tpu.trace_stop"() : () -> ()
    %132 = arith.addf %131, %52 : vector<1x8x8xf32>
    %c0_78 = arith.constant 0 : index
    %c3 = arith.constant 3 : index
    %c0_79 = arith.constant 0 : index
    %c0_80 = arith.constant 0 : index
    %133 = vector.load %arg25[%c0_78, %c3, %c0_79, %c0_80] : memref<1x4x8x8xf32, #tpu.memory_space<vmem>>, vector<1x1x8x8xf32>
    %134 = vector.shape_cast %133 : vector<1x1x8x8xf32> to vector<1x8x8xf32>
    %135 = vector.shape_cast %132 : vector<1x8x8xf32> to vector<1x1x8x8xf32>
    tpu.vector_store %arg25[%c0_78, %c3, %c0_79, %c0_80], %135 {strides = array<i32>} : memref<1x4x8x8xf32, #tpu.memory_space<vmem>>, vector<1x1x8x8xf32>,
    %cst_81 = arith.constant dense<0xFF800000> : vector<1x8xf32>
    %136 = vector.multi_reduction <maximumf>, %132, %cst_81 [2] : vector<1x8x8xf32> to vector<1x8xf32>
    %137 = vector.shape_cast %136 : vector<1x8xf32> to vector<1x8x1xf32>
    %138 = vector.broadcast %137 : vector<1x8x1xf32> to vector<1x8x8xf32>
    %139 = arith.subf %132, %138 : vector<1x8x8xf32>
    %140 = math.exp %139 : vector<1x8x8xf32>
    %cst_82 = arith.constant dense<0.000000e+00> : vector<1x8xf32>
    %141 = vector.multi_reduction <add>, %140, %cst_82 [2] : vector<1x8x8xf32> to vector<1x8xf32>
    %142 = vector.shape_cast %141 : vector<1x8xf32> to vector<1x8x1xf32>
    %143 = tpu.reciprocal %142 {approx = true} : vector<1x8x1xf32> -> vector<1x8x1xf32>
    %144 = arith.mulf %142, %143 : vector<1x8x1xf32>
    %cst_83 = arith.constant 2.000000e+00 : f32
    %145 = vector.broadcast %cst_83 : f32 to vector<1x8x1xf32>
    %146 = arith.subf %145, %144 : vector<1x8x1xf32>
    %147 = arith.mulf %143, %146 : vector<1x8x1xf32>
    %148 = vector.broadcast %147 : vector<1x8x1xf32> to vector<1x8x8xf32>
    %149 = arith.mulf %140, %148 : vector<1x8x8xf32>
    "tpu.trace_start"() <{level = 10 : i32, message = "bqk,bkd->bqd"}> : () -> ()
    %cst_84 = arith.constant dense<0.000000e+00> : vector<1x8x8xf32>
    %150 = tpu.matmul %149, %130, %cst_84 {dimension_numbers = #tpu.dot_dimension_numbers<[2], [1], [1], [2], [0, 0, 0, 1, 1, 2], [0], [0]>} : vector<1x8x8xf32>, vector<1x8x8xf32>, vector<1x8x8xf32> -> vector<1x8x8xf32>
    "tpu.trace_stop"() : () -> ()
    %151 = vector.shape_cast %150 : vector<1x8x8xf32> to vector<8x8xf32>
    %c0_85 = arith.constant 0 : index
    %c24 = arith.constant 24 : index
    %152 = vector.load %arg27[%c0_85, %c24] : memref<8x48xf32, #tpu.memory_space<vmem>>, vector<8x8xf32>
    tpu.vector_store %arg27[%c0_85, %c24], %151 {strides = array<i32>} : memref<8x48xf32, #tpu.memory_space<vmem>>, vector<8x8xf32>,
    %c0_86 = arith.constant 0 : index
    %c0_87 = arith.constant 0 : index
    %c0_88 = arith.constant 0 : index
    %153 = vector.load %arg7[%c0_86, %c0_87, %c0_88] : memref<1x1x8xf32, #tpu.memory_space<vmem>>, vector<1x1x8xf32>
    %154 = vector.shape_cast %153 : vector<1x1x8xf32> to vector<1x1x8xf32>
    %155 = vector.broadcast %154 : vector<1x1x8xf32> to vector<1x8x8xf32>
    %156 = vector.extract_strided_slice %37 {offsets = [0, 0, 0], sizes = [1, 8, 4], strides = [1, 1, 1]} : vector<1x8x16xf32> to vector<1x8x4xf32>
    %157 = vector.extract_strided_slice %43 {offsets = [0, 0, 0], sizes = [1, 8, 4], strides = [1, 1, 1]} : vector<1x8x16xf32> to vector<1x8x4xf32>
    %158 = vector.extract_strided_slice %49 {offsets = [0, 0, 0], sizes = [1, 8, 4], strides = [1, 1, 1]} : vector<1x8x16xf32> to vector<1x8x4xf32>
    "tpu.trace_start"() <{level = 10 : i32, message = "bqd,bkd->bqk"}> : () -> ()
    %cst_89 = arith.constant dense<0.000000e+00> : vector<1x8x8xf32>
    %159 = tpu.matmul %156, %157, %cst_89 {dimension_numbers = #tpu.dot_dimension_numbers<[2], [2], [1], [1], [0, 0, 0, 1, 1, 1], [0], [0]>} : vector<1x8x4xf32>, vector<1x8x4xf32>, vector<1x8x8xf32> -> vector<1x8x8xf32>
    "tpu.trace_stop"() : () -> ()
    %160 = arith.addf %159, %155 : vector<1x8x8xf32>
    %c0_90 = arith.constant 0 : index
    %c0_91 = arith.constant 0 : index
    %c0_92 = arith.constant 0 : index
    %c0_93 = arith.constant 0 : index
    %161 = vector.load %arg26[%c0_90, %c0_91, %c0_92, %c0_93] : memref<1x4x8x8xf32, #tpu.memory_space<vmem>>, vector<1x1x8x8xf32>
    %162 = vector.shape_cast %161 : vector<1x1x8x8xf32> to vector<1x8x8xf32>
    %163 = vector.shape_cast %160 : vector<1x8x8xf32> to vector<1x1x8x8xf32>
    tpu.vector_store %arg26[%c0_90, %c0_91, %c0_92, %c0_93], %163 {strides = array<i32>} : memref<1x4x8x8xf32, #tpu.memory_space<vmem>>, vector<1x1x8x8xf32>,
    %cst_94 = arith.constant dense<0xFF800000> : vector<1x8xf32>
    %164 = vector.multi_reduction <maximumf>, %160, %cst_94 [2] : vector<1x8x8xf32> to vector<1x8xf32>
    %165 = vector.shape_cast %164 : vector<1x8xf32> to vector<1x8x1xf32>
    %166 = vector.broadcast %165 : vector<1x8x1xf32> to vector<1x8x8xf32>
    %167 = arith.subf %160, %166 : vector<1x8x8xf32>
    %168 = math.exp %167 : vector<1x8x8xf32>
    %cst_95 = arith.constant dense<0.000000e+00> : vector<1x8xf32>
    %169 = vector.multi_reduction <add>, %168, %cst_95 [2] : vector<1x8x8xf32> to vector<1x8xf32>
    %170 = vector.shape_cast %169 : vector<1x8xf32> to vector<1x8x1xf32>
    %171 = tpu.reciprocal %170 {approx = true} : vector<1x8x1xf32> -> vector<1x8x1xf32>
    %172 = arith.mulf %170, %171 : vector<1x8x1xf32>
    %cst_96 = arith.constant 2.000000e+00 : f32
    %173 = vector.broadcast %cst_96 : f32 to vector<1x8x1xf32>
    %174 = arith.subf %173, %172 : vector<1x8x1xf32>
    %175 = arith.mulf %171, %174 : vector<1x8x1xf32>
    %176 = vector.broadcast %175 : vector<1x8x1xf32> to vector<1x8x8xf32>
    %177 = arith.mulf %168, %176 : vector<1x8x8xf32>
    "tpu.trace_start"() <{level = 10 : i32, message = "bqk,bkd->bqd"}> : () -> ()
    %cst_97 = arith.constant dense<0.000000e+00> : vector<1x8x4xf32>
    %178 = tpu.matmul %177, %158, %cst_97 {dimension_numbers = #tpu.dot_dimension_numbers<[2], [1], [1], [2], [0, 0, 0, 1, 1, 2], [0], [0]>} : vector<1x8x8xf32>, vector<1x8x4xf32>, vector<1x8x4xf32> -> vector<1x8x4xf32>
    "tpu.trace_stop"() : () -> ()
    %179 = vector.shape_cast %178 : vector<1x8x4xf32> to vector<8x4xf32>
    %c0_98 = arith.constant 0 : index
    %c32 = arith.constant 32 : index
    %180 = vector.load %arg27[%c0_98, %c32] : memref<8x48xf32, #tpu.memory_space<vmem>>, vector<8x4xf32>
    tpu.vector_store %arg27[%c0_98, %c32], %179 {strides = array<i32>} : memref<8x48xf32, #tpu.memory_space<vmem>>, vector<8x4xf32>,
    %181 = vector.extract_strided_slice %37 {offsets = [0, 0, 4], sizes = [1, 8, 4], strides = [1, 1, 1]} : vector<1x8x16xf32> to vector<1x8x4xf32>
    %182 = vector.extract_strided_slice %43 {offsets = [0, 0, 4], sizes = [1, 8, 4], strides = [1, 1, 1]} : vector<1x8x16xf32> to vector<1x8x4xf32>
    %183 = vector.extract_strided_slice %49 {offsets = [0, 0, 4], sizes = [1, 8, 4], strides = [1, 1, 1]} : vector<1x8x16xf32> to vector<1x8x4xf32>
    "tpu.trace_start"() <{level = 10 : i32, message = "bqd,bkd->bqk"}> : () -> ()
    %cst_99 = arith.constant dense<0.000000e+00> : vector<1x8x8xf32>
    %184 = tpu.matmul %181, %182, %cst_99 {dimension_numbers = #tpu.dot_dimension_numbers<[2], [2], [1], [1], [0, 0, 0, 1, 1, 1], [0], [0]>} : vector<1x8x4xf32>, vector<1x8x4xf32>, vector<1x8x8xf32> -> vector<1x8x8xf32>
    "tpu.trace_stop"() : () -> ()
    %185 = arith.addf %184, %155 : vector<1x8x8xf32>
    %c0_100 = arith.constant 0 : index
    %c1_101 = arith.constant 1 : index
    %c0_102 = arith.constant 0 : index
    %c0_103 = arith.constant 0 : index
    %186 = vector.load %arg26[%c0_100, %c1_101, %c0_102, %c0_103] : memref<1x4x8x8xf32, #tpu.memory_space<vmem>>, vector<1x1x8x8xf32>
    %187 = vector.shape_cast %186 : vector<1x1x8x8xf32> to vector<1x8x8xf32>
    %188 = vector.shape_cast %185 : vector<1x8x8xf32> to vector<1x1x8x8xf32>
    tpu.vector_store %arg26[%c0_100, %c1_101, %c0_102, %c0_103], %188 {strides = array<i32>} : memref<1x4x8x8xf32, #tpu.memory_space<vmem>>, vector<1x1x8x8xf32>,
    %cst_104 = arith.constant dense<0xFF800000> : vector<1x8xf32>
    %189 = vector.multi_reduction <maximumf>, %185, %cst_104 [2] : vector<1x8x8xf32> to vector<1x8xf32>
    %190 = vector.shape_cast %189 : vector<1x8xf32> to vector<1x8x1xf32>
    %191 = vector.broadcast %190 : vector<1x8x1xf32> to vector<1x8x8xf32>
    %192 = arith.subf %185, %191 : vector<1x8x8xf32>
    %193 = math.exp %192 : vector<1x8x8xf32>
    %cst_105 = arith.constant dense<0.000000e+00> : vector<1x8xf32>
    %194 = vector.multi_reduction <add>, %193, %cst_105 [2] : vector<1x8x8xf32> to vector<1x8xf32>
    %195 = vector.shape_cast %194 : vector<1x8xf32> to vector<1x8x1xf32>
    %196 = tpu.reciprocal %195 {approx = true} : vector<1x8x1xf32> -> vector<1x8x1xf32>
    %197 = arith.mulf %195, %196 : vector<1x8x1xf32>
    %cst_106 = arith.constant 2.000000e+00 : f32
    %198 = vector.broadcast %cst_106 : f32 to vector<1x8x1xf32>
    %199 = arith.subf %198, %197 : vector<1x8x1xf32>
    %200 = arith.mulf %196, %199 : vector<1x8x1xf32>
    %201 = vector.broadcast %200 : vector<1x8x1xf32> to vector<1x8x8xf32>
    %202 = arith.mulf %193, %201 : vector<1x8x8xf32>
    "tpu.trace_start"() <{level = 10 : i32, message = "bqk,bkd->bqd"}> : () -> ()
    %cst_107 = arith.constant dense<0.000000e+00> : vector<1x8x4xf32>
    %203 = tpu.matmul %202, %183, %cst_107 {dimension_numbers = #tpu.dot_dimension_numbers<[2], [1], [1], [2], [0, 0, 0, 1, 1, 2], [0], [0]>} : vector<1x8x8xf32>, vector<1x8x4xf32>, vector<1x8x4xf32> -> vector<1x8x4xf32>
    "tpu.trace_stop"() : () -> ()
    %204 = vector.shape_cast %203 : vector<1x8x4xf32> to vector<8x4xf32>
    %c0_108 = arith.constant 0 : index
    %c36 = arith.constant 36 : index
    %205 = vector.load %arg27[%c0_108, %c36] : memref<8x48xf32, #tpu.memory_space<vmem>>, vector<8x4xf32>
    tpu.vector_store %arg27[%c0_108, %c36], %204 {strides = array<i32>} : memref<8x48xf32, #tpu.memory_space<vmem>>, vector<8x4xf32>,
    %206 = vector.extract_strided_slice %37 {offsets = [0, 0, 8], sizes = [1, 8, 4], strides = [1, 1, 1]} : vector<1x8x16xf32> to vector<1x8x4xf32>
    %207 = vector.extract_strided_slice %43 {offsets = [0, 0, 8], sizes = [1, 8, 4], strides = [1, 1, 1]} : vector<1x8x16xf32> to vector<1x8x4xf32>
    %208 = vector.extract_strided_slice %49 {offsets = [0, 0, 8], sizes = [1, 8, 4], strides = [1, 1, 1]} : vector<1x8x16xf32> to vector<1x8x4xf32>
    "tpu.trace_start"() <{level = 10 : i32, message = "bqd,bkd->bqk"}> : () -> ()
    %cst_109 = arith.constant dense<0.000000e+00> : vector<1x8x8xf32>
    %209 = tpu.matmul %206, %207, %cst_109 {dimension_numbers = #tpu.dot_dimension_numbers<[2], [2], [1], [1], [0, 0, 0, 1, 1, 1], [0], [0]>} : vector<1x8x4xf32>, vector<1x8x4xf32>, vector<1x8x8xf32> -> vector<1x8x8xf32>
    "tpu.trace_stop"() : () -> ()
    %210 = arith.addf %209, %155 : vector<1x8x8xf32>
    %c0_110 = arith.constant 0 : index
    %c2_111 = arith.constant 2 : index
    %c0_112 = arith.constant 0 : index
    %c0_113 = arith.constant 0 : index
    %211 = vector.load %arg26[%c0_110, %c2_111, %c0_112, %c0_113] : memref<1x4x8x8xf32, #tpu.memory_space<vmem>>, vector<1x1x8x8xf32>
    %212 = vector.shape_cast %211 : vector<1x1x8x8xf32> to vector<1x8x8xf32>
    %213 = vector.shape_cast %210 : vector<1x8x8xf32> to vector<1x1x8x8xf32>
    tpu.vector_store %arg26[%c0_110, %c2_111, %c0_112, %c0_113], %213 {strides = array<i32>} : memref<1x4x8x8xf32, #tpu.memory_space<vmem>>, vector<1x1x8x8xf32>,
    %cst_114 = arith.constant dense<0xFF800000> : vector<1x8xf32>
    %214 = vector.multi_reduction <maximumf>, %210, %cst_114 [2] : vector<1x8x8xf32> to vector<1x8xf32>
    %215 = vector.shape_cast %214 : vector<1x8xf32> to vector<1x8x1xf32>
    %216 = vector.broadcast %215 : vector<1x8x1xf32> to vector<1x8x8xf32>
    %217 = arith.subf %210, %216 : vector<1x8x8xf32>
    %218 = math.exp %217 : vector<1x8x8xf32>
    %cst_115 = arith.constant dense<0.000000e+00> : vector<1x8xf32>
    %219 = vector.multi_reduction <add>, %218, %cst_115 [2] : vector<1x8x8xf32> to vector<1x8xf32>
    %220 = vector.shape_cast %219 : vector<1x8xf32> to vector<1x8x1xf32>
    %221 = tpu.reciprocal %220 {approx = true} : vector<1x8x1xf32> -> vector<1x8x1xf32>
    %222 = arith.mulf %220, %221 : vector<1x8x1xf32>
    %cst_116 = arith.constant 2.000000e+00 : f32
    %223 = vector.broadcast %cst_116 : f32 to vector<1x8x1xf32>
    %224 = arith.subf %223, %222 : vector<1x8x1xf32>
    %225 = arith.mulf %221, %224 : vector<1x8x1xf32>
    %226 = vector.broadcast %225 : vector<1x8x1xf32> to vector<1x8x8xf32>
    %227 = arith.mulf %218, %226 : vector<1x8x8xf32>
    "tpu.trace_start"() <{level = 10 : i32, message = "bqk,bkd->bqd"}> : () -> ()
    %cst_117 = arith.constant dense<0.000000e+00> : vector<1x8x4xf32>
    %228 = tpu.matmul %227, %208, %cst_117 {dimension_numbers = #tpu.dot_dimension_numbers<[2], [1], [1], [2], [0, 0, 0, 1, 1, 2], [0], [0]>} : vector<1x8x8xf32>, vector<1x8x4xf32>, vector<1x8x4xf32> -> vector<1x8x4xf32>
    "tpu.trace_stop"() : () -> ()
    %229 = vector.shape_cast %228 : vector<1x8x4xf32> to vector<8x4xf32>
    %c0_118 = arith.constant 0 : index
    %c40 = arith.constant 40 : index
    %230 = vector.load %arg27[%c0_118, %c40] : memref<8x48xf32, #tpu.memory_space<vmem>>, vector<8x4xf32>
    tpu.vector_store %arg27[%c0_118, %c40], %229 {strides = array<i32>} : memref<8x48xf32, #tpu.memory_space<vmem>>, vector<8x4xf32>,
    %231 = vector.extract_strided_slice %37 {offsets = [0, 0, 12], sizes = [1, 8, 4], strides = [1, 1, 1]} : vector<1x8x16xf32> to vector<1x8x4xf32>
    %232 = vector.extract_strided_slice %43 {offsets = [0, 0, 12], sizes = [1, 8, 4], strides = [1, 1, 1]} : vector<1x8x16xf32> to vector<1x8x4xf32>
    %233 = vector.extract_strided_slice %49 {offsets = [0, 0, 12], sizes = [1, 8, 4], strides = [1, 1, 1]} : vector<1x8x16xf32> to vector<1x8x4xf32>
    "tpu.trace_start"() <{level = 10 : i32, message = "bqd,bkd->bqk"}> : () -> ()
    %cst_119 = arith.constant dense<0.000000e+00> : vector<1x8x8xf32>
    %234 = tpu.matmul %231, %232, %cst_119 {dimension_numbers = #tpu.dot_dimension_numbers<[2], [2], [1], [1], [0, 0, 0, 1, 1, 1], [0], [0]>} : vector<1x8x4xf32>, vector<1x8x4xf32>, vector<1x8x8xf32> -> vector<1x8x8xf32>
    "tpu.trace_stop"() : () -> ()
    %235 = arith.addf %234, %155 : vector<1x8x8xf32>
    %c0_120 = arith.constant 0 : index
    %c3_121 = arith.constant 3 : index
    %c0_122 = arith.constant 0 : index
    %c0_123 = arith.constant 0 : index
    %236 = vector.load %arg26[%c0_120, %c3_121, %c0_122, %c0_123] : memref<1x4x8x8xf32, #tpu.memory_space<vmem>>, vector<1x1x8x8xf32>
    %237 = vector.shape_cast %236 : vector<1x1x8x8xf32> to vector<1x8x8xf32>
    %238 = vector.shape_cast %235 : vector<1x8x8xf32> to vector<1x1x8x8xf32>
    tpu.vector_store %arg26[%c0_120, %c3_121, %c0_122, %c0_123], %238 {strides = array<i32>} : memref<1x4x8x8xf32, #tpu.memory_space<vmem>>, vector<1x1x8x8xf32>,
    %cst_124 = arith.constant dense<0xFF800000> : vector<1x8xf32>
    %239 = vector.multi_reduction <maximumf>, %235, %cst_124 [2] : vector<1x8x8xf32> to vector<1x8xf32>
    %240 = vector.shape_cast %239 : vector<1x8xf32> to vector<1x8x1xf32>
    %241 = vector.broadcast %240 : vector<1x8x1xf32> to vector<1x8x8xf32>
    %242 = arith.subf %235, %241 : vector<1x8x8xf32>
    %243 = math.exp %242 : vector<1x8x8xf32>
    %cst_125 = arith.constant dense<0.000000e+00> : vector<1x8xf32>
    %244 = vector.multi_reduction <add>, %243, %cst_125 [2] : vector<1x8x8xf32> to vector<1x8xf32>
    %245 = vector.shape_cast %244 : vector<1x8xf32> to vector<1x8x1xf32>
    %246 = tpu.reciprocal %245 {approx = true} : vector<1x8x1xf32> -> vector<1x8x1xf32>
    %247 = arith.mulf %245, %246 : vector<1x8x1xf32>
    %cst_126 = arith.constant 2.000000e+00 : f32
    %248 = vector.broadcast %cst_126 : f32 to vector<1x8x1xf32>
    %249 = arith.subf %248, %247 : vector<1x8x1xf32>
    %250 = arith.mulf %246, %249 : vector<1x8x1xf32>
    %251 = vector.broadcast %250 : vector<1x8x1xf32> to vector<1x8x8xf32>
    %252 = arith.mulf %243, %251 : vector<1x8x8xf32>
    "tpu.trace_start"() <{level = 10 : i32, message = "bqk,bkd->bqd"}> : () -> ()
    %cst_127 = arith.constant dense<0.000000e+00> : vector<1x8x4xf32>
    %253 = tpu.matmul %252, %233, %cst_127 {dimension_numbers = #tpu.dot_dimension_numbers<[2], [1], [1], [2], [0, 0, 0, 1, 1, 2], [0], [0]>} : vector<1x8x8xf32>, vector<1x8x4xf32>, vector<1x8x4xf32> -> vector<1x8x4xf32>
    "tpu.trace_stop"() : () -> ()
    %254 = vector.shape_cast %253 : vector<1x8x4xf32> to vector<8x4xf32>
    %c0_128 = arith.constant 0 : index
    %c44 = arith.constant 44 : index
    %255 = vector.load %arg27[%c0_128, %c44] : memref<8x48xf32, #tpu.memory_space<vmem>>, vector<8x4xf32>
    tpu.vector_store %arg27[%c0_128, %c44], %254 {strides = array<i32>} : memref<8x48xf32, #tpu.memory_space<vmem>>, vector<8x4xf32>,
    %c0_129 = arith.constant 0 : index
    %c0_130 = arith.constant 0 : index
    %256 = vector.load %arg27[%c0_129, %c0_130] : memref<8x48xf32, #tpu.memory_space<vmem>>, vector<8x48xf32>
    %c0_131 = arith.constant 0 : index
    %c0_132 = arith.constant 0 : index
    %257 = vector.load %arg20[%c0_131, %c0_132] : memref<48x32xf32, #tpu.memory_space<vmem>>, vector<48x32xf32>
    %cst_133 = arith.constant dense<0.000000e+00> : vector<8x32xf32>
    %258 = tpu.matmul %256, %257, %cst_133 {dimension_numbers = #tpu.dot_dimension_numbers<[1], [0], [0], [1], [0, 0, 1, 1], [], []>} : vector<8x48xf32>, vector<48x32xf32>, vector<8x32xf32> -> vector<8x32xf32>
    %c0_134 = arith.constant 0 : index
    %c0_135 = arith.constant 0 : index
    %259 = vector.load %arg21[%c0_134, %c0_135] : memref<1x32xf32, #tpu.memory_space<vmem>>, vector<1x32xf32>
    %260 = vector.broadcast %259 : vector<1x32xf32> to vector<8x32xf32>
    %261 = arith.addf %258, %260 : vector<8x32xf32>
    %262 = arith.addf %261, %1 : vector<8x32xf32>
    %cst_136 = arith.constant dense<0.000000e+00> : vector<8xf32>
    %263 = vector.multi_reduction <add>, %262, %cst_136 [1] : vector<8x32xf32> to vector<8xf32>
    %264 = vector.shape_cast %263 : vector<8xf32> to vector<8x1xf32>
    %cst_137 = arith.constant 3.200000e+01 : f32
    %265 = vector.broadcast %cst_137 : f32 to vector<8x1xf32>
    %266 = arith.divf %264, %265 : vector<8x1xf32>
    %267 = vector.broadcast %266 : vector<8x1xf32> to vector<8x32xf32>
    %268 = arith.subf %262, %267 : vector<8x32xf32>
    %269 = arith.mulf %268, %268 : vector<8x32xf32>
    %cst_138 = arith.constant dense<0.000000e+00> : vector<8xf32>
    %270 = vector.multi_reduction <add>, %269, %cst_138 [1] : vector<8x32xf32> to vector<8xf32>
    %271 = vector.shape_cast %270 : vector<8xf32> to vector<8x1xf32>
    %cst_139 = arith.constant 3.200000e+01 : f32
    %272 = vector.broadcast %cst_139 : f32 to vector<8x1xf32>
    %273 = arith.divf %271, %272 : vector<8x1xf32>
    %274 = vector.broadcast %266 : vector<8x1xf32> to vector<8x32xf32>
    %275 = arith.subf %262, %274 : vector<8x32xf32>
    %cst_140 = arith.constant 9.99999996E-13 : f32
    %276 = vector.broadcast %cst_140 : f32 to vector<8x1xf32>
    %277 = arith.addf %273, %276 : vector<8x1xf32>
    %278 = math.rsqrt %277 : vector<8x1xf32>
    %279 = vector.broadcast %278 : vector<8x1xf32> to vector<8x32xf32>
    %280 = arith.mulf %275, %279 : vector<8x32xf32>
    %c0_141 = arith.constant 0 : index
    %c0_142 = arith.constant 0 : index
    %281 = vector.load %arg22[%c0_141, %c0_142] : memref<1x32xf32, #tpu.memory_space<vmem>>, vector<1x32xf32>
    %282 = vector.broadcast %281 : vector<1x32xf32> to vector<8x32xf32>
    %283 = arith.mulf %280, %282 : vector<8x32xf32>
    %c0_143 = arith.constant 0 : index
    %c0_144 = arith.constant 0 : index
    %284 = vector.load %arg23[%c0_143, %c0_144] : memref<1x32xf32, #tpu.memory_space<vmem>>, vector<1x32xf32>
    %285 = vector.broadcast %284 : vector<1x32xf32> to vector<8x32xf32>
    %286 = arith.addf %283, %285 : vector<8x32xf32>
    %287 = vector.shape_cast %286 : vector<8x32xf32> to vector<1x8x32xf32>
    %c0_145 = arith.constant 0 : index
    %c0_146 = arith.constant 0 : index
    %c0_147 = arith.constant 0 : index
    %288 = vector.load %arg24[%c0_145, %c0_146, %c0_147] : memref<1x8x32xf32, #tpu.memory_space<vmem>>, vector<1x8x32xf32>
    tpu.vector_store %arg24[%c0_145, %c0_146, %c0_147], %287 {strides = array<i32>} : memref<1x8x32xf32, #tpu.memory_space<vmem>>, vector<1x8x32xf32>,
    return
  }
  func.func @transform_0(%arg0: i32) -> (i32, i32, i32) {
    %c0_i32 = arith.constant 0 : i32
    %c0_i32_0 = arith.constant 0 : i32
    %c0_i32_1 = arith.constant 0 : i32
    return %arg0, %c0_i32, %c0_i32_0 : i32, i32, i32
  }
  func.func @transform_1(%arg0: i32) -> (i32, i32, i32) {
    %c0_i32 = arith.constant 0 : i32
    %c0_i32_0 = arith.constant 0 : i32
    %c0_i32_1 = arith.constant 0 : i32
    return %arg0, %c0_i32, %c0_i32_0 : i32, i32, i32
  }
  func.func @transform_2(%arg0: i32) -> (i32, i32, i32) {
    %c0_i32 = arith.constant 0 : i32
    %c0_i32_0 = arith.constant 0 : i32
    %c0_i32_1 = arith.constant 0 : i32
    return %arg0, %c0_i32, %c0_i32_0 : i32, i32, i32
  }
  func.func @transform_3(%arg0: i32) -> (i32, i32, i32) {
    %c0_i32 = arith.constant 0 : i32
    %c0_i32_0 = arith.constant 0 : i32
    %c0_i32_1 = arith.constant 0 : i32
    return %arg0, %c0_i32, %c0_i32_0 : i32, i32, i32
  }
  func.func @transform_4(%arg0: i32) -> (i32, i32, i32) {
    %c0_i32 = arith.constant 0 : i32
    %c0_i32_0 = arith.constant 0 : i32
    %c0_i32_1 = arith.constant 0 : i32
    return %arg0, %c0_i32, %c0_i32_0 : i32, i32, i32
  }
  func.func @transform_5(%arg0: i32) -> (i32, i32, i32) {
    %c0_i32 = arith.constant 0 : i32
    %c0_i32_0 = arith.constant 0 : i32
    %c0_i32_1 = arith.constant 0 : i32
    return %arg0, %c0_i32, %c0_i32_0 : i32, i32, i32
  }
  func.func @transform_6(%arg0: i32) -> (i32, i32, i32) {
    %c0_i32 = arith.constant 0 : i32
    %c0_i32_0 = arith.constant 0 : i32
    %c0_i32_1 = arith.constant 0 : i32
    return %arg0, %c0_i32, %c0_i32_0 : i32, i32, i32
  }
  func.func @transform_7(%arg0: i32) -> (i32, i32) {
    %c0_i32 = arith.constant 0 : i32
    %c0_i32_0 = arith.constant 0 : i32
    %c0_i32_1 = arith.constant 0 : i32
    return %c0_i32, %c0_i32_0 : i32, i32
  }
  func.func @transform_8(%arg0: i32) -> (i32, i32) {
    %c0_i32 = arith.constant 0 : i32
    %c0_i32_0 = arith.constant 0 : i32
    %c0_i32_1 = arith.constant 0 : i32
    return %c0_i32, %c0_i32_0 : i32, i32
  }
  func.func @transform_9(%arg0: i32) -> (i32, i32) {
    %c0_i32 = arith.constant 0 : i32
    %c0_i32_0 = arith.constant 0 : i32
    %c0_i32_1 = arith.constant 0 : i32
    return %c0_i32, %c0_i32_0 : i32, i32
  }
  func.func @transform_10(%arg0: i32) -> (i32, i32) {
    %c0_i32 = arith.constant 0 : i32
    %c0_i32_0 = arith.constant 0 : i32
    %c0_i32_1 = arith.constant 0 : i32
    return %c0_i32, %c0_i32_0 : i32, i32
  }
  func.func @transform_11(%arg0: i32) -> (i32, i32) {
    %c0_i32 = arith.constant 0 : i32
    %c0_i32_0 = arith.constant 0 : i32
    %c0_i32_1 = arith.constant 0 : i32
    return %c0_i32, %c0_i32_0 : i32, i32
  }
  func.func @transform_12(%arg0: i32) -> (i32, i32) {
    %c0_i32 = arith.constant 0 : i32
    %c0_i32_0 = arith.constant 0 : i32
    %c0_i32_1 = arith.constant 0 : i32
    return %c0_i32, %c0_i32_0 : i32, i32
  }
  func.func @transform_13(%arg0: i32) -> (i32, i32) {
    %c0_i32 = arith.constant 0 : i32
    %c0_i32_0 = arith.constant 0 : i32
    %c0_i32_1 = arith.constant 0 : i32
    return %c0_i32, %c0_i32_0 : i32, i32
  }
  func.func @transform_14(%arg0: i32) -> (i32, i32) {
    %c0_i32 = arith.constant 0 : i32
    %c0_i32_0 = arith.constant 0 : i32
    %c0_i32_1 = arith.constant 0 : i32
    return %c0_i32, %c0_i32_0 : i32, i32
  }
  func.func @transform_15(%arg0: i32) -> (i32, i32) {
    %c0_i32 = arith.constant 0 : i32
    %c0_i32_0 = arith.constant 0 : i32
    %c0_i32_1 = arith.constant 0 : i32
    return %c0_i32, %c0_i32_0 : i32, i32
  }
  func.func @transform_16(%arg0: i32) -> (i32, i32) {
    %c0_i32 = arith.constant 0 : i32
    %c0_i32_0 = arith.constant 0 : i32
    %c0_i32_1 = arith.constant 0 : i32
    return %c0_i32, %c0_i32_0 : i32, i32
  }
  func.func @transform_17(%arg0: i32) -> (i32, i32) {
    %c0_i32 = arith.constant 0 : i32
    %c0_i32_0 = arith.constant 0 : i32
    %c0_i32_1 = arith.constant 0 : i32
    return %c0_i32, %c0_i32_0 : i32, i32
  }
  func.func @transform_18(%arg0: i32) -> (i32, i32) {
    %c0_i32 = arith.constant 0 : i32
    %c0_i32_0 = arith.constant 0 : i32
    %c0_i32_1 = arith.constant 0 : i32
    return %c0_i32, %c0_i32_0 : i32, i32
  }
  func.func @transform_19(%arg0: i32) -> (i32, i32) {
    %c0_i32 = arith.constant 0 : i32
    %c0_i32_0 = arith.constant 0 : i32
    %c0_i32_1 = arith.constant 0 : i32
    return %c0_i32, %c0_i32_0 : i32, i32
  }
  func.func @transform_20(%arg0: i32) -> (i32, i32) {
    %c0_i32 = arith.constant 0 : i32
    %c0_i32_0 = arith.constant 0 : i32
    %c0_i32_1 = arith.constant 0 : i32
    return %c0_i32, %c0_i32_0 : i32, i32
  }
  func.func @transform_21(%arg0: i32) -> (i32, i32) {
    %c0_i32 = arith.constant 0 : i32
    %c0_i32_0 = arith.constant 0 : i32
    %c0_i32_1 = arith.constant 0 : i32
    return %c0_i32, %c0_i32_0 : i32, i32
  }
  func.func @transform_22(%arg0: i32) -> (i32, i32) {
    %c0_i32 = arith.constant 0 : i32
    %c0_i32_0 = arith.constant 0 : i32
    %c0_i32_1 = arith.constant 0 : i32
    return %c0_i32, %c0_i32_0 : i32, i32
  }
  func.func @transform_23(%arg0: i32) -> (i32, i32, i32) {
    %c0_i32 = arith.constant 0 : i32
    %c0_i32_0 = arith.constant 0 : i32
    %c0_i32_1 = arith.constant 0 : i32
    return %arg0, %c0_i32, %c0_i32_0 : i32, i32, i32
  }
  func.func @transform_24(%arg0: i32) -> (i32, i32, i32, i32) {
    %c0_i32 = arith.constant 0 : i32
    %c0_i32_0 = arith.constant 0 : i32
    %c0_i32_1 = arith.constant 0 : i32
    %c0_i32_2 = arith.constant 0 : i32
    return %arg0, %c0_i32, %c0_i32_0, %c0_i32_1 : i32, i32, i32, i32
  }
  func.func @transform_25(%arg0: i32) -> (i32, i32, i32, i32) {
    %c0_i32 = arith.constant 0 : i32
    %c0_i32_0 = arith.constant 0 : i32
    %c0_i32_1 = arith.constant 0 : i32
    %c0_i32_2 = arith.constant 0 : i32
    return %arg0, %c0_i32, %c0_i32_0, %c0_i32_1 : i32, i32, i32, i32
  }
}

</mosaic_0001>

<llo_original>
// kernel: tpu_custom_call.1
$region0: #{tpu_custom_call.1}
  #allocation0 [shape = 'u32[]', space=smem, size = 0x4, offset = 0x4, fixed_abs, tag = 'smem constant byte address 0x4 - core index']
  #allocation1 [shape = 'u32[144,128]{1,0:T(1,128)}', space=vmem, size = 0x12000, scoped, tag = 'internal scratch']
  #allocation2 [shape = 'f32[8,48]{1,0:T(8,128)}', space=vmem, size = 0x1000, scoped, tag = 'scratch operand']
  %s0 = inlined_call_operand.vmem [shape: f32[2,8,32], index: 0, kind: input, shape index: {}]
  %s1 = inlined_call_operand.hbm [shape: f32[2,8,32], index: 1, kind: input, shape index: {}]
  %s2 = inlined_call_operand.hbm [shape: f32[2,8,32], index: 2, kind: input, shape index: {}]
  %s3 = inlined_call_operand.hbm [shape: f32[2,8,16], index: 3, kind: input, shape index: {}]
  %s4 = inlined_call_operand.hbm [shape: f32[2,8,16], index: 4, kind: input, shape index: {}]
  %s5 = inlined_call_operand.hbm [shape: f32[2,1,8], index: 5, kind: input, shape index: {}]
  %s6 = inlined_call_operand.hbm [shape: f32[2,1,8], index: 6, kind: input, shape index: {}]
  %s7 = inlined_call_operand.vmem [shape: f32[32,32], index: 7, kind: input, shape index: {}]
  %s8 = inlined_call_operand.hbm [shape: f32[1,32], index: 8, kind: input, shape index: {}]
  %s9 = inlined_call_operand.vmem [shape: f32[32,32], index: 9, kind: input, shape index: {}]
  %s10 = inlined_call_operand.vmem [shape: f32[1,32], index: 10, kind: input, shape index: {}]
  %s11 = inlined_call_operand.vmem [shape: f32[32,32], index: 11, kind: input, shape index: {}]
  %s12 = inlined_call_operand.vmem [shape: f32[1,32], index: 12, kind: input, shape index: {}]
  %s13 = inlined_call_operand.vmem [shape: f32[32,16], index: 13, kind: input, shape index: {}]
  %s14 = inlined_call_operand.vmem [shape: f32[1,16], index: 14, kind: input, shape index: {}]
  %s15 = inlined_call_operand.hbm [shape: f32[16,16], index: 15, kind: input, shape index: {}]
  %s16 = inlined_call_operand.vmem [shape: f32[1,16], index: 16, kind: input, shape index: {}]
  %s17 = inlined_call_operand.hbm [shape: f32[16,16], index: 17, kind: input, shape index: {}]
  %s18 = inlined_call_operand.vmem [shape: f32[1,16], index: 18, kind: input, shape index: {}]
  %s19 = inlined_call_operand.vmem [shape: f32[48,32], index: 19, kind: input, shape index: {}]
  %s20 = inlined_call_operand.vmem [shape: f32[1,32], index: 20, kind: input, shape index: {}]
  %s21 = inlined_call_operand.vmem [shape: f32[1,32], index: 21, kind: input, shape index: {}]
  %s22 = inlined_call_operand.vmem [shape: f32[1,32], index: 22, kind: input, shape index: {}]
  %s23 = inlined_call_operand.hbm [shape: f32[2,8,32], index: 23, kind: output, shape index: {0}]
  %s24 = inlined_call_operand.hbm [shape: f32[2,4,8,8], index: 24, kind: output, shape index: {1}]
  %s25 = inlined_call_operand.hbm [shape: f32[2,4,8,8], index: 25, kind: output, shape index: {2}]
  %26 = xla_tuple %s23, %s24, %s25
  %s27 = sld [smem:[#allocation0]]
  $region177: #{tpu_custom_call.1} parent=0
    _
  %s29 = ssub.s32 1, %s27
  %s30 = scalar_select 0, %s29, %s27
  $region1: #{tpu_custom_call.1} parent=0
    #allocation3 [shape = 'u8[8192]{0}', space=vmem, size = 0x2000, scoped, tag = 'input window, operand 1']
    #allocation4 [shape = 's32[2]{0}', space=sflag, size = 0x8, scoped, tag = 'scoped memory for tpu_custom_call.1']
    #allocation5 [shape = 's32[2]{0}', space=sflag, size = 0x8, scoped, tag = 'scoped memory for tpu_custom_call.1']
    #allocation6 [shape = 'u8[8192]{0}', space=vmem, size = 0x2000, scoped, tag = 'input window, operand 2']
    #allocation7 [shape = 's32[2]{0}', space=sflag, size = 0x8, scoped, tag = 'scoped memory for tpu_custom_call.1']
    #allocation8 [shape = 'u8[8192]{0}', space=vmem, size = 0x2000, scoped, tag = 'input window, operand 3']
    #allocation9 [shape = 'u8[8192]{0}', space=vmem, size = 0x2000, scoped, tag = 'input window, operand 4']
    #allocation10 [shape = 's32[2]{0}', space=sflag, size = 0x8, scoped, tag = 'scoped memory for tpu_custom_call.1']
    #allocation11 [shape = 'u8[1024]{0}', space=vmem, size = 0x400, scoped, tag = 'input window, operand 5']
    #allocation12 [shape = 'u8[1024]{0}', space=vmem, size = 0x400, scoped, tag = 'input window, operand 6']
    #allocation13 [shape = 's32[2]{0}', space=sflag, size = 0x8, scoped, tag = 'scoped memory for tpu_custom_call.1']
    #allocation14 [shape = 'u8[512]{0}', space=vmem, size = 0x400, scoped, tag = 'input window, operand 8, single buffered']
    #allocation15 [shape = 'u8[8192]{0}', space=vmem, size = 0x2000, scoped, tag = 'input window, operand 15, single buffered']
    #allocation16 [shape = 's32[1]{0}', space=sflag, size = 0x4, scoped, tag = 'scoped memory for tpu_custom_call.1']
    #allocation17 [shape = 'u8[8192]{0}', space=vmem, size = 0x2000, scoped, tag = 'input window, operand 17, single buffered']
    #allocation18 [shape = 'u8[8192]{0}', space=vmem, size = 0x2000, scoped, tag = 'output window, operand 0']
    #allocation19 [shape = 'u8[32768]{0}', space=vmem, size = 0x8000, scoped, tag = 'output window, operand 1']
    #allocation20 [shape = 's32[2]{0}', space=sflag, size = 0x8, scoped, tag = 'scoped memory for tpu_custom_call.1']
    #allocation21 [shape = 'u8[32768]{0}', space=vmem, size = 0x8000, scoped, tag = 'output window, operand 2']
    %31 = vsyncpa [#allocation4], 0
    %s32 = scalar_lea.sflag [#allocation4], 1
    %33 = vsyncpa %s32, 0
    %34 = vsyncpa [#allocation7], 0
    %s35 = scalar_lea.sflag [#allocation7], 1
    %36 = vsyncpa %s35, 0
    %37 = vsyncpa [#allocation10], 0
    %s38 = scalar_lea.sflag [#allocation10], 1
    %39 = vsyncpa %s38, 0
    %40 = vsyncpa [#allocation13], 0
    %s41 = scalar_lea.sflag [#allocation13], 1
    %42 = vsyncpa %s41, 0
    %43 = vsyncpa [#allocation16], 0
    %44 = vsyncpa [#allocation5], 0
    %s45 = scalar_lea.sflag [#allocation5], 1
    %46 = vsyncpa %s45, 0
    %47 = vsyncpa [#allocation20], 0
    %s48 = scalar_lea.sflag [#allocation20], 1
    %49 = vsyncpa %s48, 0
    loop: start=0, step=1, limit=4
    $region2: #{tpu_custom_call.1} parent=1 // loop_pre_header
      _
    $region3: #{tpu_custom_call.1} parent=1 // loop_header
      %s51 = sphi 0, %s55
      %p52 = scmp.ge.s32.totalorder %s51, 4
      %s61 = sphi 0, %s63
      %s64 = sphi 0, %s61
      %s65 = sphi 0, %s64
      %s81 = sphi 0, %s65
      %s87 = sphi 0, %s89
      %s90 = sphi 0, %s87
      %s91 = sphi 0, %s90
      %s107 = sphi 0, %s91
      %s113 = sphi 0, %s115
      %s116 = sphi 0, %s113
      %s117 = sphi 0, %s116
      %s133 = sphi 0, %s117
      %s139 = sphi 0, %s141
      %s142 = sphi 0, %s139
      %s143 = sphi 0, %s142
      %s159 = sphi 0, %s143
      %s165 = sphi 0, %s167
      %s168 = sphi 0, %s165
      %s169 = sphi 0, %s168
      %s185 = sphi 0, %s169
      %s191 = sphi 0, %s193
      %s194 = sphi 0, %s191
      %s195 = sphi 0, %s194
      %s211 = sphi 0, %s195
      %s217 = sphi 0, %s219
      %s220 = sphi 0, %s217
      %s221 = sphi 0, %s220
      %s237 = sphi 0, %s221
      %s241 = sphi 0, %s241
      %s243 = sphi 0, %s241
      %s244 = sphi 0, %s243
      %s258 = sphi 0, %s244
      %s262 = sphi 0, %s262
      %s264 = sphi 0, %s262
      %s265 = sphi 0, %s264
      %s279 = sphi 0, %s265
      %s283 = sphi 0, %s283
      %s285 = sphi 0, %s283
      %s286 = sphi 0, %s285
      %s300 = sphi 0, %s286
      %s304 = sphi 0, %s304
      %s306 = sphi 0, %s304
      %s307 = sphi 0, %s306
      %s321 = sphi 0, %s307
      %s325 = sphi 0, %s325
      %s327 = sphi 0, %s325
      %s328 = sphi 0, %s327
      %s342 = sphi 0, %s328
      %s346 = sphi 0, %s346
      %s348 = sphi 0, %s346
      %s349 = sphi 0, %s348
      %s363 = sphi 0, %s349
      %s367 = sphi 0, %s367
      %s369 = sphi 0, %s367
      %s370 = sphi 0, %s369
      %s384 = sphi 0, %s370
      %s388 = sphi 0, %s388
      %s390 = sphi 0, %s388
      %s391 = sphi 0, %s390
      %s405 = sphi 0, %s391
      %s409 = sphi 0, %s409
      %s411 = sphi 0, %s409
      %s412 = sphi 0, %s411
      %s426 = sphi 0, %s412
      %s430 = sphi 0, %s430
      %s432 = sphi 0, %s430
      %s433 = sphi 0, %s432
      %s447 = sphi 0, %s433
      %s451 = sphi 0, %s451
      %s453 = sphi 0, %s451
      %s454 = sphi 0, %s453
      %s468 = sphi 0, %s454
      %s472 = sphi 0, %s472
      %s474 = sphi 0, %s472
      %s475 = sphi 0, %s474
      %s489 = sphi 0, %s475
      %s493 = sphi 0, %s493
      %s495 = sphi 0, %s493
      %s496 = sphi 0, %s495
      %s510 = sphi 0, %s496
      %s514 = sphi 0, %s514
      %s516 = sphi 0, %s514
      %s517 = sphi 0, %s516
      %s531 = sphi 0, %s517
      %s535 = sphi 0, %s535
      %s537 = sphi 0, %s535
      %s538 = sphi 0, %s537
      %s552 = sphi 0, %s538
      %s556 = sphi 0, %s556
      %s558 = sphi 0, %s556
      %s559 = sphi 0, %s558
      %s573 = sphi 0, %s559
      %s579 = sphi 0, %s581
      %s582 = sphi 0, %s579
      %s583 = sphi 0, %s582
      %s599 = sphi 0, %s583
      %s605 = sphi 0, %s607
      %s608 = sphi 0, %s605
      %s609 = sphi 0, %s608
      %s625 = sphi 0, %s609
      %s631 = sphi 0, %s633
      %s634 = sphi 0, %s631
      %s635 = sphi 0, %s634
      %s651 = sphi 0, %s635
    $region4: #{tpu_custom_call.1} parent=1 // loop_header_branch
      %54 = sbr.rel (%p52) target = $region8
    $region5: #{tpu_custom_call.1} parent=1 // loop_body
      %s56 = ssub.s32 %s51, 1
      %s57 = ssub.s32 %s51, 2
      %s58 = sadd.s32 %s51, 1
      %s59 = ssub.s32 %s51, %s58
      %p60 = scmp.eq.s32.totalorder %s59, 0
      %s62 = sadd.s32 %s61, 1
      %s63 = scalar_select %p60, %s61, %s62
      %p66 = pneg %p60
      %p67 = scmp.eq.s32.totalorder %s51, 1
      %p68 = por %p66, %p67
      %p69 = scmp.ne.s32.totalorder %s61, %s64
      %p70 = scmp.eq.s32.totalorder %s51, 0
      %p71 = por %p69, %p70
      %p72 = scmp.ne.s32.totalorder %s61, %s64
      %p73 = scmp.eq.s32.totalorder %s56, 1
      %p74 = por %p72, %p73
      %p75 = scmp.ne.s32.totalorder %s64, %s65
      %p76 = scmp.eq.s32.totalorder %s56, 0
      %p77 = por %p75, %p76
      %p78 = scmp.ne.s32.totalorder %s64, %s65
      %p79 = scmp.eq.s32.totalorder %s57, 1
      %p80 = por %p78, %p79
      %p82 = scmp.ne.s32.totalorder %s65, %s81
      %p83 = scmp.eq.s32.totalorder %s57, 0
      %p84 = por %p82, %p83
      %s85 = ssub.s32 %s51, %s58
      %p86 = scmp.eq.s32.totalorder %s85, 0
      %s88 = sadd.s32 %s87, 1
      %s89 = scalar_select %p86, %s87, %s88
      %p92 = pneg %p86
      %p93 = scmp.eq.s32.totalorder %s51, 1
      %p94 = por %p92, %p93
      %p95 = scmp.ne.s32.totalorder %s87, %s90
      %p96 = scmp.eq.s32.totalorder %s51, 0
      %p97 = por %p95, %p96
      %p98 = scmp.ne.s32.totalorder %s87, %s90
      %p99 = scmp.eq.s32.totalorder %s56, 1
      %p100 = por %p98, %p99
      %p101 = scmp.ne.s32.totalorder %s90, %s91
      %p102 = scmp.eq.s32.totalorder %s56, 0
      %p103 = por %p101, %p102
      %p104 = scmp.ne.s32.totalorder %s90, %s91
      %p105 = scmp.eq.s32.totalorder %s57, 1
      %p106 = por %p104, %p105
      %p108 = scmp.ne.s32.totalorder %s91, %s107
      %p109 = scmp.eq.s32.totalorder %s57, 0
      %p110 = por %p108, %p109
      %s111 = ssub.s32 %s51, %s58
      %p112 = scmp.eq.s32.totalorder %s111, 0
      %s114 = sadd.s32 %s113, 1
      %s115 = scalar_select %p112, %s113, %s114
      %p118 = pneg %p112
      %p119 = scmp.eq.s32.totalorder %s51, 1
      %p120 = por %p118, %p119
      %p121 = scmp.ne.s32.totalorder %s113, %s116
      %p122 = scmp.eq.s32.totalorder %s51, 0
      %p123 = por %p121, %p122
      %p124 = scmp.ne.s32.totalorder %s113, %s116
      %p125 = scmp.eq.s32.totalorder %s56, 1
      %p126 = por %p124, %p125
      %p127 = scmp.ne.s32.totalorder %s116, %s117
      %p128 = scmp.eq.s32.totalorder %s56, 0
      %p129 = por %p127, %p128
      %p130 = scmp.ne.s32.totalorder %s116, %s117
      %p131 = scmp.eq.s32.totalorder %s57, 1
      %p132 = por %p130, %p131
      %p134 = scmp.ne.s32.totalorder %s117, %s133
      %p135 = scmp.eq.s32.totalorder %s57, 0
      %p136 = por %p134, %p135
      %s137 = ssub.s32 %s51, %s58
      %p138 = scmp.eq.s32.totalorder %s137, 0
      %s140 = sadd.s32 %s139, 1
      %s141 = scalar_select %p138, %s139, %s140
      %p144 = pneg %p138
      %p145 = scmp.eq.s32.totalorder %s51, 1
      %p146 = por %p144, %p145
      %p147 = scmp.ne.s32.totalorder %s139, %s142
      %p148 = scmp.eq.s32.totalorder %s51, 0
      %p149 = por %p147, %p148
      %p150 = scmp.ne.s32.totalorder %s139, %s142
      %p151 = scmp.eq.s32.totalorder %s56, 1
      %p152 = por %p150, %p151
      %p153 = scmp.ne.s32.totalorder %s142, %s143
      %p154 = scmp.eq.s32.totalorder %s56, 0
      %p155 = por %p153, %p154
      %p156 = scmp.ne.s32.totalorder %s142, %s143
      %p157 = scmp.eq.s32.totalorder %s57, 1
      %p158 = por %p156, %p157
      %p160 = scmp.ne.s32.totalorder %s143, %s159
      %p161 = scmp.eq.s32.totalorder %s57, 0
      %p162 = por %p160, %p161
      %s163 = ssub.s32 %s51, %s58
      %p164 = scmp.eq.s32.totalorder %s163, 0
      %s166 = sadd.s32 %s165, 1
      %s167 = scalar_select %p164, %s165, %s166
      %p170 = pneg %p164
      %p171 = scmp.eq.s32.totalorder %s51, 1
      %p172 = por %p170, %p171
      %p173 = scmp.ne.s32.totalorder %s165, %s168
      %p174 = scmp.eq.s32.totalorder %s51, 0
      %p175 = por %p173, %p174
      %p176 = scmp.ne.s32.totalorder %s165, %s168
      %p177 = scmp.eq.s32.totalorder %s56, 1
      %p178 = por %p176, %p177
      %p179 = scmp.ne.s32.totalorder %s168, %s169
      %p180 = scmp.eq.s32.totalorder %s56, 0
      %p181 = por %p179, %p180
      %p182 = scmp.ne.s32.totalorder %s168, %s169
      %p183 = scmp.eq.s32.totalorder %s57, 1
      %p184 = por %p182, %p183
      %p186 = scmp.ne.s32.totalorder %s169, %s185
      %p187 = scmp.eq.s32.totalorder %s57, 0
      %p188 = por %p186, %p187
      %s189 = ssub.s32 %s51, %s58
      %p190 = scmp.eq.s32.totalorder %s189, 0
      %s192 = sadd.s32 %s191, 1
      %s193 = scalar_select %p190, %s191, %s192
      %p196 = pneg %p190
      %p197 = scmp.eq.s32.totalorder %s51, 1
      %p198 = por %p196, %p197
      %p199 = scmp.ne.s32.totalorder %s191, %s194
      %p200 = scmp.eq.s32.totalorder %s51, 0
      %p201 = por %p199, %p200
      %p202 = scmp.ne.s32.totalorder %s191, %s194
      %p203 = scmp.eq.s32.totalorder %s56, 1
      %p204 = por %p202, %p203
      %p205 = scmp.ne.s32.totalorder %s194, %s195
      %p206 = scmp.eq.s32.totalorder %s56, 0
      %p207 = por %p205, %p206
      %p208 = scmp.ne.s32.totalorder %s194, %s195
      %p209 = scmp.eq.s32.totalorder %s57, 1
      %p210 = por %p208, %p209
      %p212 = scmp.ne.s32.totalorder %s195, %s211
      %p213 = scmp.eq.s32.totalorder %s57, 0
      %p214 = por %p212, %p213
      %s215 = ssub.s32 %s51, %s58
      %p216 = scmp.eq.s32.totalorder %s215, 0
      %s218 = sadd.s32 %s217, 1
      %s219 = scalar_select %p216, %s217, %s218
      %p222 = pneg %p216
      %p223 = scmp.eq.s32.totalorder %s51, 1
      %p224 = por %p222, %p223
      %p225 = scmp.ne.s32.totalorder %s217, %s220
      %p226 = scmp.eq.s32.totalorder %s51, 0
      %p227 = por %p225, %p226
      %p228 = scmp.ne.s32.totalorder %s217, %s220
      %p229 = scmp.eq.s32.totalorder %s56, 1
      %p230 = por %p228, %p229
      %p231 = scmp.ne.s32.totalorder %s220, %s221
      %p232 = scmp.eq.s32.totalorder %s56, 0
      %p233 = por %p231, %p232
      %p234 = scmp.ne.s32.totalorder %s220, %s221
      %p235 = scmp.eq.s32.totalorder %s57, 1
      %p236 = por %p234, %p235
      %p238 = scmp.ne.s32.totalorder %s221, %s237
      %p239 = scmp.eq.s32.totalorder %s57, 0
      %p240 = por %p238, %p239
      %s242 = sadd.s32 %s241, 1
      %p245 = scmp.eq.s32.totalorder %s51, 1
      %p246 = scmp.ne.s32.totalorder %s241, %s243
      %p247 = scmp.eq.s32.totalorder %s51, 0
      %p248 = por %p246, %p247
      %p249 = scmp.ne.s32.totalorder %s241, %s243
      %p250 = scmp.eq.s32.totalorder %s56, 1
      %p251 = por %p249, %p250
      %p252 = scmp.ne.s32.totalorder %s243, %s244
      %p253 = scmp.eq.s32.totalorder %s56, 0
      %p254 = por %p252, %p253
      %p255 = scmp.ne.s32.totalorder %s243, %s244
      %p256 = scmp.eq.s32.totalorder %s57, 1
      %p257 = por %p255, %p256
      %p259 = scmp.ne.s32.totalorder %s244, %s258
      %p260 = scmp.eq.s32.totalorder %s57, 0
      %p261 = por %p259, %p260
      %s263 = sadd.s32 %s262, 1
      %p266 = scmp.eq.s32.totalorder %s51, 1
      %p267 = scmp.ne.s32.totalorder %s262, %s264
      %p268 = scmp.eq.s32.totalorder %s51, 0
      %p269 = por %p267, %p268
      %p270 = scmp.ne.s32.totalorder %s262, %s264
      %p271 = scmp.eq.s32.totalorder %s56, 1
      %p272 = por %p270, %p271
      %p273 = scmp.ne.s32.totalorder %s264, %s265
      %p274 = scmp.eq.s32.totalorder %s56, 0
      %p275 = por %p273, %p274
      %p276 = scmp.ne.s32.totalorder %s264, %s265
      %p277 = scmp.eq.s32.totalorder %s57, 1
      %p278 = por %p276, %p277
      %p280 = scmp.ne.s32.totalorder %s265, %s279
      %p281 = scmp.eq.s32.totalorder %s57, 0
      %p282 = por %p280, %p281
      %s284 = sadd.s32 %s283, 1
      %p287 = scmp.eq.s32.totalorder %s51, 1
      %p288 = scmp.ne.s32.totalorder %s283, %s285
      %p289 = scmp.eq.s32.totalorder %s51, 0
      %p290 = por %p288, %p289
      %p291 = scmp.ne.s32.totalorder %s283, %s285
      %p292 = scmp.eq.s32.totalorder %s56, 1
      %p293 = por %p291, %p292
      %p294 = scmp.ne.s32.totalorder %s285, %s286
      %p295 = scmp.eq.s32.totalorder %s56, 0
      %p296 = por %p294, %p295
      %p297 = scmp.ne.s32.totalorder %s285, %s286
      %p298 = scmp.eq.s32.totalorder %s57, 1
      %p299 = por %p297, %p298
      %p301 = scmp.ne.s32.totalorder %s286, %s300
      %p302 = scmp.eq.s32.totalorder %s57, 0
      %p303 = por %p301, %p302
      %s305 = sadd.s32 %s304, 1
      %p308 = scmp.eq.s32.totalorder %s51, 1
      %p309 = scmp.ne.s32.totalorder %s304, %s306
      %p310 = scmp.eq.s32.totalorder %s51, 0
      %p311 = por %p309, %p310
      %p312 = scmp.ne.s32.totalorder %s304, %s306
      %p313 = scmp.eq.s32.totalorder %s56, 1
      %p314 = por %p312, %p313
      %p315 = scmp.ne.s32.totalorder %s306, %s307
      %p316 = scmp.eq.s32.totalorder %s56, 0
      %p317 = por %p315, %p316
      %p318 = scmp.ne.s32.totalorder %s306, %s307
      %p319 = scmp.eq.s32.totalorder %s57, 1
      %p320 = por %p318, %p319
      %p322 = scmp.ne.s32.totalorder %s307, %s321
      %p323 = scmp.eq.s32.totalorder %s57, 0
      %p324 = por %p322, %p323
      %s326 = sadd.s32 %s325, 1
      %p329 = scmp.eq.s32.totalorder %s51, 1
      %p330 = scmp.ne.s32.totalorder %s325, %s327
      %p331 = scmp.eq.s32.totalorder %s51, 0
      %p332 = por %p330, %p331
      %p333 = scmp.ne.s32.totalorder %s325, %s327
      %p334 = scmp.eq.s32.totalorder %s56, 1
      %p335 = por %p333, %p334
      %p336 = scmp.ne.s32.totalorder %s327, %s328
      %p337 = scmp.eq.s32.totalorder %s56, 0
      %p338 = por %p336, %p337
      %p339 = scmp.ne.s32.totalorder %s327, %s328
      %p340 = scmp.eq.s32.totalorder %s57, 1
      %p341 = por %p339, %p340
      %p343 = scmp.ne.s32.totalorder %s328, %s342
      %p344 = scmp.eq.s32.totalorder %s57, 0
      %p345 = por %p343, %p344
      %s347 = sadd.s32 %s346, 1
      %p350 = scmp.eq.s32.totalorder %s51, 1
      %p351 = scmp.ne.s32.totalorder %s346, %s348
      %p352 = scmp.eq.s32.totalorder %s51, 0
      %p353 = por %p351, %p352
      %p354 = scmp.ne.s32.totalorder %s346, %s348
      %p355 = scmp.eq.s32.totalorder %s56, 1
      %p356 = por %p354, %p355
      %p357 = scmp.ne.s32.totalorder %s348, %s349
      %p358 = scmp.eq.s32.totalorder %s56, 0
      %p359 = por %p357, %p358
      %p360 = scmp.ne.s32.totalorder %s348, %s349
      %p361 = scmp.eq.s32.totalorder %s57, 1
      %p362 = por %p360, %p361
      %p364 = scmp.ne.s32.totalorder %s349, %s363
      %p365 = scmp.eq.s32.totalorder %s57, 0
      %p366 = por %p364, %p365
      %s368 = sadd.s32 %s367, 1
      %p371 = scmp.eq.s32.totalorder %s51, 1
      %p372 = scmp.ne.s32.totalorder %s367, %s369
      %p373 = scmp.eq.s32.totalorder %s51, 0
      %p374 = por %p372, %p373
      %p375 = scmp.ne.s32.totalorder %s367, %s369
      %p376 = scmp.eq.s32.totalorder %s56, 1
      %p377 = por %p375, %p376
      %p378 = scmp.ne.s32.totalorder %s369, %s370
      %p379 = scmp.eq.s32.totalorder %s56, 0
      %p380 = por %p378, %p379
      %p381 = scmp.ne.s32.totalorder %s369, %s370
      %p382 = scmp.eq.s32.totalorder %s57, 1
      %p383 = por %p381, %p382
      %p385 = scmp.ne.s32.totalorder %s370, %s384
      %p386 = scmp.eq.s32.totalorder %s57, 0
      %p387 = por %p385, %p386
      %s389 = sadd.s32 %s388, 1
      %p392 = scmp.eq.s32.totalorder %s51, 1
      %p393 = scmp.ne.s32.totalorder %s388, %s390
      %p394 = scmp.eq.s32.totalorder %s51, 0
      %p395 = por %p393, %p394
      %p396 = scmp.ne.s32.totalorder %s388, %s390
      %p397 = scmp.eq.s32.totalorder %s56, 1
      %p398 = por %p396, %p397
      %p399 = scmp.ne.s32.totalorder %s390, %s391
      %p400 = scmp.eq.s32.totalorder %s56, 0
      %p401 = por %p399, %p400
      %p402 = scmp.ne.s32.totalorder %s390, %s391
      %p403 = scmp.eq.s32.totalorder %s57, 1
      %p404 = por %p402, %p403
      %p406 = scmp.ne.s32.totalorder %s391, %s405
      %p407 = scmp.eq.s32.totalorder %s57, 0
      %p408 = por %p406, %p407
      %s410 = sadd.s32 %s409, 1
      %p413 = scmp.eq.s32.totalorder %s51, 1
      %p414 = scmp.ne.s32.totalorder %s409, %s411
      %p415 = scmp.eq.s32.totalorder %s51, 0
      %p416 = por %p414, %p415
      %p417 = scmp.ne.s32.totalorder %s409, %s411
      %p418 = scmp.eq.s32.totalorder %s56, 1
      %p419 = por %p417, %p418
      %p420 = scmp.ne.s32.totalorder %s411, %s412
      %p421 = scmp.eq.s32.totalorder %s56, 0
      %p422 = por %p420, %p421
      %p423 = scmp.ne.s32.totalorder %s411, %s412
      %p424 = scmp.eq.s32.totalorder %s57, 1
      %p425 = por %p423, %p424
      %p427 = scmp.ne.s32.totalorder %s412, %s426
      %p428 = scmp.eq.s32.totalorder %s57, 0
      %p429 = por %p427, %p428
      %s431 = sadd.s32 %s430, 1
      %p434 = scmp.eq.s32.totalorder %s51, 1
      %p435 = scmp.ne.s32.totalorder %s430, %s432
      %p436 = scmp.eq.s32.totalorder %s51, 0
      %p437 = por %p435, %p436
      %p438 = scmp.ne.s32.totalorder %s430, %s432
      %p439 = scmp.eq.s32.totalorder %s56, 1
      %p440 = por %p438, %p439
      %p441 = scmp.ne.s32.totalorder %s432, %s433
      %p442 = scmp.eq.s32.totalorder %s56, 0
      %p443 = por %p441, %p442
      %p444 = scmp.ne.s32.totalorder %s432, %s433
      %p445 = scmp.eq.s32.totalorder %s57, 1
      %p446 = por %p444, %p445
      %p448 = scmp.ne.s32.totalorder %s433, %s447
      %p449 = scmp.eq.s32.totalorder %s57, 0
      %p450 = por %p448, %p449
      %s452 = sadd.s32 %s451, 1
      %p455 = scmp.eq.s32.totalorder %s51, 1
      %p456 = scmp.ne.s32.totalorder %s451, %s453
      %p457 = scmp.eq.s32.totalorder %s51, 0
      %p458 = por %p456, %p457
      %p459 = scmp.ne.s32.totalorder %s451, %s453
      %p460 = scmp.eq.s32.totalorder %s56, 1
      %p461 = por %p459, %p460
      %p462 = scmp.ne.s32.totalorder %s453, %s454
      %p463 = scmp.eq.s32.totalorder %s56, 0
      %p464 = por %p462, %p463
      %p465 = scmp.ne.s32.totalorder %s453, %s454
      %p466 = scmp.eq.s32.totalorder %s57, 1
      %p467 = por %p465, %p466
      %p469 = scmp.ne.s32.totalorder %s454, %s468
      %p470 = scmp.eq.s32.totalorder %s57, 0
      %p471 = por %p469, %p470
      %s473 = sadd.s32 %s472, 1
      %p476 = scmp.eq.s32.totalorder %s51, 1
      %p477 = scmp.ne.s32.totalorder %s472, %s474
      %p478 = scmp.eq.s32.totalorder %s51, 0
      %p479 = por %p477, %p478
      %p480 = scmp.ne.s32.totalorder %s472, %s474
      %p481 = scmp.eq.s32.totalorder %s56, 1
      %p482 = por %p480, %p481
      %p483 = scmp.ne.s32.totalorder %s474, %s475
      %p484 = scmp.eq.s32.totalorder %s56, 0
      %p485 = por %p483, %p484
      %p486 = scmp.ne.s32.totalorder %s474, %s475
      %p487 = scmp.eq.s32.totalorder %s57, 1
      %p488 = por %p486, %p487
      %p490 = scmp.ne.s32.totalorder %s475, %s489
      %p491 = scmp.eq.s32.totalorder %s57, 0
      %p492 = por %p490, %p491
      %s494 = sadd.s32 %s493, 1
      %p497 = scmp.eq.s32.totalorder %s51, 1
      %p498 = scmp.ne.s32.totalorder %s493, %s495
      %p499 = scmp.eq.s32.totalorder %s51, 0
      %p500 = por %p498, %p499
      %p501 = scmp.ne.s32.totalorder %s493, %s495
      %p502 = scmp.eq.s32.totalorder %s56, 1
      %p503 = por %p501, %p502
      %p504 = scmp.ne.s32.totalorder %s495, %s496
      %p505 = scmp.eq.s32.totalorder %s56, 0
      %p506 = por %p504, %p505
      %p507 = scmp.ne.s32.totalorder %s495, %s496
      %p508 = scmp.eq.s32.totalorder %s57, 1
      %p509 = por %p507, %p508
      %p511 = scmp.ne.s32.totalorder %s496, %s510
      %p512 = scmp.eq.s32.totalorder %s57, 0
      %p513 = por %p511, %p512
      %s515 = sadd.s32 %s514, 1
      %p518 = scmp.eq.s32.totalorder %s51, 1
      %p519 = scmp.ne.s32.totalorder %s514, %s516
      %p520 = scmp.eq.s32.totalorder %s51, 0
      %p521 = por %p519, %p520
      %p522 = scmp.ne.s32.totalorder %s514, %s516
      %p523 = scmp.eq.s32.totalorder %s56, 1
      %p524 = por %p522, %p523
      %p525 = scmp.ne.s32.totalorder %s516, %s517
      %p526 = scmp.eq.s32.totalorder %s56, 0
      %p527 = por %p525, %p526
      %p528 = scmp.ne.s32.totalorder %s516, %s517
      %p529 = scmp.eq.s32.totalorder %s57, 1
      %p530 = por %p528, %p529
      %p532 = scmp.ne.s32.totalorder %s517, %s531
      %p533 = scmp.eq.s32.totalorder %s57, 0
      %p534 = por %p532, %p533
      %s536 = sadd.s32 %s535, 1
      %p539 = scmp.eq.s32.totalorder %s51, 1
      %p540 = scmp.ne.s32.totalorder %s535, %s537
      %p541 = scmp.eq.s32.totalorder %s51, 0
      %p542 = por %p540, %p541
      %p543 = scmp.ne.s32.totalorder %s535, %s537
      %p544 = scmp.eq.s32.totalorder %s56, 1
      %p545 = por %p543, %p544
      %p546 = scmp.ne.s32.totalorder %s537, %s538
      %p547 = scmp.eq.s32.totalorder %s56, 0
      %p548 = por %p546, %p547
      %p549 = scmp.ne.s32.totalorder %s537, %s538
      %p550 = scmp.eq.s32.totalorder %s57, 1
      %p551 = por %p549, %p550
      %p553 = scmp.ne.s32.totalorder %s538, %s552
      %p554 = scmp.eq.s32.totalorder %s57, 0
      %p555 = por %p553, %p554
      %s557 = sadd.s32 %s556, 1
      %p560 = scmp.eq.s32.totalorder %s51, 1
      %p561 = scmp.ne.s32.totalorder %s556, %s558
      %p562 = scmp.eq.s32.totalorder %s51, 0
      %p563 = por %p561, %p562
      %p564 = scmp.ne.s32.totalorder %s556, %s558
      %p565 = scmp.eq.s32.totalorder %s56, 1
      %p566 = por %p564, %p565
      %p567 = scmp.ne.s32.totalorder %s558, %s559
      %p568 = scmp.eq.s32.totalorder %s56, 0
      %p569 = por %p567, %p568
      %p570 = scmp.ne.s32.totalorder %s558, %s559
      %p571 = scmp.eq.s32.totalorder %s57, 1
      %p572 = por %p570, %p571
      %p574 = scmp.ne.s32.totalorder %s559, %s573
      %p575 = scmp.eq.s32.totalorder %s57, 0
      %p576 = por %p574, %p575
      %s577 = ssub.s32 %s51, %s58
      %p578 = scmp.eq.s32.totalorder %s577, 0
      %s580 = sadd.s32 %s579, 1
      %s581 = scalar_select %p578, %s579, %s580
      %p584 = pneg %p578
      %p585 = scmp.eq.s32.totalorder %s51, 1
      %p586 = por %p584, %p585
      %p587 = scmp.ne.s32.totalorder %s579, %s582
      %p588 = scmp.eq.s32.totalorder %s51, 0
      %p589 = por %p587, %p588
      %p590 = scmp.ne.s32.totalorder %s579, %s582
      %p591 = scmp.eq.s32.totalorder %s56, 1
      %p592 = por %p590, %p591
      %p593 = scmp.ne.s32.totalorder %s582, %s583
      %p594 = scmp.eq.s32.totalorder %s56, 0
      %p595 = por %p593, %p594
      %p596 = scmp.ne.s32.totalorder %s582, %s583
      %p597 = scmp.eq.s32.totalorder %s57, 1
      %p598 = por %p596, %p597
      %p600 = scmp.ne.s32.totalorder %s583, %s599
      %p601 = scmp.eq.s32.totalorder %s57, 0
      %p602 = por %p600, %p601
      %s603 = ssub.s32 %s51, %s58
      %p604 = scmp.eq.s32.totalorder %s603, 0
      %s606 = sadd.s32 %s605, 1
      %s607 = scalar_select %p604, %s605, %s606
      %p610 = pneg %p604
      %p611 = scmp.eq.s32.totalorder %s51, 1
      %p612 = por %p610, %p611
      %p613 = scmp.ne.s32.totalorder %s605, %s608
      %p614 = scmp.eq.s32.totalorder %s51, 0
      %p615 = por %p613, %p614
      %p616 = scmp.ne.s32.totalorder %s605, %s608
      %p617 = scmp.eq.s32.totalorder %s56, 1
      %p618 = por %p616, %p617
      %p619 = scmp.ne.s32.totalorder %s608, %s609
      %p620 = scmp.eq.s32.totalorder %s56, 0
      %p621 = por %p619, %p620
      %p622 = scmp.ne.s32.totalorder %s608, %s609
      %p623 = scmp.eq.s32.totalorder %s57, 1
      %p624 = por %p622, %p623
      %p626 = scmp.ne.s32.totalorder %s609, %s625
      %p627 = scmp.eq.s32.totalorder %s57, 0
      %p628 = por %p626, %p627
      %s629 = ssub.s32 %s51, %s58
      %p630 = scmp.eq.s32.totalorder %s629, 0
      %s632 = sadd.s32 %s631, 1
      %s633 = scalar_select %p630, %s631, %s632
      %p636 = pneg %p630
      %p637 = scmp.eq.s32.totalorder %s51, 1
      %p638 = por %p636, %p637
      %p639 = scmp.ne.s32.totalorder %s631, %s634
      %p640 = scmp.eq.s32.totalorder %s51, 0
      %p641 = por %p639, %p640
      %p642 = scmp.ne.s32.totalorder %s631, %s634
      %p643 = scmp.eq.s32.totalorder %s56, 1
      %p644 = por %p642, %p643
      %p645 = scmp.ne.s32.totalorder %s634, %s635
      %p646 = scmp.eq.s32.totalorder %s56, 0
      %p647 = por %p645, %p646
      %p648 = scmp.ne.s32.totalorder %s634, %s635
      %p649 = scmp.eq.s32.totalorder %s57, 1
      %p650 = por %p648, %p649
      %p652 = scmp.ne.s32.totalorder %s635, %s651
      %p653 = scmp.eq.s32.totalorder %s57, 0
      %p654 = por %p652, %p653
      %p655 = scmp.le.s32.totalorder 1, %s51
      %p656 = scmp.lt.s32.totalorder %s51, 3
      %p657 = pnand %p655, %p656
      %p658 = pneg %p657
      // Predicated region
      $region9: #{tpu_custom_call.1} parent=5 // pred_check
        _
      $region10: #{tpu_custom_call.1} parent=5 // pred_check_branch
        %660 = sbr.rel (%p657) target = $region12
      $region11: #{tpu_custom_call.1} parent=5 // pred_region
        %s661 = ssub.s32 %s51, 1
        // Predicated region
        $region13: #{tpu_custom_call.1} parent=11 // pred_check
          %p662 = pneg %p254
        $region14: #{tpu_custom_call.1} parent=11 // pred_check_branch
          %664 = sbr.rel (%p662) target = $region16
        $region15: #{tpu_custom_call.1} parent=11 // pred_region
          _
        $region16: #{tpu_custom_call.1} parent=11 // pred_fallthru
          _
        // Predicated region
        $region17: #{tpu_custom_call.1} parent=11 // pred_check
          %p665 = pneg %p275
        $region18: #{tpu_custom_call.1} parent=11 // pred_check_branch
          %667 = sbr.rel (%p665) target = $region20
        $region19: #{tpu_custom_call.1} parent=11 // pred_region
          %s669 = ssub.s32 16, 16
          %670 = vsyncadd [#allocation13], %s669
          %s672 = sshll.u32 [#allocation14], 4
          %s673 = int_to_ptr.vmem [resolvable:$true] %s672
          %675 = dma.hbm_to_vmem [thread:$0]  %s8, 16, %s673, [#allocation13]
        $region20: #{tpu_custom_call.1} parent=11 // pred_fallthru
          _
        // Predicated region
        $region21: #{tpu_custom_call.1} parent=11 // pred_check
          %p676 = pneg %p296
        $region22: #{tpu_custom_call.1} parent=11 // pred_check_branch
          %678 = sbr.rel (%p676) target = $region24
        $region23: #{tpu_custom_call.1} parent=11 // pred_region
          _
        $region24: #{tpu_custom_call.1} parent=11 // pred_fallthru
          _
        // Predicated region
        $region25: #{tpu_custom_call.1} parent=11 // pred_check
          %p679 = pneg %p317
        $region26: #{tpu_custom_call.1} parent=11 // pred_check_branch
          %681 = sbr.rel (%p679) target = $region28
        $region27: #{tpu_custom_call.1} parent=11 // pred_region
          _
        $region28: #{tpu_custom_call.1} parent=11 // pred_fallthru
          _
        // Predicated region
        $region29: #{tpu_custom_call.1} parent=11 // pred_check
          %p682 = pneg %p338
        $region30: #{tpu_custom_call.1} parent=11 // pred_check_branch
          %684 = sbr.rel (%p682) target = $region32
        $region31: #{tpu_custom_call.1} parent=11 // pred_region
          _
        $region32: #{tpu_custom_call.1} parent=11 // pred_fallthru
          _
        // Predicated region
        $region33: #{tpu_custom_call.1} parent=11 // pred_check
          %p685 = pneg %p359
        $region34: #{tpu_custom_call.1} parent=11 // pred_check_branch
          %687 = sbr.rel (%p685) target = $region36
        $region35: #{tpu_custom_call.1} parent=11 // pred_region
          _
        $region36: #{tpu_custom_call.1} parent=11 // pred_fallthru
          _
        // Predicated region
        $region37: #{tpu_custom_call.1} parent=11 // pred_check
          %p688 = pneg %p380
        $region38: #{tpu_custom_call.1} parent=11 // pred_check_branch
          %690 = sbr.rel (%p688) target = $region40
        $region39: #{tpu_custom_call.1} parent=11 // pred_region
          _
        $region40: #{tpu_custom_call.1} parent=11 // pred_fallthru
          _
        // Predicated region
        $region41: #{tpu_custom_call.1} parent=11 // pred_check
          %p691 = pneg %p401
        $region42: #{tpu_custom_call.1} parent=11 // pred_check_branch
          %693 = sbr.rel (%p691) target = $region44
        $region43: #{tpu_custom_call.1} parent=11 // pred_region
          _
        $region44: #{tpu_custom_call.1} parent=11 // pred_fallthru
          _
        // Predicated region
        $region45: #{tpu_custom_call.1} parent=11 // pred_check
          %p694 = pneg %p422
        $region46: #{tpu_custom_call.1} parent=11 // pred_check_branch
          %696 = sbr.rel (%p694) target = $region48
        $region47: #{tpu_custom_call.1} parent=11 // pred_region
          %s698 = ssub.s32 256, 256
          %699 = vsyncadd [#allocation16], %s698
          %s700 = sshll.u32 [#allocation15], 4
          %s701 = int_to_ptr.vmem [resolvable:$true] %s700
          %706 = dma.hbm_to_vmem [thread:$0]  %s15, 256, %s701, [#allocation16], 128, 128, 8
        $region48: #{tpu_custom_call.1} parent=11 // pred_fallthru
          _
        // Predicated region
        $region49: #{tpu_custom_call.1} parent=11 // pred_check
          %p707 = pneg %p443
        $region50: #{tpu_custom_call.1} parent=11 // pred_check_branch
          %709 = sbr.rel (%p707) target = $region52
        $region51: #{tpu_custom_call.1} parent=11 // pred_region
          _
        $region52: #{tpu_custom_call.1} parent=11 // pred_fallthru
          _
        // Predicated region
        $region53: #{tpu_custom_call.1} parent=11 // pred_check
          %p710 = pneg %p464
        $region54: #{tpu_custom_call.1} parent=11 // pred_check_branch
          %712 = sbr.rel (%p710) target = $region56
        $region55: #{tpu_custom_call.1} parent=11 // pred_region
          %s714 = ssub.s32 256, 256
          %715 = vsyncadd [#allocation16], %s714
          %s716 = sshll.u32 [#allocation17], 4
          %s717 = int_to_ptr.vmem [resolvable:$true] %s716
          %722 = dma.hbm_to_vmem [thread:$0]  %s17, 256, %s717, [#allocation16], 128, 128, 8
        $region56: #{tpu_custom_call.1} parent=11 // pred_fallthru
          _
        // Predicated region
        $region57: #{tpu_custom_call.1} parent=11 // pred_check
          %p723 = pneg %p485
        $region58: #{tpu_custom_call.1} parent=11 // pred_check_branch
          %725 = sbr.rel (%p723) target = $region60
        $region59: #{tpu_custom_call.1} parent=11 // pred_region
          _
        $region60: #{tpu_custom_call.1} parent=11 // pred_fallthru
          _
        // Predicated region
        $region61: #{tpu_custom_call.1} parent=11 // pred_check
          %p726 = pneg %p506
        $region62: #{tpu_custom_call.1} parent=11 // pred_check_branch
          %728 = sbr.rel (%p726) target = $region64
        $region63: #{tpu_custom_call.1} parent=11 // pred_region
          _
        $region64: #{tpu_custom_call.1} parent=11 // pred_fallthru
          _
        // Predicated region
        $region65: #{tpu_custom_call.1} parent=11 // pred_check
          %p729 = pneg %p527
        $region66: #{tpu_custom_call.1} parent=11 // pred_check_branch
          %731 = sbr.rel (%p729) target = $region68
        $region67: #{tpu_custom_call.1} parent=11 // pred_region
          _
        $region68: #{tpu_custom_call.1} parent=11 // pred_fallthru
          _
        // Predicated region
        $region69: #{tpu_custom_call.1} parent=11 // pred_check
          %p732 = pneg %p548
        $region70: #{tpu_custom_call.1} parent=11 // pred_check_branch
          %734 = sbr.rel (%p732) target = $region72
        $region71: #{tpu_custom_call.1} parent=11 // pred_region
          _
        $region72: #{tpu_custom_call.1} parent=11 // pred_fallthru
          _
        // Predicated region
        $region73: #{tpu_custom_call.1} parent=11 // pred_check
          %p735 = pneg %p569
        $region74: #{tpu_custom_call.1} parent=11 // pred_check_branch
          %737 = sbr.rel (%p735) target = $region76
        $region75: #{tpu_custom_call.1} parent=11 // pred_region
          _
        $region76: #{tpu_custom_call.1} parent=11 // pred_fallthru
          _
      $region12: #{tpu_custom_call.1} parent=5 // pred_fallthru
        _
      %p738 = scmp.lt.s32.totalorder %s51, 2
      // Predicated region
      $region77: #{tpu_custom_call.1} parent=5 // pred_check
        %p739 = pneg %p738
      $region78: #{tpu_custom_call.1} parent=5 // pred_check_branch
        %741 = sbr.rel (%p739) target = $region80
      $region79: #{tpu_custom_call.1} parent=5 // pred_region
        // Predicated region
        $region81: #{tpu_custom_call.1} parent=79 // pred_check
          %p742 = pneg %p71
        $region82: #{tpu_custom_call.1} parent=79 // pred_check_branch
          %744 = sbr.rel (%p742) target = $region84
        $region83: #{tpu_custom_call.1} parent=79 // pred_region
          %p745 = scmp.lt.s32.totalorder %s51, 1
          %s746 = scalar_select %p745, %s51, 1
          %s747 = smul.addr %s746, 8
          %s748 = scalar_lea.vmem %s0, %s747
        $region84: #{tpu_custom_call.1} parent=79 // pred_fallthru
          _
        // Predicated region
        $region85: #{tpu_custom_call.1} parent=79 // pred_check
          %p749 = pneg %p97
        $region86: #{tpu_custom_call.1} parent=79 // pred_check_branch
          %751 = sbr.rel (%p749) target = $region88
        $region87: #{tpu_custom_call.1} parent=79 // pred_region
          %s752 = sand.u32 %s87, 1
          %s753 = scalar_lea.sflag [#allocation4], %s752
          %s754 = sand.u32 %s87, 1
          %s755 = smul.addr %s754, 8
          %s756 = scalar_lea.vmem [#allocation3], %s755
          %s758 = ssub.s32 128, 128
          %759 = vsyncadd %s753, %s758
          %s760 = smul.addr %s51, 128
          %s761 = scalar_lea.hbm %s1, %s760
          %s763 = sshll.u32 %s756, 4
          %s764 = int_to_ptr.vmem [resolvable:$true] %s763
          %766 = dma.hbm_to_vmem [thread:$0]  %s761, 128, %s764, %s753
        $region88: #{tpu_custom_call.1} parent=79 // pred_fallthru
          _
        // Predicated region
        $region89: #{tpu_custom_call.1} parent=79 // pred_check
          %p767 = pneg %p123
        $region90: #{tpu_custom_call.1} parent=79 // pred_check_branch
          %769 = sbr.rel (%p767) target = $region92
        $region91: #{tpu_custom_call.1} parent=79 // pred_region
          %s770 = sand.u32 %s51, 1
          %s771 = scalar_lea.sflag [#allocation7], %s770
          %s772 = sand.u32 %s113, 1
          %s773 = smul.addr %s772, 8
          %s774 = scalar_lea.vmem [#allocation6], %s773
          %s776 = ssub.s32 128, 128
          %777 = vsyncadd %s771, %s776
          %s778 = smul.addr %s51, 128
          %s779 = scalar_lea.hbm %s2, %s778
          %s781 = sshll.u32 %s774, 4
          %s782 = int_to_ptr.vmem [resolvable:$true] %s781
          %784 = dma.hbm_to_vmem [thread:$0]  %s779, 128, %s782, %s771
        $region92: #{tpu_custom_call.1} parent=79 // pred_fallthru
          _
        // Predicated region
        $region93: #{tpu_custom_call.1} parent=79 // pred_check
          %p785 = pneg %p149
        $region94: #{tpu_custom_call.1} parent=79 // pred_check_branch
          %787 = sbr.rel (%p785) target = $region96
        $region95: #{tpu_custom_call.1} parent=79 // pred_region
          %s788 = sand.u32 %s51, 1
          %s789 = scalar_lea.sflag [#allocation7], %s788
          %s790 = sand.u32 %s139, 1
          %s791 = smul.addr %s790, 8
          %s792 = scalar_lea.vmem [#allocation8], %s791
          %s794 = ssub.s32 128, 128
          %795 = vsyncadd %s789, %s794
          %s796 = smul.addr %s51, 128
          %s797 = scalar_lea.hbm %s3, %s796
          %s799 = sshll.u32 %s792, 4
          %s800 = int_to_ptr.vmem [resolvable:$true] %s799
          %802 = dma.hbm_to_vmem [thread:$0]  %s797, 128, %s800, %s789
        $region96: #{tpu_custom_call.1} parent=79 // pred_fallthru
          _
        // Predicated region
        $region97: #{tpu_custom_call.1} parent=79 // pred_check
          %p803 = pneg %p175
        $region98: #{tpu_custom_call.1} parent=79 // pred_check_branch
          %805 = sbr.rel (%p803) target = $region100
        $region99: #{tpu_custom_call.1} parent=79 // pred_region
          %s806 = sand.u32 %s51, 1
          %s807 = scalar_lea.sflag [#allocation10], %s806
          %s808 = sand.u32 %s165, 1
          %s809 = smul.addr %s808, 8
          %s810 = scalar_lea.vmem [#allocation9], %s809
          %s812 = ssub.s32 128, 128
          %813 = vsyncadd %s807, %s812
          %s814 = smul.addr %s51, 128
          %s815 = scalar_lea.hbm %s4, %s814
          %s817 = sshll.u32 %s810, 4
          %s818 = int_to_ptr.vmem [resolvable:$true] %s817
          %820 = dma.hbm_to_vmem [thread:$0]  %s815, 128, %s818, %s807
        $region100: #{tpu_custom_call.1} parent=79 // pred_fallthru
          _
        // Predicated region
        $region101: #{tpu_custom_call.1} parent=79 // pred_check
          %p821 = pneg %p201
        $region102: #{tpu_custom_call.1} parent=79 // pred_check_branch
          %823 = sbr.rel (%p821) target = $region104
        $region103: #{tpu_custom_call.1} parent=79 // pred_region
          %s824 = sand.u32 %s51, 1
          %s825 = scalar_lea.sflag [#allocation10], %s824
          %s826 = sand.u32 %s191, 1
          %s827 = scalar_lea.vmem [#allocation11], %s826
          %s829 = ssub.s32 16, 16
          %830 = vsyncadd %s825, %s829
          %s831 = smul.addr %s51, 16
          %s832 = scalar_lea.hbm %s5, %s831
          %s834 = sshll.u32 %s827, 4
          %s835 = int_to_ptr.vmem [resolvable:$true] %s834
          %837 = dma.hbm_to_vmem [thread:$0]  %s832, 16, %s835, %s825
        $region104: #{tpu_custom_call.1} parent=79 // pred_fallthru
          _
        // Predicated region
        $region105: #{tpu_custom_call.1} parent=79 // pred_check
          %p838 = pneg %p227
        $region106: #{tpu_custom_call.1} parent=79 // pred_check_branch
          %840 = sbr.rel (%p838) target = $region108
        $region107: #{tpu_custom_call.1} parent=79 // pred_region
          %s841 = sand.u32 %s51, 1
          %s842 = scalar_lea.sflag [#allocation13], %s841
          %s843 = sand.u32 %s217, 1
          %s844 = scalar_lea.vmem [#allocation12], %s843
          %s846 = ssub.s32 16, 16
          %847 = vsyncadd %s842, %s846
          %s848 = smul.addr %s51, 16
          %s849 = scalar_lea.hbm %s6, %s848
          %s851 = sshll.u32 %s844, 4
          %s852 = int_to_ptr.vmem [resolvable:$true] %s851
          %854 = dma.hbm_to_vmem [thread:$0]  %s849, 16, %s852, %s842
        $region108: #{tpu_custom_call.1} parent=79 // pred_fallthru
          _
      $region80: #{tpu_custom_call.1} parent=5 // pred_fallthru
        _
      %p855 = scmp.le.s32.totalorder 1, %s51
      %p856 = scmp.lt.s32.totalorder %s51, 3
      %p857 = pnand %p855, %p856
      %p858 = pneg %p857
      // Predicated region
      $region109: #{tpu_custom_call.1} parent=5 // pred_check
        _
      $region110: #{tpu_custom_call.1} parent=5 // pred_check_branch
        %860 = sbr.rel (%p857) target = $region112
      $region111: #{tpu_custom_call.1} parent=5 // pred_region
        %s861 = ssub.s32 %s51, 1
        %s862 = sand.u32 %s90, 1
        %s863 = scalar_lea.sflag [#allocation4], %s862
        %s864 = sand.u32 %s90, 1
        %s865 = smul.addr %s864, 8
        %s866 = scalar_lea.vmem [#allocation3], %s865
        // Predicated region
        $region113: #{tpu_custom_call.1} parent=111 // pred_check
          %p867 = pneg %p103
        $region114: #{tpu_custom_call.1} parent=111 // pred_check_branch
          %869 = sbr.rel (%p867) target = $region116
        $region115: #{tpu_custom_call.1} parent=111 // pred_region
          %870 = dma.done %s863, 128
        $region116: #{tpu_custom_call.1} parent=111 // pred_fallthru
          _
        %s871 = sand.u32 %s56, 1
        %s872 = scalar_lea.sflag [#allocation7], %s871
        %s873 = sand.u32 %s116, 1
        %s874 = smul.addr %s873, 8
        %s875 = scalar_lea.vmem [#allocation6], %s874
        // Predicated region
        $region117: #{tpu_custom_call.1} parent=111 // pred_check
          %p876 = pneg %p129
        $region118: #{tpu_custom_call.1} parent=111 // pred_check_branch
          %878 = sbr.rel (%p876) target = $region120
        $region119: #{tpu_custom_call.1} parent=111 // pred_region
          %879 = dma.done %s872, 128
        $region120: #{tpu_custom_call.1} parent=111 // pred_fallthru
          _
        %s880 = sand.u32 %s56, 1
        %s881 = scalar_lea.sflag [#allocation7], %s880
        %s882 = sand.u32 %s142, 1
        %s883 = smul.addr %s882, 8
        %s884 = scalar_lea.vmem [#allocation8], %s883
        // Predicated region
        $region121: #{tpu_custom_call.1} parent=111 // pred_check
          %p885 = pneg %p155
        $region122: #{tpu_custom_call.1} parent=111 // pred_check_branch
          %887 = sbr.rel (%p885) target = $region124
        $region123: #{tpu_custom_call.1} parent=111 // pred_region
          %888 = dma.done %s881, 128
        $region124: #{tpu_custom_call.1} parent=111 // pred_fallthru
          _
        %s889 = sand.u32 %s56, 1
        %s890 = scalar_lea.sflag [#allocation10], %s889
        %s891 = sand.u32 %s168, 1
        %s892 = smul.addr %s891, 8
        %s893 = scalar_lea.vmem [#allocation9], %s892
        // Predicated region
        $region125: #{tpu_custom_call.1} parent=111 // pred_check
          %p894 = pneg %p181
        $region126: #{tpu_custom_call.1} parent=111 // pred_check_branch
          %896 = sbr.rel (%p894) target = $region128
        $region127: #{tpu_custom_call.1} parent=111 // pred_region
          %897 = dma.done %s890, 128
        $region128: #{tpu_custom_call.1} parent=111 // pred_fallthru
          _
        %s898 = sand.u32 %s56, 1
        %s899 = scalar_lea.sflag [#allocation10], %s898
        %s900 = sand.u32 %s194, 1
        %s901 = scalar_lea.vmem [#allocation11], %s900
        // Predicated region
        $region129: #{tpu_custom_call.1} parent=111 // pred_check
          %p902 = pneg %p207
        $region130: #{tpu_custom_call.1} parent=111 // pred_check_branch
          %904 = sbr.rel (%p902) target = $region132
        $region131: #{tpu_custom_call.1} parent=111 // pred_region
          %905 = dma.done %s899, 16
        $region132: #{tpu_custom_call.1} parent=111 // pred_fallthru
          _
        %s906 = sand.u32 %s56, 1
        %s907 = scalar_lea.sflag [#allocation13], %s906
        %s908 = sand.u32 %s220, 1
        %s909 = scalar_lea.vmem [#allocation12], %s908
        // Predicated region
        $region133: #{tpu_custom_call.1} parent=111 // pred_check
          %p910 = pneg %p233
        $region134: #{tpu_custom_call.1} parent=111 // pred_check_branch
          %912 = sbr.rel (%p910) target = $region136
        $region135: #{tpu_custom_call.1} parent=111 // pred_region
          %913 = dma.done %s907, 16
        $region136: #{tpu_custom_call.1} parent=111 // pred_fallthru
          _
        // Predicated region
        $region137: #{tpu_custom_call.1} parent=111 // pred_check
          %p914 = pneg %p275
        $region138: #{tpu_custom_call.1} parent=111 // pred_check_branch
          %916 = sbr.rel (%p914) target = $region140
        $region139: #{tpu_custom_call.1} parent=111 // pred_region
          %917 = dma.done [#allocation13], 16
        $region140: #{tpu_custom_call.1} parent=111 // pred_fallthru
          _
        // Predicated region
        $region141: #{tpu_custom_call.1} parent=111 // pred_check
          %p918 = pneg %p422
        $region142: #{tpu_custom_call.1} parent=111 // pred_check_branch
          %920 = sbr.rel (%p918) target = $region144
        $region143: #{tpu_custom_call.1} parent=111 // pred_region
          %921 = dma.done [#allocation16], 256
        $region144: #{tpu_custom_call.1} parent=111 // pred_fallthru
          _
        // Predicated region
        $region145: #{tpu_custom_call.1} parent=111 // pred_check
          %p922 = pneg %p464
        $region146: #{tpu_custom_call.1} parent=111 // pred_check_branch
          %924 = sbr.rel (%p922) target = $region148
        $region147: #{tpu_custom_call.1} parent=111 // pred_region
          %925 = dma.done [#allocation16], 256
        $region148: #{tpu_custom_call.1} parent=111 // pred_fallthru
          _
        %p926 = scmp.lt.s32.totalorder %s56, 1
        %s927 = scalar_select %p926, %s56, 1
        %s928 = smul.addr %s927, 8
        %s929 = scalar_lea.vmem %s0, %s928
        %p930 = pneg %p77
        %p931 = pneg %p74
        %s932 = sand.u32 %s90, 1
        %s933 = scalar_lea.sflag [#allocation4], %s932
        %s934 = sand.u32 %s90, 1
        %s935 = smul.addr %s934, 8
        %s936 = scalar_lea.vmem [#allocation3], %s935
        %p937 = pneg %p103
        %p938 = pneg %p100
        %s939 = sand.u32 %s56, 1
        %s940 = scalar_lea.sflag [#allocation7], %s939
        %s941 = sand.u32 %s116, 1
        %s942 = smul.addr %s941, 8
        %s943 = scalar_lea.vmem [#allocation6], %s942
        %p944 = pneg %p129
        %p945 = pneg %p126
        %s946 = sand.u32 %s56, 1
        %s947 = scalar_lea.sflag [#allocation7], %s946
        %s948 = sand.u32 %s142, 1
        %s949 = smul.addr %s948, 8
        %s950 = scalar_lea.vmem [#allocation8], %s949
        %p951 = pneg %p155
        %p952 = pneg %p152
        %s953 = sand.u32 %s56, 1
        %s954 = scalar_lea.sflag [#allocation10], %s953
        %s955 = sand.u32 %s168, 1
        %s956 = smul.addr %s955, 8
        %s957 = scalar_lea.vmem [#allocation9], %s956
        %p958 = pneg %p181
        %p959 = pneg %p178
        %s960 = sand.u32 %s56, 1
        %s961 = scalar_lea.sflag [#allocation10], %s960
        %s962 = sand.u32 %s194, 1
        %s963 = scalar_lea.vmem [#allocation11], %s962
        %p964 = pneg %p207
        %p965 = pneg %p204
        %s966 = sand.u32 %s56, 1
        %s967 = scalar_lea.sflag [#allocation13], %s966
        %s968 = sand.u32 %s220, 1
        %s969 = scalar_lea.vmem [#allocation12], %s968
        %p970 = pneg %p233
        %p971 = pneg %p230
        %p972 = pneg %p254
        %p973 = pneg %p251
        %p974 = pneg %p275
        %p975 = pneg %p272
        %p976 = pneg %p296
        %p977 = pneg %p293
        %p978 = pneg %p317
        %p979 = pneg %p314
        %p980 = pneg %p338
        %p981 = pneg %p335
        %p982 = pneg %p359
        %p983 = pneg %p356
        %p984 = pneg %p380
        %p985 = pneg %p377
        %p986 = pneg %p401
        %p987 = pneg %p398
        %p988 = pneg %p422
        %p989 = pneg %p419
        %p990 = pneg %p443
        %p991 = pneg %p440
        %p992 = pneg %p464
        %p993 = pneg %p461
        %p994 = pneg %p485
        %p995 = pneg %p482
        %p996 = pneg %p506
        %p997 = pneg %p503
        %p998 = pneg %p527
        %p999 = pneg %p524
        %p1000 = pneg %p548
        %p1001 = pneg %p545
        %p1002 = pneg %p569
        %p1003 = pneg %p566
        %p1004 = pneg %p595
        %p1005 = pneg %p592
        %s1006 = sand.u32 %s582, 1
        %s1007 = scalar_lea.sflag [#allocation5], %s1006
        %s1008 = sand.u32 %s582, 1
        %s1009 = smul.addr %s1008, 8
        %s1010 = scalar_lea.vmem [#allocation18], %s1009
        %p1011 = pneg %p621
        %p1012 = pneg %p618
        %s1013 = sand.u32 %s56, 1
        %s1014 = scalar_lea.sflag [#allocation20], %s1013
        %s1015 = sand.u32 %s608, 1
        %s1016 = smul.addr %s1015, 32
        %s1017 = scalar_lea.vmem [#allocation19], %s1016
        %p1018 = pneg %p647
        %p1019 = pneg %p644
        %s1020 = sand.u32 %s56, 1
        %s1021 = scalar_lea.sflag [#allocation20], %s1020
        %s1022 = sand.u32 %s634, 1
        %s1023 = smul.addr %s1022, 32
        %s1024 = scalar_lea.vmem [#allocation21], %s1023
        %p1025 = scmp.lt.s32.totalorder %s56, 1
        %s1026 = scalar_select %p1025, %s56, 1
        %s1027 = smul.addr %s1026, 8
        %s1028 = scalar_lea.vmem %s0, %s1027
        %v1029 = vld [vmem:[%s1028] sm:$0xff]
        %v1030 = vld [vmem:[%s866] sm:$0xff]
        %v1031 = vld [vmem:[%s875] sm:$0xff]
        %v1032 = vld [vmem:[%s884] sm:$0xff]
        %v1033 = vld [vmem:[%s893] sm:$0xff]
        %v1034 = vld [vmem:[%s7] sm:$0xff]
        %v1035 = vld [vmem:[%s7 + $0x8] sm:$0xff]
        %v1036 = vld [vmem:[%s7 + $0x10] sm:$0xff]
        %v1037 = vld [vmem:[%s7 + $0x18] sm:$0xff]
        %v1038 = vld [vmem:[#allocation14] sm:$0x1]
        %v1040 = vlaneseq
        %v1041 = vshrl.u32 %v1040, 7
        %v1042 = vsub.s32 0, %v1041
        %v1043 = vrot.slane %v1038, %v1042
        %vm1045 = vcmask 261120
        %v1047 = vsel %vm1045, %v1029, 0
        %1049 = vmatprep.subr.mxu0 0.0
        %1050 = vmatpush1.msra.mxu0 0.0
        %1051 = vmatprep.subr.mxu0 0.0
        %1052 = vmatpush1.msra.mxu0 0.0
        %1053 = vmatprep.subr.mxu0 0.0
        %1054 = vmatpush1.msra.mxu0 0.0
        %1055 = vmatprep.subr.mxu0 0.0
        %1056 = vmatpush1.msra.mxu0 0.0
        %1057 = vmatprep.subr.mxu0 0.0
        %1058 = vmatpush1.msra.mxu0 0.0
        %1059 = vmatprep.subr.mxu0 0.0
        %1060 = vmatpush1.msra.mxu0 0.0
        %1061 = vmatprep.subr.mxu0 0.0
        %1062 = vmatpush1.msra.mxu0 0.0
        %1063 = vmatprep.subr.mxu0 0.0
        %1064 = vmatpush1.msra.mxu0 0.0
        %1065 = vmatprep.subr.mxu0 0.0
        %1066 = vmatpush1.msra.mxu0 0.0
        %1067 = vmatprep.subr.mxu0 0.0
        %1068 = vmatpush1.msra.mxu0 0.0
        %1069 = vmatprep.subr.mxu0 0.0
        %1070 = vmatpush1.msra.mxu0 0.0
        %1071 = vmatprep.subr.mxu0 0.0
        %1072 = vmatpush1.msra.mxu0 0.0
        %1073 = vmatprep.subr.mxu0 0.0
        %1074 = vmatpush1.msra.mxu0 %v1037
        %1075 = vmatprep.subr.mxu0 0.0
        %1076 = vmatpush1.msra.mxu0 %v1036
        %1077 = vmatprep.subr.mxu0 0.0
        %1078 = vmatpush1.msra.mxu0 %v1035
        %1079 = vmatprep.subr.mxu0 0.0
        %1080 = vmatpush1.msra.mxu0 %v1034
        %1081 = vmatprep.subr.mxu0 0.0
        %1082 = vmatpush2.msra.mxu0 0.0
        %1083 = vmatprep.subr.mxu0 0.0
        %1084 = vmatpush2.msra.mxu0 0.0
        %1085 = vmatprep.subr.mxu0 0.0
        %1086 = vmatpush2.msra.mxu0 0.0
        %1087 = vmatprep.subr.mxu0 0.0
        %1088 = vmatpush2.msra.mxu0 0.0
        %1089 = vmatprep.subr.mxu0 0.0
        %1090 = vmatpush2.msra.mxu0 0.0
        %1091 = vmatprep.subr.mxu0 0.0
        %1092 = vmatpush2.msra.mxu0 0.0
        %1093 = vmatprep.subr.mxu0 0.0
        %1094 = vmatpush2.msra.mxu0 0.0
        %1095 = vmatprep.subr.mxu0 0.0
        %1096 = vmatpush2.msra.mxu0 0.0
        %1097 = vmatprep.subr.mxu0 0.0
        %1098 = vmatpush2.msra.mxu0 0.0
        %1099 = vmatprep.subr.mxu0 0.0
        %1100 = vmatpush2.msra.mxu0 0.0
        %1101 = vmatprep.subr.mxu0 0.0
        %1102 = vmatpush2.msra.mxu0 0.0
        %1103 = vmatprep.subr.mxu0 0.0
        %1104 = vmatpush2.msra.mxu0 0.0
        %1105 = vmatprep.subr.mxu0 0.0
        %1106 = vmatpush2.msra.mxu0 0.0
        %1107 = vmatprep.subr.mxu0 0.0
        %1108 = vmatpush2.msra.mxu0 0.0
        %1109 = vmatprep.subr.mxu0 0.0
        %1110 = vmatpush2.msra.mxu0 0.0
        %1111 = vmatprep.subr.mxu0 0.0
        %1112 = vmatpush2.msra.mxu0 0.0
        %1113 = vmatprep.mubr.f32.mxu0 0.0
        %1114 = vmatmul.mubr.f32.gmra.mxu0 %v1047
        %v1115 = vpop.f32.mrf.mxu0
        %v1116 = vadd.f32 %v1043, %v1115
        %v1117 = vpop.f32.mrf.mxu0
        %1118 = vdwg.mxu0
        %v1119 = vmul.f32 %v1116, 0.35355338
        %v1120 = vld [vmem:[%s9] sm:$0xff]
        %v1121 = vld [vmem:[%s9 + $0x8] sm:$0xff]
        %v1122 = vld [vmem:[%s9 + $0x10] sm:$0xff]
        %v1123 = vld [vmem:[%s9 + $0x18] sm:$0xff]
        %v1124 = vld [vmem:[%s10] sm:$0x1]
        %v1126 = vlaneseq
        %v1127 = vshrl.u32 %v1126, 7
        %v1128 = vsub.s32 0, %v1127
        %v1129 = vrot.slane %v1124, %v1128
        %v1132 = vsel %vm1045, %v1030, 0
        %1134 = vmatprep.subr.mxu0 0.0
        %1135 = vmatpush1.msra.mxu0 0.0
        %1136 = vmatprep.subr.mxu0 0.0
        %1137 = vmatpush1.msra.mxu0 0.0
        %1138 = vmatprep.subr.mxu0 0.0
        %1139 = vmatpush1.msra.mxu0 0.0
        %1140 = vmatprep.subr.mxu0 0.0
        %1141 = vmatpush1.msra.mxu0 0.0
        %1142 = vmatprep.subr.mxu0 0.0
        %1143 = vmatpush1.msra.mxu0 0.0
        %1144 = vmatprep.subr.mxu0 0.0
        %1145 = vmatpush1.msra.mxu0 0.0
        %1146 = vmatprep.subr.mxu0 0.0
        %1147 = vmatpush1.msra.mxu0 0.0
        %1148 = vmatprep.subr.mxu0 0.0
        %1149 = vmatpush1.msra.mxu0 0.0
        %1150 = vmatprep.subr.mxu0 0.0
        %1151 = vmatpush1.msra.mxu0 0.0
        %1152 = vmatprep.subr.mxu0 0.0
        %1153 = vmatpush1.msra.mxu0 0.0
        %1154 = vmatprep.subr.mxu0 0.0
        %1155 = vmatpush1.msra.mxu0 0.0
        %1156 = vmatprep.subr.mxu0 0.0
        %1157 = vmatpush1.msra.mxu0 0.0
        %1158 = vmatprep.subr.mxu0 0.0
        %1159 = vmatpush1.msra.mxu0 %v1123
        %1160 = vmatprep.subr.mxu0 0.0
        %1161 = vmatpush1.msra.mxu0 %v1122
        %1162 = vmatprep.subr.mxu0 0.0
        %1163 = vmatpush1.msra.mxu0 %v1121
        %1164 = vmatprep.subr.mxu0 0.0
        %1165 = vmatpush1.msra.mxu0 %v1120
        %1166 = vmatprep.subr.mxu0 0.0
        %1167 = vmatpush2.msra.mxu0 0.0
        %1168 = vmatprep.subr.mxu0 0.0
        %1169 = vmatpush2.msra.mxu0 0.0
        %1170 = vmatprep.subr.mxu0 0.0
        %1171 = vmatpush2.msra.mxu0 0.0
        %1172 = vmatprep.subr.mxu0 0.0
        %1173 = vmatpush2.msra.mxu0 0.0
        %1174 = vmatprep.subr.mxu0 0.0
        %1175 = vmatpush2.msra.mxu0 0.0
        %1176 = vmatprep.subr.mxu0 0.0
        %1177 = vmatpush2.msra.mxu0 0.0
        %1178 = vmatprep.subr.mxu0 0.0
        %1179 = vmatpush2.msra.mxu0 0.0
        %1180 = vmatprep.subr.mxu0 0.0
        %1181 = vmatpush2.msra.mxu0 0.0
        %1182 = vmatprep.subr.mxu0 0.0
        %1183 = vmatpush2.msra.mxu0 0.0
        %1184 = vmatprep.subr.mxu0 0.0
        %1185 = vmatpush2.msra.mxu0 0.0
        %1186 = vmatprep.subr.mxu0 0.0
        %1187 = vmatpush2.msra.mxu0 0.0
        %1188 = vmatprep.subr.mxu0 0.0
        %1189 = vmatpush2.msra.mxu0 0.0
        %1190 = vmatprep.subr.mxu0 0.0
        %1191 = vmatpush2.msra.mxu0 0.0
        %1192 = vmatprep.subr.mxu0 0.0
        %1193 = vmatpush2.msra.mxu0 0.0
        %1194 = vmatprep.subr.mxu0 0.0
        %1195 = vmatpush2.msra.mxu0 0.0
        %1196 = vmatprep.subr.mxu0 0.0
        %1197 = vmatpush2.msra.mxu0 0.0
        %1198 = vmatprep.mubr.f32.mxu0 0.0
        %1199 = vmatmul.mubr.f32.gmra.mxu0 %v1132
        %v1200 = vpop.f32.mrf.mxu0
        %v1201 = vadd.f32 %v1129, %v1200
        %v1202 = vpop.f32.mrf.mxu0
        %1203 = vdwg.mxu0
        %v1204 = vld [vmem:[%s11] sm:$0xff]
        %v1205 = vld [vmem:[%s11 + $0x8] sm:$0xff]
        %v1206 = vld [vmem:[%s11 + $0x10] sm:$0xff]
        %v1207 = vld [vmem:[%s11 + $0x18] sm:$0xff]
        %v1208 = vld [vmem:[%s12] sm:$0x1]
        %v1210 = vlaneseq
        %v1211 = vshrl.u32 %v1210, 7
        %v1212 = vsub.s32 0, %v1211
        %v1213 = vrot.slane %v1208, %v1212
        %v1216 = vsel %vm1045, %v1031, 0
        %1218 = vmatprep.subr.mxu0 0.0
        %1219 = vmatpush1.msra.mxu0 0.0
        %1220 = vmatprep.subr.mxu0 0.0
        %1221 = vmatpush1.msra.mxu0 0.0
        %1222 = vmatprep.subr.mxu0 0.0
        %1223 = vmatpush1.msra.mxu0 0.0
        %1224 = vmatprep.subr.mxu0 0.0
        %1225 = vmatpush1.msra.mxu0 0.0
        %1226 = vmatprep.subr.mxu0 0.0
        %1227 = vmatpush1.msra.mxu0 0.0
        %1228 = vmatprep.subr.mxu0 0.0
        %1229 = vmatpush1.msra.mxu0 0.0
        %1230 = vmatprep.subr.mxu0 0.0
        %1231 = vmatpush1.msra.mxu0 0.0
        %1232 = vmatprep.subr.mxu0 0.0
        %1233 = vmatpush1.msra.mxu0 0.0
        %1234 = vmatprep.subr.mxu0 0.0
        %1235 = vmatpush1.msra.mxu0 0.0
        %1236 = vmatprep.subr.mxu0 0.0
        %1237 = vmatpush1.msra.mxu0 0.0
        %1238 = vmatprep.subr.mxu0 0.0
        %1239 = vmatpush1.msra.mxu0 0.0
        %1240 = vmatprep.subr.mxu0 0.0
        %1241 = vmatpush1.msra.mxu0 0.0
        %1242 = vmatprep.subr.mxu0 0.0
        %1243 = vmatpush1.msra.mxu0 %v1207
        %1244 = vmatprep.subr.mxu0 0.0
        %1245 = vmatpush1.msra.mxu0 %v1206
        %1246 = vmatprep.subr.mxu0 0.0
        %1247 = vmatpush1.msra.mxu0 %v1205
        %1248 = vmatprep.subr.mxu0 0.0
        %1249 = vmatpush1.msra.mxu0 %v1204
        %1250 = vmatprep.subr.mxu0 0.0
        %1251 = vmatpush2.msra.mxu0 0.0
        %1252 = vmatprep.subr.mxu0 0.0
        %1253 = vmatpush2.msra.mxu0 0.0
        %1254 = vmatprep.subr.mxu0 0.0
        %1255 = vmatpush2.msra.mxu0 0.0
        %1256 = vmatprep.subr.mxu0 0.0
        %1257 = vmatpush2.msra.mxu0 0.0
        %1258 = vmatprep.subr.mxu0 0.0
        %1259 = vmatpush2.msra.mxu0 0.0
        %1260 = vmatprep.subr.mxu0 0.0
        %1261 = vmatpush2.msra.mxu0 0.0
        %1262 = vmatprep.subr.mxu0 0.0
        %1263 = vmatpush2.msra.mxu0 0.0
        %1264 = vmatprep.subr.mxu0 0.0
        %1265 = vmatpush2.msra.mxu0 0.0
        %1266 = vmatprep.subr.mxu0 0.0
        %1267 = vmatpush2.msra.mxu0 0.0
        %1268 = vmatprep.subr.mxu0 0.0
        %1269 = vmatpush2.msra.mxu0 0.0
        %1270 = vmatprep.subr.mxu0 0.0
        %1271 = vmatpush2.msra.mxu0 0.0
        %1272 = vmatprep.subr.mxu0 0.0
        %1273 = vmatpush2.msra.mxu0 0.0
        %1274 = vmatprep.subr.mxu0 0.0
        %1275 = vmatpush2.msra.mxu0 0.0
        %1276 = vmatprep.subr.mxu0 0.0
        %1277 = vmatpush2.msra.mxu0 0.0
        %1278 = vmatprep.subr.mxu0 0.0
        %1279 = vmatpush2.msra.mxu0 0.0
        %1280 = vmatprep.subr.mxu0 0.0
        %1281 = vmatpush2.msra.mxu0 0.0
        %1282 = vmatprep.mubr.f32.mxu0 0.0
        %1283 = vmatmul.mubr.f32.gmra.mxu0 %v1216
        %v1284 = vpop.f32.mrf.mxu0
        %v1285 = vadd.f32 %v1213, %v1284
        %v1286 = vpop.f32.mrf.mxu0
        %1287 = vdwg.mxu0
        %v1288 = vld [vmem:[%s13] sm:$0xff]
        %v1289 = vld [vmem:[%s13 + $0x8] sm:$0xff]
        %v1290 = vld [vmem:[%s13 + $0x10] sm:$0xff]
        %v1291 = vld [vmem:[%s13 + $0x18] sm:$0xff]
        %v1292 = vld [vmem:[%s14] sm:$0x1]
        %v1294 = vlaneseq
        %v1295 = vshrl.u32 %v1294, 7
        %v1296 = vsub.s32 0, %v1295
        %v1297 = vrot.slane %v1292, %v1296
        %1299 = vmatprep.subr.mxu0 0.0
        %1300 = vmatpush1.msra.mxu0 0.0
        %1301 = vmatprep.subr.mxu0 0.0
        %1302 = vmatpush1.msra.mxu0 0.0
        %1303 = vmatprep.subr.mxu0 0.0
        %1304 = vmatpush1.msra.mxu0 0.0
        %1305 = vmatprep.subr.mxu0 0.0
        %1306 = vmatpush1.msra.mxu0 0.0
        %1307 = vmatprep.subr.mxu0 0.0
        %1308 = vmatpush1.msra.mxu0 0.0
        %1309 = vmatprep.subr.mxu0 0.0
        %1310 = vmatpush1.msra.mxu0 0.0
        %1311 = vmatprep.subr.mxu0 0.0
        %1312 = vmatpush1.msra.mxu0 0.0
        %1313 = vmatprep.subr.mxu0 0.0
        %1314 = vmatpush1.msra.mxu0 0.0
        %1315 = vmatprep.subr.mxu0 0.0
        %1316 = vmatpush1.msra.mxu0 0.0
        %1317 = vmatprep.subr.mxu0 0.0
        %1318 = vmatpush1.msra.mxu0 0.0
        %1319 = vmatprep.subr.mxu0 0.0
        %1320 = vmatpush1.msra.mxu0 0.0
        %1321 = vmatprep.subr.mxu0 0.0
        %1322 = vmatpush1.msra.mxu0 0.0
        %1323 = vmatprep.subr.mxu0 0.0
        %1324 = vmatpush1.msra.mxu0 %v1291
        %1325 = vmatprep.subr.mxu0 0.0
        %1326 = vmatpush1.msra.mxu0 %v1290
        %1327 = vmatprep.subr.mxu0 0.0
        %1328 = vmatpush1.msra.mxu0 %v1289
        %1329 = vmatprep.subr.mxu0 0.0
        %1330 = vmatpush1.msra.mxu0 %v1288
        %1331 = vmatprep.subr.mxu0 0.0
        %1332 = vmatpush2.msra.mxu0 0.0
        %1333 = vmatprep.subr.mxu0 0.0
        %1334 = vmatpush2.msra.mxu0 0.0
        %1335 = vmatprep.subr.mxu0 0.0
        %1336 = vmatpush2.msra.mxu0 0.0
        %1337 = vmatprep.subr.mxu0 0.0
        %1338 = vmatpush2.msra.mxu0 0.0
        %1339 = vmatprep.subr.mxu0 0.0
        %1340 = vmatpush2.msra.mxu0 0.0
        %1341 = vmatprep.subr.mxu0 0.0
        %1342 = vmatpush2.msra.mxu0 0.0
        %1343 = vmatprep.subr.mxu0 0.0
        %1344 = vmatpush2.msra.mxu0 0.0
        %1345 = vmatprep.subr.mxu0 0.0
        %1346 = vmatpush2.msra.mxu0 0.0
        %1347 = vmatprep.subr.mxu0 0.0
        %1348 = vmatpush2.msra.mxu0 0.0
        %1349 = vmatprep.subr.mxu0 0.0
        %1350 = vmatpush2.msra.mxu0 0.0
        %1351 = vmatprep.subr.mxu0 0.0
        %1352 = vmatpush2.msra.mxu0 0.0
        %1353 = vmatprep.subr.mxu0 0.0
        %1354 = vmatpush2.msra.mxu0 0.0
        %1355 = vmatprep.subr.mxu0 0.0
        %1356 = vmatpush2.msra.mxu0 0.0
        %1357 = vmatprep.subr.mxu0 0.0
        %1358 = vmatpush2.msra.mxu0 0.0
        %1359 = vmatprep.subr.mxu0 0.0
        %1360 = vmatpush2.msra.mxu0 0.0
        %1361 = vmatprep.subr.mxu0 0.0
        %1362 = vmatpush2.msra.mxu0 0.0
        %1363 = vmatprep.mubr.f32.mxu0 0.0
        %1364 = vmatmul.mubr.f32.gmra.mxu0 %v1047
        %v1365 = vpop.f32.mrf.mxu0
        %v1366 = vadd.f32 %v1297, %v1365
        %v1367 = vpop.f32.mrf.mxu0
        %1368 = vdwg.mxu0
        %v1369 = vmul.f32 %v1366, 0.5
        %v1370 = vld [vmem:[#allocation15] sm:$0xff]
        %v1371 = vld [vmem:[#allocation15 + $0x8] sm:$0xff]
        %v1372 = vld [vmem:[%s16] sm:$0x1]
        %v1374 = vlaneseq
        %v1375 = vshrl.u32 %v1374, 7
        %v1376 = vsub.s32 0, %v1375
        %v1377 = vrot.slane %v1372, %v1376
        %vm1379 = vcmask 130048
        %v1381 = vsel %vm1379, %v1032, 0
        %1383 = vmatprep.subr.mxu0 0.0
        %1384 = vmatpush1.msra.mxu0 0.0
        %1385 = vmatprep.subr.mxu0 0.0
        %1386 = vmatpush1.msra.mxu0 0.0
        %1387 = vmatprep.subr.mxu0 0.0
        %1388 = vmatpush1.msra.mxu0 0.0
        %1389 = vmatprep.subr.mxu0 0.0
        %1390 = vmatpush1.msra.mxu0 0.0
        %1391 = vmatprep.subr.mxu0 0.0
        %1392 = vmatpush1.msra.mxu0 0.0
        %1393 = vmatprep.subr.mxu0 0.0
        %1394 = vmatpush1.msra.mxu0 0.0
        %1395 = vmatprep.subr.mxu0 0.0
        %1396 = vmatpush1.msra.mxu0 0.0
        %1397 = vmatprep.subr.mxu0 0.0
        %1398 = vmatpush1.msra.mxu0 0.0
        %1399 = vmatprep.subr.mxu0 0.0
        %1400 = vmatpush1.msra.mxu0 0.0
        %1401 = vmatprep.subr.mxu0 0.0
        %1402 = vmatpush1.msra.mxu0 0.0
        %1403 = vmatprep.subr.mxu0 0.0
        %1404 = vmatpush1.msra.mxu0 0.0
        %1405 = vmatprep.subr.mxu0 0.0
        %1406 = vmatpush1.msra.mxu0 0.0
        %1407 = vmatprep.subr.mxu0 0.0
        %1408 = vmatpush1.msra.mxu0 0.0
        %1409 = vmatprep.subr.mxu0 0.0
        %1410 = vmatpush1.msra.mxu0 0.0
        %1411 = vmatprep.subr.mxu0 0.0
        %1412 = vmatpush1.msra.mxu0 %v1371
        %1413 = vmatprep.subr.mxu0 0.0
        %1414 = vmatpush1.msra.mxu0 %v1370
        %1415 = vmatprep.subr.mxu0 0.0
        %1416 = vmatpush2.msra.mxu0 0.0
        %1417 = vmatprep.subr.mxu0 0.0
        %1418 = vmatpush2.msra.mxu0 0.0
        %1419 = vmatprep.subr.mxu0 0.0
        %1420 = vmatpush2.msra.mxu0 0.0
        %1421 = vmatprep.subr.mxu0 0.0
        %1422 = vmatpush2.msra.mxu0 0.0
        %1423 = vmatprep.subr.mxu0 0.0
        %1424 = vmatpush2.msra.mxu0 0.0
        %1425 = vmatprep.subr.mxu0 0.0
        %1426 = vmatpush2.msra.mxu0 0.0
        %1427 = vmatprep.subr.mxu0 0.0
        %1428 = vmatpush2.msra.mxu0 0.0
        %1429 = vmatprep.subr.mxu0 0.0
        %1430 = vmatpush2.msra.mxu0 0.0
        %1431 = vmatprep.subr.mxu0 0.0
        %1432 = vmatpush2.msra.mxu0 0.0
        %1433 = vmatprep.subr.mxu0 0.0
        %1434 = vmatpush2.msra.mxu0 0.0
        %1435 = vmatprep.subr.mxu0 0.0
        %1436 = vmatpush2.msra.mxu0 0.0
        %1437 = vmatprep.subr.mxu0 0.0
        %1438 = vmatpush2.msra.mxu0 0.0
        %1439 = vmatprep.subr.mxu0 0.0
        %1440 = vmatpush2.msra.mxu0 0.0
        %1441 = vmatprep.subr.mxu0 0.0
        %1442 = vmatpush2.msra.mxu0 0.0
        %1443 = vmatprep.subr.mxu0 0.0
        %1444 = vmatpush2.msra.mxu0 0.0
        %1445 = vmatprep.subr.mxu0 0.0
        %1446 = vmatpush2.msra.mxu0 0.0
        %1447 = vmatprep.mubr.f32.mxu0 0.0
        %1448 = vmatmul.mubr.f32.gmra.mxu0 %v1381
        %v1449 = vpop.f32.mrf.mxu0
        %v1450 = vadd.f32 %v1377, %v1449
        %v1451 = vpop.f32.mrf.mxu0
        %1452 = vdwg.mxu0
        %v1453 = vld [vmem:[#allocation17] sm:$0xff]
        %v1454 = vld [vmem:[#allocation17 + $0x8] sm:$0xff]
        %v1455 = vld [vmem:[%s18] sm:$0x1]
        %v1457 = vlaneseq
        %v1458 = vshrl.u32 %v1457, 7
        %v1459 = vsub.s32 0, %v1458
        %v1460 = vrot.slane %v1455, %v1459
        %v1463 = vsel %vm1379, %v1033, 0
        %1465 = vmatprep.subr.mxu0 0.0
        %1466 = vmatpush1.msra.mxu0 0.0
        %1467 = vmatprep.subr.mxu0 0.0
        %1468 = vmatpush1.msra.mxu0 0.0
        %1469 = vmatprep.subr.mxu0 0.0
        %1470 = vmatpush1.msra.mxu0 0.0
        %1471 = vmatprep.subr.mxu0 0.0
        %1472 = vmatpush1.msra.mxu0 0.0
        %1473 = vmatprep.subr.mxu0 0.0
        %1474 = vmatpush1.msra.mxu0 0.0
        %1475 = vmatprep.subr.mxu0 0.0
        %1476 = vmatpush1.msra.mxu0 0.0
        %1477 = vmatprep.subr.mxu0 0.0
        %1478 = vmatpush1.msra.mxu0 0.0
        %1479 = vmatprep.subr.mxu0 0.0
        %1480 = vmatpush1.msra.mxu0 0.0
        %1481 = vmatprep.subr.mxu0 0.0
        %1482 = vmatpush1.msra.mxu0 0.0
        %1483 = vmatprep.subr.mxu0 0.0
        %1484 = vmatpush1.msra.mxu0 0.0
        %1485 = vmatprep.subr.mxu0 0.0
        %1486 = vmatpush1.msra.mxu0 0.0
        %1487 = vmatprep.subr.mxu0 0.0
        %1488 = vmatpush1.msra.mxu0 0.0
        %1489 = vmatprep.subr.mxu0 0.0
        %1490 = vmatpush1.msra.mxu0 0.0
        %1491 = vmatprep.subr.mxu0 0.0
        %1492 = vmatpush1.msra.mxu0 0.0
        %1493 = vmatprep.subr.mxu0 0.0
        %1494 = vmatpush1.msra.mxu0 %v1454
        %1495 = vmatprep.subr.mxu0 0.0
        %1496 = vmatpush1.msra.mxu0 %v1453
        %1497 = vmatprep.subr.mxu0 0.0
        %1498 = vmatpush2.msra.mxu0 0.0
        %1499 = vmatprep.subr.mxu0 0.0
        %1500 = vmatpush2.msra.mxu0 0.0
        %1501 = vmatprep.subr.mxu0 0.0
        %1502 = vmatpush2.msra.mxu0 0.0
        %1503 = vmatprep.subr.mxu0 0.0
        %1504 = vmatpush2.msra.mxu0 0.0
        %1505 = vmatprep.subr.mxu0 0.0
        %1506 = vmatpush2.msra.mxu0 0.0
        %1507 = vmatprep.subr.mxu0 0.0
        %1508 = vmatpush2.msra.mxu0 0.0
        %1509 = vmatprep.subr.mxu0 0.0
        %1510 = vmatpush2.msra.mxu0 0.0
        %1511 = vmatprep.subr.mxu0 0.0
        %1512 = vmatpush2.msra.mxu0 0.0
        %1513 = vmatprep.subr.mxu0 0.0
        %1514 = vmatpush2.msra.mxu0 0.0
        %1515 = vmatprep.subr.mxu0 0.0
        %1516 = vmatpush2.msra.mxu0 0.0
        %1517 = vmatprep.subr.mxu0 0.0
        %1518 = vmatpush2.msra.mxu0 0.0
        %1519 = vmatprep.subr.mxu0 0.0
        %1520 = vmatpush2.msra.mxu0 0.0
        %1521 = vmatprep.subr.mxu0 0.0
        %1522 = vmatpush2.msra.mxu0 0.0
        %1523 = vmatprep.subr.mxu0 0.0
        %1524 = vmatpush2.msra.mxu0 0.0
        %1525 = vmatprep.subr.mxu0 0.0
        %1526 = vmatpush2.msra.mxu0 0.0
        %1527 = vmatprep.subr.mxu0 0.0
        %1528 = vmatpush2.msra.mxu0 0.0
        %1529 = vmatprep.mubr.f32.mxu0 0.0
        %1530 = vmatmul.mubr.f32.gmra.mxu0 %v1463
        %v1531 = vpop.f32.mrf.mxu0
        %v1532 = vadd.f32 %v1460, %v1531
        %v1533 = vpop.f32.mrf.mxu0
        %1534 = vdwg.mxu0
        %v1535 = vld [vmem:[%s901] sm:$0x1]
        %v1537 = vlaneseq
        %v1538 = vshrl.u32 %v1537, 7
        %v1539 = vsub.s32 0, %v1538
        %v1540 = vrot.slane %v1535, %v1539
        %vm1542 = vcmask 64512
        %v1544 = vsel %vm1542, %v1119, 0
        %v1547 = vsel %vm1542, %v1201, 0
        %1549 = vmatprep.subr.mxu0 0.0
        %1550 = vmatpush1.xpose.msra.mxu0 0.0
        %1551 = vmatprep.subr.mxu0 0.0
        %1552 = vmatpush1.xpose.msra.mxu0 0.0
        %1553 = vmatprep.subr.mxu0 0.0
        %1554 = vmatpush1.xpose.msra.mxu0 0.0
        %1555 = vmatprep.subr.mxu0 0.0
        %1556 = vmatpush1.xpose.msra.mxu0 0.0
        %1557 = vmatprep.subr.mxu0 0.0
        %1558 = vmatpush1.xpose.msra.mxu0 0.0
        %1559 = vmatprep.subr.mxu0 0.0
        %1560 = vmatpush1.xpose.msra.mxu0 0.0
        %1561 = vmatprep.subr.mxu0 0.0
        %1562 = vmatpush1.xpose.msra.mxu0 0.0
        %1563 = vmatprep.subr.mxu0 0.0
        %1564 = vmatpush1.xpose.msra.mxu0 0.0
        %1565 = vmatprep.subr.mxu0 0.0
        %1566 = vmatpush1.xpose.msra.mxu0 0.0
        %1567 = vmatprep.subr.mxu0 0.0
        %1568 = vmatpush1.xpose.msra.mxu0 0.0
        %1569 = vmatprep.subr.mxu0 0.0
        %1570 = vmatpush1.xpose.msra.mxu0 0.0
        %1571 = vmatprep.subr.mxu0 0.0
        %1572 = vmatpush1.xpose.msra.mxu0 0.0
        %1573 = vmatprep.subr.mxu0 0.0
        %1574 = vmatpush1.xpose.msra.mxu0 0.0
        %1575 = vmatprep.subr.mxu0 0.0
        %1576 = vmatpush1.xpose.msra.mxu0 0.0
        %1577 = vmatprep.subr.mxu0 0.0
        %1578 = vmatpush1.xpose.msra.mxu0 0.0
        %1579 = vmatprep.subr.mxu0 0.0
        %1580 = vmatpush1.xpose.msra.mxu0 %v1547
        %1581 = vmatprep.subr.mxu0 0.0
        %1582 = vmatpush2.xpose.msra.mxu0 0.0
        %1583 = vmatprep.subr.mxu0 0.0
        %1584 = vmatpush2.xpose.msra.mxu0 0.0
        %1585 = vmatprep.subr.mxu0 0.0
        %1586 = vmatpush2.xpose.msra.mxu0 0.0
        %1587 = vmatprep.subr.mxu0 0.0
        %1588 = vmatpush2.xpose.msra.mxu0 0.0
        %1589 = vmatprep.subr.mxu0 0.0
        %1590 = vmatpush2.xpose.msra.mxu0 0.0
        %1591 = vmatprep.subr.mxu0 0.0
        %1592 = vmatpush2.xpose.msra.mxu0 0.0
        %1593 = vmatprep.subr.mxu0 0.0
        %1594 = vmatpush2.xpose.msra.mxu0 0.0
        %1595 = vmatprep.subr.mxu0 0.0
        %1596 = vmatpush2.xpose.msra.mxu0 0.0
        %1597 = vmatprep.subr.mxu0 0.0
        %1598 = vmatpush2.xpose.msra.mxu0 0.0
        %1599 = vmatprep.subr.mxu0 0.0
        %1600 = vmatpush2.xpose.msra.mxu0 0.0
        %1601 = vmatprep.subr.mxu0 0.0
        %1602 = vmatpush2.xpose.msra.mxu0 0.0
        %1603 = vmatprep.subr.mxu0 0.0
        %1604 = vmatpush2.xpose.msra.mxu0 0.0
        %1605 = vmatprep.subr.mxu0 0.0
        %1606 = vmatpush2.xpose.msra.mxu0 0.0
        %1607 = vmatprep.subr.mxu0 0.0
        %1608 = vmatpush2.xpose.msra.mxu0 0.0
        %1609 = vmatprep.subr.mxu0 0.0
        %1610 = vmatpush2.xpose.msra.mxu0 0.0
        %1611 = vmatprep.subr.mxu0 0.0
        %1612 = vmatpush2.xpose.msra.mxu0 0.0
        %1613 = vmatprep.mubr.f32.mxu0 0.0
        %1614 = vmatmul.mubr.f32.gmra.mxu0 %v1544
        %v1615 = vpop.f32.mrf.mxu0
        %v1616 = vadd.f32 %v1540, %v1615
        %v1617 = vpop.f32.mrf.mxu0
        %1618 = vdwg.mxu0
        %1619 = vst.msk [vmem:[%s1017] sm:$0xff] %vm1542, %v1616
        %v1620 = vsel %vm1542, %v1616, -inf
        %1621 = vmax.xlane.f32.xlu0 %v1620
        %v1622 = vpop.xlane.xlu0 %1621
        %v1623 = vsub.f32 %v1616, %v1622
        %v1624 = vmul.f32 %v1623, 1.442695
        %v1625 = vpow.pop %v1624
        %v1626 = vsel %vm1542, %v1625, 0.0
        %1627 = vadd.xlane.f32.xlu0 %v1626
        %v1628 = vpop.xlane.xlu0 %1627
        %v1629 = vrcp.pop %v1628
        %v1630 = vmul.f32 %v1628, %v1629
        %v1631 = vsub.f32 2.0, %v1630
        %v1632 = vmul.f32 %v1629, %v1631
        %v1633 = vmul.f32 %v1625, %v1632
        %v1635 = vsel %vm1542, %v1633, 0
        %1637 = vmatprep.subr.mxu0 0.0
        %1638 = vmatpush1.msra.mxu0 0.0
        %1639 = vmatprep.subr.mxu0 0.0
        %1640 = vmatpush1.msra.mxu0 0.0
        %1641 = vmatprep.subr.mxu0 0.0
        %1642 = vmatpush1.msra.mxu0 0.0
        %1643 = vmatprep.subr.mxu0 0.0
        %1644 = vmatpush1.msra.mxu0 0.0
        %1645 = vmatprep.subr.mxu0 0.0
        %1646 = vmatpush1.msra.mxu0 0.0
        %1647 = vmatprep.subr.mxu0 0.0
        %1648 = vmatpush1.msra.mxu0 0.0
        %1649 = vmatprep.subr.mxu0 0.0
        %1650 = vmatpush1.msra.mxu0 0.0
        %1651 = vmatprep.subr.mxu0 0.0
        %1652 = vmatpush1.msra.mxu0 0.0
        %1653 = vmatprep.subr.mxu0 0.0
        %1654 = vmatpush1.msra.mxu0 0.0
        %1655 = vmatprep.subr.mxu0 0.0
        %1656 = vmatpush1.msra.mxu0 0.0
        %1657 = vmatprep.subr.mxu0 0.0
        %1658 = vmatpush1.msra.mxu0 0.0
        %1659 = vmatprep.subr.mxu0 0.0
        %1660 = vmatpush1.msra.mxu0 0.0
        %1661 = vmatprep.subr.mxu0 0.0
        %1662 = vmatpush1.msra.mxu0 0.0
        %1663 = vmatprep.subr.mxu0 0.0
        %1664 = vmatpush1.msra.mxu0 0.0
        %1665 = vmatprep.subr.mxu0 0.0
        %1666 = vmatpush1.msra.mxu0 0.0
        %1667 = vmatprep.subr.mxu0 0.0
        %1668 = vmatpush1.msra.mxu0 %v1285
        %1669 = vmatprep.subr.mxu0 0.0
        %1670 = vmatpush2.msra.mxu0 0.0
        %1671 = vmatprep.subr.mxu0 0.0
        %1672 = vmatpush2.msra.mxu0 0.0
        %1673 = vmatprep.subr.mxu0 0.0
        %1674 = vmatpush2.msra.mxu0 0.0
        %1675 = vmatprep.subr.mxu0 0.0
        %1676 = vmatpush2.msra.mxu0 0.0
        %1677 = vmatprep.subr.mxu0 0.0
        %1678 = vmatpush2.msra.mxu0 0.0
        %1679 = vmatprep.subr.mxu0 0.0
        %1680 = vmatpush2.msra.mxu0 0.0
        %1681 = vmatprep.subr.mxu0 0.0
        %1682 = vmatpush2.msra.mxu0 0.0
        %1683 = vmatprep.subr.mxu0 0.0
        %1684 = vmatpush2.msra.mxu0 0.0
        %1685 = vmatprep.subr.mxu0 0.0
        %1686 = vmatpush2.msra.mxu0 0.0
        %1687 = vmatprep.subr.mxu0 0.0
        %1688 = vmatpush2.msra.mxu0 0.0
        %1689 = vmatprep.subr.mxu0 0.0
        %1690 = vmatpush2.msra.mxu0 0.0
        %1691 = vmatprep.subr.mxu0 0.0
        %1692 = vmatpush2.msra.mxu0 0.0
        %1693 = vmatprep.subr.mxu0 0.0
        %1694 = vmatpush2.msra.mxu0 0.0
        %1695 = vmatprep.subr.mxu0 0.0
        %1696 = vmatpush2.msra.mxu0 0.0
        %1697 = vmatprep.subr.mxu0 0.0
        %1698 = vmatpush2.msra.mxu0 0.0
        %1699 = vmatprep.subr.mxu0 0.0
        %1700 = vmatpush2.msra.mxu0 0.0
        %1701 = vmatprep.mubr.f32.mxu0 0.0
        %1702 = vmatmul.mubr.f32.gmra.mxu0 %v1635
        %v1703 = vpop.f32.mrf.mxu0
        %v1704 = vadd.f32 0.0, %v1703
        %v1705 = vpop.f32.mrf.mxu0
        %1706 = vdwg.mxu0
        %1707 = vst.msk [vmem:[#allocation2] sm:$0xff] %vm1542, %v1704
        %1708 = vrot.lane.b32.xlu0 %v1119, 120
        %v1709 = vpop.permute.xlu0 %1708
        %1710 = vrot.lane.b32.xlu0 %v1201, 120
        %v1711 = vpop.permute.xlu0 %1710
        %v1712 = vsel %vm1542, %v1709, 0
        %v1714 = vsel %vm1542, %v1711, 0
        %1716 = vmatprep.subr.mxu0 0.0
        %1717 = vmatpush1.xpose.msra.mxu0 0.0
        %1718 = vmatprep.subr.mxu0 0.0
        %1719 = vmatpush1.xpose.msra.mxu0 0.0
        %1720 = vmatprep.subr.mxu0 0.0
        %1721 = vmatpush1.xpose.msra.mxu0 0.0
        %1722 = vmatprep.subr.mxu0 0.0
        %1723 = vmatpush1.xpose.msra.mxu0 0.0
        %1724 = vmatprep.subr.mxu0 0.0
        %1725 = vmatpush1.xpose.msra.mxu0 0.0
        %1726 = vmatprep.subr.mxu0 0.0
        %1727 = vmatpush1.xpose.msra.mxu0 0.0
        %1728 = vmatprep.subr.mxu0 0.0
        %1729 = vmatpush1.xpose.msra.mxu0 0.0
        %1730 = vmatprep.subr.mxu0 0.0
        %1731 = vmatpush1.xpose.msra.mxu0 0.0
        %1732 = vmatprep.subr.mxu0 0.0
        %1733 = vmatpush1.xpose.msra.mxu0 0.0
        %1734 = vmatprep.subr.mxu0 0.0
        %1735 = vmatpush1.xpose.msra.mxu0 0.0
        %1736 = vmatprep.subr.mxu0 0.0
        %1737 = vmatpush1.xpose.msra.mxu0 0.0
        %1738 = vmatprep.subr.mxu0 0.0
        %1739 = vmatpush1.xpose.msra.mxu0 0.0
        %1740 = vmatprep.subr.mxu0 0.0
        %1741 = vmatpush1.xpose.msra.mxu0 0.0
        %1742 = vmatprep.subr.mxu0 0.0
        %1743 = vmatpush1.xpose.msra.mxu0 0.0
        %1744 = vmatprep.subr.mxu0 0.0
        %1745 = vmatpush1.xpose.msra.mxu0 0.0
        %1746 = vmatprep.subr.mxu0 0.0
        %1747 = vmatpush1.xpose.msra.mxu0 %v1714
        %1748 = vmatprep.subr.mxu0 0.0
        %1749 = vmatpush2.xpose.msra.mxu0 0.0
        %1750 = vmatprep.subr.mxu0 0.0
        %1751 = vmatpush2.xpose.msra.mxu0 0.0
        %1752 = vmatprep.subr.mxu0 0.0
        %1753 = vmatpush2.xpose.msra.mxu0 0.0
        %1754 = vmatprep.subr.mxu0 0.0
        %1755 = vmatpush2.xpose.msra.mxu0 0.0
        %1756 = vmatprep.subr.mxu0 0.0
        %1757 = vmatpush2.xpose.msra.mxu0 0.0
        %1758 = vmatprep.subr.mxu0 0.0
        %1759 = vmatpush2.xpose.msra.mxu0 0.0
        %1760 = vmatprep.subr.mxu0 0.0
        %1761 = vmatpush2.xpose.msra.mxu0 0.0
        %1762 = vmatprep.subr.mxu0 0.0
        %1763 = vmatpush2.xpose.msra.mxu0 0.0
        %1764 = vmatprep.subr.mxu0 0.0
        %1765 = vmatpush2.xpose.msra.mxu0 0.0
        %1766 = vmatprep.subr.mxu0 0.0
        %1767 = vmatpush2.xpose.msra.mxu0 0.0
        %1768 = vmatprep.subr.mxu0 0.0
        %1769 = vmatpush2.xpose.msra.mxu0 0.0
        %1770 = vmatprep.subr.mxu0 0.0
        %1771 = vmatpush2.xpose.msra.mxu0 0.0
        %1772 = vmatprep.subr.mxu0 0.0
        %1773 = vmatpush2.xpose.msra.mxu0 0.0
        %1774 = vmatprep.subr.mxu0 0.0
        %1775 = vmatpush2.xpose.msra.mxu0 0.0
        %1776 = vmatprep.subr.mxu0 0.0
        %1777 = vmatpush2.xpose.msra.mxu0 0.0
        %1778 = vmatprep.subr.mxu0 0.0
        %1779 = vmatpush2.xpose.msra.mxu0 0.0
        %1780 = vmatprep.mubr.f32.mxu0 0.0
        %1781 = vmatmul.mubr.f32.gmra.mxu0 %v1712
        %v1782 = vpop.f32.mrf.mxu0
        %v1783 = vadd.f32 %v1540, %v1782
        %v1784 = vpop.f32.mrf.mxu0
        %1785 = vdwg.mxu0
        %s1786 = scalar_lea.vmem %s1017, 8 [#allocation19]
        %1787 = vst.msk [vmem:[%s1786] sm:$0xff] %vm1542, %v1783
        %v1788 = vsel %vm1542, %v1783, -inf
        %1789 = vmax.xlane.f32.xlu0 %v1788
        %v1790 = vpop.xlane.xlu0 %1789
        %v1791 = vsub.f32 %v1783, %v1790
        %v1792 = vmul.f32 %v1791, 1.442695
        %v1793 = vpow.pop %v1792
        %v1794 = vsel %vm1542, %v1793, 0.0
        %1795 = vadd.xlane.f32.xlu0 %v1794
        %v1796 = vpop.xlane.xlu0 %1795
        %v1797 = vrcp.pop %v1796
        %v1798 = vmul.f32 %v1796, %v1797
        %v1799 = vsub.f32 2.0, %v1798
        %v1800 = vmul.f32 %v1797, %v1799
        %v1801 = vmul.f32 %v1793, %v1800
        %1803 = vrot.lane.b32.xlu0 %v1285, 120
        %v1804 = vpop.permute.xlu0 %1803
        %v1807 = vsel %vm1542, %v1801, 0
        %1809 = vmatprep.subr.mxu0 0.0
        %1810 = vmatpush1.msra.mxu0 0.0
        %1811 = vmatprep.subr.mxu0 0.0
        %1812 = vmatpush1.msra.mxu0 0.0
        %1813 = vmatprep.subr.mxu0 0.0
        %1814 = vmatpush1.msra.mxu0 0.0
        %1815 = vmatprep.subr.mxu0 0.0
        %1816 = vmatpush1.msra.mxu0 0.0
        %1817 = vmatprep.subr.mxu0 0.0
        %1818 = vmatpush1.msra.mxu0 0.0
        %1819 = vmatprep.subr.mxu0 0.0
        %1820 = vmatpush1.msra.mxu0 0.0
        %1821 = vmatprep.subr.mxu0 0.0
        %1822 = vmatpush1.msra.mxu0 0.0
        %1823 = vmatprep.subr.mxu0 0.0
        %1824 = vmatpush1.msra.mxu0 0.0
        %1825 = vmatprep.subr.mxu0 0.0
        %1826 = vmatpush1.msra.mxu0 0.0
        %1827 = vmatprep.subr.mxu0 0.0
        %1828 = vmatpush1.msra.mxu0 0.0
        %1829 = vmatprep.subr.mxu0 0.0
        %1830 = vmatpush1.msra.mxu0 0.0
        %1831 = vmatprep.subr.mxu0 0.0
        %1832 = vmatpush1.msra.mxu0 0.0
        %1833 = vmatprep.subr.mxu0 0.0
        %1834 = vmatpush1.msra.mxu0 0.0
        %1835 = vmatprep.subr.mxu0 0.0
        %1836 = vmatpush1.msra.mxu0 0.0
        %1837 = vmatprep.subr.mxu0 0.0
        %1838 = vmatpush1.msra.mxu0 0.0
        %1839 = vmatprep.subr.mxu0 0.0
        %1840 = vmatpush1.msra.mxu0 %v1804
        %1841 = vmatprep.subr.mxu0 0.0
        %1842 = vmatpush2.msra.mxu0 0.0
        %1843 = vmatprep.subr.mxu0 0.0
        %1844 = vmatpush2.msra.mxu0 0.0
        %1845 = vmatprep.subr.mxu0 0.0
        %1846 = vmatpush2.msra.mxu0 0.0
        %1847 = vmatprep.subr.mxu0 0.0
        %1848 = vmatpush2.msra.mxu0 0.0
        %1849 = vmatprep.subr.mxu0 0.0
        %1850 = vmatpush2.msra.mxu0 0.0
        %1851 = vmatprep.subr.mxu0 0.0
        %1852 = vmatpush2.msra.mxu0 0.0
        %1853 = vmatprep.subr.mxu0 0.0
        %1854 = vmatpush2.msra.mxu0 0.0
        %1855 = vmatprep.subr.mxu0 0.0
        %1856 = vmatpush2.msra.mxu0 0.0
        %1857 = vmatprep.subr.mxu0 0.0
        %1858 = vmatpush2.msra.mxu0 0.0
        %1859 = vmatprep.subr.mxu0 0.0
        %1860 = vmatpush2.msra.mxu0 0.0
        %1861 = vmatprep.subr.mxu0 0.0
        %1862 = vmatpush2.msra.mxu0 0.0
        %1863 = vmatprep.subr.mxu0 0.0
        %1864 = vmatpush2.msra.mxu0 0.0
        %1865 = vmatprep.subr.mxu0 0.0
        %1866 = vmatpush2.msra.mxu0 0.0
        %1867 = vmatprep.subr.mxu0 0.0
        %1868 = vmatpush2.msra.mxu0 0.0
        %1869 = vmatprep.subr.mxu0 0.0
        %1870 = vmatpush2.msra.mxu0 0.0
        %1871 = vmatprep.subr.mxu0 0.0
        %1872 = vmatpush2.msra.mxu0 0.0
        %1873 = vmatprep.mubr.f32.mxu0 0.0
        %1874 = vmatmul.mubr.f32.gmra.mxu0 %v1807
        %v1875 = vpop.f32.mrf.mxu0
        %v1876 = vadd.f32 0.0, %v1875
        %v1877 = vpop.f32.mrf.mxu0
        %1878 = vdwg.mxu0
        %1880 = vrot.lane.b32.xlu0 %v1876, 8
        %v1881 = vpop.permute.xlu0 %1880
        %vm1883 = vcmask 130112
        %1884 = vst.msk [vmem:[#allocation2] sm:$0xff] %vm1883, %v1881
        %1885 = vrot.lane.b32.xlu0 %v1119, 112
        %v1886 = vpop.permute.xlu0 %1885
        %1887 = vrot.lane.b32.xlu0 %v1201, 112
        %v1888 = vpop.permute.xlu0 %1887
        %v1889 = vsel %vm1542, %v1886, 0
        %v1891 = vsel %vm1542, %v1888, 0
        %1893 = vmatprep.subr.mxu0 0.0
        %1894 = vmatpush1.xpose.msra.mxu0 0.0
        %1895 = vmatprep.subr.mxu0 0.0
        %1896 = vmatpush1.xpose.msra.mxu0 0.0
        %1897 = vmatprep.subr.mxu0 0.0
        %1898 = vmatpush1.xpose.msra.mxu0 0.0
        %1899 = vmatprep.subr.mxu0 0.0
        %1900 = vmatpush1.xpose.msra.mxu0 0.0
        %1901 = vmatprep.subr.mxu0 0.0
        %1902 = vmatpush1.xpose.msra.mxu0 0.0
        %1903 = vmatprep.subr.mxu0 0.0
        %1904 = vmatpush1.xpose.msra.mxu0 0.0
        %1905 = vmatprep.subr.mxu0 0.0
        %1906 = vmatpush1.xpose.msra.mxu0 0.0
        %1907 = vmatprep.subr.mxu0 0.0
        %1908 = vmatpush1.xpose.msra.mxu0 0.0
        %1909 = vmatprep.subr.mxu0 0.0
        %1910 = vmatpush1.xpose.msra.mxu0 0.0
        %1911 = vmatprep.subr.mxu0 0.0
        %1912 = vmatpush1.xpose.msra.mxu0 0.0
        %1913 = vmatprep.subr.mxu0 0.0
        %1914 = vmatpush1.xpose.msra.mxu0 0.0
        %1915 = vmatprep.subr.mxu0 0.0
        %1916 = vmatpush1.xpose.msra.mxu0 0.0
        %1917 = vmatprep.subr.mxu0 0.0
        %1918 = vmatpush1.xpose.msra.mxu0 0.0
        %1919 = vmatprep.subr.mxu0 0.0
        %1920 = vmatpush1.xpose.msra.mxu0 0.0
        %1921 = vmatprep.subr.mxu0 0.0
        %1922 = vmatpush1.xpose.msra.mxu0 0.0
        %1923 = vmatprep.subr.mxu0 0.0
        %1924 = vmatpush1.xpose.msra.mxu0 %v1891
        %1925 = vmatprep.subr.mxu0 0.0
        %1926 = vmatpush2.xpose.msra.mxu0 0.0
        %1927 = vmatprep.subr.mxu0 0.0
        %1928 = vmatpush2.xpose.msra.mxu0 0.0
        %1929 = vmatprep.subr.mxu0 0.0
        %1930 = vmatpush2.xpose.msra.mxu0 0.0
        %1931 = vmatprep.subr.mxu0 0.0
        %1932 = vmatpush2.xpose.msra.mxu0 0.0
        %1933 = vmatprep.subr.mxu0 0.0
        %1934 = vmatpush2.xpose.msra.mxu0 0.0
        %1935 = vmatprep.subr.mxu0 0.0
        %1936 = vmatpush2.xpose.msra.mxu0 0.0
        %1937 = vmatprep.subr.mxu0 0.0
        %1938 = vmatpush2.xpose.msra.mxu0 0.0
        %1939 = vmatprep.subr.mxu0 0.0
        %1940 = vmatpush2.xpose.msra.mxu0 0.0
        %1941 = vmatprep.subr.mxu0 0.0
        %1942 = vmatpush2.xpose.msra.mxu0 0.0
        %1943 = vmatprep.subr.mxu0 0.0
        %1944 = vmatpush2.xpose.msra.mxu0 0.0
        %1945 = vmatprep.subr.mxu0 0.0
        %1946 = vmatpush2.xpose.msra.mxu0 0.0
        %1947 = vmatprep.subr.mxu0 0.0
        %1948 = vmatpush2.xpose.msra.mxu0 0.0
        %1949 = vmatprep.subr.mxu0 0.0
        %1950 = vmatpush2.xpose.msra.mxu0 0.0
        %1951 = vmatprep.subr.mxu0 0.0
        %1952 = vmatpush2.xpose.msra.mxu0 0.0
        %1953 = vmatprep.subr.mxu0 0.0
        %1954 = vmatpush2.xpose.msra.mxu0 0.0
        %1955 = vmatprep.subr.mxu0 0.0
        %1956 = vmatpush2.xpose.msra.mxu0 0.0
        %1957 = vmatprep.mubr.f32.mxu0 0.0
        %1958 = vmatmul.mubr.f32.gmra.mxu0 %v1889
        %v1959 = vpop.f32.mrf.mxu0
        %v1960 = vadd.f32 %v1540, %v1959
        %v1961 = vpop.f32.mrf.mxu0
        %1962 = vdwg.mxu0
        %s1963 = scalar_lea.vmem %s1017, 16 [#allocation19]
        %1964 = vst.msk [vmem:[%s1963] sm:$0xff] %vm1542, %v1960
        %v1965 = vsel %vm1542, %v1960, -inf
        %1966 = vmax.xlane.f32.xlu0 %v1965
        %v1967 = vpop.xlane.xlu0 %1966
        %v1968 = vsub.f32 %v1960, %v1967
        %v1969 = vmul.f32 %v1968, 1.442695
        %v1970 = vpow.pop %v1969
        %v1971 = vsel %vm1542, %v1970, 0.0
        %1972 = vadd.xlane.f32.xlu0 %v1971
        %v1973 = vpop.xlane.xlu0 %1972
        %v1974 = vrcp.pop %v1973
        %v1975 = vmul.f32 %v1973, %v1974
        %v1976 = vsub.f32 2.0, %v1975
        %v1977 = vmul.f32 %v1974, %v1976
        %v1978 = vmul.f32 %v1970, %v1977
        %1979 = vrot.lane.b32.xlu0 %v1285, 112
        %v1980 = vpop.permute.xlu0 %1979
        %v1983 = vsel %vm1542, %v1978, 0
        %1985 = vmatprep.subr.mxu0 0.0
        %1986 = vmatpush1.msra.mxu0 0.0
        %1987 = vmatprep.subr.mxu0 0.0
        %1988 = vmatpush1.msra.mxu0 0.0
        %1989 = vmatprep.subr.mxu0 0.0
        %1990 = vmatpush1.msra.mxu0 0.0
        %1991 = vmatprep.subr.mxu0 0.0
        %1992 = vmatpush1.msra.mxu0 0.0
        %1993 = vmatprep.subr.mxu0 0.0
        %1994 = vmatpush1.msra.mxu0 0.0
        %1995 = vmatprep.subr.mxu0 0.0
        %1996 = vmatpush1.msra.mxu0 0.0
        %1997 = vmatprep.subr.mxu0 0.0
        %1998 = vmatpush1.msra.mxu0 0.0
        %1999 = vmatprep.subr.mxu0 0.0
        %2000 = vmatpush1.msra.mxu0 0.0
        %2001 = vmatprep.subr.mxu0 0.0
        %2002 = vmatpush1.msra.mxu0 0.0
        %2003 = vmatprep.subr.mxu0 0.0
        %2004 = vmatpush1.msra.mxu0 0.0
        %2005 = vmatprep.subr.mxu0 0.0
        %2006 = vmatpush1.msra.mxu0 0.0
        %2007 = vmatprep.subr.mxu0 0.0
        %2008 = vmatpush1.msra.mxu0 0.0
        %2009 = vmatprep.subr.mxu0 0.0
        %2010 = vmatpush1.msra.mxu0 0.0
        %2011 = vmatprep.subr.mxu0 0.0
        %2012 = vmatpush1.msra.mxu0 0.0
        %2013 = vmatprep.subr.mxu0 0.0
        %2014 = vmatpush1.msra.mxu0 0.0
        %2015 = vmatprep.subr.mxu0 0.0
        %2016 = vmatpush1.msra.mxu0 %v1980
        %2017 = vmatprep.subr.mxu0 0.0
        %2018 = vmatpush2.msra.mxu0 0.0
        %2019 = vmatprep.subr.mxu0 0.0
        %2020 = vmatpush2.msra.mxu0 0.0
        %2021 = vmatprep.subr.mxu0 0.0
        %2022 = vmatpush2.msra.mxu0 0.0
        %2023 = vmatprep.subr.mxu0 0.0
        %2024 = vmatpush2.msra.mxu0 0.0
        %2025 = vmatprep.subr.mxu0 0.0
        %2026 = vmatpush2.msra.mxu0 0.0
        %2027 = vmatprep.subr.mxu0 0.0
        %2028 = vmatpush2.msra.mxu0 0.0
        %2029 = vmatprep.subr.mxu0 0.0
        %2030 = vmatpush2.msra.mxu0 0.0
        %2031 = vmatprep.subr.mxu0 0.0
        %2032 = vmatpush2.msra.mxu0 0.0
        %2033 = vmatprep.subr.mxu0 0.0
        %2034 = vmatpush2.msra.mxu0 0.0
        %2035 = vmatprep.subr.mxu0 0.0
        %2036 = vmatpush2.msra.mxu0 0.0
        %2037 = vmatprep.subr.mxu0 0.0
        %2038 = vmatpush2.msra.mxu0 0.0
        %2039 = vmatprep.subr.mxu0 0.0
        %2040 = vmatpush2.msra.mxu0 0.0
        %2041 = vmatprep.subr.mxu0 0.0
        %2042 = vmatpush2.msra.mxu0 0.0
        %2043 = vmatprep.subr.mxu0 0.0
        %2044 = vmatpush2.msra.mxu0 0.0
        %2045 = vmatprep.subr.mxu0 0.0
        %2046 = vmatpush2.msra.mxu0 0.0
        %2047 = vmatprep.subr.mxu0 0.0
        %2048 = vmatpush2.msra.mxu0 0.0
        %2049 = vmatprep.mubr.f32.mxu0 0.0
        %2050 = vmatmul.mubr.f32.gmra.mxu0 %v1983
        %v2051 = vpop.f32.mrf.mxu0
        %v2052 = vadd.f32 0.0, %v2051
        %v2053 = vpop.f32.mrf.mxu0
        %2054 = vdwg.mxu0
        %2056 = vrot.lane.b32.xlu0 %v2052, 16
        %v2057 = vpop.permute.xlu0 %2056
        %vm2059 = vcmask 195712
        %2060 = vst.msk [vmem:[#allocation2] sm:$0xff] %vm2059, %v2057
        %2061 = vrot.lane.b32.xlu0 %v1119, 104
        %v2062 = vpop.permute.xlu0 %2061
        %2063 = vrot.lane.b32.xlu0 %v1201, 104
        %v2064 = vpop.permute.xlu0 %2063
        %v2065 = vsel %vm1542, %v2062, 0
        %v2067 = vsel %vm1542, %v2064, 0
        %2069 = vmatprep.subr.mxu0 0.0
        %2070 = vmatpush1.xpose.msra.mxu0 0.0
        %2071 = vmatprep.subr.mxu0 0.0
        %2072 = vmatpush1.xpose.msra.mxu0 0.0
        %2073 = vmatprep.subr.mxu0 0.0
        %2074 = vmatpush1.xpose.msra.mxu0 0.0
        %2075 = vmatprep.subr.mxu0 0.0
        %2076 = vmatpush1.xpose.msra.mxu0 0.0
        %2077 = vmatprep.subr.mxu0 0.0
        %2078 = vmatpush1.xpose.msra.mxu0 0.0
        %2079 = vmatprep.subr.mxu0 0.0
        %2080 = vmatpush1.xpose.msra.mxu0 0.0
        %2081 = vmatprep.subr.mxu0 0.0
        %2082 = vmatpush1.xpose.msra.mxu0 0.0
        %2083 = vmatprep.subr.mxu0 0.0
        %2084 = vmatpush1.xpose.msra.mxu0 0.0
        %2085 = vmatprep.subr.mxu0 0.0
        %2086 = vmatpush1.xpose.msra.mxu0 0.0
        %2087 = vmatprep.subr.mxu0 0.0
        %2088 = vmatpush1.xpose.msra.mxu0 0.0
        %2089 = vmatprep.subr.mxu0 0.0
        %2090 = vmatpush1.xpose.msra.mxu0 0.0
        %2091 = vmatprep.subr.mxu0 0.0
        %2092 = vmatpush1.xpose.msra.mxu0 0.0
        %2093 = vmatprep.subr.mxu0 0.0
        %2094 = vmatpush1.xpose.msra.mxu0 0.0
        %2095 = vmatprep.subr.mxu0 0.0
        %2096 = vmatpush1.xpose.msra.mxu0 0.0
        %2097 = vmatprep.subr.mxu0 0.0
        %2098 = vmatpush1.xpose.msra.mxu0 0.0
        %2099 = vmatprep.subr.mxu0 0.0
        %2100 = vmatpush1.xpose.msra.mxu0 %v2067
        %2101 = vmatprep.subr.mxu0 0.0
        %2102 = vmatpush2.xpose.msra.mxu0 0.0
        %2103 = vmatprep.subr.mxu0 0.0
        %2104 = vmatpush2.xpose.msra.mxu0 0.0
        %2105 = vmatprep.subr.mxu0 0.0
        %2106 = vmatpush2.xpose.msra.mxu0 0.0
        %2107 = vmatprep.subr.mxu0 0.0
        %2108 = vmatpush2.xpose.msra.mxu0 0.0
        %2109 = vmatprep.subr.mxu0 0.0
        %2110 = vmatpush2.xpose.msra.mxu0 0.0
        %2111 = vmatprep.subr.mxu0 0.0
        %2112 = vmatpush2.xpose.msra.mxu0 0.0
        %2113 = vmatprep.subr.mxu0 0.0
        %2114 = vmatpush2.xpose.msra.mxu0 0.0
        %2115 = vmatprep.subr.mxu0 0.0
        %2116 = vmatpush2.xpose.msra.mxu0 0.0
        %2117 = vmatprep.subr.mxu0 0.0
        %2118 = vmatpush2.xpose.msra.mxu0 0.0
        %2119 = vmatprep.subr.mxu0 0.0
        %2120 = vmatpush2.xpose.msra.mxu0 0.0
        %2121 = vmatprep.subr.mxu0 0.0
        %2122 = vmatpush2.xpose.msra.mxu0 0.0
        %2123 = vmatprep.subr.mxu0 0.0
        %2124 = vmatpush2.xpose.msra.mxu0 0.0
        %2125 = vmatprep.subr.mxu0 0.0
        %2126 = vmatpush2.xpose.msra.mxu0 0.0
        %2127 = vmatprep.subr.mxu0 0.0
        %2128 = vmatpush2.xpose.msra.mxu0 0.0
        %2129 = vmatprep.subr.mxu0 0.0
        %2130 = vmatpush2.xpose.msra.mxu0 0.0
        %2131 = vmatprep.subr.mxu0 0.0
        %2132 = vmatpush2.xpose.msra.mxu0 0.0
        %2133 = vmatprep.mubr.f32.mxu0 0.0
        %2134 = vmatmul.mubr.f32.gmra.mxu0 %v2065
        %v2135 = vpop.f32.mrf.mxu0
        %v2136 = vadd.f32 %v1540, %v2135
        %v2137 = vpop.f32.mrf.mxu0
        %2138 = vdwg.mxu0
        %s2139 = scalar_lea.vmem %s1017, 24 [#allocation19]
        %2140 = vst.msk [vmem:[%s2139] sm:$0xff] %vm1542, %v2136
        %v2141 = vsel %vm1542, %v2136, -inf
        %2142 = vmax.xlane.f32.xlu0 %v2141
        %v2143 = vpop.xlane.xlu0 %2142
        %v2144 = vsub.f32 %v2136, %v2143
        %v2145 = vmul.f32 %v2144, 1.442695
        %v2146 = vpow.pop %v2145
        %v2147 = vsel %vm1542, %v2146, 0.0
        %2148 = vadd.xlane.f32.xlu0 %v2147
        %v2149 = vpop.xlane.xlu0 %2148
        %v2150 = vrcp.pop %v2149
        %v2151 = vmul.f32 %v2149, %v2150
        %v2152 = vsub.f32 2.0, %v2151
        %v2153 = vmul.f32 %v2150, %v2152
        %v2154 = vmul.f32 %v2146, %v2153
        %2155 = vrot.lane.b32.xlu0 %v1285, 104
        %v2156 = vpop.permute.xlu0 %2155
        %v2159 = vsel %vm1542, %v2154, 0
        %2161 = vmatprep.subr.mxu0 0.0
        %2162 = vmatpush1.msra.mxu0 0.0
        %2163 = vmatprep.subr.mxu0 0.0
        %2164 = vmatpush1.msra.mxu0 0.0
        %2165 = vmatprep.subr.mxu0 0.0
        %2166 = vmatpush1.msra.mxu0 0.0
        %2167 = vmatprep.subr.mxu0 0.0
        %2168 = vmatpush1.msra.mxu0 0.0
        %2169 = vmatprep.subr.mxu0 0.0
        %2170 = vmatpush1.msra.mxu0 0.0
        %2171 = vmatprep.subr.mxu0 0.0
        %2172 = vmatpush1.msra.mxu0 0.0
        %2173 = vmatprep.subr.mxu0 0.0
        %2174 = vmatpush1.msra.mxu0 0.0
        %2175 = vmatprep.subr.mxu0 0.0
        %2176 = vmatpush1.msra.mxu0 0.0
        %2177 = vmatprep.subr.mxu0 0.0
        %2178 = vmatpush1.msra.mxu0 0.0
        %2179 = vmatprep.subr.mxu0 0.0
        %2180 = vmatpush1.msra.mxu0 0.0
        %2181 = vmatprep.subr.mxu0 0.0
        %2182 = vmatpush1.msra.mxu0 0.0
        %2183 = vmatprep.subr.mxu0 0.0
        %2184 = vmatpush1.msra.mxu0 0.0
        %2185 = vmatprep.subr.mxu0 0.0
        %2186 = vmatpush1.msra.mxu0 0.0
        %2187 = vmatprep.subr.mxu0 0.0
        %2188 = vmatpush1.msra.mxu0 0.0
        %2189 = vmatprep.subr.mxu0 0.0
        %2190 = vmatpush1.msra.mxu0 0.0
        %2191 = vmatprep.subr.mxu0 0.0
        %2192 = vmatpush1.msra.mxu0 %v2156
        %2193 = vmatprep.subr.mxu0 0.0
        %2194 = vmatpush2.msra.mxu0 0.0
        %2195 = vmatprep.subr.mxu0 0.0
        %2196 = vmatpush2.msra.mxu0 0.0
        %2197 = vmatprep.subr.mxu0 0.0
        %2198 = vmatpush2.msra.mxu0 0.0
        %2199 = vmatprep.subr.mxu0 0.0
        %2200 = vmatpush2.msra.mxu0 0.0
        %2201 = vmatprep.subr.mxu0 0.0
        %2202 = vmatpush2.msra.mxu0 0.0
        %2203 = vmatprep.subr.mxu0 0.0
        %2204 = vmatpush2.msra.mxu0 0.0
        %2205 = vmatprep.subr.mxu0 0.0
        %2206 = vmatpush2.msra.mxu0 0.0
        %2207 = vmatprep.subr.mxu0 0.0
        %2208 = vmatpush2.msra.mxu0 0.0
        %2209 = vmatprep.subr.mxu0 0.0
        %2210 = vmatpush2.msra.mxu0 0.0
        %2211 = vmatprep.subr.mxu0 0.0
        %2212 = vmatpush2.msra.mxu0 0.0
        %2213 = vmatprep.subr.mxu0 0.0
        %2214 = vmatpush2.msra.mxu0 0.0
        %2215 = vmatprep.subr.mxu0 0.0
        %2216 = vmatpush2.msra.mxu0 0.0
        %2217 = vmatprep.subr.mxu0 0.0
        %2218 = vmatpush2.msra.mxu0 0.0
        %2219 = vmatprep.subr.mxu0 0.0
        %2220 = vmatpush2.msra.mxu0 0.0
        %2221 = vmatprep.subr.mxu0 0.0
        %2222 = vmatpush2.msra.mxu0 0.0
        %2223 = vmatprep.subr.mxu0 0.0
        %2224 = vmatpush2.msra.mxu0 0.0
        %2225 = vmatprep.mubr.f32.mxu0 0.0
        %2226 = vmatmul.mubr.f32.gmra.mxu0 %v2159
        %v2227 = vpop.f32.mrf.mxu0
        %v2228 = vadd.f32 0.0, %v2227
        %v2229 = vpop.f32.mrf.mxu0
        %2230 = vdwg.mxu0
        %2232 = vrot.lane.b32.xlu0 %v2228, 24
        %v2233 = vpop.permute.xlu0 %2232
        %vm2235 = vcmask 261312
        %2236 = vst.msk [vmem:[#allocation2] sm:$0xff] %vm2235, %v2233
        %v2237 = vld [vmem:[%s909] sm:$0x1]
        %v2239 = vlaneseq
        %v2240 = vshrl.u32 %v2239, 7
        %v2241 = vsub.s32 0, %v2240
        %v2242 = vrot.slane %v2237, %v2241
        %vm2244 = vcmask 31744
        %v2246 = vsel %vm2244, %v1369, 0
        %v2249 = vsel %vm2244, %v1450, 0
        %2251 = vmatprep.subr.mxu0 0.0
        %2252 = vmatpush1.xpose.msra.mxu0 0.0
        %2253 = vmatprep.subr.mxu0 0.0
        %2254 = vmatpush1.xpose.msra.mxu0 0.0
        %2255 = vmatprep.subr.mxu0 0.0
        %2256 = vmatpush1.xpose.msra.mxu0 0.0
        %2257 = vmatprep.subr.mxu0 0.0
        %2258 = vmatpush1.xpose.msra.mxu0 0.0
        %2259 = vmatprep.subr.mxu0 0.0
        %2260 = vmatpush1.xpose.msra.mxu0 0.0
        %2261 = vmatprep.subr.mxu0 0.0
        %2262 = vmatpush1.xpose.msra.mxu0 0.0
        %2263 = vmatprep.subr.mxu0 0.0
        %2264 = vmatpush1.xpose.msra.mxu0 0.0
        %2265 = vmatprep.subr.mxu0 0.0
        %2266 = vmatpush1.xpose.msra.mxu0 0.0
        %2267 = vmatprep.subr.mxu0 0.0
        %2268 = vmatpush1.xpose.msra.mxu0 0.0
        %2269 = vmatprep.subr.mxu0 0.0
        %2270 = vmatpush1.xpose.msra.mxu0 0.0
        %2271 = vmatprep.subr.mxu0 0.0
        %2272 = vmatpush1.xpose.msra.mxu0 0.0
        %2273 = vmatprep.subr.mxu0 0.0
        %2274 = vmatpush1.xpose.msra.mxu0 0.0
        %2275 = vmatprep.subr.mxu0 0.0
        %2276 = vmatpush1.xpose.msra.mxu0 0.0
        %2277 = vmatprep.subr.mxu0 0.0
        %2278 = vmatpush1.xpose.msra.mxu0 0.0
        %2279 = vmatprep.subr.mxu0 0.0
        %2280 = vmatpush1.xpose.msra.mxu0 0.0
        %2281 = vmatprep.subr.mxu0 0.0
        %2282 = vmatpush1.xpose.msra.mxu0 %v2249
        %2283 = vmatprep.subr.mxu0 0.0
        %2284 = vmatpush2.xpose.msra.mxu0 0.0
        %2285 = vmatprep.subr.mxu0 0.0
        %2286 = vmatpush2.xpose.msra.mxu0 0.0
        %2287 = vmatprep.subr.mxu0 0.0
        %2288 = vmatpush2.xpose.msra.mxu0 0.0
        %2289 = vmatprep.subr.mxu0 0.0
        %2290 = vmatpush2.xpose.msra.mxu0 0.0
        %2291 = vmatprep.subr.mxu0 0.0
        %2292 = vmatpush2.xpose.msra.mxu0 0.0
        %2293 = vmatprep.subr.mxu0 0.0
        %2294 = vmatpush2.xpose.msra.mxu0 0.0
        %2295 = vmatprep.subr.mxu0 0.0
        %2296 = vmatpush2.xpose.msra.mxu0 0.0
        %2297 = vmatprep.subr.mxu0 0.0
        %2298 = vmatpush2.xpose.msra.mxu0 0.0
        %2299 = vmatprep.subr.mxu0 0.0
        %2300 = vmatpush2.xpose.msra.mxu0 0.0
        %2301 = vmatprep.subr.mxu0 0.0
        %2302 = vmatpush2.xpose.msra.mxu0 0.0
        %2303 = vmatprep.subr.mxu0 0.0
        %2304 = vmatpush2.xpose.msra.mxu0 0.0
        %2305 = vmatprep.subr.mxu0 0.0
        %2306 = vmatpush2.xpose.msra.mxu0 0.0
        %2307 = vmatprep.subr.mxu0 0.0
        %2308 = vmatpush2.xpose.msra.mxu0 0.0
        %2309 = vmatprep.subr.mxu0 0.0
        %2310 = vmatpush2.xpose.msra.mxu0 0.0
        %2311 = vmatprep.subr.mxu0 0.0
        %2312 = vmatpush2.xpose.msra.mxu0 0.0
        %2313 = vmatprep.subr.mxu0 0.0
        %2314 = vmatpush2.xpose.msra.mxu0 0.0
        %2315 = vmatprep.mubr.f32.mxu0 0.0
        %2316 = vmatmul.mubr.f32.gmra.mxu0 %v2246
        %v2317 = vpop.f32.mrf.mxu0
        %v2318 = vadd.f32 %v2242, %v2317
        %v2319 = vpop.f32.mrf.mxu0
        %2320 = vdwg.mxu0
        %2321 = vst.msk [vmem:[%s1024] sm:$0xff] %vm1542, %v2318
        %v2322 = vsel %vm1542, %v2318, -inf
        %2323 = vmax.xlane.f32.xlu0 %v2322
        %v2324 = vpop.xlane.xlu0 %2323
        %v2325 = vsub.f32 %v2318, %v2324
        %v2326 = vmul.f32 %v2325, 1.442695
        %v2327 = vpow.pop %v2326
        %v2328 = vsel %vm1542, %v2327, 0.0
        %2329 = vadd.xlane.f32.xlu0 %v2328
        %v2330 = vpop.xlane.xlu0 %2329
        %v2331 = vrcp.pop %v2330
        %v2332 = vmul.f32 %v2330, %v2331
        %v2333 = vsub.f32 2.0, %v2332
        %v2334 = vmul.f32 %v2331, %v2333
        %v2335 = vmul.f32 %v2327, %v2334
        %v2337 = vsel %vm1542, %v2335, 0
        %2339 = vmatprep.subr.mxu0 0.0
        %2340 = vmatpush1.msra.mxu0 0.0
        %2341 = vmatprep.subr.mxu0 0.0
        %2342 = vmatpush1.msra.mxu0 0.0
        %2343 = vmatprep.subr.mxu0 0.0
        %2344 = vmatpush1.msra.mxu0 0.0
        %2345 = vmatprep.subr.mxu0 0.0
        %2346 = vmatpush1.msra.mxu0 0.0
        %2347 = vmatprep.subr.mxu0 0.0
        %2348 = vmatpush1.msra.mxu0 0.0
        %2349 = vmatprep.subr.mxu0 0.0
        %2350 = vmatpush1.msra.mxu0 0.0
        %2351 = vmatprep.subr.mxu0 0.0
        %2352 = vmatpush1.msra.mxu0 0.0
        %2353 = vmatprep.subr.mxu0 0.0
        %2354 = vmatpush1.msra.mxu0 0.0
        %2355 = vmatprep.subr.mxu0 0.0
        %2356 = vmatpush1.msra.mxu0 0.0
        %2357 = vmatprep.subr.mxu0 0.0
        %2358 = vmatpush1.msra.mxu0 0.0
        %2359 = vmatprep.subr.mxu0 0.0
        %2360 = vmatpush1.msra.mxu0 0.0
        %2361 = vmatprep.subr.mxu0 0.0
        %2362 = vmatpush1.msra.mxu0 0.0
        %2363 = vmatprep.subr.mxu0 0.0
        %2364 = vmatpush1.msra.mxu0 0.0
        %2365 = vmatprep.subr.mxu0 0.0
        %2366 = vmatpush1.msra.mxu0 0.0
        %2367 = vmatprep.subr.mxu0 0.0
        %2368 = vmatpush1.msra.mxu0 0.0
        %2369 = vmatprep.subr.mxu0 0.0
        %2370 = vmatpush1.msra.mxu0 %v1532
        %2371 = vmatprep.subr.mxu0 0.0
        %2372 = vmatpush2.msra.mxu0 0.0
        %2373 = vmatprep.subr.mxu0 0.0
        %2374 = vmatpush2.msra.mxu0 0.0
        %2375 = vmatprep.subr.mxu0 0.0
        %2376 = vmatpush2.msra.mxu0 0.0
        %2377 = vmatprep.subr.mxu0 0.0
        %2378 = vmatpush2.msra.mxu0 0.0
        %2379 = vmatprep.subr.mxu0 0.0
        %2380 = vmatpush2.msra.mxu0 0.0
        %2381 = vmatprep.subr.mxu0 0.0
        %2382 = vmatpush2.msra.mxu0 0.0
        %2383 = vmatprep.subr.mxu0 0.0
        %2384 = vmatpush2.msra.mxu0 0.0
        %2385 = vmatprep.subr.mxu0 0.0
        %2386 = vmatpush2.msra.mxu0 0.0
        %2387 = vmatprep.subr.mxu0 0.0
        %2388 = vmatpush2.msra.mxu0 0.0
        %2389 = vmatprep.subr.mxu0 0.0
        %2390 = vmatpush2.msra.mxu0 0.0
        %2391 = vmatprep.subr.mxu0 0.0
        %2392 = vmatpush2.msra.mxu0 0.0
        %2393 = vmatprep.subr.mxu0 0.0
        %2394 = vmatpush2.msra.mxu0 0.0
        %2395 = vmatprep.subr.mxu0 0.0
        %2396 = vmatpush2.msra.mxu0 0.0
        %2397 = vmatprep.subr.mxu0 0.0
        %2398 = vmatpush2.msra.mxu0 0.0
        %2399 = vmatprep.subr.mxu0 0.0
        %2400 = vmatpush2.msra.mxu0 0.0
        %2401 = vmatprep.subr.mxu0 0.0
        %2402 = vmatpush2.msra.mxu0 0.0
        %2403 = vmatprep.mubr.f32.mxu0 0.0
        %2404 = vmatmul.mubr.f32.gmra.mxu0 %v2337
        %v2405 = vpop.f32.mrf.mxu0
        %v2406 = vadd.f32 0.0, %v2405
        %v2407 = vpop.f32.mrf.mxu0
        %2408 = vdwg.mxu0
        %2410 = vrot.lane.b32.xlu0 %v2406, 32
        %v2411 = vpop.permute.xlu0 %2410
        %vm2413 = vcmask 294144
        %2414 = vst.msk [vmem:[#allocation2] sm:$0xff] %vm2413, %v2411
        %2415 = vrot.lane.b32.xlu0 %v1369, 124
        %v2416 = vpop.permute.xlu0 %2415
        %2417 = vrot.lane.b32.xlu0 %v1450, 124
        %v2418 = vpop.permute.xlu0 %2417
        %v2419 = vsel %vm2244, %v2416, 0
        %v2421 = vsel %vm2244, %v2418, 0
        %2423 = vmatprep.subr.mxu0 0.0
        %2424 = vmatpush1.xpose.msra.mxu0 0.0
        %2425 = vmatprep.subr.mxu0 0.0
        %2426 = vmatpush1.xpose.msra.mxu0 0.0
        %2427 = vmatprep.subr.mxu0 0.0
        %2428 = vmatpush1.xpose.msra.mxu0 0.0
        %2429 = vmatprep.subr.mxu0 0.0
        %2430 = vmatpush1.xpose.msra.mxu0 0.0
        %2431 = vmatprep.subr.mxu0 0.0
        %2432 = vmatpush1.xpose.msra.mxu0 0.0
        %2433 = vmatprep.subr.mxu0 0.0
        %2434 = vmatpush1.xpose.msra.mxu0 0.0
        %2435 = vmatprep.subr.mxu0 0.0
        %2436 = vmatpush1.xpose.msra.mxu0 0.0
        %2437 = vmatprep.subr.mxu0 0.0
        %2438 = vmatpush1.xpose.msra.mxu0 0.0
        %2439 = vmatprep.subr.mxu0 0.0
        %2440 = vmatpush1.xpose.msra.mxu0 0.0
        %2441 = vmatprep.subr.mxu0 0.0
        %2442 = vmatpush1.xpose.msra.mxu0 0.0
        %2443 = vmatprep.subr.mxu0 0.0
        %2444 = vmatpush1.xpose.msra.mxu0 0.0
        %2445 = vmatprep.subr.mxu0 0.0
        %2446 = vmatpush1.xpose.msra.mxu0 0.0
        %2447 = vmatprep.subr.mxu0 0.0
        %2448 = vmatpush1.xpose.msra.mxu0 0.0
        %2449 = vmatprep.subr.mxu0 0.0
        %2450 = vmatpush1.xpose.msra.mxu0 0.0
        %2451 = vmatprep.subr.mxu0 0.0
        %2452 = vmatpush1.xpose.msra.mxu0 0.0
        %2453 = vmatprep.subr.mxu0 0.0
        %2454 = vmatpush1.xpose.msra.mxu0 %v2421
        %2455 = vmatprep.subr.mxu0 0.0
        %2456 = vmatpush2.xpose.msra.mxu0 0.0
        %2457 = vmatprep.subr.mxu0 0.0
        %2458 = vmatpush2.xpose.msra.mxu0 0.0
        %2459 = vmatprep.subr.mxu0 0.0
        %2460 = vmatpush2.xpose.msra.mxu0 0.0
        %2461 = vmatprep.subr.mxu0 0.0
        %2462 = vmatpush2.xpose.msra.mxu0 0.0
        %2463 = vmatprep.subr.mxu0 0.0
        %2464 = vmatpush2.xpose.msra.mxu0 0.0
        %2465 = vmatprep.subr.mxu0 0.0
        %2466 = vmatpush2.xpose.msra.mxu0 0.0
        %2467 = vmatprep.subr.mxu0 0.0
        %2468 = vmatpush2.xpose.msra.mxu0 0.0
        %2469 = vmatprep.subr.mxu0 0.0
        %2470 = vmatpush2.xpose.msra.mxu0 0.0
        %2471 = vmatprep.subr.mxu0 0.0
        %2472 = vmatpush2.xpose.msra.mxu0 0.0
        %2473 = vmatprep.subr.mxu0 0.0
        %2474 = vmatpush2.xpose.msra.mxu0 0.0
        %2475 = vmatprep.subr.mxu0 0.0
        %2476 = vmatpush2.xpose.msra.mxu0 0.0
        %2477 = vmatprep.subr.mxu0 0.0
        %2478 = vmatpush2.xpose.msra.mxu0 0.0
        %2479 = vmatprep.subr.mxu0 0.0
        %2480 = vmatpush2.xpose.msra.mxu0 0.0
        %2481 = vmatprep.subr.mxu0 0.0
        %2482 = vmatpush2.xpose.msra.mxu0 0.0
        %2483 = vmatprep.subr.mxu0 0.0
        %2484 = vmatpush2.xpose.msra.mxu0 0.0
        %2485 = vmatprep.subr.mxu0 0.0
        %2486 = vmatpush2.xpose.msra.mxu0 0.0
        %2487 = vmatprep.mubr.f32.mxu0 0.0
        %2488 = vmatmul.mubr.f32.gmra.mxu0 %v2419
        %v2489 = vpop.f32.mrf.mxu0
        %v2490 = vadd.f32 %v2242, %v2489
        %v2491 = vpop.f32.mrf.mxu0
        %2492 = vdwg.mxu0
        %s2493 = scalar_lea.vmem %s1024, 8 [#allocation21]
        %2494 = vst.msk [vmem:[%s2493] sm:$0xff] %vm1542, %v2490
        %v2495 = vsel %vm1542, %v2490, -inf
        %2496 = vmax.xlane.f32.xlu0 %v2495
        %v2497 = vpop.xlane.xlu0 %2496
        %v2498 = vsub.f32 %v2490, %v2497
        %v2499 = vmul.f32 %v2498, 1.442695
        %v2500 = vpow.pop %v2499
        %v2501 = vsel %vm1542, %v2500, 0.0
        %2502 = vadd.xlane.f32.xlu0 %v2501
        %v2503 = vpop.xlane.xlu0 %2502
        %v2504 = vrcp.pop %v2503
        %v2505 = vmul.f32 %v2503, %v2504
        %v2506 = vsub.f32 2.0, %v2505
        %v2507 = vmul.f32 %v2504, %v2506
        %v2508 = vmul.f32 %v2500, %v2507
        %2510 = vrot.lane.b32.xlu0 %v1532, 124
        %v2511 = vpop.permute.xlu0 %2510
        %v2514 = vsel %vm1542, %v2508, 0
        %2516 = vmatprep.subr.mxu0 0.0
        %2517 = vmatpush1.msra.mxu0 0.0
        %2518 = vmatprep.subr.mxu0 0.0
        %2519 = vmatpush1.msra.mxu0 0.0
        %2520 = vmatprep.subr.mxu0 0.0
        %2521 = vmatpush1.msra.mxu0 0.0
        %2522 = vmatprep.subr.mxu0 0.0
        %2523 = vmatpush1.msra.mxu0 0.0
        %2524 = vmatprep.subr.mxu0 0.0
        %2525 = vmatpush1.msra.mxu0 0.0
        %2526 = vmatprep.subr.mxu0 0.0
        %2527 = vmatpush1.msra.mxu0 0.0
        %2528 = vmatprep.subr.mxu0 0.0
        %2529 = vmatpush1.msra.mxu0 0.0
        %2530 = vmatprep.subr.mxu0 0.0
        %2531 = vmatpush1.msra.mxu0 0.0
        %2532 = vmatprep.subr.mxu0 0.0
        %2533 = vmatpush1.msra.mxu0 0.0
        %2534 = vmatprep.subr.mxu0 0.0
        %2535 = vmatpush1.msra.mxu0 0.0
        %2536 = vmatprep.subr.mxu0 0.0
        %2537 = vmatpush1.msra.mxu0 0.0
        %2538 = vmatprep.subr.mxu0 0.0
        %2539 = vmatpush1.msra.mxu0 0.0
        %2540 = vmatprep.subr.mxu0 0.0
        %2541 = vmatpush1.msra.mxu0 0.0
        %2542 = vmatprep.subr.mxu0 0.0
        %2543 = vmatpush1.msra.mxu0 0.0
        %2544 = vmatprep.subr.mxu0 0.0
        %2545 = vmatpush1.msra.mxu0 0.0
        %2546 = vmatprep.subr.mxu0 0.0
        %2547 = vmatpush1.msra.mxu0 %v2511
        %2548 = vmatprep.subr.mxu0 0.0
        %2549 = vmatpush2.msra.mxu0 0.0
        %2550 = vmatprep.subr.mxu0 0.0
        %2551 = vmatpush2.msra.mxu0 0.0
        %2552 = vmatprep.subr.mxu0 0.0
        %2553 = vmatpush2.msra.mxu0 0.0
        %2554 = vmatprep.subr.mxu0 0.0
        %2555 = vmatpush2.msra.mxu0 0.0
        %2556 = vmatprep.subr.mxu0 0.0
        %2557 = vmatpush2.msra.mxu0 0.0
        %2558 = vmatprep.subr.mxu0 0.0
        %2559 = vmatpush2.msra.mxu0 0.0
        %2560 = vmatprep.subr.mxu0 0.0
        %2561 = vmatpush2.msra.mxu0 0.0
        %2562 = vmatprep.subr.mxu0 0.0
        %2563 = vmatpush2.msra.mxu0 0.0
        %2564 = vmatprep.subr.mxu0 0.0
        %2565 = vmatpush2.msra.mxu0 0.0
        %2566 = vmatprep.subr.mxu0 0.0
        %2567 = vmatpush2.msra.mxu0 0.0
        %2568 = vmatprep.subr.mxu0 0.0
        %2569 = vmatpush2.msra.mxu0 0.0
        %2570 = vmatprep.subr.mxu0 0.0
        %2571 = vmatpush2.msra.mxu0 0.0
        %2572 = vmatprep.subr.mxu0 0.0
        %2573 = vmatpush2.msra.mxu0 0.0
        %2574 = vmatprep.subr.mxu0 0.0
        %2575 = vmatpush2.msra.mxu0 0.0
        %2576 = vmatprep.subr.mxu0 0.0
        %2577 = vmatpush2.msra.mxu0 0.0
        %2578 = vmatprep.subr.mxu0 0.0
        %2579 = vmatpush2.msra.mxu0 0.0
        %2580 = vmatprep.mubr.f32.mxu0 0.0
        %2581 = vmatmul.mubr.f32.gmra.mxu0 %v2514
        %v2582 = vpop.f32.mrf.mxu0
        %v2583 = vadd.f32 0.0, %v2582
        %v2584 = vpop.f32.mrf.mxu0
        %2585 = vdwg.mxu0
        %2587 = vrot.lane.b32.xlu0 %v2583, 36
        %v2588 = vpop.permute.xlu0 %2587
        %vm2590 = vcmask 326944
        %2591 = vst.msk [vmem:[#allocation2] sm:$0xff] %vm2590, %v2588
        %2592 = vrot.lane.b32.xlu0 %v1369, 120
        %v2593 = vpop.permute.xlu0 %2592
        %2594 = vrot.lane.b32.xlu0 %v1450, 120
        %v2595 = vpop.permute.xlu0 %2594
        %v2596 = vsel %vm2244, %v2593, 0
        %v2598 = vsel %vm2244, %v2595, 0
        %2600 = vmatprep.subr.mxu0 0.0
        %2601 = vmatpush1.xpose.msra.mxu0 0.0
        %2602 = vmatprep.subr.mxu0 0.0
        %2603 = vmatpush1.xpose.msra.mxu0 0.0
        %2604 = vmatprep.subr.mxu0 0.0
        %2605 = vmatpush1.xpose.msra.mxu0 0.0
        %2606 = vmatprep.subr.mxu0 0.0
        %2607 = vmatpush1.xpose.msra.mxu0 0.0
        %2608 = vmatprep.subr.mxu0 0.0
        %2609 = vmatpush1.xpose.msra.mxu0 0.0
        %2610 = vmatprep.subr.mxu0 0.0
        %2611 = vmatpush1.xpose.msra.mxu0 0.0
        %2612 = vmatprep.subr.mxu0 0.0
        %2613 = vmatpush1.xpose.msra.mxu0 0.0
        %2614 = vmatprep.subr.mxu0 0.0
        %2615 = vmatpush1.xpose.msra.mxu0 0.0
        %2616 = vmatprep.subr.mxu0 0.0
        %2617 = vmatpush1.xpose.msra.mxu0 0.0
        %2618 = vmatprep.subr.mxu0 0.0
        %2619 = vmatpush1.xpose.msra.mxu0 0.0
        %2620 = vmatprep.subr.mxu0 0.0
        %2621 = vmatpush1.xpose.msra.mxu0 0.0
        %2622 = vmatprep.subr.mxu0 0.0
        %2623 = vmatpush1.xpose.msra.mxu0 0.0
        %2624 = vmatprep.subr.mxu0 0.0
        %2625 = vmatpush1.xpose.msra.mxu0 0.0
        %2626 = vmatprep.subr.mxu0 0.0
        %2627 = vmatpush1.xpose.msra.mxu0 0.0
        %2628 = vmatprep.subr.mxu0 0.0
        %2629 = vmatpush1.xpose.msra.mxu0 0.0
        %2630 = vmatprep.subr.mxu0 0.0
        %2631 = vmatpush1.xpose.msra.mxu0 %v2598
        %2632 = vmatprep.subr.mxu0 0.0
        %2633 = vmatpush2.xpose.msra.mxu0 0.0
        %2634 = vmatprep.subr.mxu0 0.0
        %2635 = vmatpush2.xpose.msra.mxu0 0.0
        %2636 = vmatprep.subr.mxu0 0.0
        %2637 = vmatpush2.xpose.msra.mxu0 0.0
        %2638 = vmatprep.subr.mxu0 0.0
        %2639 = vmatpush2.xpose.msra.mxu0 0.0
        %2640 = vmatprep.subr.mxu0 0.0
        %2641 = vmatpush2.xpose.msra.mxu0 0.0
        %2642 = vmatprep.subr.mxu0 0.0
        %2643 = vmatpush2.xpose.msra.mxu0 0.0
        %2644 = vmatprep.subr.mxu0 0.0
        %2645 = vmatpush2.xpose.msra.mxu0 0.0
        %2646 = vmatprep.subr.mxu0 0.0
        %2647 = vmatpush2.xpose.msra.mxu0 0.0
        %2648 = vmatprep.subr.mxu0 0.0
        %2649 = vmatpush2.xpose.msra.mxu0 0.0
        %2650 = vmatprep.subr.mxu0 0.0
        %2651 = vmatpush2.xpose.msra.mxu0 0.0
        %2652 = vmatprep.subr.mxu0 0.0
        %2653 = vmatpush2.xpose.msra.mxu0 0.0
        %2654 = vmatprep.subr.mxu0 0.0
        %2655 = vmatpush2.xpose.msra.mxu0 0.0
        %2656 = vmatprep.subr.mxu0 0.0
        %2657 = vmatpush2.xpose.msra.mxu0 0.0
        %2658 = vmatprep.subr.mxu0 0.0
        %2659 = vmatpush2.xpose.msra.mxu0 0.0
        %2660 = vmatprep.subr.mxu0 0.0
        %2661 = vmatpush2.xpose.msra.mxu0 0.0
        %2662 = vmatprep.subr.mxu0 0.0
        %2663 = vmatpush2.xpose.msra.mxu0 0.0
        %2664 = vmatprep.mubr.f32.mxu0 0.0
        %2665 = vmatmul.mubr.f32.gmra.mxu0 %v2596
        %v2666 = vpop.f32.mrf.mxu0
        %v2667 = vadd.f32 %v2242, %v2666
        %v2668 = vpop.f32.mrf.mxu0
        %2669 = vdwg.mxu0
        %s2670 = scalar_lea.vmem %s1024, 16 [#allocation21]
        %2671 = vst.msk [vmem:[%s2670] sm:$0xff] %vm1542, %v2667
        %v2672 = vsel %vm1542, %v2667, -inf
        %2673 = vmax.xlane.f32.xlu0 %v2672
        %v2674 = vpop.xlane.xlu0 %2673
        %v2675 = vsub.f32 %v2667, %v2674
        %v2676 = vmul.f32 %v2675, 1.442695
        %v2677 = vpow.pop %v2676
        %v2678 = vsel %vm1542, %v2677, 0.0
        %2679 = vadd.xlane.f32.xlu0 %v2678
        %v2680 = vpop.xlane.xlu0 %2679
        %v2681 = vrcp.pop %v2680
        %v2682 = vmul.f32 %v2680, %v2681
        %v2683 = vsub.f32 2.0, %v2682
        %v2684 = vmul.f32 %v2681, %v2683
        %v2685 = vmul.f32 %v2677, %v2684
        %2686 = vrot.lane.b32.xlu0 %v1532, 120
        %v2687 = vpop.permute.xlu0 %2686
        %v2690 = vsel %vm1542, %v2685, 0
        %2692 = vmatprep.subr.mxu0 0.0
        %2693 = vmatpush1.msra.mxu0 0.0
        %2694 = vmatprep.subr.mxu0 0.0
        %2695 = vmatpush1.msra.mxu0 0.0
        %2696 = vmatprep.subr.mxu0 0.0
        %2697 = vmatpush1.msra.mxu0 0.0
        %2698 = vmatprep.subr.mxu0 0.0
        %2699 = vmatpush1.msra.mxu0 0.0
        %2700 = vmatprep.subr.mxu0 0.0
        %2701 = vmatpush1.msra.mxu0 0.0
        %2702 = vmatprep.subr.mxu0 0.0
        %2703 = vmatpush1.msra.mxu0 0.0
        %2704 = vmatprep.subr.mxu0 0.0
        %2705 = vmatpush1.msra.mxu0 0.0
        %2706 = vmatprep.subr.mxu0 0.0
        %2707 = vmatpush1.msra.mxu0 0.0
        %2708 = vmatprep.subr.mxu0 0.0
        %2709 = vmatpush1.msra.mxu0 0.0
        %2710 = vmatprep.subr.mxu0 0.0
        %2711 = vmatpush1.msra.mxu0 0.0
        %2712 = vmatprep.subr.mxu0 0.0
        %2713 = vmatpush1.msra.mxu0 0.0
        %2714 = vmatprep.subr.mxu0 0.0
        %2715 = vmatpush1.msra.mxu0 0.0
        %2716 = vmatprep.subr.mxu0 0.0
        %2717 = vmatpush1.msra.mxu0 0.0
        %2718 = vmatprep.subr.mxu0 0.0
        %2719 = vmatpush1.msra.mxu0 0.0
        %2720 = vmatprep.subr.mxu0 0.0
        %2721 = vmatpush1.msra.mxu0 0.0
        %2722 = vmatprep.subr.mxu0 0.0
        %2723 = vmatpush1.msra.mxu0 %v2687
        %2724 = vmatprep.subr.mxu0 0.0
        %2725 = vmatpush2.msra.mxu0 0.0
        %2726 = vmatprep.subr.mxu0 0.0
        %2727 = vmatpush2.msra.mxu0 0.0
        %2728 = vmatprep.subr.mxu0 0.0
        %2729 = vmatpush2.msra.mxu0 0.0
        %2730 = vmatprep.subr.mxu0 0.0
        %2731 = vmatpush2.msra.mxu0 0.0
        %2732 = vmatprep.subr.mxu0 0.0
        %2733 = vmatpush2.msra.mxu0 0.0
        %2734 = vmatprep.subr.mxu0 0.0
        %2735 = vmatpush2.msra.mxu0 0.0
        %2736 = vmatprep.subr.mxu0 0.0
        %2737 = vmatpush2.msra.mxu0 0.0
        %2738 = vmatprep.subr.mxu0 0.0
        %2739 = vmatpush2.msra.mxu0 0.0
        %2740 = vmatprep.subr.mxu0 0.0
        %2741 = vmatpush2.msra.mxu0 0.0
        %2742 = vmatprep.subr.mxu0 0.0
        %2743 = vmatpush2.msra.mxu0 0.0
        %2744 = vmatprep.subr.mxu0 0.0
        %2745 = vmatpush2.msra.mxu0 0.0
        %2746 = vmatprep.subr.mxu0 0.0
        %2747 = vmatpush2.msra.mxu0 0.0
        %2748 = vmatprep.subr.mxu0 0.0
        %2749 = vmatpush2.msra.mxu0 0.0
        %2750 = vmatprep.subr.mxu0 0.0
        %2751 = vmatpush2.msra.mxu0 0.0
        %2752 = vmatprep.subr.mxu0 0.0
        %2753 = vmatpush2.msra.mxu0 0.0
        %2754 = vmatprep.subr.mxu0 0.0
        %2755 = vmatpush2.msra.mxu0 0.0
        %2756 = vmatprep.mubr.f32.mxu0 0.0
        %2757 = vmatmul.mubr.f32.gmra.mxu0 %v2690
        %v2758 = vpop.f32.mrf.mxu0
        %v2759 = vadd.f32 0.0, %v2758
        %v2760 = vpop.f32.mrf.mxu0
        %2761 = vdwg.mxu0
        %2763 = vrot.lane.b32.xlu0 %v2759, 40
        %v2764 = vpop.permute.xlu0 %2763
        %vm2766 = vcmask 359744
        %2767 = vst.msk [vmem:[#allocation2] sm:$0xff] %vm2766, %v2764
        %2768 = vrot.lane.b32.xlu0 %v1369, 116
        %v2769 = vpop.permute.xlu0 %2768
        %2770 = vrot.lane.b32.xlu0 %v1450, 116
        %v2771 = vpop.permute.xlu0 %2770
        %v2772 = vsel %vm2244, %v2769, 0
        %v2774 = vsel %vm2244, %v2771, 0
        %2776 = vmatprep.subr.mxu0 0.0
        %2777 = vmatpush1.xpose.msra.mxu0 0.0
        %2778 = vmatprep.subr.mxu0 0.0
        %2779 = vmatpush1.xpose.msra.mxu0 0.0
        %2780 = vmatprep.subr.mxu0 0.0
        %2781 = vmatpush1.xpose.msra.mxu0 0.0
        %2782 = vmatprep.subr.mxu0 0.0
        %2783 = vmatpush1.xpose.msra.mxu0 0.0
        %2784 = vmatprep.subr.mxu0 0.0
        %2785 = vmatpush1.xpose.msra.mxu0 0.0
        %2786 = vmatprep.subr.mxu0 0.0
        %2787 = vmatpush1.xpose.msra.mxu0 0.0
        %2788 = vmatprep.subr.mxu0 0.0
        %2789 = vmatpush1.xpose.msra.mxu0 0.0
        %2790 = vmatprep.subr.mxu0 0.0
        %2791 = vmatpush1.xpose.msra.mxu0 0.0
        %2792 = vmatprep.subr.mxu0 0.0
        %2793 = vmatpush1.xpose.msra.mxu0 0.0
        %2794 = vmatprep.subr.mxu0 0.0
        %2795 = vmatpush1.xpose.msra.mxu0 0.0
        %2796 = vmatprep.subr.mxu0 0.0
        %2797 = vmatpush1.xpose.msra.mxu0 0.0
        %2798 = vmatprep.subr.mxu0 0.0
        %2799 = vmatpush1.xpose.msra.mxu0 0.0
        %2800 = vmatprep.subr.mxu0 0.0
        %2801 = vmatpush1.xpose.msra.mxu0 0.0
        %2802 = vmatprep.subr.mxu0 0.0
        %2803 = vmatpush1.xpose.msra.mxu0 0.0
        %2804 = vmatprep.subr.mxu0 0.0
        %2805 = vmatpush1.xpose.msra.mxu0 0.0
        %2806 = vmatprep.subr.mxu0 0.0
        %2807 = vmatpush1.xpose.msra.mxu0 %v2774
        %2808 = vmatprep.subr.mxu0 0.0
        %2809 = vmatpush2.xpose.msra.mxu0 0.0
        %2810 = vmatprep.subr.mxu0 0.0
        %2811 = vmatpush2.xpose.msra.mxu0 0.0
        %2812 = vmatprep.subr.mxu0 0.0
        %2813 = vmatpush2.xpose.msra.mxu0 0.0
        %2814 = vmatprep.subr.mxu0 0.0
        %2815 = vmatpush2.xpose.msra.mxu0 0.0
        %2816 = vmatprep.subr.mxu0 0.0
        %2817 = vmatpush2.xpose.msra.mxu0 0.0
        %2818 = vmatprep.subr.mxu0 0.0
        %2819 = vmatpush2.xpose.msra.mxu0 0.0
        %2820 = vmatprep.subr.mxu0 0.0
        %2821 = vmatpush2.xpose.msra.mxu0 0.0
        %2822 = vmatprep.subr.mxu0 0.0
        %2823 = vmatpush2.xpose.msra.mxu0 0.0
        %2824 = vmatprep.subr.mxu0 0.0
        %2825 = vmatpush2.xpose.msra.mxu0 0.0
        %2826 = vmatprep.subr.mxu0 0.0
        %2827 = vmatpush2.xpose.msra.mxu0 0.0
        %2828 = vmatprep.subr.mxu0 0.0
        %2829 = vmatpush2.xpose.msra.mxu0 0.0
        %2830 = vmatprep.subr.mxu0 0.0
        %2831 = vmatpush2.xpose.msra.mxu0 0.0
        %2832 = vmatprep.subr.mxu0 0.0
        %2833 = vmatpush2.xpose.msra.mxu0 0.0
        %2834 = vmatprep.subr.mxu0 0.0
        %2835 = vmatpush2.xpose.msra.mxu0 0.0
        %2836 = vmatprep.subr.mxu0 0.0
        %2837 = vmatpush2.xpose.msra.mxu0 0.0
        %2838 = vmatprep.subr.mxu0 0.0
        %2839 = vmatpush2.xpose.msra.mxu0 0.0
        %2840 = vmatprep.mubr.f32.mxu0 0.0
        %2841 = vmatmul.mubr.f32.gmra.mxu0 %v2772
        %v2842 = vpop.f32.mrf.mxu0
        %v2843 = vadd.f32 %v2242, %v2842
        %v2844 = vpop.f32.mrf.mxu0
        %2845 = vdwg.mxu0
        %s2846 = scalar_lea.vmem %s1024, 24 [#allocation21]
        %2847 = vst.msk [vmem:[%s2846] sm:$0xff] %vm1542, %v2843
        %v2848 = vsel %vm1542, %v2843, -inf
        %2849 = vmax.xlane.f32.xlu0 %v2848
        %v2850 = vpop.xlane.xlu0 %2849
        %v2851 = vsub.f32 %v2843, %v2850
        %v2852 = vmul.f32 %v2851, 1.442695
        %v2853 = vpow.pop %v2852
        %v2854 = vsel %vm1542, %v2853, 0.0
        %2855 = vadd.xlane.f32.xlu0 %v2854
        %v2856 = vpop.xlane.xlu0 %2855
        %v2857 = vrcp.pop %v2856
        %v2858 = vmul.f32 %v2856, %v2857
        %v2859 = vsub.f32 2.0, %v2858
        %v2860 = vmul.f32 %v2857, %v2859
        %v2861 = vmul.f32 %v2853, %v2860
        %2862 = vrot.lane.b32.xlu0 %v1532, 116
        %v2863 = vpop.permute.xlu0 %2862
        %v2866 = vsel %vm1542, %v2861, 0
        %2868 = vmatprep.subr.mxu0 0.0
        %2869 = vmatpush1.msra.mxu0 0.0
        %2870 = vmatprep.subr.mxu0 0.0
        %2871 = vmatpush1.msra.mxu0 0.0
        %2872 = vmatprep.subr.mxu0 0.0
        %2873 = vmatpush1.msra.mxu0 0.0
        %2874 = vmatprep.subr.mxu0 0.0
        %2875 = vmatpush1.msra.mxu0 0.0
        %2876 = vmatprep.subr.mxu0 0.0
        %2877 = vmatpush1.msra.mxu0 0.0
        %2878 = vmatprep.subr.mxu0 0.0
        %2879 = vmatpush1.msra.mxu0 0.0
        %2880 = vmatprep.subr.mxu0 0.0
        %2881 = vmatpush1.msra.mxu0 0.0
        %2882 = vmatprep.subr.mxu0 0.0
        %2883 = vmatpush1.msra.mxu0 0.0
        %2884 = vmatprep.subr.mxu0 0.0
        %2885 = vmatpush1.msra.mxu0 0.0
        %2886 = vmatprep.subr.mxu0 0.0
        %2887 = vmatpush1.msra.mxu0 0.0
        %2888 = vmatprep.subr.mxu0 0.0
        %2889 = vmatpush1.msra.mxu0 0.0
        %2890 = vmatprep.subr.mxu0 0.0
        %2891 = vmatpush1.msra.mxu0 0.0
        %2892 = vmatprep.subr.mxu0 0.0
        %2893 = vmatpush1.msra.mxu0 0.0
        %2894 = vmatprep.subr.mxu0 0.0
        %2895 = vmatpush1.msra.mxu0 0.0
        %2896 = vmatprep.subr.mxu0 0.0
        %2897 = vmatpush1.msra.mxu0 0.0
        %2898 = vmatprep.subr.mxu0 0.0
        %2899 = vmatpush1.msra.mxu0 %v2863
        %2900 = vmatprep.subr.mxu0 0.0
        %2901 = vmatpush2.msra.mxu0 0.0
        %2902 = vmatprep.subr.mxu0 0.0
        %2903 = vmatpush2.msra.mxu0 0.0
        %2904 = vmatprep.subr.mxu0 0.0
        %2905 = vmatpush2.msra.mxu0 0.0
        %2906 = vmatprep.subr.mxu0 0.0
        %2907 = vmatpush2.msra.mxu0 0.0
        %2908 = vmatprep.subr.mxu0 0.0
        %2909 = vmatpush2.msra.mxu0 0.0
        %2910 = vmatprep.subr.mxu0 0.0
        %2911 = vmatpush2.msra.mxu0 0.0
        %2912 = vmatprep.subr.mxu0 0.0
        %2913 = vmatpush2.msra.mxu0 0.0
        %2914 = vmatprep.subr.mxu0 0.0
        %2915 = vmatpush2.msra.mxu0 0.0
        %2916 = vmatprep.subr.mxu0 0.0
        %2917 = vmatpush2.msra.mxu0 0.0
        %2918 = vmatprep.subr.mxu0 0.0
        %2919 = vmatpush2.msra.mxu0 0.0
        %2920 = vmatprep.subr.mxu0 0.0
        %2921 = vmatpush2.msra.mxu0 0.0
        %2922 = vmatprep.subr.mxu0 0.0
        %2923 = vmatpush2.msra.mxu0 0.0
        %2924 = vmatprep.subr.mxu0 0.0
        %2925 = vmatpush2.msra.mxu0 0.0
        %2926 = vmatprep.subr.mxu0 0.0
        %2927 = vmatpush2.msra.mxu0 0.0
        %2928 = vmatprep.subr.mxu0 0.0
        %2929 = vmatpush2.msra.mxu0 0.0
        %2930 = vmatprep.subr.mxu0 0.0
        %2931 = vmatpush2.msra.mxu0 0.0
        %2932 = vmatprep.mubr.f32.mxu0 0.0
        %2933 = vmatmul.mubr.f32.gmra.mxu0 %v2866
        %v2934 = vpop.f32.mrf.mxu0
        %v2935 = vadd.f32 0.0, %v2934
        %v2936 = vpop.f32.mrf.mxu0
        %2937 = vdwg.mxu0
        %2939 = vrot.lane.b32.xlu0 %v2935, 44
        %v2940 = vpop.permute.xlu0 %2939
        %vm2942 = vcmask 392544
        %2943 = vst.msk [vmem:[#allocation2] sm:$0xff] %vm2942, %v2940
        %v2944 = vld [vmem:[#allocation2] sm:$0xff]
        %v2945 = vld [vmem:[%s19] sm:$0xff]
        %v2946 = vld [vmem:[%s19 + $0x8] sm:$0xff]
        %v2947 = vld [vmem:[%s19 + $0x10] sm:$0xff]
        %v2948 = vld [vmem:[%s19 + $0x18] sm:$0xff]
        %v2949 = vld [vmem:[%s19 + $0x20] sm:$0xff]
        %v2950 = vld [vmem:[%s19 + $0x28] sm:$0xff]
        %v2951 = vld [vmem:[%s20] sm:$0x1]
        %v2953 = vlaneseq
        %v2954 = vshrl.u32 %v2953, 7
        %v2955 = vsub.s32 0, %v2954
        %v2956 = vrot.slane %v2951, %v2955
        %vm2958 = vcmask 392192
        %v2960 = vsel %vm2958, %v2944, 0
        %2962 = vmatprep.subr.mxu0 0.0
        %2963 = vmatpush1.msra.mxu0 0.0
        %2964 = vmatprep.subr.mxu0 0.0
        %2965 = vmatpush1.msra.mxu0 0.0
        %2966 = vmatprep.subr.mxu0 0.0
        %2967 = vmatpush1.msra.mxu0 0.0
        %2968 = vmatprep.subr.mxu0 0.0
        %2969 = vmatpush1.msra.mxu0 0.0
        %2970 = vmatprep.subr.mxu0 0.0
        %2971 = vmatpush1.msra.mxu0 0.0
        %2972 = vmatprep.subr.mxu0 0.0
        %2973 = vmatpush1.msra.mxu0 0.0
        %2974 = vmatprep.subr.mxu0 0.0
        %2975 = vmatpush1.msra.mxu0 0.0
        %2976 = vmatprep.subr.mxu0 0.0
        %2977 = vmatpush1.msra.mxu0 0.0
        %2978 = vmatprep.subr.mxu0 0.0
        %2979 = vmatpush1.msra.mxu0 0.0
        %2980 = vmatprep.subr.mxu0 0.0
        %2981 = vmatpush1.msra.mxu0 0.0
        %2982 = vmatprep.subr.mxu0 0.0
        %2983 = vmatpush1.msra.mxu0 %v2950
        %2984 = vmatprep.subr.mxu0 0.0
        %2985 = vmatpush1.msra.mxu0 %v2949
        %2986 = vmatprep.subr.mxu0 0.0
        %2987 = vmatpush1.msra.mxu0 %v2948
        %2988 = vmatprep.subr.mxu0 0.0
        %2989 = vmatpush1.msra.mxu0 %v2947
        %2990 = vmatprep.subr.mxu0 0.0
        %2991 = vmatpush1.msra.mxu0 %v2946
        %2992 = vmatprep.subr.mxu0 0.0
        %2993 = vmatpush1.msra.mxu0 %v2945
        %2994 = vmatprep.subr.mxu0 0.0
        %2995 = vmatpush2.msra.mxu0 0.0
        %2996 = vmatprep.subr.mxu0 0.0
        %2997 = vmatpush2.msra.mxu0 0.0
        %2998 = vmatprep.subr.mxu0 0.0
        %2999 = vmatpush2.msra.mxu0 0.0
        %3000 = vmatprep.subr.mxu0 0.0
        %3001 = vmatpush2.msra.mxu0 0.0
        %3002 = vmatprep.subr.mxu0 0.0
        %3003 = vmatpush2.msra.mxu0 0.0
        %3004 = vmatprep.subr.mxu0 0.0
        %3005 = vmatpush2.msra.mxu0 0.0
        %3006 = vmatprep.subr.mxu0 0.0
        %3007 = vmatpush2.msra.mxu0 0.0
        %3008 = vmatprep.subr.mxu0 0.0
        %3009 = vmatpush2.msra.mxu0 0.0
        %3010 = vmatprep.subr.mxu0 0.0
        %3011 = vmatpush2.msra.mxu0 0.0
        %3012 = vmatprep.subr.mxu0 0.0
        %3013 = vmatpush2.msra.mxu0 0.0
        %3014 = vmatprep.subr.mxu0 0.0
        %3015 = vmatpush2.msra.mxu0 0.0
        %3016 = vmatprep.subr.mxu0 0.0
        %3017 = vmatpush2.msra.mxu0 0.0
        %3018 = vmatprep.subr.mxu0 0.0
        %3019 = vmatpush2.msra.mxu0 0.0
        %3020 = vmatprep.subr.mxu0 0.0
        %3021 = vmatpush2.msra.mxu0 0.0
        %3022 = vmatprep.subr.mxu0 0.0
        %3023 = vmatpush2.msra.mxu0 0.0
        %3024 = vmatprep.subr.mxu0 0.0
        %3025 = vmatpush2.msra.mxu0 0.0
        %3026 = vmatprep.mubr.f32.mxu0 0.0
        %3027 = vmatmul.mubr.f32.gmra.mxu0 %v2960
        %v3028 = vpop.f32.mrf.mxu0
        %v3029 = vadd.f32 %v2956, %v3028
        %v3030 = vpop.f32.mrf.mxu0
        %3031 = vdwg.mxu0
        %v3032 = vadd.f32 %v3029, %v1029
        %v3033 = vsel %vm1045, %v3032, 0.0
        %3034 = vadd.xlane.f32.xlu0 %v3033
        %v3035 = vpop.xlane.xlu0 %3034
        %v3036 = vrcp.pop 32.0
        %v3037 = vmul.f32 %v3035, %v3036
        %v3038 = vsub.f32 %v3032, %v3037
        %v3039 = vmul.f32 %v3038, %v3038
        %v3040 = vsel %vm1045, %v3039, 0.0
        %3041 = vadd.xlane.f32.xlu0 %v3040
        %v3042 = vpop.xlane.xlu0 %3041
        %v3043 = vmul.f32 %v3042, %v3036
        %v3044 = vadd.f32 %v3043, 1e-12
        %v3045 = vrsqrt.pop %v3044
        %v3046 = vmul.f32 %v3038, %v3045
        %v3047 = vld [vmem:[%s21] sm:$0x1]
        %v3049 = vlaneseq
        %v3050 = vshrl.u32 %v3049, 7
        %v3051 = vsub.s32 0, %v3050
        %v3052 = vrot.slane %v3047, %v3051
        %v3054 = vmul.f32 %v3046, %v3052
        %v3055 = vld [vmem:[%s22] sm:$0x1]
        %v3057 = vlaneseq
        %v3058 = vshrl.u32 %v3057, 7
        %v3059 = vsub.s32 0, %v3058
        %v3060 = vrot.slane %v3055, %v3059
        %v3062 = vadd.f32 %v3054, %v3060
        %3063 = vst.msk [vmem:[%s1010] sm:$0xff] %vm1045, %v3062
        %s3064 = sand.u32 %s582, 1
        %s3065 = scalar_lea.sflag [#allocation5], %s3064
        %s3066 = sand.u32 %s582, 1
        %s3067 = smul.addr %s3066, 8
        %s3068 = scalar_lea.vmem [#allocation18], %s3067
        %s3069 = sand.u32 %s56, 1
        %s3070 = scalar_lea.sflag [#allocation20], %s3069
        %s3071 = sand.u32 %s608, 1
        %s3072 = smul.addr %s3071, 32
        %s3073 = scalar_lea.vmem [#allocation19], %s3072
        %s3074 = sand.u32 %s56, 1
        %s3075 = scalar_lea.sflag [#allocation20], %s3074
        %s3076 = sand.u32 %s634, 1
        %s3077 = smul.addr %s3076, 32
        %s3078 = scalar_lea.vmem [#allocation21], %s3077
        // Predicated region
        $region149: #{tpu_custom_call.1} parent=111 // pred_check
          %p3079 = pneg %p592
        $region150: #{tpu_custom_call.1} parent=111 // pred_check_branch
          %3081 = sbr.rel (%p3079) target = $region152
        $region151: #{tpu_custom_call.1} parent=111 // pred_region
          %s3083 = ssub.s32 128, 128
          %3084 = vsyncadd %s3065, %s3083
          %s3085 = smul.addr %s56, 128
          %s3086 = scalar_lea.hbm %s23, %s3085
          %s3088 = sshll.u32 %s3068, 4
          %s3089 = int_to_ptr.vmem [resolvable:$true] %s3088
          %3091 = dma.vmem_to_hbm [thread:$0]  %s3089, 128, %s3086, %s3065
        $region152: #{tpu_custom_call.1} parent=111 // pred_fallthru
          _
        // Predicated region
        $region153: #{tpu_custom_call.1} parent=111 // pred_check
          %p3092 = pneg %p618
        $region154: #{tpu_custom_call.1} parent=111 // pred_check_branch
          %3094 = sbr.rel (%p3092) target = $region156
        $region155: #{tpu_custom_call.1} parent=111 // pred_region
          %s3096 = ssub.s32 512, 512
          %3097 = vsyncadd %s3070, %s3096
          %s3098 = smul.addr %s56, 4
          %s3099 = smul.addr %s3098, 128
          %s3100 = scalar_lea.hbm %s24, %s3099
          %s3101 = sshll.u32 %s3073, 4
          %s3102 = int_to_ptr.vmem [resolvable:$true] %s3101
          %3107 = dma.vmem_to_hbm [thread:$0]  %s3102, 512, %s3100, %s3070, 128, 128, 8
        $region156: #{tpu_custom_call.1} parent=111 // pred_fallthru
          _
        // Predicated region
        $region157: #{tpu_custom_call.1} parent=111 // pred_check
          %p3108 = pneg %p644
        $region158: #{tpu_custom_call.1} parent=111 // pred_check_branch
          %3110 = sbr.rel (%p3108) target = $region160
        $region159: #{tpu_custom_call.1} parent=111 // pred_region
          %s3112 = ssub.s32 512, 512
          %3113 = vsyncadd %s3075, %s3112
          %s3114 = smul.addr %s56, 4
          %s3115 = smul.addr %s3114, 128
          %s3116 = scalar_lea.hbm %s25, %s3115
          %s3117 = sshll.u32 %s3078, 4
          %s3118 = int_to_ptr.vmem [resolvable:$true] %s3117
          %3123 = dma.vmem_to_hbm [thread:$0]  %s3118, 512, %s3116, %s3075, 128, 128, 8
        $region160: #{tpu_custom_call.1} parent=111 // pred_fallthru
          _
      $region112: #{tpu_custom_call.1} parent=5 // pred_fallthru
        _
      %p3124 = scmp.le.s32.totalorder 2, %s51
      // Predicated region
      $region161: #{tpu_custom_call.1} parent=5 // pred_check
        %p3125 = pneg %p3124
      $region162: #{tpu_custom_call.1} parent=5 // pred_check_branch
        %3127 = sbr.rel (%p3125) target = $region164
      $region163: #{tpu_custom_call.1} parent=5 // pred_region
        %s3128 = ssub.s32 %s51, 2
        // Predicated region
        $region165: #{tpu_custom_call.1} parent=163 // pred_check
          %p3129 = pneg %p598
        $region166: #{tpu_custom_call.1} parent=163 // pred_check_branch
          %3131 = sbr.rel (%p3129) target = $region168
        $region167: #{tpu_custom_call.1} parent=163 // pred_region
          %s3132 = sand.u32 %s583, 1
          %s3133 = scalar_lea.sflag [#allocation5], %s3132
          %s3134 = sand.u32 %s583, 1
          %s3135 = smul.addr %s3134, 8
          %s3136 = scalar_lea.vmem [#allocation18], %s3135
          %3137 = dma.done %s3133, 128
        $region168: #{tpu_custom_call.1} parent=163 // pred_fallthru
          _
        // Predicated region
        $region169: #{tpu_custom_call.1} parent=163 // pred_check
          %p3138 = pneg %p624
        $region170: #{tpu_custom_call.1} parent=163 // pred_check_branch
          %3140 = sbr.rel (%p3138) target = $region172
        $region171: #{tpu_custom_call.1} parent=163 // pred_region
          %s3141 = sand.u32 %s57, 1
          %s3142 = scalar_lea.sflag [#allocation20], %s3141
          %s3143 = sand.u32 %s609, 1
          %s3144 = smul.addr %s3143, 32
          %s3145 = scalar_lea.vmem [#allocation19], %s3144
          %3146 = dma.done %s3142, 512
        $region172: #{tpu_custom_call.1} parent=163 // pred_fallthru
          _
        // Predicated region
        $region173: #{tpu_custom_call.1} parent=163 // pred_check
          %p3147 = pneg %p650
        $region174: #{tpu_custom_call.1} parent=163 // pred_check_branch
          %3149 = sbr.rel (%p3147) target = $region176
        $region175: #{tpu_custom_call.1} parent=163 // pred_region
          %s3150 = sand.u32 %s57, 1
          %s3151 = scalar_lea.sflag [#allocation20], %s3150
          %s3152 = sand.u32 %s635, 1
          %s3153 = smul.addr %s3152, 32
          %s3154 = scalar_lea.vmem [#allocation21], %s3153
          %3155 = dma.done %s3151, 512
        $region176: #{tpu_custom_call.1} parent=163 // pred_fallthru
          _
      $region164: #{tpu_custom_call.1} parent=5 // pred_fallthru
        _
    $region6: #{tpu_custom_call.1} parent=1 // loop_footer
      %s55 = sadd.s32 1, %s51
    $region7: #{tpu_custom_call.1} parent=1 // loop_footer_branch
      %50 = sbr.rel target = $region3
    $region8: #{tpu_custom_call.1} parent=1 // loop_exit
      _
    %3156 = vsyncpa [#allocation4], 1
    %s3157 = scalar_lea.sflag [#allocation4], 1
    %3158 = vsyncpa %s3157, 1
    %3159 = vsyncpa [#allocation7], 1
    %s3160 = scalar_lea.sflag [#allocation7], 1
    %3161 = vsyncpa %s3160, 1
    %3162 = vsyncpa [#allocation10], 1
    %s3163 = scalar_lea.sflag [#allocation10], 1
    %3164 = vsyncpa %s3163, 1
    %3165 = vsyncpa [#allocation13], 1
    %s3166 = scalar_lea.sflag [#allocation13], 1
    %3167 = vsyncpa %s3166, 1
    %3168 = vsyncpa [#allocation16], 1
    %3169 = vsyncpa [#allocation5], 1
    %s3170 = scalar_lea.sflag [#allocation5], 1
    %3171 = vsyncpa %s3170, 1
    %3172 = vsyncpa [#allocation20], 1
    %s3173 = scalar_lea.sflag [#allocation20], 1
    %3174 = vsyncpa %s3173, 1

// kernel: tpu_custom_call.1
$region0: #{tpu_custom_call.1}
  #allocation0 [shape = 'u32[]', space=smem, size = 0x4, offset = 0x4, fixed_abs, tag = 'smem constant byte address 0x4 - core index']
  #allocation1 [shape = 'u32[144,128]{1,0:T(1,128)}', space=vmem, size = 0x12000, scoped, tag = 'internal scratch']
  #allocation2 [shape = 'f32[8,48]{1,0:T(8,128)}', space=vmem, size = 0x1000, scoped, tag = 'scratch operand']
  %s0 = inlined_call_operand.vmem [shape: f32[2,8,32], index: 0, kind: input, shape index: {}]
  %s1 = inlined_call_operand.hbm [shape: f32[2,8,32], index: 1, kind: input, shape index: {}]
  %s2 = inlined_call_operand.hbm [shape: f32[2,8,32], index: 2, kind: input, shape index: {}]
  %s3 = inlined_call_operand.hbm [shape: f32[2,8,16], index: 3, kind: input, shape index: {}]
  %s4 = inlined_call_operand.hbm [shape: f32[2,8,16], index: 4, kind: input, shape index: {}]
  %s5 = inlined_call_operand.hbm [shape: f32[2,1,8], index: 5, kind: input, shape index: {}]
  %s6 = inlined_call_operand.hbm [shape: f32[2,1,8], index: 6, kind: input, shape index: {}]
  %s7 = inlined_call_operand.vmem [shape: f32[32,32], index: 7, kind: input, shape index: {}]
  %s8 = inlined_call_operand.hbm [shape: f32[1,32], index: 8, kind: input, shape index: {}]
  %s9 = inlined_call_operand.vmem [shape: f32[32,32], index: 9, kind: input, shape index: {}]
  %s10 = inlined_call_operand.vmem [shape: f32[1,32], index: 10, kind: input, shape index: {}]
  %s11 = inlined_call_operand.vmem [shape: f32[32,32], index: 11, kind: input, shape index: {}]
  %s12 = inlined_call_operand.vmem [shape: f32[1,32], index: 12, kind: input, shape index: {}]
  %s13 = inlined_call_operand.vmem [shape: f32[32,16], index: 13, kind: input, shape index: {}]
  %s14 = inlined_call_operand.vmem [shape: f32[1,16], index: 14, kind: input, shape index: {}]
  %s15 = inlined_call_operand.hbm [shape: f32[16,16], index: 15, kind: input, shape index: {}]
  %s16 = inlined_call_operand.vmem [shape: f32[1,16], index: 16, kind: input, shape index: {}]
  %s17 = inlined_call_operand.hbm [shape: f32[16,16], index: 17, kind: input, shape index: {}]
  %s18 = inlined_call_operand.vmem [shape: f32[1,16], index: 18, kind: input, shape index: {}]
  %s19 = inlined_call_operand.vmem [shape: f32[48,32], index: 19, kind: input, shape index: {}]
  %s20 = inlined_call_operand.vmem [shape: f32[1,32], index: 20, kind: input, shape index: {}]
  %s21 = inlined_call_operand.vmem [shape: f32[1,32], index: 21, kind: input, shape index: {}]
  %s22 = inlined_call_operand.vmem [shape: f32[1,32], index: 22, kind: input, shape index: {}]
  %s23 = inlined_call_operand.hbm [shape: f32[2,8,32], index: 23, kind: output, shape index: {0}]
  %s24 = inlined_call_operand.hbm [shape: f32[2,4,8,8], index: 24, kind: output, shape index: {1}]
  %s25 = inlined_call_operand.hbm [shape: f32[2,4,8,8], index: 25, kind: output, shape index: {2}]
  %26 = xla_tuple %s23, %s24, %s25
  %s27 = sld [smem:[#allocation0]]
  $region177: #{tpu_custom_call.1} parent=0
    _
  %s29 = ssub.s32 1, %s27
  %s30 = scalar_select 0, %s29, %s27
  $region1: #{tpu_custom_call.1} parent=0
    #allocation3 [shape = 'u8[8192]{0}', space=vmem, size = 0x2000, scoped, tag = 'input window, operand 1']
    #allocation4 [shape = 's32[2]{0}', space=sflag, size = 0x8, scoped, tag = 'scoped memory for tpu_custom_call.1']
    #allocation5 [shape = 's32[2]{0}', space=sflag, size = 0x8, scoped, tag = 'scoped memory for tpu_custom_call.1']
    #allocation6 [shape = 'u8[8192]{0}', space=vmem, size = 0x2000, scoped, tag = 'input window, operand 2']
    #allocation7 [shape = 's32[2]{0}', space=sflag, size = 0x8, scoped, tag = 'scoped memory for tpu_custom_call.1']
    #allocation8 [shape = 'u8[8192]{0}', space=vmem, size = 0x2000, scoped, tag = 'input window, operand 3']
    #allocation9 [shape = 'u8[8192]{0}', space=vmem, size = 0x2000, scoped, tag = 'input window, operand 4']
    #allocation10 [shape = 's32[2]{0}', space=sflag, size = 0x8, scoped, tag = 'scoped memory for tpu_custom_call.1']
    #allocation11 [shape = 'u8[1024]{0}', space=vmem, size = 0x400, scoped, tag = 'input window, operand 5']
    #allocation12 [shape = 'u8[1024]{0}', space=vmem, size = 0x400, scoped, tag = 'input window, operand 6']
    #allocation13 [shape = 's32[2]{0}', space=sflag, size = 0x8, scoped, tag = 'scoped memory for tpu_custom_call.1']
    #allocation14 [shape = 'u8[512]{0}', space=vmem, size = 0x400, scoped, tag = 'input window, operand 8, single buffered']
    #allocation15 [shape = 'u8[8192]{0}', space=vmem, size = 0x2000, scoped, tag = 'input window, operand 15, single buffered']
    #allocation16 [shape = 's32[1]{0}', space=sflag, size = 0x4, scoped, tag = 'scoped memory for tpu_custom_call.1']
    #allocation17 [shape = 'u8[8192]{0}', space=vmem, size = 0x2000, scoped, tag = 'input window, operand 17, single buffered']
    #allocation18 [shape = 'u8[8192]{0}', space=vmem, size = 0x2000, scoped, tag = 'output window, operand 0']
    #allocation19 [shape = 'u8[32768]{0}', space=vmem, size = 0x8000, scoped, tag = 'output window, operand 1']
    #allocation20 [shape = 's32[2]{0}', space=sflag, size = 0x8, scoped, tag = 'scoped memory for tpu_custom_call.1']
    #allocation21 [shape = 'u8[32768]{0}', space=vmem, size = 0x8000, scoped, tag = 'output window, operand 2']
    %31 = vsyncpa [#allocation4], 0
    %s32 = scalar_lea.sflag [#allocation4], 1
    %33 = vsyncpa %s32, 0
    %34 = vsyncpa [#allocation7], 0
    %s35 = scalar_lea.sflag [#allocation7], 1
    %36 = vsyncpa %s35, 0
    %37 = vsyncpa [#allocation10], 0
    %s38 = scalar_lea.sflag [#allocation10], 1
    %39 = vsyncpa %s38, 0
    %40 = vsyncpa [#allocation13], 0
    %s41 = scalar_lea.sflag [#allocation13], 1
    %42 = vsyncpa %s41, 0
    %43 = vsyncpa [#allocation16], 0
    %44 = vsyncpa [#allocation5], 0
    %s45 = scalar_lea.sflag [#allocation5], 1
    %46 = vsyncpa %s45, 0
    %47 = vsyncpa [#allocation20], 0
    %s48 = scalar_lea.sflag [#allocation20], 1
    %49 = vsyncpa %s48, 0
    loop: start=0, step=1, limit=4
    $region2: #{tpu_custom_call.1} parent=1 // loop_pre_header
      _
    $region3: #{tpu_custom_call.1} parent=1 // loop_header
      %s51 = sphi 0, %s55
      %p52 = scmp.ge.s32.totalorder %s51, 4
      %s61 = sphi 0, %s63
      %s64 = sphi 0, %s61
      %s65 = sphi 0, %s64
      %s81 = sphi 0, %s65
      %s87 = sphi 0, %s89
      %s90 = sphi 0, %s87
      %s91 = sphi 0, %s90
      %s107 = sphi 0, %s91
      %s113 = sphi 0, %s115
      %s116 = sphi 0, %s113
      %s117 = sphi 0, %s116
      %s133 = sphi 0, %s117
      %s139 = sphi 0, %s141
      %s142 = sphi 0, %s139
      %s143 = sphi 0, %s142
      %s159 = sphi 0, %s143
      %s165 = sphi 0, %s167
      %s168 = sphi 0, %s165
      %s169 = sphi 0, %s168
      %s185 = sphi 0, %s169
      %s191 = sphi 0, %s193
      %s194 = sphi 0, %s191
      %s195 = sphi 0, %s194
      %s211 = sphi 0, %s195
      %s217 = sphi 0, %s219
      %s220 = sphi 0, %s217
      %s221 = sphi 0, %s220
      %s237 = sphi 0, %s221
      %s241 = sphi 0, %s241
      %s243 = sphi 0, %s241
      %s244 = sphi 0, %s243
      %s258 = sphi 0, %s244
      %s262 = sphi 0, %s262
      %s264 = sphi 0, %s262
      %s265 = sphi 0, %s264
      %s279 = sphi 0, %s265
      %s283 = sphi 0, %s283
      %s285 = sphi 0, %s283
      %s286 = sphi 0, %s285
      %s300 = sphi 0, %s286
      %s304 = sphi 0, %s304
      %s306 = sphi 0, %s304
      %s307 = sphi 0, %s306
      %s321 = sphi 0, %s307
      %s325 = sphi 0, %s325
      %s327 = sphi 0, %s325
      %s328 = sphi 0, %s327
      %s342 = sphi 0, %s328
      %s346 = sphi 0, %s346
      %s348 = sphi 0, %s346
      %s349 = sphi 0, %s348
      %s363 = sphi 0, %s349
      %s367 = sphi 0, %s367
      %s369 = sphi 0, %s367
      %s370 = sphi 0, %s369
      %s384 = sphi 0, %s370
      %s388 = sphi 0, %s388
      %s390 = sphi 0, %s388
      %s391 = sphi 0, %s390
      %s405 = sphi 0, %s391
      %s409 = sphi 0, %s409
      %s411 = sphi 0, %s409
      %s412 = sphi 0, %s411
      %s426 = sphi 0, %s412
      %s430 = sphi 0, %s430
      %s432 = sphi 0, %s430
      %s433 = sphi 0, %s432
      %s447 = sphi 0, %s433
      %s451 = sphi 0, %s451
      %s453 = sphi 0, %s451
      %s454 = sphi 0, %s453
      %s468 = sphi 0, %s454
      %s472 = sphi 0, %s472
      %s474 = sphi 0, %s472
      %s475 = sphi 0, %s474
      %s489 = sphi 0, %s475
      %s493 = sphi 0, %s493
      %s495 = sphi 0, %s493
      %s496 = sphi 0, %s495
      %s510 = sphi 0, %s496
      %s514 = sphi 0, %s514
      %s516 = sphi 0, %s514
      %s517 = sphi 0, %s516
      %s531 = sphi 0, %s517
      %s535 = sphi 0, %s535
      %s537 = sphi 0, %s535
      %s538 = sphi 0, %s537
      %s552 = sphi 0, %s538
      %s556 = sphi 0, %s556
      %s558 = sphi 0, %s556
      %s559 = sphi 0, %s558
      %s573 = sphi 0, %s559
      %s579 = sphi 0, %s581
      %s582 = sphi 0, %s579
      %s583 = sphi 0, %s582
      %s599 = sphi 0, %s583
      %s605 = sphi 0, %s607
      %s608 = sphi 0, %s605
      %s609 = sphi 0, %s608
      %s625 = sphi 0, %s609
      %s631 = sphi 0, %s633
      %s634 = sphi 0, %s631
      %s635 = sphi 0, %s634
      %s651 = sphi 0, %s635
    $region4: #{tpu_custom_call.1} parent=1 // loop_header_branch
      %54 = sbr.rel (%p52) target = $region8
    $region5: #{tpu_custom_call.1} parent=1 // loop_body
      %s56 = ssub.s32 %s51, 1
      %s57 = ssub.s32 %s51, 2
      %s58 = sadd.s32 %s51, 1
      %s59 = ssub.s32 %s51, %s58
      %p60 = scmp.eq.s32.totalorder %s59, 0
      %s62 = sadd.s32 %s61, 1
      %s63 = scalar_select %p60, %s61, %s62
      %p66 = pneg %p60
      %p67 = scmp.eq.s32.totalorder %s51, 1
      %p68 = por %p66, %p67
      %p69 = scmp.ne.s32.totalorder %s61, %s64
      %p70 = scmp.eq.s32.totalorder %s51, 0
      %p71 = por %p69, %p70
      %p72 = scmp.ne.s32.totalorder %s61, %s64
      %p73 = scmp.eq.s32.totalorder %s56, 1
      %p74 = por %p72, %p73
      %p75 = scmp.ne.s32.totalorder %s64, %s65
      %p76 = scmp.eq.s32.totalorder %s56, 0
      %p77 = por %p75, %p76
      %p78 = scmp.ne.s32.totalorder %s64, %s65
      %p79 = scmp.eq.s32.totalorder %s57, 1
      %p80 = por %p78, %p79
      %p82 = scmp.ne.s32.totalorder %s65, %s81
      %p83 = scmp.eq.s32.totalorder %s57, 0
      %p84 = por %p82, %p83
      %s85 = ssub.s32 %s51, %s58
      %p86 = scmp.eq.s32.totalorder %s85, 0
      %s88 = sadd.s32 %s87, 1
      %s89 = scalar_select %p86, %s87, %s88
      %p92 = pneg %p86
      %p93 = scmp.eq.s32.totalorder %s51, 1
      %p94 = por %p92, %p93
      %p95 = scmp.ne.s32.totalorder %s87, %s90
      %p96 = scmp.eq.s32.totalorder %s51, 0
      %p97 = por %p95, %p96
      %p98 = scmp.ne.s32.totalorder %s87, %s90
      %p99 = scmp.eq.s32.totalorder %s56, 1
      %p100 = por %p98, %p99
      %p101 = scmp.ne.s32.totalorder %s90, %s91
      %p102 = scmp.eq.s32.totalorder %s56, 0
      %p103 = por %p101, %p102
      %p104 = scmp.ne.s32.totalorder %s90, %s91
      %p105 = scmp.eq.s32.totalorder %s57, 1
      %p106 = por %p104, %p105
      %p108 = scmp.ne.s32.totalorder %s91, %s107
      %p109 = scmp.eq.s32.totalorder %s57, 0
      %p110 = por %p108, %p109
      %s111 = ssub.s32 %s51, %s58
      %p112 = scmp.eq.s32.totalorder %s111, 0
      %s114 = sadd.s32 %s113, 1
      %s115 = scalar_select %p112, %s113, %s114
      %p118 = pneg %p112
      %p119 = scmp.eq.s32.totalorder %s51, 1
      %p120 = por %p118, %p119
      %p121 = scmp.ne.s32.totalorder %s113, %s116
      %p122 = scmp.eq.s32.totalorder %s51, 0
      %p123 = por %p121, %p122
      %p124 = scmp.ne.s32.totalorder %s113, %s116
      %p125 = scmp.eq.s32.totalorder %s56, 1
      %p126 = por %p124, %p125
      %p127 = scmp.ne.s32.totalorder %s116, %s117
      %p128 = scmp.eq.s32.totalorder %s56, 0
      %p129 = por %p127, %p128
      %p130 = scmp.ne.s32.totalorder %s116, %s117
      %p131 = scmp.eq.s32.totalorder %s57, 1
      %p132 = por %p130, %p131
      %p134 = scmp.ne.s32.totalorder %s117, %s133
      %p135 = scmp.eq.s32.totalorder %s57, 0
      %p136 = por %p134, %p135
      %s137 = ssub.s32 %s51, %s58
      %p138 = scmp.eq.s32.totalorder %s137, 0
      %s140 = sadd.s32 %s139, 1
      %s141 = scalar_select %p138, %s139, %s140
      %p144 = pneg %p138
      %p145 = scmp.eq.s32.totalorder %s51, 1
      %p146 = por %p144, %p145
      %p147 = scmp.ne.s32.totalorder %s139, %s142
      %p148 = scmp.eq.s32.totalorder %s51, 0
      %p149 = por %p147, %p148
      %p150 = scmp.ne.s32.totalorder %s139, %s142
      %p151 = scmp.eq.s32.totalorder %s56, 1
      %p152 = por %p150, %p151
      %p153 = scmp.ne.s32.totalorder %s142, %s143
      %p154 = scmp.eq.s32.totalorder %s56, 0
      %p155 = por %p153, %p154
      %p156 = scmp.ne.s32.totalorder %s142, %s143
      %p157 = scmp.eq.s32.totalorder %s57, 1
      %p158 = por %p156, %p157
      %p160 = scmp.ne.s32.totalorder %s143, %s159
      %p161 = scmp.eq.s32.totalorder %s57, 0
      %p162 = por %p160, %p161
      %s163 = ssub.s32 %s51, %s58
      %p164 = scmp.eq.s32.totalorder %s163, 0
      %s166 = sadd.s32 %s165, 1
      %s167 = scalar_select %p164, %s165, %s166
      %p170 = pneg %p164
      %p171 = scmp.eq.s32.totalorder %s51, 1
      %p172 = por %p170, %p171
      %p173 = scmp.ne.s32.totalorder %s165, %s168
      %p174 = scmp.eq.s32.totalorder %s51, 0
      %p175 = por %p173, %p174
      %p176 = scmp.ne.s32.totalorder %s165, %s168
      %p177 = scmp.eq.s32.totalorder %s56, 1
      %p178 = por %p176, %p177
      %p179 = scmp.ne.s32.totalorder %s168, %s169
      %p180 = scmp.eq.s32.totalorder %s56, 0
      %p181 = por %p179, %p180
      %p182 = scmp.ne.s32.totalorder %s168, %s169
      %p183 = scmp.eq.s32.totalorder %s57, 1
      %p184 = por %p182, %p183
      %p186 = scmp.ne.s32.totalorder %s169, %s185
      %p187 = scmp.eq.s32.totalorder %s57, 0
      %p188 = por %p186, %p187
      %s189 = ssub.s32 %s51, %s58
      %p190 = scmp.eq.s32.totalorder %s189, 0
      %s192 = sadd.s32 %s191, 1
      %s193 = scalar_select %p190, %s191, %s192
      %p196 = pneg %p190
      %p197 = scmp.eq.s32.totalorder %s51, 1
      %p198 = por %p196, %p197
      %p199 = scmp.ne.s32.totalorder %s191, %s194
      %p200 = scmp.eq.s32.totalorder %s51, 0
      %p201 = por %p199, %p200
      %p202 = scmp.ne.s32.totalorder %s191, %s194
      %p203 = scmp.eq.s32.totalorder %s56, 1
      %p204 = por %p202, %p203
      %p205 = scmp.ne.s32.totalorder %s194, %s195
      %p206 = scmp.eq.s32.totalorder %s56, 0
      %p207 = por %p205, %p206
      %p208 = scmp.ne.s32.totalorder %s194, %s195
      %p209 = scmp.eq.s32.totalorder %s57, 1
      %p210 = por %p208, %p209
      %p212 = scmp.ne.s32.totalorder %s195, %s211
      %p213 = scmp.eq.s32.totalorder %s57, 0
      %p214 = por %p212, %p213
      %s215 = ssub.s32 %s51, %s58
      %p216 = scmp.eq.s32.totalorder %s215, 0
      %s218 = sadd.s32 %s217, 1
      %s219 = scalar_select %p216, %s217, %s218
      %p222 = pneg %p216
      %p223 = scmp.eq.s32.totalorder %s51, 1
      %p224 = por %p222, %p223
      %p225 = scmp.ne.s32.totalorder %s217, %s220
      %p226 = scmp.eq.s32.totalorder %s51, 0
      %p227 = por %p225, %p226
      %p228 = scmp.ne.s32.totalorder %s217, %s220
      %p229 = scmp.eq.s32.totalorder %s56, 1
      %p230 = por %p228, %p229
      %p231 = scmp.ne.s32.totalorder %s220, %s221
      %p232 = scmp.eq.s32.totalorder %s56, 0
      %p233 = por %p231, %p232
      %p234 = scmp.ne.s32.totalorder %s220, %s221
      %p235 = scmp.eq.s32.totalorder %s57, 1
      %p236 = por %p234, %p235
      %p238 = scmp.ne.s32.totalorder %s221, %s237
      %p239 = scmp.eq.s32.totalorder %s57, 0
      %p240 = por %p238, %p239
      %s242 = sadd.s32 %s241, 1
      %p245 = scmp.eq.s32.totalorder %s51, 1
      %p246 = scmp.ne.s32.totalorder %s241, %s243
      %p247 = scmp.eq.s32.totalorder %s51, 0
      %p248 = por %p246, %p247
      %p249 = scmp.ne.s32.totalorder %s241, %s243
      %p250 = scmp.eq.s32.totalorder %s56, 1
      %p251 = por %p249, %p250
      %p252 = scmp.ne.s32.totalorder %s243, %s244
      %p253 = scmp.eq.s32.totalorder %s56, 0
      %p254 = por %p252, %p253
      %p255 = scmp.ne.s32.totalorder %s243, %s244
      %p256 = scmp.eq.s32.totalorder %s57, 1
      %p257 = por %p255, %p256
      %p259 = scmp.ne.s32.totalorder %s244, %s258
      %p260 = scmp.eq.s32.totalorder %s57, 0
      %p261 = por %p259, %p260
      %s263 = sadd.s32 %s262, 1
      %p266 = scmp.eq.s32.totalorder %s51, 1
      %p267 = scmp.ne.s32.totalorder %s262, %s264
      %p268 = scmp.eq.s32.totalorder %s51, 0
      %p269 = por %p267, %p268
      %p270 = scmp.ne.s32.totalorder %s262, %s264
      %p271 = scmp.eq.s32.totalorder %s56, 1
      %p272 = por %p270, %p271
      %p273 = scmp.ne.s32.totalorder %s264, %s265
      %p274 = scmp.eq.s32.totalorder %s56, 0
      %p275 = por %p273, %p274
      %p276 = scmp.ne.s32.totalorder %s264, %s265
      %p277 = scmp.eq.s32.totalorder %s57, 1
      %p278 = por %p276, %p277
      %p280 = scmp.ne.s32.totalorder %s265, %s279
      %p281 = scmp.eq.s32.totalorder %s57, 0
      %p282 = por %p280, %p281
      %s284 = sadd.s32 %s283, 1
      %p287 = scmp.eq.s32.totalorder %s51, 1
      %p288 = scmp.ne.s32.totalorder %s283, %s285
      %p289 = scmp.eq.s32.totalorder %s51, 0
      %p290 = por %p288, %p289
      %p291 = scmp.ne.s32.totalorder %s283, %s285
      %p292 = scmp.eq.s32.totalorder %s56, 1
      %p293 = por %p291, %p292
      %p294 = scmp.ne.s32.totalorder %s285, %s286
      %p295 = scmp.eq.s32.totalorder %s56, 0
      %p296 = por %p294, %p295
      %p297 = scmp.ne.s32.totalorder %s285, %s286
      %p298 = scmp.eq.s32.totalorder %s57, 1
      %p299 = por %p297, %p298
      %p301 = scmp.ne.s32.totalorder %s286, %s300
      %p302 = scmp.eq.s32.totalorder %s57, 0
      %p303 = por %p301, %p302
      %s305 = sadd.s32 %s304, 1
      %p308 = scmp.eq.s32.totalorder %s51, 1
      %p309 = scmp.ne.s32.totalorder %s304, %s306
      %p310 = scmp.eq.s32.totalorder %s51, 0
      %p311 = por %p309, %p310
      %p312 = scmp.ne.s32.totalorder %s304, %s306
      %p313 = scmp.eq.s32.totalorder %s56, 1
      %p314 = por %p312, %p313
      %p315 = scmp.ne.s32.totalorder %s306, %s307
      %p316 = scmp.eq.s32.totalorder %s56, 0
      %p317 = por %p315, %p316
      %p318 = scmp.ne.s32.totalorder %s306, %s307
      %p319 = scmp.eq.s32.totalorder %s57, 1
      %p320 = por %p318, %p319
      %p322 = scmp.ne.s32.totalorder %s307, %s321
      %p323 = scmp.eq.s32.totalorder %s57, 0
      %p324 = por %p322, %p323
      %s326 = sadd.s32 %s325, 1
      %p329 = scmp.eq.s32.totalorder %s51, 1
      %p330 = scmp.ne.s32.totalorder %s325, %s327
      %p331 = scmp.eq.s32.totalorder %s51, 0
      %p332 = por %p330, %p331
      %p333 = scmp.ne.s32.totalorder %s325, %s327
      %p334 = scmp.eq.s32.totalorder %s56, 1
      %p335 = por %p333, %p334
      %p336 = scmp.ne.s32.totalorder %s327, %s328
      %p337 = scmp.eq.s32.totalorder %s56, 0
      %p338 = por %p336, %p337
      %p339 = scmp.ne.s32.totalorder %s327, %s328
      %p340 = scmp.eq.s32.totalorder %s57, 1
      %p341 = por %p339, %p340
      %p343 = scmp.ne.s32.totalorder %s328, %s342
      %p344 = scmp.eq.s32.totalorder %s57, 0
      %p345 = por %p343, %p344
      %s347 = sadd.s32 %s346, 1
      %p350 = scmp.eq.s32.totalorder %s51, 1
      %p351 = scmp.ne.s32.totalorder %s346, %s348
      %p352 = scmp.eq.s32.totalorder %s51, 0
      %p353 = por %p351, %p352
      %p354 = scmp.ne.s32.totalorder %s346, %s348
      %p355 = scmp.eq.s32.totalorder %s56, 1
      %p356 = por %p354, %p355
      %p357 = scmp.ne.s32.totalorder %s348, %s349
      %p358 = scmp.eq.s32.totalorder %s56, 0
      %p359 = por %p357, %p358
      %p360 = scmp.ne.s32.totalorder %s348, %s349
      %p361 = scmp.eq.s32.totalorder %s57, 1
      %p362 = por %p360, %p361
      %p364 = scmp.ne.s32.totalorder %s349, %s363
      %p365 = scmp.eq.s32.totalorder %s57, 0
      %p366 = por %p364, %p365
      %s368 = sadd.s32 %s367, 1
      %p371 = scmp.eq.s32.totalorder %s51, 1
      %p372 = scmp.ne.s32.totalorder %s367, %s369
      %p373 = scmp.eq.s32.totalorder %s51, 0
      %p374 = por %p372, %p373
      %p375 = scmp.ne.s32.totalorder %s367, %s369
      %p376 = scmp.eq.s32.totalorder %s56, 1
      %p377 = por %p375, %p376
      %p378 = scmp.ne.s32.totalorder %s369, %s370
      %p379 = scmp.eq.s32.totalorder %s56, 0
      %p380 = por %p378, %p379
      %p381 = scmp.ne.s32.totalorder %s369, %s370
      %p382 = scmp.eq.s32.totalorder %s57, 1
      %p383 = por %p381, %p382
      %p385 = scmp.ne.s32.totalorder %s370, %s384
      %p386 = scmp.eq.s32.totalorder %s57, 0
      %p387 = por %p385, %p386
      %s389 = sadd.s32 %s388, 1
      %p392 = scmp.eq.s32.totalorder %s51, 1
      %p393 = scmp.ne.s32.totalorder %s388, %s390
      %p394 = scmp.eq.s32.totalorder %s51, 0
      %p395 = por %p393, %p394
      %p396 = scmp.ne.s32.totalorder %s388, %s390
      %p397 = scmp.eq.s32.totalorder %s56, 1
      %p398 = por %p396, %p397
      %p399 = scmp.ne.s32.totalorder %s390, %s391
      %p400 = scmp.eq.s32.totalorder %s56, 0
      %p401 = por %p399, %p400
      %p402 = scmp.ne.s32.totalorder %s390, %s391
      %p403 = scmp.eq.s32.totalorder %s57, 1
      %p404 = por %p402, %p403
      %p406 = scmp.ne.s32.totalorder %s391, %s405
      %p407 = scmp.eq.s32.totalorder %s57, 0
      %p408 = por %p406, %p407
      %s410 = sadd.s32 %s409, 1
      %p413 = scmp.eq.s32.totalorder %s51, 1
      %p414 = scmp.ne.s32.totalorder %s409, %s411
      %p415 = scmp.eq.s32.totalorder %s51, 0
      %p416 = por %p414, %p415
      %p417 = scmp.ne.s32.totalorder %s409, %s411
      %p418 = scmp.eq.s32.totalorder %s56, 1
      %p419 = por %p417, %p418
      %p420 = scmp.ne.s32.totalorder %s411, %s412
      %p421 = scmp.eq.s32.totalorder %s56, 0
      %p422 = por %p420, %p421
      %p423 = scmp.ne.s32.totalorder %s411, %s412
      %p424 = scmp.eq.s32.totalorder %s57, 1
      %p425 = por %p423, %p424
      %p427 = scmp.ne.s32.totalorder %s412, %s426
      %p428 = scmp.eq.s32.totalorder %s57, 0
      %p429 = por %p427, %p428
      %s431 = sadd.s32 %s430, 1
      %p434 = scmp.eq.s32.totalorder %s51, 1
      %p435 = scmp.ne.s32.totalorder %s430, %s432
      %p436 = scmp.eq.s32.totalorder %s51, 0
      %p437 = por %p435, %p436
      %p438 = scmp.ne.s32.totalorder %s430, %s432
      %p439 = scmp.eq.s32.totalorder %s56, 1
      %p440 = por %p438, %p439
      %p441 = scmp.ne.s32.totalorder %s432, %s433
      %p442 = scmp.eq.s32.totalorder %s56, 0
      %p443 = por %p441, %p442
      %p444 = scmp.ne.s32.totalorder %s432, %s433
      %p445 = scmp.eq.s32.totalorder %s57, 1
      %p446 = por %p444, %p445
      %p448 = scmp.ne.s32.totalorder %s433, %s447
      %p449 = scmp.eq.s32.totalorder %s57, 0
      %p450 = por %p448, %p449
      %s452 = sadd.s32 %s451, 1
      %p455 = scmp.eq.s32.totalorder %s51, 1
      %p456 = scmp.ne.s32.totalorder %s451, %s453
      %p457 = scmp.eq.s32.totalorder %s51, 0
      %p458 = por %p456, %p457
      %p459 = scmp.ne.s32.totalorder %s451, %s453
      %p460 = scmp.eq.s32.totalorder %s56, 1
      %p461 = por %p459, %p460
      %p462 = scmp.ne.s32.totalorder %s453, %s454
      %p463 = scmp.eq.s32.totalorder %s56, 0
      %p464 = por %p462, %p463
      %p465 = scmp.ne.s32.totalorder %s453, %s454
      %p466 = scmp.eq.s32.totalorder %s57, 1
      %p467 = por %p465, %p466
      %p469 = scmp.ne.s32.totalorder %s454, %s468
      %p470 = scmp.eq.s32.totalorder %s57, 0
      %p471 = por %p469, %p470
      %s473 = sadd.s32 %s472, 1
      %p476 = scmp.eq.s32.totalorder %s51, 1
      %p477 = scmp.ne.s32.totalorder %s472, %s474
      %p478 = scmp.eq.s32.totalorder %s51, 0
      %p479 = por %p477, %p478
      %p480 = scmp.ne.s32.totalorder %s472, %s474
      %p481 = scmp.eq.s32.totalorder %s56, 1
      %p482 = por %p480, %p481
      %p483 = scmp.ne.s32.totalorder %s474, %s475
      %p484 = scmp.eq.s32.totalorder %s56, 0
      %p485 = por %p483, %p484
      %p486 = scmp.ne.s32.totalorder %s474, %s475
      %p487 = scmp.eq.s32.totalorder %s57, 1
      %p488 = por %p486, %p487
      %p490 = scmp.ne.s32.totalorder %s475, %s489
      %p491 = scmp.eq.s32.totalorder %s57, 0
      %p492 = por %p490, %p491
      %s494 = sadd.s32 %s493, 1
      %p497 = scmp.eq.s32.totalorder %s51, 1
      %p498 = scmp.ne.s32.totalorder %s493, %s495
      %p499 = scmp.eq.s32.totalorder %s51, 0
      %p500 = por %p498, %p499
      %p501 = scmp.ne.s32.totalorder %s493, %s495
      %p502 = scmp.eq.s32.totalorder %s56, 1
      %p503 = por %p501, %p502
      %p504 = scmp.ne.s32.totalorder %s495, %s496
      %p505 = scmp.eq.s32.totalorder %s56, 0
      %p506 = por %p504, %p505
      %p507 = scmp.ne.s32.totalorder %s495, %s496
      %p508 = scmp.eq.s32.totalorder %s57, 1
      %p509 = por %p507, %p508
      %p511 = scmp.ne.s32.totalorder %s496, %s510
      %p512 = scmp.eq.s32.totalorder %s57, 0
      %p513 = por %p511, %p512
      %s515 = sadd.s32 %s514, 1
      %p518 = scmp.eq.s32.totalorder %s51, 1
      %p519 = scmp.ne.s32.totalorder %s514, %s516
      %p520 = scmp.eq.s32.totalorder %s51, 0
      %p521 = por %p519, %p520
      %p522 = scmp.ne.s32.totalorder %s514, %s516
      %p523 = scmp.eq.s32.totalorder %s56, 1
      %p524 = por %p522, %p523
      %p525 = scmp.ne.s32.totalorder %s516, %s517
      %p526 = scmp.eq.s32.totalorder %s56, 0
      %p527 = por %p525, %p526
      %p528 = scmp.ne.s32.totalorder %s516, %s517
      %p529 = scmp.eq.s32.totalorder %s57, 1
      %p530 = por %p528, %p529
      %p532 = scmp.ne.s32.totalorder %s517, %s531
      %p533 = scmp.eq.s32.totalorder %s57, 0
      %p534 = por %p532, %p533
      %s536 = sadd.s32 %s535, 1
      %p539 = scmp.eq.s32.totalorder %s51, 1
      %p540 = scmp.ne.s32.totalorder %s535, %s537
      %p541 = scmp.eq.s32.totalorder %s51, 0
      %p542 = por %p540, %p541
      %p543 = scmp.ne.s32.totalorder %s535, %s537
      %p544 = scmp.eq.s32.totalorder %s56, 1
      %p545 = por %p543, %p544
      %p546 = scmp.ne.s32.totalorder %s537, %s538
      %p547 = scmp.eq.s32.totalorder %s56, 0
      %p548 = por %p546, %p547
      %p549 = scmp.ne.s32.totalorder %s537, %s538
      %p550 = scmp.eq.s32.totalorder %s57, 1
      %p551 = por %p549, %p550
      %p553 = scmp.ne.s32.totalorder %s538, %s552
      %p554 = scmp.eq.s32.totalorder %s57, 0
      %p555 = por %p553, %p554
      %s557 = sadd.s32 %s556, 1
      %p560 = scmp.eq.s32.totalorder %s51, 1
      %p561 = scmp.ne.s32.totalorder %s556, %s558
      %p562 = scmp.eq.s32.totalorder %s51, 0
      %p563 = por %p561, %p562
      %p564 = scmp.ne.s32.totalorder %s556, %s558
      %p565 = scmp.eq.s32.totalorder %s56, 1
      %p566 = por %p564, %p565
      %p567 = scmp.ne.s32.totalorder %s558, %s559
      %p568 = scmp.eq.s32.totalorder %s56, 0
      %p569 = por %p567, %p568
      %p570 = scmp.ne.s32.totalorder %s558, %s559
      %p571 = scmp.eq.s32.totalorder %s57, 1
      %p572 = por %p570, %p571
      %p574 = scmp.ne.s32.totalorder %s559, %s573
      %p575 = scmp.eq.s32.totalorder %s57, 0
      %p576 = por %p574, %p575
      %s577 = ssub.s32 %s51, %s58
      %p578 = scmp.eq.s32.totalorder %s577, 0
      %s580 = sadd.s32 %s579, 1
      %s581 = scalar_select %p578, %s579, %s580
      %p584 = pneg %p578
      %p585 = scmp.eq.s32.totalorder %s51, 1
      %p586 = por %p584, %p585
      %p587 = scmp.ne.s32.totalorder %s579, %s582
      %p588 = scmp.eq.s32.totalorder %s51, 0
      %p589 = por %p587, %p588
      %p590 = scmp.ne.s32.totalorder %s579, %s582
      %p591 = scmp.eq.s32.totalorder %s56, 1
      %p592 = por %p590, %p591
      %p593 = scmp.ne.s32.totalorder %s582, %s583
      %p594 = scmp.eq.s32.totalorder %s56, 0
      %p595 = por %p593, %p594
      %p596 = scmp.ne.s32.totalorder %s582, %s583
      %p597 = scmp.eq.s32.totalorder %s57, 1
      %p598 = por %p596, %p597
      %p600 = scmp.ne.s32.totalorder %s583, %s599
      %p601 = scmp.eq.s32.totalorder %s57, 0
      %p602 = por %p600, %p601
      %s603 = ssub.s32 %s51, %s58
      %p604 = scmp.eq.s32.totalorder %s603, 0
      %s606 = sadd.s32 %s605, 1
      %s607 = scalar_select %p604, %s605, %s606
      %p610 = pneg %p604
      %p611 = scmp.eq.s32.totalorder %s51, 1
      %p612 = por %p610, %p611
      %p613 = scmp.ne.s32.totalorder %s605, %s608
      %p614 = scmp.eq.s32.totalorder %s51, 0
      %p615 = por %p613, %p614
      %p616 = scmp.ne.s32.totalorder %s605, %s608
      %p617 = scmp.eq.s32.totalorder %s56, 1
      %p618 = por %p616, %p617
      %p619 = scmp.ne.s32.totalorder %s608, %s609
      %p620 = scmp.eq.s32.totalorder %s56, 0
      %p621 = por %p619, %p620
      %p622 = scmp.ne.s32.totalorder %s608, %s609
      %p623 = scmp.eq.s32.totalorder %s57, 1
      %p624 = por %p622, %p623
      %p626 = scmp.ne.s32.totalorder %s609, %s625
      %p627 = scmp.eq.s32.totalorder %s57, 0
      %p628 = por %p626, %p627
      %s629 = ssub.s32 %s51, %s58
      %p630 = scmp.eq.s32.totalorder %s629, 0
      %s632 = sadd.s32 %s631, 1
      %s633 = scalar_select %p630, %s631, %s632
      %p636 = pneg %p630
      %p637 = scmp.eq.s32.totalorder %s51, 1
      %p638 = por %p636, %p637
      %p639 = scmp.ne.s32.totalorder %s631, %s634
      %p640 = scmp.eq.s32.totalorder %s51, 0
      %p641 = por %p639, %p640
      %p642 = scmp.ne.s32.totalorder %s631, %s634
      %p643 = scmp.eq.s32.totalorder %s56, 1
      %p644 = por %p642, %p643
      %p645 = scmp.ne.s32.totalorder %s634, %s635
      %p646 = scmp.eq.s32.totalorder %s56, 0
      %p647 = por %p645, %p646
      %p648 = scmp.ne.s32.totalorder %s634, %s635
      %p649 = scmp.eq.s32.totalorder %s57, 1
      %p650 = por %p648, %p649
      %p652 = scmp.ne.s32.totalorder %s635, %s651
      %p653 = scmp.eq.s32.totalorder %s57, 0
      %p654 = por %p652, %p653
      %p655 = scmp.le.s32.totalorder 1, %s51
      %p656 = scmp.lt.s32.totalorder %s51, 3
      %p657 = pnand %p655, %p656
      %p658 = pneg %p657
      // Predicated region
      $region9: #{tpu_custom_call.1} parent=5 // pred_check
        _
      $region10: #{tpu_custom_call.1} parent=5 // pred_check_branch
        %660 = sbr.rel (%p657) target = $region12
      $region11: #{tpu_custom_call.1} parent=5 // pred_region
        %s661 = ssub.s32 %s51, 1
        // Predicated region
        $region13: #{tpu_custom_call.1} parent=11 // pred_check
          %p662 = pneg %p254
        $region14: #{tpu_custom_call.1} parent=11 // pred_check_branch
          %664 = sbr.rel (%p662) target = $region16
        $region15: #{tpu_custom_call.1} parent=11 // pred_region
          _
        $region16: #{tpu_custom_call.1} parent=11 // pred_fallthru
          _
        // Predicated region
        $region17: #{tpu_custom_call.1} parent=11 // pred_check
          %p665 = pneg %p275
        $region18: #{tpu_custom_call.1} parent=11 // pred_check_branch
          %667 = sbr.rel (%p665) target = $region20
        $region19: #{tpu_custom_call.1} parent=11 // pred_region
          %s669 = ssub.s32 16, 16
          %670 = vsyncadd [#allocation13], %s669
          %s672 = sshll.u32 [#allocation14], 4
          %s673 = int_to_ptr.vmem [resolvable:$true] %s672
          %675 = dma.hbm_to_vmem [thread:$0]  %s8, 16, %s673, [#allocation13]
        $region20: #{tpu_custom_call.1} parent=11 // pred_fallthru
          _
        // Predicated region
        $region21: #{tpu_custom_call.1} parent=11 // pred_check
          %p676 = pneg %p296
        $region22: #{tpu_custom_call.1} parent=11 // pred_check_branch
          %678 = sbr.rel (%p676) target = $region24
        $region23: #{tpu_custom_call.1} parent=11 // pred_region
          _
        $region24: #{tpu_custom_call.1} parent=11 // pred_fallthru
          _
        // Predicated region
        $region25: #{tpu_custom_call.1} parent=11 // pred_check
          %p679 = pneg %p317
        $region26: #{tpu_custom_call.1} parent=11 // pred_check_branch
          %681 = sbr.rel (%p679) target = $region28
        $region27: #{tpu_custom_call.1} parent=11 // pred_region
          _
        $region28: #{tpu_custom_call.1} parent=11 // pred_fallthru
          _
        // Predicated region
        $region29: #{tpu_custom_call.1} parent=11 // pred_check
          %p682 = pneg %p338
        $region30: #{tpu_custom_call.1} parent=11 // pred_check_branch
          %684 = sbr.rel (%p682) target = $region32
        $region31: #{tpu_custom_call.1} parent=11 // pred_region
          _
        $region32: #{tpu_custom_call.1} parent=11 // pred_fallthru
          _
        // Predicated region
        $region33: #{tpu_custom_call.1} parent=11 // pred_check
          %p685 = pneg %p359
        $region34: #{tpu_custom_call.1} parent=11 // pred_check_branch
          %687 = sbr.rel (%p685) target = $region36
        $region35: #{tpu_custom_call.1} parent=11 // pred_region
          _
        $region36: #{tpu_custom_call.1} parent=11 // pred_fallthru
          _
        // Predicated region
        $region37: #{tpu_custom_call.1} parent=11 // pred_check
          %p688 = pneg %p380
        $region38: #{tpu_custom_call.1} parent=11 // pred_check_branch
          %690 = sbr.rel (%p688) target = $region40
        $region39: #{tpu_custom_call.1} parent=11 // pred_region
          _
        $region40: #{tpu_custom_call.1} parent=11 // pred_fallthru
          _
        // Predicated region
        $region41: #{tpu_custom_call.1} parent=11 // pred_check
          %p691 = pneg %p401
        $region42: #{tpu_custom_call.1} parent=11 // pred_check_branch
          %693 = sbr.rel (%p691) target = $region44
        $region43: #{tpu_custom_call.1} parent=11 // pred_region
          _
        $region44: #{tpu_custom_call.1} parent=11 // pred_fallthru
          _
        // Predicated region
        $region45: #{tpu_custom_call.1} parent=11 // pred_check
          %p694 = pneg %p422
        $region46: #{tpu_custom_call.1} parent=11 // pred_check_branch
          %696 = sbr.rel (%p694) target = $region48
        $region47: #{tpu_custom_call.1} parent=11 // pred_region
          %s698 = ssub.s32 256, 256
          %699 = vsyncadd [#allocation16], %s698
          %s700 = sshll.u32 [#allocation15], 4
          %s701 = int_to_ptr.vmem [resolvable:$true] %s700
          %706 = dma.hbm_to_vmem [thread:$0]  %s15, 256, %s701, [#allocation16], 128, 128, 8
        $region48: #{tpu_custom_call.1} parent=11 // pred_fallthru
          _
        // Predicated region
        $region49: #{tpu_custom_call.1} parent=11 // pred_check
          %p707 = pneg %p443
        $region50: #{tpu_custom_call.1} parent=11 // pred_check_branch
          %709 = sbr.rel (%p707) target = $region52
        $region51: #{tpu_custom_call.1} parent=11 // pred_region
          _
        $region52: #{tpu_custom_call.1} parent=11 // pred_fallthru
          _
        // Predicated region
        $region53: #{tpu_custom_call.1} parent=11 // pred_check
          %p710 = pneg %p464
        $region54: #{tpu_custom_call.1} parent=11 // pred_check_branch
          %712 = sbr.rel (%p710) target = $region56
        $region55: #{tpu_custom_call.1} parent=11 // pred_region
          %s714 = ssub.s32 256, 256
          %715 = vsyncadd [#allocation16], %s714
          %s716 = sshll.u32 [#allocation17], 4
          %s717 = int_to_ptr.vmem [resolvable:$true] %s716
          %722 = dma.hbm_to_vmem [thread:$0]  %s17, 256, %s717, [#allocation16], 128, 128, 8
        $region56: #{tpu_custom_call.1} parent=11 // pred_fallthru
          _
        // Predicated region
        $region57: #{tpu_custom_call.1} parent=11 // pred_check
          %p723 = pneg %p485
        $region58: #{tpu_custom_call.1} parent=11 // pred_check_branch
          %725 = sbr.rel (%p723) target = $region60
        $region59: #{tpu_custom_call.1} parent=11 // pred_region
          _
        $region60: #{tpu_custom_call.1} parent=11 // pred_fallthru
          _
        // Predicated region
        $region61: #{tpu_custom_call.1} parent=11 // pred_check
          %p726 = pneg %p506
        $region62: #{tpu_custom_call.1} parent=11 // pred_check_branch
          %728 = sbr.rel (%p726) target = $region64
        $region63: #{tpu_custom_call.1} parent=11 // pred_region
          _
        $region64: #{tpu_custom_call.1} parent=11 // pred_fallthru
          _
        // Predicated region
        $region65: #{tpu_custom_call.1} parent=11 // pred_check
          %p729 = pneg %p527
        $region66: #{tpu_custom_call.1} parent=11 // pred_check_branch
          %731 = sbr.rel (%p729) target = $region68
        $region67: #{tpu_custom_call.1} parent=11 // pred_region
          _
        $region68: #{tpu_custom_call.1} parent=11 // pred_fallthru
          _
        // Predicated region
        $region69: #{tpu_custom_call.1} parent=11 // pred_check
          %p732 = pneg %p548
        $region70: #{tpu_custom_call.1} parent=11 // pred_check_branch
          %734 = sbr.rel (%p732) target = $region72
        $region71: #{tpu_custom_call.1} parent=11 // pred_region
          _
        $region72: #{tpu_custom_call.1} parent=11 // pred_fallthru
          _
        // Predicated region
        $region73: #{tpu_custom_call.1} parent=11 // pred_check
          %p735 = pneg %p569
        $region74: #{tpu_custom_call.1} parent=11 // pred_check_branch
          %737 = sbr.rel (%p735) target = $region76
        $region75: #{tpu_custom_call.1} parent=11 // pred_region
          _
        $region76: #{tpu_custom_call.1} parent=11 // pred_fallthru
          _
      $region12: #{tpu_custom_call.1} parent=5 // pred_fallthru
        _
      %p738 = scmp.lt.s32.totalorder %s51, 2
      // Predicated region
      $region77: #{tpu_custom_call.1} parent=5 // pred_check
        %p739 = pneg %p738
      $region78: #{tpu_custom_call.1} parent=5 // pred_check_branch
        %741 = sbr.rel (%p739) target = $region80
      $region79: #{tpu_custom_call.1} parent=5 // pred_region
        // Predicated region
        $region81: #{tpu_custom_call.1} parent=79 // pred_check
          %p742 = pneg %p71
        $region82: #{tpu_custom_call.1} parent=79 // pred_check_branch
          %744 = sbr.rel (%p742) target = $region84
        $region83: #{tpu_custom_call.1} parent=79 // pred_region
          %p745 = scmp.lt.s32.totalorder %s51, 1
          %s746 = scalar_select %p745, %s51, 1
          %s747 = smul.addr %s746, 8
          %s748 = scalar_lea.vmem %s0, %s747
        $region84: #{tpu_custom_call.1} parent=79 // pred_fallthru
          _
        // Predicated region
        $region85: #{tpu_custom_call.1} parent=79 // pred_check
          %p749 = pneg %p97
        $region86: #{tpu_custom_call.1} parent=79 // pred_check_branch
          %751 = sbr.rel (%p749) target = $region88
        $region87: #{tpu_custom_call.1} parent=79 // pred_region
          %s752 = sand.u32 %s87, 1
          %s753 = scalar_lea.sflag [#allocation4], %s752
          %s754 = sand.u32 %s87, 1
          %s755 = smul.addr %s754, 8
          %s756 = scalar_lea.vmem [#allocation3], %s755
          %s758 = ssub.s32 128, 128
          %759 = vsyncadd %s753, %s758
          %s760 = smul.addr %s51, 128
          %s761 = scalar_lea.hbm %s1, %s760
          %s763 = sshll.u32 %s756, 4
          %s764 = int_to_ptr.vmem [resolvable:$true] %s763
          %766 = dma.hbm_to_vmem [thread:$0]  %s761, 128, %s764, %s753
        $region88: #{tpu_custom_call.1} parent=79 // pred_fallthru
          _
        // Predicated region
        $region89: #{tpu_custom_call.1} parent=79 // pred_check
          %p767 = pneg %p123
        $region90: #{tpu_custom_call.1} parent=79 // pred_check_branch
          %769 = sbr.rel (%p767) target = $region92
        $region91: #{tpu_custom_call.1} parent=79 // pred_region
          %s770 = sand.u32 %s51, 1
          %s771 = scalar_lea.sflag [#allocation7], %s770
          %s772 = sand.u32 %s113, 1
          %s773 = smul.addr %s772, 8
          %s774 = scalar_lea.vmem [#allocation6], %s773
          %s776 = ssub.s32 128, 128
          %777 = vsyncadd %s771, %s776
          %s778 = smul.addr %s51, 128
          %s779 = scalar_lea.hbm %s2, %s778
          %s781 = sshll.u32 %s774, 4
          %s782 = int_to_ptr.vmem [resolvable:$true] %s781
          %784 = dma.hbm_to_vmem [thread:$0]  %s779, 128, %s782, %s771
        $region92: #{tpu_custom_call.1} parent=79 // pred_fallthru
          _
        // Predicated region
        $region93: #{tpu_custom_call.1} parent=79 // pred_check
          %p785 = pneg %p149
        $region94: #{tpu_custom_call.1} parent=79 // pred_check_branch
          %787 = sbr.rel (%p785) target = $region96
        $region95: #{tpu_custom_call.1} parent=79 // pred_region
          %s788 = sand.u32 %s51, 1
          %s789 = scalar_lea.sflag [#allocation7], %s788
          %s790 = sand.u32 %s139, 1
          %s791 = smul.addr %s790, 8
          %s792 = scalar_lea.vmem [#allocation8], %s791
          %s794 = ssub.s32 128, 128
          %795 = vsyncadd %s789, %s794
          %s796 = smul.addr %s51, 128
          %s797 = scalar_lea.hbm %s3, %s796
          %s799 = sshll.u32 %s792, 4
          %s800 = int_to_ptr.vmem [resolvable:$true] %s799
          %802 = dma.hbm_to_vmem [thread:$0]  %s797, 128, %s800, %s789
        $region96: #{tpu_custom_call.1} parent=79 // pred_fallthru
          _
        // Predicated region
        $region97: #{tpu_custom_call.1} parent=79 // pred_check
          %p803 = pneg %p175
        $region98: #{tpu_custom_call.1} parent=79 // pred_check_branch
          %805 = sbr.rel (%p803) target = $region100
        $region99: #{tpu_custom_call.1} parent=79 // pred_region
          %s806 = sand.u32 %s51, 1
          %s807 = scalar_lea.sflag [#allocation10], %s806
          %s808 = sand.u32 %s165, 1
          %s809 = smul.addr %s808, 8
          %s810 = scalar_lea.vmem [#allocation9], %s809
          %s812 = ssub.s32 128, 128
          %813 = vsyncadd %s807, %s812
          %s814 = smul.addr %s51, 128
          %s815 = scalar_lea.hbm %s4, %s814
          %s817 = sshll.u32 %s810, 4
          %s818 = int_to_ptr.vmem [resolvable:$true] %s817
          %820 = dma.hbm_to_vmem [thread:$0]  %s815, 128, %s818, %s807
        $region100: #{tpu_custom_call.1} parent=79 // pred_fallthru
          _
        // Predicated region
        $region101: #{tpu_custom_call.1} parent=79 // pred_check
          %p821 = pneg %p201
        $region102: #{tpu_custom_call.1} parent=79 // pred_check_branch
          %823 = sbr.rel (%p821) target = $region104
        $region103: #{tpu_custom_call.1} parent=79 // pred_region
          %s824 = sand.u32 %s51, 1
          %s825 = scalar_lea.sflag [#allocation10], %s824
          %s826 = sand.u32 %s191, 1
          %s827 = scalar_lea.vmem [#allocation11], %s826
          %s829 = ssub.s32 16, 16
          %830 = vsyncadd %s825, %s829
          %s831 = smul.addr %s51, 16
          %s832 = scalar_lea.hbm %s5, %s831
          %s834 = sshll.u32 %s827, 4
          %s835 = int_to_ptr.vmem [resolvable:$true] %s834
          %837 = dma.hbm_to_vmem [thread:$0]  %s832, 16, %s835, %s825
        $region104: #{tpu_custom_call.1} parent=79 // pred_fallthru
          _
        // Predicated region
        $region105: #{tpu_custom_call.1} parent=79 // pred_check
          %p838 = pneg %p227
        $region106: #{tpu_custom_call.1} parent=79 // pred_check_branch
          %840 = sbr.rel (%p838) target = $region108
        $region107: #{tpu_custom_call.1} parent=79 // pred_region
          %s841 = sand.u32 %s51, 1
          %s842 = scalar_lea.sflag [#allocation13], %s841
          %s843 = sand.u32 %s217, 1
          %s844 = scalar_lea.vmem [#allocation12], %s843
          %s846 = ssub.s32 16, 16
          %847 = vsyncadd %s842, %s846
          %s848 = smul.addr %s51, 16
          %s849 = scalar_lea.hbm %s6, %s848
          %s851 = sshll.u32 %s844, 4
          %s852 = int_to_ptr.vmem [resolvable:$true] %s851
          %854 = dma.hbm_to_vmem [thread:$0]  %s849, 16, %s852, %s842
        $region108: #{tpu_custom_call.1} parent=79 // pred_fallthru
          _
      $region80: #{tpu_custom_call.1} parent=5 // pred_fallthru
        _
      %p855 = scmp.le.s32.totalorder 1, %s51
      %p856 = scmp.lt.s32.totalorder %s51, 3
      %p857 = pnand %p855, %p856
      %p858 = pneg %p857
      // Predicated region
      $region109: #{tpu_custom_call.1} parent=5 // pred_check
        _
      $region110: #{tpu_custom_call.1} parent=5 // pred_check_branch
        %860 = sbr.rel (%p857) target = $region112
      $region111: #{tpu_custom_call.1} parent=5 // pred_region
        %s861 = ssub.s32 %s51, 1
        %s862 = sand.u32 %s90, 1
        %s863 = scalar_lea.sflag [#allocation4], %s862
        %s864 = sand.u32 %s90, 1
        %s865 = smul.addr %s864, 8
        %s866 = scalar_lea.vmem [#allocation3], %s865
        // Predicated region
        $region113: #{tpu_custom_call.1} parent=111 // pred_check
          %p867 = pneg %p103
        $region114: #{tpu_custom_call.1} parent=111 // pred_check_branch
          %869 = sbr.rel (%p867) target = $region116
        $region115: #{tpu_custom_call.1} parent=111 // pred_region
          %870 = dma.done %s863, 128
        $region116: #{tpu_custom_call.1} parent=111 // pred_fallthru
          _
        %s871 = sand.u32 %s56, 1
        %s872 = scalar_lea.sflag [#allocation7], %s871
        %s873 = sand.u32 %s116, 1
        %s874 = smul.addr %s873, 8
        %s875 = scalar_lea.vmem [#allocation6], %s874
        // Predicated region
        $region117: #{tpu_custom_call.1} parent=111 // pred_check
          %p876 = pneg %p129
        $region118: #{tpu_custom_call.1} parent=111 // pred_check_branch
          %878 = sbr.rel (%p876) target = $region120
        $region119: #{tpu_custom_call.1} parent=111 // pred_region
          %879 = dma.done %s872, 128
        $region120: #{tpu_custom_call.1} parent=111 // pred_fallthru
          _
        %s880 = sand.u32 %s56, 1
        %s881 = scalar_lea.sflag [#allocation7], %s880
        %s882 = sand.u32 %s142, 1
        %s883 = smul.addr %s882, 8
        %s884 = scalar_lea.vmem [#allocation8], %s883
        // Predicated region
        $region121: #{tpu_custom_call.1} parent=111 // pred_check
          %p885 = pneg %p155
        $region122: #{tpu_custom_call.1} parent=111 // pred_check_branch
          %887 = sbr.rel (%p885) target = $region124
        $region123: #{tpu_custom_call.1} parent=111 // pred_region
          %888 = dma.done %s881, 128
        $region124: #{tpu_custom_call.1} parent=111 // pred_fallthru
          _
        %s889 = sand.u32 %s56, 1
        %s890 = scalar_lea.sflag [#allocation10], %s889
        %s891 = sand.u32 %s168, 1
        %s892 = smul.addr %s891, 8
        %s893 = scalar_lea.vmem [#allocation9], %s892
        // Predicated region
        $region125: #{tpu_custom_call.1} parent=111 // pred_check
          %p894 = pneg %p181
        $region126: #{tpu_custom_call.1} parent=111 // pred_check_branch
          %896 = sbr.rel (%p894) target = $region128
        $region127: #{tpu_custom_call.1} parent=111 // pred_region
          %897 = dma.done %s890, 128
        $region128: #{tpu_custom_call.1} parent=111 // pred_fallthru
          _
        %s898 = sand.u32 %s56, 1
        %s899 = scalar_lea.sflag [#allocation10], %s898
        %s900 = sand.u32 %s194, 1
        %s901 = scalar_lea.vmem [#allocation11], %s900
        // Predicated region
        $region129: #{tpu_custom_call.1} parent=111 // pred_check
          %p902 = pneg %p207
        $region130: #{tpu_custom_call.1} parent=111 // pred_check_branch
          %904 = sbr.rel (%p902) target = $region132
        $region131: #{tpu_custom_call.1} parent=111 // pred_region
          %905 = dma.done %s899, 16
        $region132: #{tpu_custom_call.1} parent=111 // pred_fallthru
          _
        %s906 = sand.u32 %s56, 1
        %s907 = scalar_lea.sflag [#allocation13], %s906
        %s908 = sand.u32 %s220, 1
        %s909 = scalar_lea.vmem [#allocation12], %s908
        // Predicated region
        $region133: #{tpu_custom_call.1} parent=111 // pred_check
          %p910 = pneg %p233
        $region134: #{tpu_custom_call.1} parent=111 // pred_check_branch
          %912 = sbr.rel (%p910) target = $region136
        $region135: #{tpu_custom_call.1} parent=111 // pred_region
          %913 = dma.done %s907, 16
        $region136: #{tpu_custom_call.1} parent=111 // pred_fallthru
          _
        // Predicated region
        $region137: #{tpu_custom_call.1} parent=111 // pred_check
          %p914 = pneg %p275
        $region138: #{tpu_custom_call.1} parent=111 // pred_check_branch
          %916 = sbr.rel (%p914) target = $region140
        $region139: #{tpu_custom_call.1} parent=111 // pred_region
          %917 = dma.done [#allocation13], 16
        $region140: #{tpu_custom_call.1} parent=111 // pred_fallthru
          _
        // Predicated region
        $region141: #{tpu_custom_call.1} parent=111 // pred_check
          %p918 = pneg %p422
        $region142: #{tpu_custom_call.1} parent=111 // pred_check_branch
          %920 = sbr.rel (%p918) target = $region144
        $region143: #{tpu_custom_call.1} parent=111 // pred_region
          %921 = dma.done [#allocation16], 256
        $region144: #{tpu_custom_call.1} parent=111 // pred_fallthru
          _
        // Predicated region
        $region145: #{tpu_custom_call.1} parent=111 // pred_check
          %p922 = pneg %p464
        $region146: #{tpu_custom_call.1} parent=111 // pred_check_branch
          %924 = sbr.rel (%p922) target = $region148
        $region147: #{tpu_custom_call.1} parent=111 // pred_region
          %925 = dma.done [#allocation16], 256
        $region148: #{tpu_custom_call.1} parent=111 // pred_fallthru
          _
        %p926 = scmp.lt.s32.totalorder %s56, 1
        %s927 = scalar_select %p926, %s56, 1
        %s928 = smul.addr %s927, 8
        %s929 = scalar_lea.vmem %s0, %s928
        %p930 = pneg %p77
        %p931 = pneg %p74
        %s932 = sand.u32 %s90, 1
        %s933 = scalar_lea.sflag [#allocation4], %s932
        %s934 = sand.u32 %s90, 1
        %s935 = smul.addr %s934, 8
        %s936 = scalar_lea.vmem [#allocation3], %s935
        %p937 = pneg %p103
        %p938 = pneg %p100
        %s939 = sand.u32 %s56, 1
        %s940 = scalar_lea.sflag [#allocation7], %s939
        %s941 = sand.u32 %s116, 1
        %s942 = smul.addr %s941, 8
        %s943 = scalar_lea.vmem [#allocation6], %s942
        %p944 = pneg %p129
        %p945 = pneg %p126
        %s946 = sand.u32 %s56, 1
        %s947 = scalar_lea.sflag [#allocation7], %s946
        %s948 = sand.u32 %s142, 1
        %s949 = smul.addr %s948, 8
        %s950 = scalar_lea.vmem [#allocation8], %s949
        %p951 = pneg %p155
        %p952 = pneg %p152
        %s953 = sand.u32 %s56, 1
        %s954 = scalar_lea.sflag [#allocation10], %s953
        %s955 = sand.u32 %s168, 1
        %s956 = smul.addr %s955, 8
        %s957 = scalar_lea.vmem [#allocation9], %s956
        %p958 = pneg %p181
        %p959 = pneg %p178
        %s960 = sand.u32 %s56, 1
        %s961 = scalar_lea.sflag [#allocation10], %s960
        %s962 = sand.u32 %s194, 1
        %s963 = scalar_lea.vmem [#allocation11], %s962
        %p964 = pneg %p207
        %p965 = pneg %p204
        %s966 = sand.u32 %s56, 1
        %s967 = scalar_lea.sflag [#allocation13], %s966
        %s968 = sand.u32 %s220, 1
        %s969 = scalar_lea.vmem [#allocation12], %s968
        %p970 = pneg %p233
        %p971 = pneg %p230
        %p972 = pneg %p254
        %p973 = pneg %p251
        %p974 = pneg %p275
        %p975 = pneg %p272
        %p976 = pneg %p296
        %p977 = pneg %p293
        %p978 = pneg %p317
        %p979 = pneg %p314
        %p980 = pneg %p338
        %p981 = pneg %p335
        %p982 = pneg %p359
        %p983 = pneg %p356
        %p984 = pneg %p380
        %p985 = pneg %p377
        %p986 = pneg %p401
        %p987 = pneg %p398
        %p988 = pneg %p422
        %p989 = pneg %p419
        %p990 = pneg %p443
        %p991 = pneg %p440
        %p992 = pneg %p464
        %p993 = pneg %p461
        %p994 = pneg %p485
        %p995 = pneg %p482
        %p996 = pneg %p506
        %p997 = pneg %p503
        %p998 = pneg %p527
        %p999 = pneg %p524
        %p1000 = pneg %p548
        %p1001 = pneg %p545
        %p1002 = pneg %p569
        %p1003 = pneg %p566
        %p1004 = pneg %p595
        %p1005 = pneg %p592
        %s1006 = sand.u32 %s582, 1
        %s1007 = scalar_lea.sflag [#allocation5], %s1006
        %s1008 = sand.u32 %s582, 1
        %s1009 = smul.addr %s1008, 8
        %s1010 = scalar_lea.vmem [#allocation18], %s1009
        %p1011 = pneg %p621
        %p1012 = pneg %p618
        %s1013 = sand.u32 %s56, 1
        %s1014 = scalar_lea.sflag [#allocation20], %s1013
        %s1015 = sand.u32 %s608, 1
        %s1016 = smul.addr %s1015, 32
        %s1017 = scalar_lea.vmem [#allocation19], %s1016
        %p1018 = pneg %p647
        %p1019 = pneg %p644
        %s1020 = sand.u32 %s56, 1
        %s1021 = scalar_lea.sflag [#allocation20], %s1020
        %s1022 = sand.u32 %s634, 1
        %s1023 = smul.addr %s1022, 32
        %s1024 = scalar_lea.vmem [#allocation21], %s1023
        %p1025 = scmp.lt.s32.totalorder %s56, 1
        %s1026 = scalar_select %p1025, %s56, 1
        %s1027 = smul.addr %s1026, 8
        %s1028 = scalar_lea.vmem %s0, %s1027
        %v1029 = vld [vmem:[%s1028] sm:$0xff]
        %v1030 = vld [vmem:[%s866] sm:$0xff]
        %v1031 = vld [vmem:[%s875] sm:$0xff]
        %v1032 = vld [vmem:[%s884] sm:$0xff]
        %v1033 = vld [vmem:[%s893] sm:$0xff]
        %v1034 = vld [vmem:[%s7] sm:$0xff]
        %v1035 = vld [vmem:[%s7 + $0x8] sm:$0xff]
        %v1036 = vld [vmem:[%s7 + $0x10] sm:$0xff]
        %v1037 = vld [vmem:[%s7 + $0x18] sm:$0xff]
        %v1038 = vld [vmem:[#allocation14] sm:$0x1]
        %v1040 = vlaneseq
        %v1041 = vshrl.u32 %v1040, 7
        %v1042 = vsub.s32 0, %v1041
        %v1043 = vrot.slane %v1038, %v1042
        %vm1045 = vcmask 261120
        %v1047 = vsel %vm1045, %v1029, 0
        %1049 = vmatprep.subr.mxu0 0.0
        %1050 = vmatpush1.msra.mxu0 0.0
        %1051 = vmatprep.subr.mxu0 0.0
        %1052 = vmatpush1.msra.mxu0 0.0
        %1053 = vmatprep.subr.mxu0 0.0
        %1054 = vmatpush1.msra.mxu0 0.0
        %1055 = vmatprep.subr.mxu0 0.0
        %1056 = vmatpush1.msra.mxu0 0.0
        %1057 = vmatprep.subr.mxu0 0.0
        %1058 = vmatpush1.msra.mxu0 0.0
        %1059 = vmatprep.subr.mxu0 0.0
        %1060 = vmatpush1.msra.mxu0 0.0
        %1061 = vmatprep.subr.mxu0 0.0
        %1062 = vmatpush1.msra.mxu0 0.0
        %1063 = vmatprep.subr.mxu0 0.0
        %1064 = vmatpush1.msra.mxu0 0.0
        %1065 = vmatprep.subr.mxu0 0.0
        %1066 = vmatpush1.msra.mxu0 0.0
        %1067 = vmatprep.subr.mxu0 0.0
        %1068 = vmatpush1.msra.mxu0 0.0
        %1069 = vmatprep.subr.mxu0 0.0
        %1070 = vmatpush1.msra.mxu0 0.0
        %1071 = vmatprep.subr.mxu0 0.0
        %1072 = vmatpush1.msra.mxu0 0.0
        %1073 = vmatprep.subr.mxu0 0.0
        %1074 = vmatpush1.msra.mxu0 %v1037
        %1075 = vmatprep.subr.mxu0 0.0
        %1076 = vmatpush1.msra.mxu0 %v1036
        %1077 = vmatprep.subr.mxu0 0.0
        %1078 = vmatpush1.msra.mxu0 %v1035
        %1079 = vmatprep.subr.mxu0 0.0
        %1080 = vmatpush1.msra.mxu0 %v1034
        %1081 = vmatprep.subr.mxu0 0.0
        %1082 = vmatpush2.msra.mxu0 0.0
        %1083 = vmatprep.subr.mxu0 0.0
        %1084 = vmatpush2.msra.mxu0 0.0
        %1085 = vmatprep.subr.mxu0 0.0
        %1086 = vmatpush2.msra.mxu0 0.0
        %1087 = vmatprep.subr.mxu0 0.0
        %1088 = vmatpush2.msra.mxu0 0.0
        %1089 = vmatprep.subr.mxu0 0.0
        %1090 = vmatpush2.msra.mxu0 0.0
        %1091 = vmatprep.subr.mxu0 0.0
        %1092 = vmatpush2.msra.mxu0 0.0
        %1093 = vmatprep.subr.mxu0 0.0
        %1094 = vmatpush2.msra.mxu0 0.0
        %1095 = vmatprep.subr.mxu0 0.0
        %1096 = vmatpush2.msra.mxu0 0.0
        %1097 = vmatprep.subr.mxu0 0.0
        %1098 = vmatpush2.msra.mxu0 0.0
        %1099 = vmatprep.subr.mxu0 0.0
        %1100 = vmatpush2.msra.mxu0 0.0
        %1101 = vmatprep.subr.mxu0 0.0
        %1102 = vmatpush2.msra.mxu0 0.0
        %1103 = vmatprep.subr.mxu0 0.0
        %1104 = vmatpush2.msra.mxu0 0.0
        %1105 = vmatprep.subr.mxu0 0.0
        %1106 = vmatpush2.msra.mxu0 0.0
        %1107 = vmatprep.subr.mxu0 0.0
        %1108 = vmatpush2.msra.mxu0 0.0
        %1109 = vmatprep.subr.mxu0 0.0
        %1110 = vmatpush2.msra.mxu0 0.0
        %1111 = vmatprep.subr.mxu0 0.0
        %1112 = vmatpush2.msra.mxu0 0.0
        %1113 = vmatprep.mubr.f32.mxu0 0.0
        %1114 = vmatmul.mubr.f32.gmra.mxu0 %v1047
        %v1115 = vpop.f32.mrf.mxu0
        %v1116 = vadd.f32 %v1043, %v1115
        %v1117 = vpop.f32.mrf.mxu0
        %1118 = vdwg.mxu0
        %v1119 = vmul.f32 %v1116, 0.35355338
        %v1120 = vld [vmem:[%s9] sm:$0xff]
        %v1121 = vld [vmem:[%s9 + $0x8] sm:$0xff]
        %v1122 = vld [vmem:[%s9 + $0x10] sm:$0xff]
        %v1123 = vld [vmem:[%s9 + $0x18] sm:$0xff]
        %v1124 = vld [vmem:[%s10] sm:$0x1]
        %v1126 = vlaneseq
        %v1127 = vshrl.u32 %v1126, 7
        %v1128 = vsub.s32 0, %v1127
        %v1129 = vrot.slane %v1124, %v1128
        %v1132 = vsel %vm1045, %v1030, 0
        %1134 = vmatprep.subr.mxu0 0.0
        %1135 = vmatpush1.msra.mxu0 0.0
        %1136 = vmatprep.subr.mxu0 0.0
        %1137 = vmatpush1.msra.mxu0 0.0
        %1138 = vmatprep.subr.mxu0 0.0
        %1139 = vmatpush1.msra.mxu0 0.0
        %1140 = vmatprep.subr.mxu0 0.0
        %1141 = vmatpush1.msra.mxu0 0.0
        %1142 = vmatprep.subr.mxu0 0.0
        %1143 = vmatpush1.msra.mxu0 0.0
        %1144 = vmatprep.subr.mxu0 0.0
        %1145 = vmatpush1.msra.mxu0 0.0
        %1146 = vmatprep.subr.mxu0 0.0
        %1147 = vmatpush1.msra.mxu0 0.0
        %1148 = vmatprep.subr.mxu0 0.0
        %1149 = vmatpush1.msra.mxu0 0.0
        %1150 = vmatprep.subr.mxu0 0.0
        %1151 = vmatpush1.msra.mxu0 0.0
        %1152 = vmatprep.subr.mxu0 0.0
        %1153 = vmatpush1.msra.mxu0 0.0
        %1154 = vmatprep.subr.mxu0 0.0
        %1155 = vmatpush1.msra.mxu0 0.0
        %1156 = vmatprep.subr.mxu0 0.0
        %1157 = vmatpush1.msra.mxu0 0.0
        %1158 = vmatprep.subr.mxu0 0.0
        %1159 = vmatpush1.msra.mxu0 %v1123
        %1160 = vmatprep.subr.mxu0 0.0
        %1161 = vmatpush1.msra.mxu0 %v1122
        %1162 = vmatprep.subr.mxu0 0.0
        %1163 = vmatpush1.msra.mxu0 %v1121
        %1164 = vmatprep.subr.mxu0 0.0
        %1165 = vmatpush1.msra.mxu0 %v1120
        %1166 = vmatprep.subr.mxu0 0.0
        %1167 = vmatpush2.msra.mxu0 0.0
        %1168 = vmatprep.subr.mxu0 0.0
        %1169 = vmatpush2.msra.mxu0 0.0
        %1170 = vmatprep.subr.mxu0 0.0
        %1171 = vmatpush2.msra.mxu0 0.0
        %1172 = vmatprep.subr.mxu0 0.0
        %1173 = vmatpush2.msra.mxu0 0.0
        %1174 = vmatprep.subr.mxu0 0.0
        %1175 = vmatpush2.msra.mxu0 0.0
        %1176 = vmatprep.subr.mxu0 0.0
        %1177 = vmatpush2.msra.mxu0 0.0
        %1178 = vmatprep.subr.mxu0 0.0
        %1179 = vmatpush2.msra.mxu0 0.0
        %1180 = vmatprep.subr.mxu0 0.0
        %1181 = vmatpush2.msra.mxu0 0.0
        %1182 = vmatprep.subr.mxu0 0.0
        %1183 = vmatpush2.msra.mxu0 0.0
        %1184 = vmatprep.subr.mxu0 0.0
        %1185 = vmatpush2.msra.mxu0 0.0
        %1186 = vmatprep.subr.mxu0 0.0
        %1187 = vmatpush2.msra.mxu0 0.0
        %1188 = vmatprep.subr.mxu0 0.0
        %1189 = vmatpush2.msra.mxu0 0.0
        %1190 = vmatprep.subr.mxu0 0.0
        %1191 = vmatpush2.msra.mxu0 0.0
        %1192 = vmatprep.subr.mxu0 0.0
        %1193 = vmatpush2.msra.mxu0 0.0
        %1194 = vmatprep.subr.mxu0 0.0
        %1195 = vmatpush2.msra.mxu0 0.0
        %1196 = vmatprep.subr.mxu0 0.0
        %1197 = vmatpush2.msra.mxu0 0.0
        %1198 = vmatprep.mubr.f32.mxu0 0.0
        %1199 = vmatmul.mubr.f32.gmra.mxu0 %v1132
        %v1200 = vpop.f32.mrf.mxu0
        %v1201 = vadd.f32 %v1129, %v1200
        %v1202 = vpop.f32.mrf.mxu0
        %1203 = vdwg.mxu0
        %v1204 = vld [vmem:[%s11] sm:$0xff]
        %v1205 = vld [vmem:[%s11 + $0x8] sm:$0xff]
        %v1206 = vld [vmem:[%s11 + $0x10] sm:$0xff]
        %v1207 = vld [vmem:[%s11 + $0x18] sm:$0xff]
        %v1208 = vld [vmem:[%s12] sm:$0x1]
        %v1210 = vlaneseq
        %v1211 = vshrl.u32 %v1210, 7
        %v1212 = vsub.s32 0, %v1211
        %v1213 = vrot.slane %v1208, %v1212
        %v1216 = vsel %vm1045, %v1031, 0
        %1218 = vmatprep.subr.mxu0 0.0
        %1219 = vmatpush1.msra.mxu0 0.0
        %1220 = vmatprep.subr.mxu0 0.0
        %1221 = vmatpush1.msra.mxu0 0.0
        %1222 = vmatprep.subr.mxu0 0.0
        %1223 = vmatpush1.msra.mxu0 0.0
        %1224 = vmatprep.subr.mxu0 0.0
        %1225 = vmatpush1.msra.mxu0 0.0
        %1226 = vmatprep.subr.mxu0 0.0
        %1227 = vmatpush1.msra.mxu0 0.0
        %1228 = vmatprep.subr.mxu0 0.0
        %1229 = vmatpush1.msra.mxu0 0.0
        %1230 = vmatprep.subr.mxu0 0.0
        %1231 = vmatpush1.msra.mxu0 0.0
        %1232 = vmatprep.subr.mxu0 0.0
        %1233 = vmatpush1.msra.mxu0 0.0
        %1234 = vmatprep.subr.mxu0 0.0
        %1235 = vmatpush1.msra.mxu0 0.0
        %1236 = vmatprep.subr.mxu0 0.0
        %1237 = vmatpush1.msra.mxu0 0.0
        %1238 = vmatprep.subr.mxu0 0.0
        %1239 = vmatpush1.msra.mxu0 0.0
        %1240 = vmatprep.subr.mxu0 0.0
        %1241 = vmatpush1.msra.mxu0 0.0
        %1242 = vmatprep.subr.mxu0 0.0
        %1243 = vmatpush1.msra.mxu0 %v1207
        %1244 = vmatprep.subr.mxu0 0.0
        %1245 = vmatpush1.msra.mxu0 %v1206
        %1246 = vmatprep.subr.mxu0 0.0
        %1247 = vmatpush1.msra.mxu0 %v1205
        %1248 = vmatprep.subr.mxu0 0.0
        %1249 = vmatpush1.msra.mxu0 %v1204
        %1250 = vmatprep.subr.mxu0 0.0
        %1251 = vmatpush2.msra.mxu0 0.0
        %1252 = vmatprep.subr.mxu0 0.0
        %1253 = vmatpush2.msra.mxu0 0.0
        %1254 = vmatprep.subr.mxu0 0.0
        %1255 = vmatpush2.msra.mxu0 0.0
        %1256 = vmatprep.subr.mxu0 0.0
        %1257 = vmatpush2.msra.mxu0 0.0
        %1258 = vmatprep.subr.mxu0 0.0
        %1259 = vmatpush2.msra.mxu0 0.0
        %1260 = vmatprep.subr.mxu0 0.0
        %1261 = vmatpush2.msra.mxu0 0.0
        %1262 = vmatprep.subr.mxu0 0.0
        %1263 = vmatpush2.msra.mxu0 0.0
        %1264 = vmatprep.subr.mxu0 0.0
        %1265 = vmatpush2.msra.mxu0 0.0
        %1266 = vmatprep.subr.mxu0 0.0
        %1267 = vmatpush2.msra.mxu0 0.0
        %1268 = vmatprep.subr.mxu0 0.0
        %1269 = vmatpush2.msra.mxu0 0.0
        %1270 = vmatprep.subr.mxu0 0.0
        %1271 = vmatpush2.msra.mxu0 0.0
        %1272 = vmatprep.subr.mxu0 0.0
        %1273 = vmatpush2.msra.mxu0 0.0
        %1274 = vmatprep.subr.mxu0 0.0
        %1275 = vmatpush2.msra.mxu0 0.0
        %1276 = vmatprep.subr.mxu0 0.0
        %1277 = vmatpush2.msra.mxu0 0.0
        %1278 = vmatprep.subr.mxu0 0.0
        %1279 = vmatpush2.msra.mxu0 0.0
        %1280 = vmatprep.subr.mxu0 0.0
        %1281 = vmatpush2.msra.mxu0 0.0
        %1282 = vmatprep.mubr.f32.mxu0 0.0
        %1283 = vmatmul.mubr.f32.gmra.mxu0 %v1216
        %v1284 = vpop.f32.mrf.mxu0
        %v1285 = vadd.f32 %v1213, %v1284
        %v1286 = vpop.f32.mrf.mxu0
        %1287 = vdwg.mxu0
        %v1288 = vld [vmem:[%s13] sm:$0xff]
        %v1289 = vld [vmem:[%s13 + $0x8] sm:$0xff]
        %v1290 = vld [vmem:[%s13 + $0x10] sm:$0xff]
        %v1291 = vld [vmem:[%s13 + $0x18] sm:$0xff]
        %v1292 = vld [vmem:[%s14] sm:$0x1]
        %v1294 = vlaneseq
        %v1295 = vshrl.u32 %v1294, 7
        %v1296 = vsub.s32 0, %v1295
        %v1297 = vrot.slane %v1292, %v1296
        %1299 = vmatprep.subr.mxu0 0.0
        %1300 = vmatpush1.msra.mxu0 0.0
        %1301 = vmatprep.subr.mxu0 0.0
        %1302 = vmatpush1.msra.mxu0 0.0
        %1303 = vmatprep.subr.mxu0 0.0
        %1304 = vmatpush1.msra.mxu0 0.0
        %1305 = vmatprep.subr.mxu0 0.0
        %1306 = vmatpush1.msra.mxu0 0.0
        %1307 = vmatprep.subr.mxu0 0.0
        %1308 = vmatpush1.msra.mxu0 0.0
        %1309 = vmatprep.subr.mxu0 0.0
        %1310 = vmatpush1.msra.mxu0 0.0
        %1311 = vmatprep.subr.mxu0 0.0
        %1312 = vmatpush1.msra.mxu0 0.0
        %1313 = vmatprep.subr.mxu0 0.0
        %1314 = vmatpush1.msra.mxu0 0.0
        %1315 = vmatprep.subr.mxu0 0.0
        %1316 = vmatpush1.msra.mxu0 0.0
        %1317 = vmatprep.subr.mxu0 0.0
        %1318 = vmatpush1.msra.mxu0 0.0
        %1319 = vmatprep.subr.mxu0 0.0
        %1320 = vmatpush1.msra.mxu0 0.0
        %1321 = vmatprep.subr.mxu0 0.0
        %1322 = vmatpush1.msra.mxu0 0.0
        %1323 = vmatprep.subr.mxu0 0.0
        %1324 = vmatpush1.msra.mxu0 %v1291
        %1325 = vmatprep.subr.mxu0 0.0
        %1326 = vmatpush1.msra.mxu0 %v1290
        %1327 = vmatprep.subr.mxu0 0.0
        %1328 = vmatpush1.msra.mxu0 %v1289
        %1329 = vmatprep.subr.mxu0 0.0
        %1330 = vmatpush1.msra.mxu0 %v1288
        %1331 = vmatprep.subr.mxu0 0.0
        %1332 = vmatpush2.msra.mxu0 0.0
        %1333 = vmatprep.subr.mxu0 0.0
        %1334 = vmatpush2.msra.mxu0 0.0
        %1335 = vmatprep.subr.mxu0 0.0
        %1336 = vmatpush2.msra.mxu0 0.0
        %1337 = vmatprep.subr.mxu0 0.0
        %1338 = vmatpush2.msra.mxu0 0.0
        %1339 = vmatprep.subr.mxu0 0.0
        %1340 = vmatpush2.msra.mxu0 0.0
        %1341 = vmatprep.subr.mxu0 0.0
        %1342 = vmatpush2.msra.mxu0 0.0
        %1343 = vmatprep.subr.mxu0 0.0
        %1344 = vmatpush2.msra.mxu0 0.0
        %1345 = vmatprep.subr.mxu0 0.0
        %1346 = vmatpush2.msra.mxu0 0.0
        %1347 = vmatprep.subr.mxu0 0.0
        %1348 = vmatpush2.msra.mxu0 0.0
        %1349 = vmatprep.subr.mxu0 0.0
        %1350 = vmatpush2.msra.mxu0 0.0
        %1351 = vmatprep.subr.mxu0 0.0
        %1352 = vmatpush2.msra.mxu0 0.0
        %1353 = vmatprep.subr.mxu0 0.0
        %1354 = vmatpush2.msra.mxu0 0.0
        %1355 = vmatprep.subr.mxu0 0.0
        %1356 = vmatpush2.msra.mxu0 0.0
        %1357 = vmatprep.subr.mxu0 0.0
        %1358 = vmatpush2.msra.mxu0 0.0
        %1359 = vmatprep.subr.mxu0 0.0
        %1360 = vmatpush2.msra.mxu0 0.0
        %1361 = vmatprep.subr.mxu0 0.0
        %1362 = vmatpush2.msra.mxu0 0.0
        %1363 = vmatprep.mubr.f32.mxu0 0.0
        %1364 = vmatmul.mubr.f32.gmra.mxu0 %v1047
        %v1365 = vpop.f32.mrf.mxu0
        %v1366 = vadd.f32 %v1297, %v1365
        %v1367 = vpop.f32.mrf.mxu0
        %1368 = vdwg.mxu0
        %v1369 = vmul.f32 %v1366, 0.5
        %v1370 = vld [vmem:[#allocation15] sm:$0xff]
        %v1371 = vld [vmem:[#allocation15 + $0x8] sm:$0xff]
        %v1372 = vld [vmem:[%s16] sm:$0x1]
        %v1374 = vlaneseq
        %v1375 = vshrl.u32 %v1374, 7
        %v1376 = vsub.s32 0, %v1375
        %v1377 = vrot.slane %v1372, %v1376
        %vm1379 = vcmask 130048
        %v1381 = vsel %vm1379, %v1032, 0
        %1383 = vmatprep.subr.mxu0 0.0
        %1384 = vmatpush1.msra.mxu0 0.0
        %1385 = vmatprep.subr.mxu0 0.0
        %1386 = vmatpush1.msra.mxu0 0.0
        %1387 = vmatprep.subr.mxu0 0.0
        %1388 = vmatpush1.msra.mxu0 0.0
        %1389 = vmatprep.subr.mxu0 0.0
        %1390 = vmatpush1.msra.mxu0 0.0
        %1391 = vmatprep.subr.mxu0 0.0
        %1392 = vmatpush1.msra.mxu0 0.0
        %1393 = vmatprep.subr.mxu0 0.0
        %1394 = vmatpush1.msra.mxu0 0.0
        %1395 = vmatprep.subr.mxu0 0.0
        %1396 = vmatpush1.msra.mxu0 0.0
        %1397 = vmatprep.subr.mxu0 0.0
        %1398 = vmatpush1.msra.mxu0 0.0
        %1399 = vmatprep.subr.mxu0 0.0
        %1400 = vmatpush1.msra.mxu0 0.0
        %1401 = vmatprep.subr.mxu0 0.0
        %1402 = vmatpush1.msra.mxu0 0.0
        %1403 = vmatprep.subr.mxu0 0.0
        %1404 = vmatpush1.msra.mxu0 0.0
        %1405 = vmatprep.subr.mxu0 0.0
        %1406 = vmatpush1.msra.mxu0 0.0
        %1407 = vmatprep.subr.mxu0 0.0
        %1408 = vmatpush1.msra.mxu0 0.0
        %1409 = vmatprep.subr.mxu0 0.0
        %1410 = vmatpush1.msra.mxu0 0.0
        %1411 = vmatprep.subr.mxu0 0.0
        %1412 = vmatpush1.msra.mxu0 %v1371
        %1413 = vmatprep.subr.mxu0 0.0
        %1414 = vmatpush1.msra.mxu0 %v1370
        %1415 = vmatprep.subr.mxu0 0.0
        %1416 = vmatpush2.msra.mxu0 0.0
        %1417 = vmatprep.subr.mxu0 0.0
        %1418 = vmatpush2.msra.mxu0 0.0
        %1419 = vmatprep.subr.mxu0 0.0
        %1420 = vmatpush2.msra.mxu0 0.0
        %1421 = vmatprep.subr.mxu0 0.0
        %1422 = vmatpush2.msra.mxu0 0.0
        %1423 = vmatprep.subr.mxu0 0.0
        %1424 = vmatpush2.msra.mxu0 0.0
        %1425 = vmatprep.subr.mxu0 0.0
        %1426 = vmatpush2.msra.mxu0 0.0
        %1427 = vmatprep.subr.mxu0 0.0
        %1428 = vmatpush2.msra.mxu0 0.0
        %1429 = vmatprep.subr.mxu0 0.0
        %1430 = vmatpush2.msra.mxu0 0.0
        %1431 = vmatprep.subr.mxu0 0.0
        %1432 = vmatpush2.msra.mxu0 0.0
        %1433 = vmatprep.subr.mxu0 0.0
        %1434 = vmatpush2.msra.mxu0 0.0
        %1435 = vmatprep.subr.mxu0 0.0
        %1436 = vmatpush2.msra.mxu0 0.0
        %1437 = vmatprep.subr.mxu0 0.0
        %1438 = vmatpush2.msra.mxu0 0.0
        %1439 = vmatprep.subr.mxu0 0.0
        %1440 = vmatpush2.msra.mxu0 0.0
        %1441 = vmatprep.subr.mxu0 0.0
        %1442 = vmatpush2.msra.mxu0 0.0
        %1443 = vmatprep.subr.mxu0 0.0
        %1444 = vmatpush2.msra.mxu0 0.0
        %1445 = vmatprep.subr.mxu0 0.0
        %1446 = vmatpush2.msra.mxu0 0.0
        %1447 = vmatprep.mubr.f32.mxu0 0.0
        %1448 = vmatmul.mubr.f32.gmra.mxu0 %v1381
        %v1449 = vpop.f32.mrf.mxu0
        %v1450 = vadd.f32 %v1377, %v1449
        %v1451 = vpop.f32.mrf.mxu0
        %1452 = vdwg.mxu0
        %v1453 = vld [vmem:[#allocation17] sm:$0xff]
        %v1454 = vld [vmem:[#allocation17 + $0x8] sm:$0xff]
        %v1455 = vld [vmem:[%s18] sm:$0x1]
        %v1457 = vlaneseq
        %v1458 = vshrl.u32 %v1457, 7
        %v1459 = vsub.s32 0, %v1458
        %v1460 = vrot.slane %v1455, %v1459
        %v1463 = vsel %vm1379, %v1033, 0
        %1465 = vmatprep.subr.mxu0 0.0
        %1466 = vmatpush1.msra.mxu0 0.0
        %1467 = vmatprep.subr.mxu0 0.0
        %1468 = vmatpush1.msra.mxu0 0.0
        %1469 = vmatprep.subr.mxu0 0.0
        %1470 = vmatpush1.msra.mxu0 0.0
        %1471 = vmatprep.subr.mxu0 0.0
        %1472 = vmatpush1.msra.mxu0 0.0
        %1473 = vmatprep.subr.mxu0 0.0
        %1474 = vmatpush1.msra.mxu0 0.0
        %1475 = vmatprep.subr.mxu0 0.0
        %1476 = vmatpush1.msra.mxu0 0.0
        %1477 = vmatprep.subr.mxu0 0.0
        %1478 = vmatpush1.msra.mxu0 0.0
        %1479 = vmatprep.subr.mxu0 0.0
        %1480 = vmatpush1.msra.mxu0 0.0
        %1481 = vmatprep.subr.mxu0 0.0
        %1482 = vmatpush1.msra.mxu0 0.0
        %1483 = vmatprep.subr.mxu0 0.0
        %1484 = vmatpush1.msra.mxu0 0.0
        %1485 = vmatprep.subr.mxu0 0.0
        %1486 = vmatpush1.msra.mxu0 0.0
        %1487 = vmatprep.subr.mxu0 0.0
        %1488 = vmatpush1.msra.mxu0 0.0
        %1489 = vmatprep.subr.mxu0 0.0
        %1490 = vmatpush1.msra.mxu0 0.0
        %1491 = vmatprep.subr.mxu0 0.0
        %1492 = vmatpush1.msra.mxu0 0.0
        %1493 = vmatprep.subr.mxu0 0.0
        %1494 = vmatpush1.msra.mxu0 %v1454
        %1495 = vmatprep.subr.mxu0 0.0
        %1496 = vmatpush1.msra.mxu0 %v1453
        %1497 = vmatprep.subr.mxu0 0.0
        %1498 = vmatpush2.msra.mxu0 0.0
        %1499 = vmatprep.subr.mxu0 0.0
        %1500 = vmatpush2.msra.mxu0 0.0
        %1501 = vmatprep.subr.mxu0 0.0
        %1502 = vmatpush2.msra.mxu0 0.0
        %1503 = vmatprep.subr.mxu0 0.0
        %1504 = vmatpush2.msra.mxu0 0.0
        %1505 = vmatprep.subr.mxu0 0.0
        %1506 = vmatpush2.msra.mxu0 0.0
        %1507 = vmatprep.subr.mxu0 0.0
        %1508 = vmatpush2.msra.mxu0 0.0
        %1509 = vmatprep.subr.mxu0 0.0
        %1510 = vmatpush2.msra.mxu0 0.0
        %1511 = vmatprep.subr.mxu0 0.0
        %1512 = vmatpush2.msra.mxu0 0.0
        %1513 = vmatprep.subr.mxu0 0.0
        %1514 = vmatpush2.msra.mxu0 0.0
        %1515 = vmatprep.subr.mxu0 0.0
        %1516 = vmatpush2.msra.mxu0 0.0
        %1517 = vmatprep.subr.mxu0 0.0
        %1518 = vmatpush2.msra.mxu0 0.0
        %1519 = vmatprep.subr.mxu0 0.0
        %1520 = vmatpush2.msra.mxu0 0.0
        %1521 = vmatprep.subr.mxu0 0.0
        %1522 = vmatpush2.msra.mxu0 0.0
        %1523 = vmatprep.subr.mxu0 0.0
        %1524 = vmatpush2.msra.mxu0 0.0
        %1525 = vmatprep.subr.mxu0 0.0
        %1526 = vmatpush2.msra.mxu0 0.0
        %1527 = vmatprep.subr.mxu0 0.0
        %1528 = vmatpush2.msra.mxu0 0.0
        %1529 = vmatprep.mubr.f32.mxu0 0.0
        %1530 = vmatmul.mubr.f32.gmra.mxu0 %v1463
        %v1531 = vpop.f32.mrf.mxu0
        %v1532 = vadd.f32 %v1460, %v1531
        %v1533 = vpop.f32.mrf.mxu0
        %1534 = vdwg.mxu0
        %v1535 = vld [vmem:[%s901] sm:$0x1]
        %v1537 = vlaneseq
        %v1538 = vshrl.u32 %v1537, 7
        %v1539 = vsub.s32 0, %v1538
        %v1540 = vrot.slane %v1535, %v1539
        %vm1542 = vcmask 64512
        %v1544 = vsel %vm1542, %v1119, 0
        %v1547 = vsel %vm1542, %v1201, 0
        %1549 = vmatprep.subr.mxu0 0.0
        %1550 = vmatpush1.xpose.msra.mxu0 0.0
        %1551 = vmatprep.subr.mxu0 0.0
        %1552 = vmatpush1.xpose.msra.mxu0 0.0
        %1553 = vmatprep.subr.mxu0 0.0
        %1554 = vmatpush1.xpose.msra.mxu0 0.0
        %1555 = vmatprep.subr.mxu0 0.0
        %1556 = vmatpush1.xpose.msra.mxu0 0.0
        %1557 = vmatprep.subr.mxu0 0.0
        %1558 = vmatpush1.xpose.msra.mxu0 0.0
        %1559 = vmatprep.subr.mxu0 0.0
        %1560 = vmatpush1.xpose.msra.mxu0 0.0
        %1561 = vmatprep.subr.mxu0 0.0
        %1562 = vmatpush1.xpose.msra.mxu0 0.0
        %1563 = vmatprep.subr.mxu0 0.0
        %1564 = vmatpush1.xpose.msra.mxu0 0.0
        %1565 = vmatprep.subr.mxu0 0.0
        %1566 = vmatpush1.xpose.msra.mxu0 0.0
        %1567 = vmatprep.subr.mxu0 0.0
        %1568 = vmatpush1.xpose.msra.mxu0 0.0
        %1569 = vmatprep.subr.mxu0 0.0
        %1570 = vmatpush1.xpose.msra.mxu0 0.0
        %1571 = vmatprep.subr.mxu0 0.0
        %1572 = vmatpush1.xpose.msra.mxu0 0.0
        %1573 = vmatprep.subr.mxu0 0.0
        %1574 = vmatpush1.xpose.msra.mxu0 0.0
        %1575 = vmatprep.subr.mxu0 0.0
        %1576 = vmatpush1.xpose.msra.mxu0 0.0
        %1577 = vmatprep.subr.mxu0 0.0
        %1578 = vmatpush1.xpose.msra.mxu0 0.0
        %1579 = vmatprep.subr.mxu0 0.0
        %1580 = vmatpush1.xpose.msra.mxu0 %v1547
        %1581 = vmatprep.subr.mxu0 0.0
        %1582 = vmatpush2.xpose.msra.mxu0 0.0
        %1583 = vmatprep.subr.mxu0 0.0
        %1584 = vmatpush2.xpose.msra.mxu0 0.0
        %1585 = vmatprep.subr.mxu0 0.0
        %1586 = vmatpush2.xpose.msra.mxu0 0.0
        %1587 = vmatprep.subr.mxu0 0.0
        %1588 = vmatpush2.xpose.msra.mxu0 0.0
        %1589 = vmatprep.subr.mxu0 0.0
        %1590 = vmatpush2.xpose.msra.mxu0 0.0
        %1591 = vmatprep.subr.mxu0 0.0
        %1592 = vmatpush2.xpose.msra.mxu0 0.0
        %1593 = vmatprep.subr.mxu0 0.0
        %1594 = vmatpush2.xpose.msra.mxu0 0.0
        %1595 = vmatprep.subr.mxu0 0.0
        %1596 = vmatpush2.xpose.msra.mxu0 0.0
        %1597 = vmatprep.subr.mxu0 0.0
        %1598 = vmatpush2.xpose.msra.mxu0 0.0
        %1599 = vmatprep.subr.mxu0 0.0
        %1600 = vmatpush2.xpose.msra.mxu0 0.0
        %1601 = vmatprep.subr.mxu0 0.0
        %1602 = vmatpush2.xpose.msra.mxu0 0.0
        %1603 = vmatprep.subr.mxu0 0.0
        %1604 = vmatpush2.xpose.msra.mxu0 0.0
        %1605 = vmatprep.subr.mxu0 0.0
        %1606 = vmatpush2.xpose.msra.mxu0 0.0
        %1607 = vmatprep.subr.mxu0 0.0
        %1608 = vmatpush2.xpose.msra.mxu0 0.0
        %1609 = vmatprep.subr.mxu0 0.0
        %1610 = vmatpush2.xpose.msra.mxu0 0.0
        %1611 = vmatprep.subr.mxu0 0.0
        %1612 = vmatpush2.xpose.msra.mxu0 0.0
        %1613 = vmatprep.mubr.f32.mxu0 0.0
        %1614 = vmatmul.mubr.f32.gmra.mxu0 %v1544
        %v1615 = vpop.f32.mrf.mxu0
        %v1616 = vadd.f32 %v1540, %v1615
        %v1617 = vpop.f32.mrf.mxu0
        %1618 = vdwg.mxu0
        %1619 = vst.msk [vmem:[%s1017] sm:$0xff] %vm1542, %v1616
        %v1620 = vsel %vm1542, %v1616, -inf
        %1621 = vmax.xlane.f32.xlu0 %v1620
        %v1622 = vpop.xlane.xlu0 %1621
        %v1623 = vsub.f32 %v1616, %v1622
        %v1624 = vmul.f32 %v1623, 1.442695
        %v1625 = vpow.pop %v1624
        %v1626 = vsel %vm1542, %v1625, 0.0
        %1627 = vadd.xlane.f32.xlu0 %v1626
        %v1628 = vpop.xlane.xlu0 %1627
        %v1629 = vrcp.pop %v1628
        %v1630 = vmul.f32 %v1628, %v1629
        %v1631 = vsub.f32 2.0, %v1630
        %v1632 = vmul.f32 %v1629, %v1631
        %v1633 = vmul.f32 %v1625, %v1632
        %v1635 = vsel %vm1542, %v1633, 0
        %1637 = vmatprep.subr.mxu0 0.0
        %1638 = vmatpush1.msra.mxu0 0.0
        %1639 = vmatprep.subr.mxu0 0.0
        %1640 = vmatpush1.msra.mxu0 0.0
        %1641 = vmatprep.subr.mxu0 0.0
        %1642 = vmatpush1.msra.mxu0 0.0
        %1643 = vmatprep.subr.mxu0 0.0
        %1644 = vmatpush1.msra.mxu0 0.0
        %1645 = vmatprep.subr.mxu0 0.0
        %1646 = vmatpush1.msra.mxu0 0.0
        %1647 = vmatprep.subr.mxu0 0.0
        %1648 = vmatpush1.msra.mxu0 0.0
        %1649 = vmatprep.subr.mxu0 0.0
        %1650 = vmatpush1.msra.mxu0 0.0
        %1651 = vmatprep.subr.mxu0 0.0
        %1652 = vmatpush1.msra.mxu0 0.0
        %1653 = vmatprep.subr.mxu0 0.0
        %1654 = vmatpush1.msra.mxu0 0.0
        %1655 = vmatprep.subr.mxu0 0.0
        %1656 = vmatpush1.msra.mxu0 0.0
        %1657 = vmatprep.subr.mxu0 0.0
        %1658 = vmatpush1.msra.mxu0 0.0
        %1659 = vmatprep.subr.mxu0 0.0
        %1660 = vmatpush1.msra.mxu0 0.0
        %1661 = vmatprep.subr.mxu0 0.0
        %1662 = vmatpush1.msra.mxu0 0.0
        %1663 = vmatprep.subr.mxu0 0.0
        %1664 = vmatpush1.msra.mxu0 0.0
        %1665 = vmatprep.subr.mxu0 0.0
        %1666 = vmatpush1.msra.mxu0 0.0
        %1667 = vmatprep.subr.mxu0 0.0
        %1668 = vmatpush1.msra.mxu0 %v1285
        %1669 = vmatprep.subr.mxu0 0.0
        %1670 = vmatpush2.msra.mxu0 0.0
        %1671 = vmatprep.subr.mxu0 0.0
        %1672 = vmatpush2.msra.mxu0 0.0
        %1673 = vmatprep.subr.mxu0 0.0
        %1674 = vmatpush2.msra.mxu0 0.0
        %1675 = vmatprep.subr.mxu0 0.0
        %1676 = vmatpush2.msra.mxu0 0.0
        %1677 = vmatprep.subr.mxu0 0.0
        %1678 = vmatpush2.msra.mxu0 0.0
        %1679 = vmatprep.subr.mxu0 0.0
        %1680 = vmatpush2.msra.mxu0 0.0
        %1681 = vmatprep.subr.mxu0 0.0
        %1682 = vmatpush2.msra.mxu0 0.0
        %1683 = vmatprep.subr.mxu0 0.0
        %1684 = vmatpush2.msra.mxu0 0.0
        %1685 = vmatprep.subr.mxu0 0.0
        %1686 = vmatpush2.msra.mxu0 0.0
        %1687 = vmatprep.subr.mxu0 0.0
        %1688 = vmatpush2.msra.mxu0 0.0
        %1689 = vmatprep.subr.mxu0 0.0
        %1690 = vmatpush2.msra.mxu0 0.0
        %1691 = vmatprep.subr.mxu0 0.0
        %1692 = vmatpush2.msra.mxu0 0.0
        %1693 = vmatprep.subr.mxu0 0.0
        %1694 = vmatpush2.msra.mxu0 0.0
        %1695 = vmatprep.subr.mxu0 0.0
        %1696 = vmatpush2.msra.mxu0 0.0
        %1697 = vmatprep.subr.mxu0 0.0
        %1698 = vmatpush2.msra.mxu0 0.0
        %1699 = vmatprep.subr.mxu0 0.0
        %1700 = vmatpush2.msra.mxu0 0.0
        %1701 = vmatprep.mubr.f32.mxu0 0.0
        %1702 = vmatmul.mubr.f32.gmra.mxu0 %v1635
        %v1703 = vpop.f32.mrf.mxu0
        %v1704 = vadd.f32 0.0, %v1703
        %v1705 = vpop.f32.mrf.mxu0
        %1706 = vdwg.mxu0
        %1707 = vst.msk [vmem:[#allocation2] sm:$0xff] %vm1542, %v1704
        %1708 = vrot.lane.b32.xlu0 %v1119, 120
        %v1709 = vpop.permute.xlu0 %1708
        %1710 = vrot.lane.b32.xlu0 %v1201, 120
        %v1711 = vpop.permute.xlu0 %1710
        %v1712 = vsel %vm1542, %v1709, 0
        %v1714 = vsel %vm1542, %v1711, 0
        %1716 = vmatprep.subr.mxu0 0.0
        %1717 = vmatpush1.xpose.msra.mxu0 0.0
        %1718 = vmatprep.subr.mxu0 0.0
        %1719 = vmatpush1.xpose.msra.mxu0 0.0
        %1720 = vmatprep.subr.mxu0 0.0
        %1721 = vmatpush1.xpose.msra.mxu0 0.0
        %1722 = vmatprep.subr.mxu0 0.0
        %1723 = vmatpush1.xpose.msra.mxu0 0.0
        %1724 = vmatprep.subr.mxu0 0.0
        %1725 = vmatpush1.xpose.msra.mxu0 0.0
        %1726 = vmatprep.subr.mxu0 0.0
        %1727 = vmatpush1.xpose.msra.mxu0 0.0
        %1728 = vmatprep.subr.mxu0 0.0
        %1729 = vmatpush1.xpose.msra.mxu0 0.0
        %1730 = vmatprep.subr.mxu0 0.0
        %1731 = vmatpush1.xpose.msra.mxu0 0.0
        %1732 = vmatprep.subr.mxu0 0.0
        %1733 = vmatpush1.xpose.msra.mxu0 0.0
        %1734 = vmatprep.subr.mxu0 0.0
        %1735 = vmatpush1.xpose.msra.mxu0 0.0
        %1736 = vmatprep.subr.mxu0 0.0
        %1737 = vmatpush1.xpose.msra.mxu0 0.0
        %1738 = vmatprep.subr.mxu0 0.0
        %1739 = vmatpush1.xpose.msra.mxu0 0.0
        %1740 = vmatprep.subr.mxu0 0.0
        %1741 = vmatpush1.xpose.msra.mxu0 0.0
        %1742 = vmatprep.subr.mxu0 0.0
        %1743 = vmatpush1.xpose.msra.mxu0 0.0
        %1744 = vmatprep.subr.mxu0 0.0
        %1745 = vmatpush1.xpose.msra.mxu0 0.0
        %1746 = vmatprep.subr.mxu0 0.0
        %1747 = vmatpush1.xpose.msra.mxu0 %v1714
        %1748 = vmatprep.subr.mxu0 0.0
        %1749 = vmatpush2.xpose.msra.mxu0 0.0
        %1750 = vmatprep.subr.mxu0 0.0
        %1751 = vmatpush2.xpose.msra.mxu0 0.0
        %1752 = vmatprep.subr.mxu0 0.0
        %1753 = vmatpush2.xpose.msra.mxu0 0.0
        %1754 = vmatprep.subr.mxu0 0.0
        %1755 = vmatpush2.xpose.msra.mxu0 0.0
        %1756 = vmatprep.subr.mxu0 0.0
        %1757 = vmatpush2.xpose.msra.mxu0 0.0
        %1758 = vmatprep.subr.mxu0 0.0
        %1759 = vmatpush2.xpose.msra.mxu0 0.0
        %1760 = vmatprep.subr.mxu0 0.0
        %1761 = vmatpush2.xpose.msra.mxu0 0.0
        %1762 = vmatprep.subr.mxu0 0.0
        %1763 = vmatpush2.xpose.msra.mxu0 0.0
        %1764 = vmatprep.subr.mxu0 0.0
        %1765 = vmatpush2.xpose.msra.mxu0 0.0
        %1766 = vmatprep.subr.mxu0 0.0
        %1767 = vmatpush2.xpose.msra.mxu0 0.0
        %1768 = vmatprep.subr.mxu0 0.0
        %1769 = vmatpush2.xpose.msra.mxu0 0.0
        %1770 = vmatprep.subr.mxu0 0.0
        %1771 = vmatpush2.xpose.msra.mxu0 0.0
        %1772 = vmatprep.subr.mxu0 0.0
        %1773 = vmatpush2.xpose.msra.mxu0 0.0
        %1774 = vmatprep.subr.mxu0 0.0
        %1775 = vmatpush2.xpose.msra.mxu0 0.0
        %1776 = vmatprep.subr.mxu0 0.0
        %1777 = vmatpush2.xpose.msra.mxu0 0.0
        %1778 = vmatprep.subr.mxu0 0.0
        %1779 = vmatpush2.xpose.msra.mxu0 0.0
        %1780 = vmatprep.mubr.f32.mxu0 0.0
        %1781 = vmatmul.mubr.f32.gmra.mxu0 %v1712
        %v1782 = vpop.f32.mrf.mxu0
        %v1783 = vadd.f32 %v1540, %v1782
        %v1784 = vpop.f32.mrf.mxu0
        %1785 = vdwg.mxu0
        %s1786 = scalar_lea.vmem %s1017, 8 [#allocation19]
        %1787 = vst.msk [vmem:[%s1786] sm:$0xff] %vm1542, %v1783
        %v1788 = vsel %vm1542, %v1783, -inf
        %1789 = vmax.xlane.f32.xlu0 %v1788
        %v1790 = vpop.xlane.xlu0 %1789
        %v1791 = vsub.f32 %v1783, %v1790
        %v1792 = vmul.f32 %v1791, 1.442695
        %v1793 = vpow.pop %v1792
        %v1794 = vsel %vm1542, %v1793, 0.0
        %1795 = vadd.xlane.f32.xlu0 %v1794
        %v1796 = vpop.xlane.xlu0 %1795
        %v1797 = vrcp.pop %v1796
        %v1798 = vmul.f32 %v1796, %v1797
        %v1799 = vsub.f32 2.0, %v1798
        %v1800 = vmul.f32 %v1797, %v1799
        %v1801 = vmul.f32 %v1793, %v1800
        %1803 = vrot.lane.b32.xlu0 %v1285, 120
        %v1804 = vpop.permute.xlu0 %1803
        %v1807 = vsel %vm1542, %v1801, 0
        %1809 = vmatprep.subr.mxu0 0.0
        %1810 = vmatpush1.msra.mxu0 0.0
        %1811 = vmatprep.subr.mxu0 0.0
        %1812 = vmatpush1.msra.mxu0 0.0
        %1813 = vmatprep.subr.mxu0 0.0
        %1814 = vmatpush1.msra.mxu0 0.0
        %1815 = vmatprep.subr.mxu0 0.0
        %1816 = vmatpush1.msra.mxu0 0.0
        %1817 = vmatprep.subr.mxu0 0.0
        %1818 = vmatpush1.msra.mxu0 0.0
        %1819 = vmatprep.subr.mxu0 0.0
        %1820 = vmatpush1.msra.mxu0 0.0
        %1821 = vmatprep.subr.mxu0 0.0
        %1822 = vmatpush1.msra.mxu0 0.0
        %1823 = vmatprep.subr.mxu0 0.0
        %1824 = vmatpush1.msra.mxu0 0.0
        %1825 = vmatprep.subr.mxu0 0.0
        %1826 = vmatpush1.msra.mxu0 0.0
        %1827 = vmatprep.subr.mxu0 0.0
        %1828 = vmatpush1.msra.mxu0 0.0
        %1829 = vmatprep.subr.mxu0 0.0
        %1830 = vmatpush1.msra.mxu0 0.0
        %1831 = vmatprep.subr.mxu0 0.0
        %1832 = vmatpush1.msra.mxu0 0.0
        %1833 = vmatprep.subr.mxu0 0.0
        %1834 = vmatpush1.msra.mxu0 0.0
        %1835 = vmatprep.subr.mxu0 0.0
        %1836 = vmatpush1.msra.mxu0 0.0
        %1837 = vmatprep.subr.mxu0 0.0
        %1838 = vmatpush1.msra.mxu0 0.0
        %1839 = vmatprep.subr.mxu0 0.0
        %1840 = vmatpush1.msra.mxu0 %v1804
        %1841 = vmatprep.subr.mxu0 0.0
        %1842 = vmatpush2.msra.mxu0 0.0
        %1843 = vmatprep.subr.mxu0 0.0
        %1844 = vmatpush2.msra.mxu0 0.0
        %1845 = vmatprep.subr.mxu0 0.0
        %1846 = vmatpush2.msra.mxu0 0.0
        %1847 = vmatprep.subr.mxu0 0.0
        %1848 = vmatpush2.msra.mxu0 0.0
        %1849 = vmatprep.subr.mxu0 0.0
        %1850 = vmatpush2.msra.mxu0 0.0
        %1851 = vmatprep.subr.mxu0 0.0
        %1852 = vmatpush2.msra.mxu0 0.0
        %1853 = vmatprep.subr.mxu0 0.0
        %1854 = vmatpush2.msra.mxu0 0.0
        %1855 = vmatprep.subr.mxu0 0.0
        %1856 = vmatpush2.msra.mxu0 0.0
        %1857 = vmatprep.subr.mxu0 0.0
        %1858 = vmatpush2.msra.mxu0 0.0
        %1859 = vmatprep.subr.mxu0 0.0
        %1860 = vmatpush2.msra.mxu0 0.0
        %1861 = vmatprep.subr.mxu0 0.0
        %1862 = vmatpush2.msra.mxu0 0.0
        %1863 = vmatprep.subr.mxu0 0.0
        %1864 = vmatpush2.msra.mxu0 0.0
        %1865 = vmatprep.subr.mxu0 0.0
        %1866 = vmatpush2.msra.mxu0 0.0
        %1867 = vmatprep.subr.mxu0 0.0
        %1868 = vmatpush2.msra.mxu0 0.0
        %1869 = vmatprep.subr.mxu0 0.0
        %1870 = vmatpush2.msra.mxu0 0.0
        %1871 = vmatprep.subr.mxu0 0.0
        %1872 = vmatpush2.msra.mxu0 0.0
        %1873 = vmatprep.mubr.f32.mxu0 0.0
        %1874 = vmatmul.mubr.f32.gmra.mxu0 %v1807
        %v1875 = vpop.f32.mrf.mxu0
        %v1876 = vadd.f32 0.0, %v1875
        %v1877 = vpop.f32.mrf.mxu0
        %1878 = vdwg.mxu0
        %1880 = vrot.lane.b32.xlu0 %v1876, 8
        %v1881 = vpop.permute.xlu0 %1880
        %vm1883 = vcmask 130112
        %1884 = vst.msk [vmem:[#allocation2] sm:$0xff] %vm1883, %v1881
        %1885 = vrot.lane.b32.xlu0 %v1119, 112
        %v1886 = vpop.permute.xlu0 %1885
        %1887 = vrot.lane.b32.xlu0 %v1201, 112
        %v1888 = vpop.permute.xlu0 %1887
        %v1889 = vsel %vm1542, %v1886, 0
        %v1891 = vsel %vm1542, %v1888, 0
        %1893 = vmatprep.subr.mxu0 0.0
        %1894 = vmatpush1.xpose.msra.mxu0 0.0
        %1895 = vmatprep.subr.mxu0 0.0
        %1896 = vmatpush1.xpose.msra.mxu0 0.0
        %1897 = vmatprep.subr.mxu0 0.0
        %1898 = vmatpush1.xpose.msra.mxu0 0.0
        %1899 = vmatprep.subr.mxu0 0.0
        %1900 = vmatpush1.xpose.msra.mxu0 0.0
        %1901 = vmatprep.subr.mxu0 0.0
        %1902 = vmatpush1.xpose.msra.mxu0 0.0
        %1903 = vmatprep.subr.mxu0 0.0
        %1904 = vmatpush1.xpose.msra.mxu0 0.0
        %1905 = vmatprep.subr.mxu0 0.0
        %1906 = vmatpush1.xpose.msra.mxu0 0.0
        %1907 = vmatprep.subr.mxu0 0.0
        %1908 = vmatpush1.xpose.msra.mxu0 0.0
        %1909 = vmatprep.subr.mxu0 0.0
        %1910 = vmatpush1.xpose.msra.mxu0 0.0
        %1911 = vmatprep.subr.mxu0 0.0
        %1912 = vmatpush1.xpose.msra.mxu0 0.0
        %1913 = vmatprep.subr.mxu0 0.0
        %1914 = vmatpush1.xpose.msra.mxu0 0.0
        %1915 = vmatprep.subr.mxu0 0.0
        %1916 = vmatpush1.xpose.msra.mxu0 0.0
        %1917 = vmatprep.subr.mxu0 0.0
        %1918 = vmatpush1.xpose.msra.mxu0 0.0
        %1919 = vmatprep.subr.mxu0 0.0
        %1920 = vmatpush1.xpose.msra.mxu0 0.0
        %1921 = vmatprep.subr.mxu0 0.0
        %1922 = vmatpush1.xpose.msra.mxu0 0.0
        %1923 = vmatprep.subr.mxu0 0.0
        %1924 = vmatpush1.xpose.msra.mxu0 %v1891
        %1925 = vmatprep.subr.mxu0 0.0
        %1926 = vmatpush2.xpose.msra.mxu0 0.0
        %1927 = vmatprep.subr.mxu0 0.0
        %1928 = vmatpush2.xpose.msra.mxu0 0.0
        %1929 = vmatprep.subr.mxu0 0.0
        %1930 = vmatpush2.xpose.msra.mxu0 0.0
        %1931 = vmatprep.subr.mxu0 0.0
        %1932 = vmatpush2.xpose.msra.mxu0 0.0
        %1933 = vmatprep.subr.mxu0 0.0
        %1934 = vmatpush2.xpose.msra.mxu0 0.0
        %1935 = vmatprep.subr.mxu0 0.0
        %1936 = vmatpush2.xpose.msra.mxu0 0.0
        %1937 = vmatprep.subr.mxu0 0.0
        %1938 = vmatpush2.xpose.msra.mxu0 0.0
        %1939 = vmatprep.subr.mxu0 0.0
        %1940 = vmatpush2.xpose.msra.mxu0 0.0
        %1941 = vmatprep.subr.mxu0 0.0
        %1942 = vmatpush2.xpose.msra.mxu0 0.0
        %1943 = vmatprep.subr.mxu0 0.0
        %1944 = vmatpush2.xpose.msra.mxu0 0.0
        %1945 = vmatprep.subr.mxu0 0.0
        %1946 = vmatpush2.xpose.msra.mxu0 0.0
        %1947 = vmatprep.subr.mxu0 0.0
        %1948 = vmatpush2.xpose.msra.mxu0 0.0
        %1949 = vmatprep.subr.mxu0 0.0
        %1950 = vmatpush2.xpose.msra.mxu0 0.0
        %1951 = vmatprep.subr.mxu0 0.0
        %1952 = vmatpush2.xpose.msra.mxu0 0.0
        %1953 = vmatprep.subr.mxu0 0.0
        %1954 = vmatpush2.xpose.msra.mxu0 0.0
        %1955 = vmatprep.subr.mxu0 0.0
        %1956 = vmatpush2.xpose.msra.mxu0 0.0
        %1957 = vmatprep.mubr.f32.mxu0 0.0
        %1958 = vmatmul.mubr.f32.gmra.mxu0 %v1889
        %v1959 = vpop.f32.mrf.mxu0
        %v1960 = vadd.f32 %v1540, %v1959
        %v1961 = vpop.f32.mrf.mxu0
        %1962 = vdwg.mxu0
        %s1963 = scalar_lea.vmem %s1017, 16 [#allocation19]
        %1964 = vst.msk [vmem:[%s1963] sm:$0xff] %vm1542, %v1960
        %v1965 = vsel %vm1542, %v1960, -inf
        %1966 = vmax.xlane.f32.xlu0 %v1965
        %v1967 = vpop.xlane.xlu0 %1966
        %v1968 = vsub.f32 %v1960, %v1967
        %v1969 = vmul.f32 %v1968, 1.442695
        %v1970 = vpow.pop %v1969
        %v1971 = vsel %vm1542, %v1970, 0.0
        %1972 = vadd.xlane.f32.xlu0 %v1971
        %v1973 = vpop.xlane.xlu0 %1972
        %v1974 = vrcp.pop %v1973
        %v1975 = vmul.f32 %v1973, %v1974
        %v1976 = vsub.f32 2.0, %v1975
        %v1977 = vmul.f32 %v1974, %v1976
        %v1978 = vmul.f32 %v1970, %v1977
        %1979 = vrot.lane.b32.xlu0 %v1285, 112
        %v1980 = vpop.permute.xlu0 %1979
        %v1983 = vsel %vm1542, %v1978, 0
        %1985 = vmatprep.subr.mxu0 0.0
        %1986 = vmatpush1.msra.mxu0 0.0
        %1987 = vmatprep.subr.mxu0 0.0
        %1988 = vmatpush1.msra.mxu0 0.0
        %1989 = vmatprep.subr.mxu0 0.0
        %1990 = vmatpush1.msra.mxu0 0.0
        %1991 = vmatprep.subr.mxu0 0.0
        %1992 = vmatpush1.msra.mxu0 0.0
        %1993 = vmatprep.subr.mxu0 0.0
        %1994 = vmatpush1.msra.mxu0 0.0
        %1995 = vmatprep.subr.mxu0 0.0
        %1996 = vmatpush1.msra.mxu0 0.0
        %1997 = vmatprep.subr.mxu0 0.0
        %1998 = vmatpush1.msra.mxu0 0.0
        %1999 = vmatprep.subr.mxu0 0.0
        %2000 = vmatpush1.msra.mxu0 0.0
        %2001 = vmatprep.subr.mxu0 0.0
        %2002 = vmatpush1.msra.mxu0 0.0
        %2003 = vmatprep.subr.mxu0 0.0
        %2004 = vmatpush1.msra.mxu0 0.0
        %2005 = vmatprep.subr.mxu0 0.0
        %2006 = vmatpush1.msra.mxu0 0.0
        %2007 = vmatprep.subr.mxu0 0.0
        %2008 = vmatpush1.msra.mxu0 0.0
        %2009 = vmatprep.subr.mxu0 0.0
        %2010 = vmatpush1.msra.mxu0 0.0
        %2011 = vmatprep.subr.mxu0 0.0
        %2012 = vmatpush1.msra.mxu0 0.0
        %2013 = vmatprep.subr.mxu0 0.0
        %2014 = vmatpush1.msra.mxu0 0.0
        %2015 = vmatprep.subr.mxu0 0.0
        %2016 = vmatpush1.msra.mxu0 %v1980
        %2017 = vmatprep.subr.mxu0 0.0
        %2018 = vmatpush2.msra.mxu0 0.0
        %2019 = vmatprep.subr.mxu0 0.0
        %2020 = vmatpush2.msra.mxu0 0.0
        %2021 = vmatprep.subr.mxu0 0.0
        %2022 = vmatpush2.msra.mxu0 0.0
        %2023 = vmatprep.subr.mxu0 0.0
        %2024 = vmatpush2.msra.mxu0 0.0
        %2025 = vmatprep.subr.mxu0 0.0
        %2026 = vmatpush2.msra.mxu0 0.0
        %2027 = vmatprep.subr.mxu0 0.0
        %2028 = vmatpush2.msra.mxu0 0.0
        %2029 = vmatprep.subr.mxu0 0.0
        %2030 = vmatpush2.msra.mxu0 0.0
        %2031 = vmatprep.subr.mxu0 0.0
        %2032 = vmatpush2.msra.mxu0 0.0
        %2033 = vmatprep.subr.mxu0 0.0
        %2034 = vmatpush2.msra.mxu0 0.0
        %2035 = vmatprep.subr.mxu0 0.0
        %2036 = vmatpush2.msra.mxu0 0.0
        %2037 = vmatprep.subr.mxu0 0.0
        %2038 = vmatpush2.msra.mxu0 0.0
        %2039 = vmatprep.subr.mxu0 0.0
        %2040 = vmatpush2.msra.mxu0 0.0
        %2041 = vmatprep.subr.mxu0 0.0
        %2042 = vmatpush2.msra.mxu0 0.0
        %2043 = vmatprep.subr.mxu0 0.0
        %2044 = vmatpush2.msra.mxu0 0.0
        %2045 = vmatprep.subr.mxu0 0.0
        %2046 = vmatpush2.msra.mxu0 0.0
        %2047 = vmatprep.subr.mxu0 0.0
        %2048 = vmatpush2.msra.mxu0 0.0
        %2049 = vmatprep.mubr.f32.mxu0 0.0
        %2050 = vmatmul.mubr.f32.gmra.mxu0 %v1983
        %v2051 = vpop.f32.mrf.mxu0
        %v2052 = vadd.f32 0.0, %v2051
        %v2053 = vpop.f32.mrf.mxu0
        %2054 = vdwg.mxu0
        %2056 = vrot.lane.b32.xlu0 %v2052, 16
        %v2057 = vpop.permute.xlu0 %2056
        %vm2059 = vcmask 195712
        %2060 = vst.msk [vmem:[#allocation2] sm:$0xff] %vm2059, %v2057
        %2061 = vrot.lane.b32.xlu0 %v1119, 104
        %v2062 = vpop.permute.xlu0 %2061
        %2063 = vrot.lane.b32.xlu0 %v1201, 104
        %v2064 = vpop.permute.xlu0 %2063
        %v2065 = vsel %vm1542, %v2062, 0
        %v2067 = vsel %vm1542, %v2064, 0
        %2069 = vmatprep.subr.mxu0 0.0
        %2070 = vmatpush1.xpose.msra.mxu0 0.0
        %2071 = vmatprep.subr.mxu0 0.0
        %2072 = vmatpush1.xpose.msra.mxu0 0.0
        %2073 = vmatprep.subr.mxu0 0.0
        %2074 = vmatpush1.xpose.msra.mxu0 0.0
        %2075 = vmatprep.subr.mxu0 0.0
        %2076 = vmatpush1.xpose.msra.mxu0 0.0
        %2077 = vmatprep.subr.mxu0 0.0
        %2078 = vmatpush1.xpose.msra.mxu0 0.0
        %2079 = vmatprep.subr.mxu0 0.0
        %2080 = vmatpush1.xpose.msra.mxu0 0.0
        %2081 = vmatprep.subr.mxu0 0.0
        %2082 = vmatpush1.xpose.msra.mxu0 0.0
        %2083 = vmatprep.subr.mxu0 0.0
        %2084 = vmatpush1.xpose.msra.mxu0 0.0
        %2085 = vmatprep.subr.mxu0 0.0
        %2086 = vmatpush1.xpose.msra.mxu0 0.0
        %2087 = vmatprep.subr.mxu0 0.0
        %2088 = vmatpush1.xpose.msra.mxu0 0.0
        %2089 = vmatprep.subr.mxu0 0.0
        %2090 = vmatpush1.xpose.msra.mxu0 0.0
        %2091 = vmatprep.subr.mxu0 0.0
        %2092 = vmatpush1.xpose.msra.mxu0 0.0
        %2093 = vmatprep.subr.mxu0 0.0
        %2094 = vmatpush1.xpose.msra.mxu0 0.0
        %2095 = vmatprep.subr.mxu0 0.0
        %2096 = vmatpush1.xpose.msra.mxu0 0.0
        %2097 = vmatprep.subr.mxu0 0.0
        %2098 = vmatpush1.xpose.msra.mxu0 0.0
        %2099 = vmatprep.subr.mxu0 0.0
        %2100 = vmatpush1.xpose.msra.mxu0 %v2067
        %2101 = vmatprep.subr.mxu0 0.0
        %2102 = vmatpush2.xpose.msra.mxu0 0.0
        %2103 = vmatprep.subr.mxu0 0.0
        %2104 = vmatpush2.xpose.msra.mxu0 0.0
        %2105 = vmatprep.subr.mxu0 0.0
        %2106 = vmatpush2.xpose.msra.mxu0 0.0
        %2107 = vmatprep.subr.mxu0 0.0
        %2108 = vmatpush2.xpose.msra.mxu0 0.0
        %2109 = vmatprep.subr.mxu0 0.0
        %2110 = vmatpush2.xpose.msra.mxu0 0.0
        %2111 = vmatprep.subr.mxu0 0.0
        %2112 = vmatpush2.xpose.msra.mxu0 0.0
        %2113 = vmatprep.subr.mxu0 0.0
        %2114 = vmatpush2.xpose.msra.mxu0 0.0
        %2115 = vmatprep.subr.mxu0 0.0
        %2116 = vmatpush2.xpose.msra.mxu0 0.0
        %2117 = vmatprep.subr.mxu0 0.0
        %2118 = vmatpush2.xpose.msra.mxu0 0.0
        %2119 = vmatprep.subr.mxu0 0.0
        %2120 = vmatpush2.xpose.msra.mxu0 0.0
        %2121 = vmatprep.subr.mxu0 0.0
        %2122 = vmatpush2.xpose.msra.mxu0 0.0
        %2123 = vmatprep.subr.mxu0 0.0
        %2124 = vmatpush2.xpose.msra.mxu0 0.0
        %2125 = vmatprep.subr.mxu0 0.0
        %2126 = vmatpush2.xpose.msra.mxu0 0.0
        %2127 = vmatprep.subr.mxu0 0.0
        %2128 = vmatpush2.xpose.msra.mxu0 0.0
        %2129 = vmatprep.subr.mxu0 0.0
        %2130 = vmatpush2.xpose.msra.mxu0 0.0
        %2131 = vmatprep.subr.mxu0 0.0
        %2132 = vmatpush2.xpose.msra.mxu0 0.0
        %2133 = vmatprep.mubr.f32.mxu0 0.0
        %2134 = vmatmul.mubr.f32.gmra.mxu0 %v2065
        %v2135 = vpop.f32.mrf.mxu0
        %v2136 = vadd.f32 %v1540, %v2135
        %v2137 = vpop.f32.mrf.mxu0
        %2138 = vdwg.mxu0
        %s2139 = scalar_lea.vmem %s1017, 24 [#allocation19]
        %2140 = vst.msk [vmem:[%s2139] sm:$0xff] %vm1542, %v2136
        %v2141 = vsel %vm1542, %v2136, -inf
        %2142 = vmax.xlane.f32.xlu0 %v2141
        %v2143 = vpop.xlane.xlu0 %2142
        %v2144 = vsub.f32 %v2136, %v2143
        %v2145 = vmul.f32 %v2144, 1.442695
        %v2146 = vpow.pop %v2145
        %v2147 = vsel %vm1542, %v2146, 0.0
        %2148 = vadd.xlane.f32.xlu0 %v2147
        %v2149 = vpop.xlane.xlu0 %2148
        %v2150 = vrcp.pop %v2149
        %v2151 = vmul.f32 %v2149, %v2150
        %v2152 = vsub.f32 2.0, %v2151
        %v2153 = vmul.f32 %v2150, %v2152
        %v2154 = vmul.f32 %v2146, %v2153
        %2155 = vrot.lane.b32.xlu0 %v1285, 104
        %v2156 = vpop.permute.xlu0 %2155
        %v2159 = vsel %vm1542, %v2154, 0
        %2161 = vmatprep.subr.mxu0 0.0
        %2162 = vmatpush1.msra.mxu0 0.0
        %2163 = vmatprep.subr.mxu0 0.0
        %2164 = vmatpush1.msra.mxu0 0.0
        %2165 = vmatprep.subr.mxu0 0.0
        %2166 = vmatpush1.msra.mxu0 0.0
        %2167 = vmatprep.subr.mxu0 0.0
        %2168 = vmatpush1.msra.mxu0 0.0
        %2169 = vmatprep.subr.mxu0 0.0
        %2170 = vmatpush1.msra.mxu0 0.0
        %2171 = vmatprep.subr.mxu0 0.0
        %2172 = vmatpush1.msra.mxu0 0.0
        %2173 = vmatprep.subr.mxu0 0.0
        %2174 = vmatpush1.msra.mxu0 0.0
        %2175 = vmatprep.subr.mxu0 0.0
        %2176 = vmatpush1.msra.mxu0 0.0
        %2177 = vmatprep.subr.mxu0 0.0
        %2178 = vmatpush1.msra.mxu0 0.0
        %2179 = vmatprep.subr.mxu0 0.0
        %2180 = vmatpush1.msra.mxu0 0.0
        %2181 = vmatprep.subr.mxu0 0.0
        %2182 = vmatpush1.msra.mxu0 0.0
        %2183 = vmatprep.subr.mxu0 0.0
        %2184 = vmatpush1.msra.mxu0 0.0
        %2185 = vmatprep.subr.mxu0 0.0
        %2186 = vmatpush1.msra.mxu0 0.0
        %2187 = vmatprep.subr.mxu0 0.0
        %2188 = vmatpush1.msra.mxu0 0.0
        %2189 = vmatprep.subr.mxu0 0.0
        %2190 = vmatpush1.msra.mxu0 0.0
        %2191 = vmatprep.subr.mxu0 0.0
        %2192 = vmatpush1.msra.mxu0 %v2156
        %2193 = vmatprep.subr.mxu0 0.0
        %2194 = vmatpush2.msra.mxu0 0.0
        %2195 = vmatprep.subr.mxu0 0.0
        %2196 = vmatpush2.msra.mxu0 0.0
        %2197 = vmatprep.subr.mxu0 0.0
        %2198 = vmatpush2.msra.mxu0 0.0
        %2199 = vmatprep.subr.mxu0 0.0
        %2200 = vmatpush2.msra.mxu0 0.0
        %2201 = vmatprep.subr.mxu0 0.0
        %2202 = vmatpush2.msra.mxu0 0.0
        %2203 = vmatprep.subr.mxu0 0.0
        %2204 = vmatpush2.msra.mxu0 0.0
        %2205 = vmatprep.subr.mxu0 0.0
        %2206 = vmatpush2.msra.mxu0 0.0
        %2207 = vmatprep.subr.mxu0 0.0
        %2208 = vmatpush2.msra.mxu0 0.0
        %2209 = vmatprep.subr.mxu0 0.0
        %2210 = vmatpush2.msra.mxu0 0.0
        %2211 = vmatprep.subr.mxu0 0.0
        %2212 = vmatpush2.msra.mxu0 0.0
        %2213 = vmatprep.subr.mxu0 0.0
        %2214 = vmatpush2.msra.mxu0 0.0
        %2215 = vmatprep.subr.mxu0 0.0
        %2216 = vmatpush2.msra.mxu0 0.0
        %2217 = vmatprep.subr.mxu0 0.0
        %2218 = vmatpush2.msra.mxu0 0.0
        %2219 = vmatprep.subr.mxu0 0.0
        %2220 = vmatpush2.msra.mxu0 0.0
        %2221 = vmatprep.subr.mxu0 0.0
        %2222 = vmatpush2.msra.mxu0 0.0
        %2223 = vmatprep.subr.mxu0 0.0
        %2224 = vmatpush2.msra.mxu0 0.0
        %2225 = vmatprep.mubr.f32.mxu0 0.0
        %2226 = vmatmul.mubr.f32.gmra.mxu0 %v2159
        %v2227 = vpop.f32.mrf.mxu0
        %v2228 = vadd.f32 0.0, %v2227
        %v2229 = vpop.f32.mrf.mxu0
        %2230 = vdwg.mxu0
        %2232 = vrot.lane.b32.xlu0 %v2228, 24
        %v2233 = vpop.permute.xlu0 %2232
        %vm2235 = vcmask 261312
        %2236 = vst.msk [vmem:[#allocation2] sm:$0xff] %vm2235, %v2233
        %v2237 = vld [vmem:[%s909] sm:$0x1]
        %v2239 = vlaneseq
        %v2240 = vshrl.u32 %v2239, 7
        %v2241 = vsub.s32 0, %v2240
        %v2242 = vrot.slane %v2237, %v2241
        %vm2244 = vcmask 31744
        %v2246 = vsel %vm2244, %v1369, 0
        %v2249 = vsel %vm2244, %v1450, 0
        %2251 = vmatprep.subr.mxu0 0.0
        %2252 = vmatpush1.xpose.msra.mxu0 0.0
        %2253 = vmatprep.subr.mxu0 0.0
        %2254 = vmatpush1.xpose.msra.mxu0 0.0
        %2255 = vmatprep.subr.mxu0 0.0
        %2256 = vmatpush1.xpose.msra.mxu0 0.0
        %2257 = vmatprep.subr.mxu0 0.0
        %2258 = vmatpush1.xpose.msra.mxu0 0.0
        %2259 = vmatprep.subr.mxu0 0.0
        %2260 = vmatpush1.xpose.msra.mxu0 0.0
        %2261 = vmatprep.subr.mxu0 0.0
        %2262 = vmatpush1.xpose.msra.mxu0 0.0
        %2263 = vmatprep.subr.mxu0 0.0
        %2264 = vmatpush1.xpose.msra.mxu0 0.0
        %2265 = vmatprep.subr.mxu0 0.0
        %2266 = vmatpush1.xpose.msra.mxu0 0.0
        %2267 = vmatprep.subr.mxu0 0.0
        %2268 = vmatpush1.xpose.msra.mxu0 0.0
        %2269 = vmatprep.subr.mxu0 0.0
        %2270 = vmatpush1.xpose.msra.mxu0 0.0
        %2271 = vmatprep.subr.mxu0 0.0
        %2272 = vmatpush1.xpose.msra.mxu0 0.0
        %2273 = vmatprep.subr.mxu0 0.0
        %2274 = vmatpush1.xpose.msra.mxu0 0.0
        %2275 = vmatprep.subr.mxu0 0.0
        %2276 = vmatpush1.xpose.msra.mxu0 0.0
        %2277 = vmatprep.subr.mxu0 0.0
        %2278 = vmatpush1.xpose.msra.mxu0 0.0
        %2279 = vmatprep.subr.mxu0 0.0
        %2280 = vmatpush1.xpose.msra.mxu0 0.0
        %2281 = vmatprep.subr.mxu0 0.0
        %2282 = vmatpush1.xpose.msra.mxu0 %v2249
        %2283 = vmatprep.subr.mxu0 0.0
        %2284 = vmatpush2.xpose.msra.mxu0 0.0
        %2285 = vmatprep.subr.mxu0 0.0
        %2286 = vmatpush2.xpose.msra.mxu0 0.0
        %2287 = vmatprep.subr.mxu0 0.0
        %2288 = vmatpush2.xpose.msra.mxu0 0.0
        %2289 = vmatprep.subr.mxu0 0.0
        %2290 = vmatpush2.xpose.msra.mxu0 0.0
        %2291 = vmatprep.subr.mxu0 0.0
        %2292 = vmatpush2.xpose.msra.mxu0 0.0
        %2293 = vmatprep.subr.mxu0 0.0
        %2294 = vmatpush2.xpose.msra.mxu0 0.0
        %2295 = vmatprep.subr.mxu0 0.0
        %2296 = vmatpush2.xpose.msra.mxu0 0.0
        %2297 = vmatprep.subr.mxu0 0.0
        %2298 = vmatpush2.xpose.msra.mxu0 0.0
        %2299 = vmatprep.subr.mxu0 0.0
        %2300 = vmatpush2.xpose.msra.mxu0 0.0
        %2301 = vmatprep.subr.mxu0 0.0
        %2302 = vmatpush2.xpose.msra.mxu0 0.0
        %2303 = vmatprep.subr.mxu0 0.0
        %2304 = vmatpush2.xpose.msra.mxu0 0.0
        %2305 = vmatprep.subr.mxu0 0.0
        %2306 = vmatpush2.xpose.msra.mxu0 0.0
        %2307 = vmatprep.subr.mxu0 0.0
        %2308 = vmatpush2.xpose.msra.mxu0 0.0
        %2309 = vmatprep.subr.mxu0 0.0
        %2310 = vmatpush2.xpose.msra.mxu0 0.0
        %2311 = vmatprep.subr.mxu0 0.0
        %2312 = vmatpush2.xpose.msra.mxu0 0.0
        %2313 = vmatprep.subr.mxu0 0.0
        %2314 = vmatpush2.xpose.msra.mxu0 0.0
        %2315 = vmatprep.mubr.f32.mxu0 0.0
        %2316 = vmatmul.mubr.f32.gmra.mxu0 %v2246
        %v2317 = vpop.f32.mrf.mxu0
        %v2318 = vadd.f32 %v2242, %v2317
        %v2319 = vpop.f32.mrf.mxu0
        %2320 = vdwg.mxu0
        %2321 = vst.msk [vmem:[%s1024] sm:$0xff] %vm1542, %v2318
        %v2322 = vsel %vm1542, %v2318, -inf
        %2323 = vmax.xlane.f32.xlu0 %v2322
        %v2324 = vpop.xlane.xlu0 %2323
        %v2325 = vsub.f32 %v2318, %v2324
        %v2326 = vmul.f32 %v2325, 1.442695
        %v2327 = vpow.pop %v2326
        %v2328 = vsel %vm1542, %v2327, 0.0
        %2329 = vadd.xlane.f32.xlu0 %v2328
        %v2330 = vpop.xlane.xlu0 %2329
        %v2331 = vrcp.pop %v2330
        %v2332 = vmul.f32 %v2330, %v2331
        %v2333 = vsub.f32 2.0, %v2332
        %v2334 = vmul.f32 %v2331, %v2333
        %v2335 = vmul.f32 %v2327, %v2334
        %v2337 = vsel %vm1542, %v2335, 0
        %2339 = vmatprep.subr.mxu0 0.0
        %2340 = vmatpush1.msra.mxu0 0.0
        %2341 = vmatprep.subr.mxu0 0.0
        %2342 = vmatpush1.msra.mxu0 0.0
        %2343 = vmatprep.subr.mxu0 0.0
        %2344 = vmatpush1.msra.mxu0 0.0
        %2345 = vmatprep.subr.mxu0 0.0
        %2346 = vmatpush1.msra.mxu0 0.0
        %2347 = vmatprep.subr.mxu0 0.0
        %2348 = vmatpush1.msra.mxu0 0.0
        %2349 = vmatprep.subr.mxu0 0.0
        %2350 = vmatpush1.msra.mxu0 0.0
        %2351 = vmatprep.subr.mxu0 0.0
        %2352 = vmatpush1.msra.mxu0 0.0
        %2353 = vmatprep.subr.mxu0 0.0
        %2354 = vmatpush1.msra.mxu0 0.0
        %2355 = vmatprep.subr.mxu0 0.0
        %2356 = vmatpush1.msra.mxu0 0.0
        %2357 = vmatprep.subr.mxu0 0.0
        %2358 = vmatpush1.msra.mxu0 0.0
        %2359 = vmatprep.subr.mxu0 0.0
        %2360 = vmatpush1.msra.mxu0 0.0
        %2361 = vmatprep.subr.mxu0 0.0
        %2362 = vmatpush1.msra.mxu0 0.0
        %2363 = vmatprep.subr.mxu0 0.0
        %2364 = vmatpush1.msra.mxu0 0.0
        %2365 = vmatprep.subr.mxu0 0.0
        %2366 = vmatpush1.msra.mxu0 0.0
        %2367 = vmatprep.subr.mxu0 0.0
        %2368 = vmatpush1.msra.mxu0 0.0
        %2369 = vmatprep.subr.mxu0 0.0
        %2370 = vmatpush1.msra.mxu0 %v1532
        %2371 = vmatprep.subr.mxu0 0.0
        %2372 = vmatpush2.msra.mxu0 0.0
        %2373 = vmatprep.subr.mxu0 0.0
        %2374 = vmatpush2.msra.mxu0 0.0
        %2375 = vmatprep.subr.mxu0 0.0
        %2376 = vmatpush2.msra.mxu0 0.0
        %2377 = vmatprep.subr.mxu0 0.0
        %2378 = vmatpush2.msra.mxu0 0.0
        %2379 = vmatprep.subr.mxu0 0.0
        %2380 = vmatpush2.msra.mxu0 0.0
        %2381 = vmatprep.subr.mxu0 0.0
        %2382 = vmatpush2.msra.mxu0 0.0
        %2383 = vmatprep.subr.mxu0 0.0
        %2384 = vmatpush2.msra.mxu0 0.0
        %2385 = vmatprep.subr.mxu0 0.0
        %2386 = vmatpush2.msra.mxu0 0.0
        %2387 = vmatprep.subr.mxu0 0.0
        %2388 = vmatpush2.msra.mxu0 0.0
        %2389 = vmatprep.subr.mxu0 0.0
        %2390 = vmatpush2.msra.mxu0 0.0
        %2391 = vmatprep.subr.mxu0 0.0
        %2392 = vmatpush2.msra.mxu0 0.0
        %2393 = vmatprep.subr.mxu0 0.0
        %2394 = vmatpush2.msra.mxu0 0.0
        %2395 = vmatprep.subr.mxu0 0.0
        %2396 = vmatpush2.msra.mxu0 0.0
        %2397 = vmatprep.subr.mxu0 0.0
        %2398 = vmatpush2.msra.mxu0 0.0
        %2399 = vmatprep.subr.mxu0 0.0
        %2400 = vmatpush2.msra.mxu0 0.0
        %2401 = vmatprep.subr.mxu0 0.0
        %2402 = vmatpush2.msra.mxu0 0.0
        %2403 = vmatprep.mubr.f32.mxu0 0.0
        %2404 = vmatmul.mubr.f32.gmra.mxu0 %v2337
        %v2405 = vpop.f32.mrf.mxu0
        %v2406 = vadd.f32 0.0, %v2405
        %v2407 = vpop.f32.mrf.mxu0
        %2408 = vdwg.mxu0
        %2410 = vrot.lane.b32.xlu0 %v2406, 32
        %v2411 = vpop.permute.xlu0 %2410
        %vm2413 = vcmask 294144
        %2414 = vst.msk [vmem:[#allocation2] sm:$0xff] %vm2413, %v2411
        %2415 = vrot.lane.b32.xlu0 %v1369, 124
        %v2416 = vpop.permute.xlu0 %2415
        %2417 = vrot.lane.b32.xlu0 %v1450, 124
        %v2418 = vpop.permute.xlu0 %2417
        %v2419 = vsel %vm2244, %v2416, 0
        %v2421 = vsel %vm2244, %v2418, 0
        %2423 = vmatprep.subr.mxu0 0.0
        %2424 = vmatpush1.xpose.msra.mxu0 0.0
        %2425 = vmatprep.subr.mxu0 0.0
        %2426 = vmatpush1.xpose.msra.mxu0 0.0
        %2427 = vmatprep.subr.mxu0 0.0
        %2428 = vmatpush1.xpose.msra.mxu0 0.0
        %2429 = vmatprep.subr.mxu0 0.0
        %2430 = vmatpush1.xpose.msra.mxu0 0.0
        %2431 = vmatprep.subr.mxu0 0.0
        %2432 = vmatpush1.xpose.msra.mxu0 0.0
        %2433 = vmatprep.subr.mxu0 0.0
        %2434 = vmatpush1.xpose.msra.mxu0 0.0
        %2435 = vmatprep.subr.mxu0 0.0
        %2436 = vmatpush1.xpose.msra.mxu0 0.0
        %2437 = vmatprep.subr.mxu0 0.0
        %2438 = vmatpush1.xpose.msra.mxu0 0.0
        %2439 = vmatprep.subr.mxu0 0.0
        %2440 = vmatpush1.xpose.msra.mxu0 0.0
        %2441 = vmatprep.subr.mxu0 0.0
        %2442 = vmatpush1.xpose.msra.mxu0 0.0
        %2443 = vmatprep.subr.mxu0 0.0
        %2444 = vmatpush1.xpose.msra.mxu0 0.0
        %2445 = vmatprep.subr.mxu0 0.0
        %2446 = vmatpush1.xpose.msra.mxu0 0.0
        %2447 = vmatprep.subr.mxu0 0.0
        %2448 = vmatpush1.xpose.msra.mxu0 0.0
        %2449 = vmatprep.subr.mxu0 0.0
        %2450 = vmatpush1.xpose.msra.mxu0 0.0
        %2451 = vmatprep.subr.mxu0 0.0
        %2452 = vmatpush1.xpose.msra.mxu0 0.0
        %2453 = vmatprep.subr.mxu0 0.0
        %2454 = vmatpush1.xpose.msra.mxu0 %v2421
        %2455 = vmatprep.subr.mxu0 0.0
        %2456 = vmatpush2.xpose.msra.mxu0 0.0
        %2457 = vmatprep.subr.mxu0 0.0
        %2458 = vmatpush2.xpose.msra.mxu0 0.0
        %2459 = vmatprep.subr.mxu0 0.0
        %2460 = vmatpush2.xpose.msra.mxu0 0.0
        %2461 = vmatprep.subr.mxu0 0.0
        %2462 = vmatpush2.xpose.msra.mxu0 0.0
        %2463 = vmatprep.subr.mxu0 0.0
        %2464 = vmatpush2.xpose.msra.mxu0 0.0
        %2465 = vmatprep.subr.mxu0 0.0
        %2466 = vmatpush2.xpose.msra.mxu0 0.0
        %2467 = vmatprep.subr.mxu0 0.0
        %2468 = vmatpush2.xpose.msra.mxu0 0.0
        %2469 = vmatprep.subr.mxu0 0.0
        %2470 = vmatpush2.xpose.msra.mxu0 0.0
        %2471 = vmatprep.subr.mxu0 0.0
        %2472 = vmatpush2.xpose.msra.mxu0 0.0
        %2473 = vmatprep.subr.mxu0 0.0
        %2474 = vmatpush2.xpose.msra.mxu0 0.0
        %2475 = vmatprep.subr.mxu0 0.0
        %2476 = vmatpush2.xpose.msra.mxu0 0.0
        %2477 = vmatprep.subr.mxu0 0.0
        %2478 = vmatpush2.xpose.msra.mxu0 0.0
        %2479 = vmatprep.subr.mxu0 0.0
        %2480 = vmatpush2.xpose.msra.mxu0 0.0
        %2481 = vmatprep.subr.mxu0 0.0
        %2482 = vmatpush2.xpose.msra.mxu0 0.0
        %2483 = vmatprep.subr.mxu0 0.0
        %2484 = vmatpush2.xpose.msra.mxu0 0.0
        %2485 = vmatprep.subr.mxu0 0.0
        %2486 = vmatpush2.xpose.msra.mxu0 0.0
        %2487 = vmatprep.mubr.f32.mxu0 0.0
        %2488 = vmatmul.mubr.f32.gmra.mxu0 %v2419
        %v2489 = vpop.f32.mrf.mxu0
        %v2490 = vadd.f32 %v2242, %v2489
        %v2491 = vpop.f32.mrf.mxu0
        %2492 = vdwg.mxu0
        %s2493 = scalar_lea.vmem %s1024, 8 [#allocation21]
        %2494 = vst.msk [vmem:[%s2493] sm:$0xff] %vm1542, %v2490
        %v2495 = vsel %vm1542, %v2490, -inf
        %2496 = vmax.xlane.f32.xlu0 %v2495
        %v2497 = vpop.xlane.xlu0 %2496
        %v2498 = vsub.f32 %v2490, %v2497
        %v2499 = vmul.f32 %v2498, 1.442695
        %v2500 = vpow.pop %v2499
        %v2501 = vsel %vm1542, %v2500, 0.0
        %2502 = vadd.xlane.f32.xlu0 %v2501
        %v2503 = vpop.xlane.xlu0 %2502
        %v2504 = vrcp.pop %v2503
        %v2505 = vmul.f32 %v2503, %v2504
        %v2506 = vsub.f32 2.0, %v2505
        %v2507 = vmul.f32 %v2504, %v2506
        %v2508 = vmul.f32 %v2500, %v2507
        %2510 = vrot.lane.b32.xlu0 %v1532, 124
        %v2511 = vpop.permute.xlu0 %2510
        %v2514 = vsel %vm1542, %v2508, 0
        %2516 = vmatprep.subr.mxu0 0.0
        %2517 = vmatpush1.msra.mxu0 0.0
        %2518 = vmatprep.subr.mxu0 0.0
        %2519 = vmatpush1.msra.mxu0 0.0
        %2520 = vmatprep.subr.mxu0 0.0
        %2521 = vmatpush1.msra.mxu0 0.0
        %2522 = vmatprep.subr.mxu0 0.0
        %2523 = vmatpush1.msra.mxu0 0.0
        %2524 = vmatprep.subr.mxu0 0.0
        %2525 = vmatpush1.msra.mxu0 0.0
        %2526 = vmatprep.subr.mxu0 0.0
        %2527 = vmatpush1.msra.mxu0 0.0
        %2528 = vmatprep.subr.mxu0 0.0
        %2529 = vmatpush1.msra.mxu0 0.0
        %2530 = vmatprep.subr.mxu0 0.0
        %2531 = vmatpush1.msra.mxu0 0.0
        %2532 = vmatprep.subr.mxu0 0.0
        %2533 = vmatpush1.msra.mxu0 0.0
        %2534 = vmatprep.subr.mxu0 0.0
        %2535 = vmatpush1.msra.mxu0 0.0
        %2536 = vmatprep.subr.mxu0 0.0
        %2537 = vmatpush1.msra.mxu0 0.0
        %2538 = vmatprep.subr.mxu0 0.0
        %2539 = vmatpush1.msra.mxu0 0.0
        %2540 = vmatprep.subr.mxu0 0.0
        %2541 = vmatpush1.msra.mxu0 0.0
        %2542 = vmatprep.subr.mxu0 0.0
        %2543 = vmatpush1.msra.mxu0 0.0
        %2544 = vmatprep.subr.mxu0 0.0
        %2545 = vmatpush1.msra.mxu0 0.0
        %2546 = vmatprep.subr.mxu0 0.0
        %2547 = vmatpush1.msra.mxu0 %v2511
        %2548 = vmatprep.subr.mxu0 0.0
        %2549 = vmatpush2.msra.mxu0 0.0
        %2550 = vmatprep.subr.mxu0 0.0
        %2551 = vmatpush2.msra.mxu0 0.0
        %2552 = vmatprep.subr.mxu0 0.0
        %2553 = vmatpush2.msra.mxu0 0.0
        %2554 = vmatprep.subr.mxu0 0.0
        %2555 = vmatpush2.msra.mxu0 0.0
        %2556 = vmatprep.subr.mxu0 0.0
        %2557 = vmatpush2.msra.mxu0 0.0
        %2558 = vmatprep.subr.mxu0 0.0
        %2559 = vmatpush2.msra.mxu0 0.0
        %2560 = vmatprep.subr.mxu0 0.0
        %2561 = vmatpush2.msra.mxu0 0.0
        %2562 = vmatprep.subr.mxu0 0.0
        %2563 = vmatpush2.msra.mxu0 0.0
        %2564 = vmatprep.subr.mxu0 0.0
        %2565 = vmatpush2.msra.mxu0 0.0
        %2566 = vmatprep.subr.mxu0 0.0
        %2567 = vmatpush2.msra.mxu0 0.0
        %2568 = vmatprep.subr.mxu0 0.0
        %2569 = vmatpush2.msra.mxu0 0.0
        %2570 = vmatprep.subr.mxu0 0.0
        %2571 = vmatpush2.msra.mxu0 0.0
        %2572 = vmatprep.subr.mxu0 0.0
        %2573 = vmatpush2.msra.mxu0 0.0
        %2574 = vmatprep.subr.mxu0 0.0
        %2575 = vmatpush2.msra.mxu0 0.0
        %2576 = vmatprep.subr.mxu0 0.0
        %2577 = vmatpush2.msra.mxu0 0.0
        %2578 = vmatprep.subr.mxu0 0.0
        %2579 = vmatpush2.msra.mxu0 0.0
        %2580 = vmatprep.mubr.f32.mxu0 0.0
        %2581 = vmatmul.mubr.f32.gmra.mxu0 %v2514
        %v2582 = vpop.f32.mrf.mxu0
        %v2583 = vadd.f32 0.0, %v2582
        %v2584 = vpop.f32.mrf.mxu0
        %2585 = vdwg.mxu0
        %2587 = vrot.lane.b32.xlu0 %v2583, 36
        %v2588 = vpop.permute.xlu0 %2587
        %vm2590 = vcmask 326944
        %2591 = vst.msk [vmem:[#allocation2] sm:$0xff] %vm2590, %v2588
        %2592 = vrot.lane.b32.xlu0 %v1369, 120
        %v2593 = vpop.permute.xlu0 %2592
        %2594 = vrot.lane.b32.xlu0 %v1450, 120
        %v2595 = vpop.permute.xlu0 %2594
        %v2596 = vsel %vm2244, %v2593, 0
        %v2598 = vsel %vm2244, %v2595, 0
        %2600 = vmatprep.subr.mxu0 0.0
        %2601 = vmatpush1.xpose.msra.mxu0 0.0
        %2602 = vmatprep.subr.mxu0 0.0
        %2603 = vmatpush1.xpose.msra.mxu0 0.0
        %2604 = vmatprep.subr.mxu0 0.0
        %2605 = vmatpush1.xpose.msra.mxu0 0.0
        %2606 = vmatprep.subr.mxu0 0.0
        %2607 = vmatpush1.xpose.msra.mxu0 0.0
        %2608 = vmatprep.subr.mxu0 0.0
        %2609 = vmatpush1.xpose.msra.mxu0 0.0
        %2610 = vmatprep.subr.mxu0 0.0
        %2611 = vmatpush1.xpose.msra.mxu0 0.0
        %2612 = vmatprep.subr.mxu0 0.0
        %2613 = vmatpush1.xpose.msra.mxu0 0.0
        %2614 = vmatprep.subr.mxu0 0.0
        %2615 = vmatpush1.xpose.msra.mxu0 0.0
        %2616 = vmatprep.subr.mxu0 0.0
        %2617 = vmatpush1.xpose.msra.mxu0 0.0
        %2618 = vmatprep.subr.mxu0 0.0
        %2619 = vmatpush1.xpose.msra.mxu0 0.0
        %2620 = vmatprep.subr.mxu0 0.0
        %2621 = vmatpush1.xpose.msra.mxu0 0.0
        %2622 = vmatprep.subr.mxu0 0.0
        %2623 = vmatpush1.xpose.msra.mxu0 0.0
        %2624 = vmatprep.subr.mxu0 0.0
        %2625 = vmatpush1.xpose.msra.mxu0 0.0
        %2626 = vmatprep.subr.mxu0 0.0
        %2627 = vmatpush1.xpose.msra.mxu0 0.0
        %2628 = vmatprep.subr.mxu0 0.0
        %2629 = vmatpush1.xpose.msra.mxu0 0.0
        %2630 = vmatprep.subr.mxu0 0.0
        %2631 = vmatpush1.xpose.msra.mxu0 %v2598
        %2632 = vmatprep.subr.mxu0 0.0
        %2633 = vmatpush2.xpose.msra.mxu0 0.0
        %2634 = vmatprep.subr.mxu0 0.0
        %2635 = vmatpush2.xpose.msra.mxu0 0.0
        %2636 = vmatprep.subr.mxu0 0.0
        %2637 = vmatpush2.xpose.msra.mxu0 0.0
        %2638 = vmatprep.subr.mxu0 0.0
        %2639 = vmatpush2.xpose.msra.mxu0 0.0
        %2640 = vmatprep.subr.mxu0 0.0
        %2641 = vmatpush2.xpose.msra.mxu0 0.0
        %2642 = vmatprep.subr.mxu0 0.0
        %2643 = vmatpush2.xpose.msra.mxu0 0.0
        %2644 = vmatprep.subr.mxu0 0.0
        %2645 = vmatpush2.xpose.msra.mxu0 0.0
        %2646 = vmatprep.subr.mxu0 0.0
        %2647 = vmatpush2.xpose.msra.mxu0 0.0
        %2648 = vmatprep.subr.mxu0 0.0
        %2649 = vmatpush2.xpose.msra.mxu0 0.0
        %2650 = vmatprep.subr.mxu0 0.0
        %2651 = vmatpush2.xpose.msra.mxu0 0.0
        %2652 = vmatprep.subr.mxu0 0.0
        %2653 = vmatpush2.xpose.msra.mxu0 0.0
        %2654 = vmatprep.subr.mxu0 0.0
        %2655 = vmatpush2.xpose.msra.mxu0 0.0
        %2656 = vmatprep.subr.mxu0 0.0
        %2657 = vmatpush2.xpose.msra.mxu0 0.0
        %2658 = vmatprep.subr.mxu0 0.0
        %2659 = vmatpush2.xpose.msra.mxu0 0.0
        %2660 = vmatprep.subr.mxu0 0.0
        %2661 = vmatpush2.xpose.msra.mxu0 0.0
        %2662 = vmatprep.subr.mxu0 0.0
        %2663 = vmatpush2.xpose.msra.mxu0 0.0
        %2664 = vmatprep.mubr.f32.mxu0 0.0
        %2665 = vmatmul.mubr.f32.gmra.mxu0 %v2596
        %v2666 = vpop.f32.mrf.mxu0
        %v2667 = vadd.f32 %v2242, %v2666
        %v2668 = vpop.f32.mrf.mxu0
        %2669 = vdwg.mxu0
        %s2670 = scalar_lea.vmem %s1024, 16 [#allocation21]
        %2671 = vst.msk [vmem:[%s2670] sm:$0xff] %vm1542, %v2667
        %v2672 = vsel %vm1542, %v2667, -inf
        %2673 = vmax.xlane.f32.xlu0 %v2672
        %v2674 = vpop.xlane.xlu0 %2673
        %v2675 = vsub.f32 %v2667, %v2674
        %v2676 = vmul.f32 %v2675, 1.442695
        %v2677 = vpow.pop %v2676
        %v2678 = vsel %vm1542, %v2677, 0.0
        %2679 = vadd.xlane.f32.xlu0 %v2678
        %v2680 = vpop.xlane.xlu0 %2679
        %v2681 = vrcp.pop %v2680
        %v2682 = vmul.f32 %v2680, %v2681
        %v2683 = vsub.f32 2.0, %v2682
        %v2684 = vmul.f32 %v2681, %v2683
        %v2685 = vmul.f32 %v2677, %v2684
        %2686 = vrot.lane.b32.xlu0 %v1532, 120
        %v2687 = vpop.permute.xlu0 %2686
        %v2690 = vsel %vm1542, %v2685, 0
        %2692 = vmatprep.subr.mxu0 0.0
        %2693 = vmatpush1.msra.mxu0 0.0
        %2694 = vmatprep.subr.mxu0 0.0
        %2695 = vmatpush1.msra.mxu0 0.0
        %2696 = vmatprep.subr.mxu0 0.0
        %2697 = vmatpush1.msra.mxu0 0.0
        %2698 = vmatprep.subr.mxu0 0.0
        %2699 = vmatpush1.msra.mxu0 0.0
        %2700 = vmatprep.subr.mxu0 0.0
        %2701 = vmatpush1.msra.mxu0 0.0
        %2702 = vmatprep.subr.mxu0 0.0
        %2703 = vmatpush1.msra.mxu0 0.0
        %2704 = vmatprep.subr.mxu0 0.0
        %2705 = vmatpush1.msra.mxu0 0.0
        %2706 = vmatprep.subr.mxu0 0.0
        %2707 = vmatpush1.msra.mxu0 0.0
        %2708 = vmatprep.subr.mxu0 0.0
        %2709 = vmatpush1.msra.mxu0 0.0
        %2710 = vmatprep.subr.mxu0 0.0
        %2711 = vmatpush1.msra.mxu0 0.0
        %2712 = vmatprep.subr.mxu0 0.0
        %2713 = vmatpush1.msra.mxu0 0.0
        %2714 = vmatprep.subr.mxu0 0.0
        %2715 = vmatpush1.msra.mxu0 0.0
        %2716 = vmatprep.subr.mxu0 0.0
        %2717 = vmatpush1.msra.mxu0 0.0
        %2718 = vmatprep.subr.mxu0 0.0
        %2719 = vmatpush1.msra.mxu0 0.0
        %2720 = vmatprep.subr.mxu0 0.0
        %2721 = vmatpush1.msra.mxu0 0.0
        %2722 = vmatprep.subr.mxu0 0.0
        %2723 = vmatpush1.msra.mxu0 %v2687
        %2724 = vmatprep.subr.mxu0 0.0
        %2725 = vmatpush2.msra.mxu0 0.0
        %2726 = vmatprep.subr.mxu0 0.0
        %2727 = vmatpush2.msra.mxu0 0.0
        %2728 = vmatprep.subr.mxu0 0.0
        %2729 = vmatpush2.msra.mxu0 0.0
        %2730 = vmatprep.subr.mxu0 0.0
        %2731 = vmatpush2.msra.mxu0 0.0
        %2732 = vmatprep.subr.mxu0 0.0
        %2733 = vmatpush2.msra.mxu0 0.0
        %2734 = vmatprep.subr.mxu0 0.0
        %2735 = vmatpush2.msra.mxu0 0.0
        %2736 = vmatprep.subr.mxu0 0.0
        %2737 = vmatpush2.msra.mxu0 0.0
        %2738 = vmatprep.subr.mxu0 0.0
        %2739 = vmatpush2.msra.mxu0 0.0
        %2740 = vmatprep.subr.mxu0 0.0
        %2741 = vmatpush2.msra.mxu0 0.0
        %2742 = vmatprep.subr.mxu0 0.0
        %2743 = vmatpush2.msra.mxu0 0.0
        %2744 = vmatprep.subr.mxu0 0.0
        %2745 = vmatpush2.msra.mxu0 0.0
        %2746 = vmatprep.subr.mxu0 0.0
        %2747 = vmatpush2.msra.mxu0 0.0
        %2748 = vmatprep.subr.mxu0 0.0
        %2749 = vmatpush2.msra.mxu0 0.0
        %2750 = vmatprep.subr.mxu0 0.0
        %2751 = vmatpush2.msra.mxu0 0.0
        %2752 = vmatprep.subr.mxu0 0.0
        %2753 = vmatpush2.msra.mxu0 0.0
        %2754 = vmatprep.subr.mxu0 0.0
        %2755 = vmatpush2.msra.mxu0 0.0
        %2756 = vmatprep.mubr.f32.mxu0 0.0
        %2757 = vmatmul.mubr.f32.gmra.mxu0 %v2690
        %v2758 = vpop.f32.mrf.mxu0
        %v2759 = vadd.f32 0.0, %v2758
        %v2760 = vpop.f32.mrf.mxu0
        %2761 = vdwg.mxu0
        %2763 = vrot.lane.b32.xlu0 %v2759, 40
        %v2764 = vpop.permute.xlu0 %2763
        %vm2766 = vcmask 359744
        %2767 = vst.msk [vmem:[#allocation2] sm:$0xff] %vm2766, %v2764
        %2768 = vrot.lane.b32.xlu0 %v1369, 116
        %v2769 = vpop.permute.xlu0 %2768
        %2770 = vrot.lane.b32.xlu0 %v1450, 116
        %v2771 = vpop.permute.xlu0 %2770
        %v2772 = vsel %vm2244, %v2769, 0
        %v2774 = vsel %vm2244, %v2771, 0
        %2776 = vmatprep.subr.mxu0 0.0
        %2777 = vmatpush1.xpose.msra.mxu0 0.0
        %2778 = vmatprep.subr.mxu0 0.0
        %2779 = vmatpush1.xpose.msra.mxu0 0.0
        %2780 = vmatprep.subr.mxu0 0.0
        %2781 = vmatpush1.xpose.msra.mxu0 0.0
        %2782 = vmatprep.subr.mxu0 0.0
        %2783 = vmatpush1.xpose.msra.mxu0 0.0
        %2784 = vmatprep.subr.mxu0 0.0
        %2785 = vmatpush1.xpose.msra.mxu0 0.0
        %2786 = vmatprep.subr.mxu0 0.0
        %2787 = vmatpush1.xpose.msra.mxu0 0.0
        %2788 = vmatprep.subr.mxu0 0.0
        %2789 = vmatpush1.xpose.msra.mxu0 0.0
        %2790 = vmatprep.subr.mxu0 0.0
        %2791 = vmatpush1.xpose.msra.mxu0 0.0
        %2792 = vmatprep.subr.mxu0 0.0
        %2793 = vmatpush1.xpose.msra.mxu0 0.0
        %2794 = vmatprep.subr.mxu0 0.0
        %2795 = vmatpush1.xpose.msra.mxu0 0.0
        %2796 = vmatprep.subr.mxu0 0.0
        %2797 = vmatpush1.xpose.msra.mxu0 0.0
        %2798 = vmatprep.subr.mxu0 0.0
        %2799 = vmatpush1.xpose.msra.mxu0 0.0
        %2800 = vmatprep.subr.mxu0 0.0
        %2801 = vmatpush1.xpose.msra.mxu0 0.0
        %2802 = vmatprep.subr.mxu0 0.0
        %2803 = vmatpush1.xpose.msra.mxu0 0.0
        %2804 = vmatprep.subr.mxu0 0.0
        %2805 = vmatpush1.xpose.msra.mxu0 0.0
        %2806 = vmatprep.subr.mxu0 0.0
        %2807 = vmatpush1.xpose.msra.mxu0 %v2774
        %2808 = vmatprep.subr.mxu0 0.0
        %2809 = vmatpush2.xpose.msra.mxu0 0.0
        %2810 = vmatprep.subr.mxu0 0.0
        %2811 = vmatpush2.xpose.msra.mxu0 0.0
        %2812 = vmatprep.subr.mxu0 0.0
        %2813 = vmatpush2.xpose.msra.mxu0 0.0
        %2814 = vmatprep.subr.mxu0 0.0
        %2815 = vmatpush2.xpose.msra.mxu0 0.0
        %2816 = vmatprep.subr.mxu0 0.0
        %2817 = vmatpush2.xpose.msra.mxu0 0.0
        %2818 = vmatprep.subr.mxu0 0.0
        %2819 = vmatpush2.xpose.msra.mxu0 0.0
        %2820 = vmatprep.subr.mxu0 0.0
        %2821 = vmatpush2.xpose.msra.mxu0 0.0
        %2822 = vmatprep.subr.mxu0 0.0
        %2823 = vmatpush2.xpose.msra.mxu0 0.0
        %2824 = vmatprep.subr.mxu0 0.0
        %2825 = vmatpush2.xpose.msra.mxu0 0.0
        %2826 = vmatprep.subr.mxu0 0.0
        %2827 = vmatpush2.xpose.msra.mxu0 0.0
        %2828 = vmatprep.subr.mxu0 0.0
        %2829 = vmatpush2.xpose.msra.mxu0 0.0
        %2830 = vmatprep.subr.mxu0 0.0
        %2831 = vmatpush2.xpose.msra.mxu0 0.0
        %2832 = vmatprep.subr.mxu0 0.0
        %2833 = vmatpush2.xpose.msra.mxu0 0.0
        %2834 = vmatprep.subr.mxu0 0.0
        %2835 = vmatpush2.xpose.msra.mxu0 0.0
        %2836 = vmatprep.subr.mxu0 0.0
        %2837 = vmatpush2.xpose.msra.mxu0 0.0
        %2838 = vmatprep.subr.mxu0 0.0
        %2839 = vmatpush2.xpose.msra.mxu0 0.0
        %2840 = vmatprep.mubr.f32.mxu0 0.0
        %2841 = vmatmul.mubr.f32.gmra.mxu0 %v2772
        %v2842 = vpop.f32.mrf.mxu0
        %v2843 = vadd.f32 %v2242, %v2842
        %v2844 = vpop.f32.mrf.mxu0
        %2845 = vdwg.mxu0
        %s2846 = scalar_lea.vmem %s1024, 24 [#allocation21]
        %2847 = vst.msk [vmem:[%s2846] sm:$0xff] %vm1542, %v2843
        %v2848 = vsel %vm1542, %v2843, -inf
        %2849 = vmax.xlane.f32.xlu0 %v2848
        %v2850 = vpop.xlane.xlu0 %2849
        %v2851 = vsub.f32 %v2843, %v2850
        %v2852 = vmul.f32 %v2851, 1.442695
        %v2853 = vpow.pop %v2852
        %v2854 = vsel %vm1542, %v2853, 0.0
        %2855 = vadd.xlane.f32.xlu0 %v2854
        %v2856 = vpop.xlane.xlu0 %2855
        %v2857 = vrcp.pop %v2856
        %v2858 = vmul.f32 %v2856, %v2857
        %v2859 = vsub.f32 2.0, %v2858
        %v2860 = vmul.f32 %v2857, %v2859
        %v2861 = vmul.f32 %v2853, %v2860
        %2862 = vrot.lane.b32.xlu0 %v1532, 116
        %v2863 = vpop.permute.xlu0 %2862
        %v2866 = vsel %vm1542, %v2861, 0
        %2868 = vmatprep.subr.mxu0 0.0
        %2869 = vmatpush1.msra.mxu0 0.0
        %2870 = vmatprep.subr.mxu0 0.0
        %2871 = vmatpush1.msra.mxu0 0.0
        %2872 = vmatprep.subr.mxu0 0.0
        %2873 = vmatpush1.msra.mxu0 0.0
        %2874 = vmatprep.subr.mxu0 0.0
        %2875 = vmatpush1.msra.mxu0 0.0
        %2876 = vmatprep.subr.mxu0 0.0
        %2877 = vmatpush1.msra.mxu0 0.0
        %2878 = vmatprep.subr.mxu0 0.0
        %2879 = vmatpush1.msra.mxu0 0.0
        %2880 = vmatprep.subr.mxu0 0.0
        %2881 = vmatpush1.msra.mxu0 0.0
        %2882 = vmatprep.subr.mxu0 0.0
        %2883 = vmatpush1.msra.mxu0 0.0
        %2884 = vmatprep.subr.mxu0 0.0
        %2885 = vmatpush1.msra.mxu0 0.0
        %2886 = vmatprep.subr.mxu0 0.0
        %2887 = vmatpush1.msra.mxu0 0.0
        %2888 = vmatprep.subr.mxu0 0.0
        %2889 = vmatpush1.msra.mxu0 0.0
        %2890 = vmatprep.subr.mxu0 0.0
        %2891 = vmatpush1.msra.mxu0 0.0
        %2892 = vmatprep.subr.mxu0 0.0
        %2893 = vmatpush1.msra.mxu0 0.0
        %2894 = vmatprep.subr.mxu0 0.0
        %2895 = vmatpush1.msra.mxu0 0.0
        %2896 = vmatprep.subr.mxu0 0.0
        %2897 = vmatpush1.msra.mxu0 0.0
        %2898 = vmatprep.subr.mxu0 0.0
        %2899 = vmatpush1.msra.mxu0 %v2863
        %2900 = vmatprep.subr.mxu0 0.0
        %2901 = vmatpush2.msra.mxu0 0.0
        %2902 = vmatprep.subr.mxu0 0.0
        %2903 = vmatpush2.msra.mxu0 0.0
        %2904 = vmatprep.subr.mxu0 0.0
        %2905 = vmatpush2.msra.mxu0 0.0
        %2906 = vmatprep.subr.mxu0 0.0
        %2907 = vmatpush2.msra.mxu0 0.0
        %2908 = vmatprep.subr.mxu0 0.0
        %2909 = vmatpush2.msra.mxu0 0.0
        %2910 = vmatprep.subr.mxu0 0.0
        %2911 = vmatpush2.msra.mxu0 0.0
        %2912 = vmatprep.subr.mxu0 0.0
        %2913 = vmatpush2.msra.mxu0 0.0
        %2914 = vmatprep.subr.mxu0 0.0
        %2915 = vmatpush2.msra.mxu0 0.0
        %2916 = vmatprep.subr.mxu0 0.0
        %2917 = vmatpush2.msra.mxu0 0.0
        %2918 = vmatprep.subr.mxu0 0.0
        %2919 = vmatpush2.msra.mxu0 0.0
        %2920 = vmatprep.subr.mxu0 0.0
        %2921 = vmatpush2.msra.mxu0 0.0
        %2922 = vmatprep.subr.mxu0 0.0
        %2923 = vmatpush2.msra.mxu0 0.0
        %2924 = vmatprep.subr.mxu0 0.0
        %2925 = vmatpush2.msra.mxu0 0.0
        %2926 = vmatprep.subr.mxu0 0.0
        %2927 = vmatpush2.msra.mxu0 0.0
        %2928 = vmatprep.subr.mxu0 0.0
        %2929 = vmatpush2.msra.mxu0 0.0
        %2930 = vmatprep.subr.mxu0 0.0
        %2931 = vmatpush2.msra.mxu0 0.0
        %2932 = vmatprep.mubr.f32.mxu0 0.0
        %2933 = vmatmul.mubr.f32.gmra.mxu0 %v2866
        %v2934 = vpop.f32.mrf.mxu0
        %v2935 = vadd.f32 0.0, %v2934
        %v2936 = vpop.f32.mrf.mxu0
        %2937 = vdwg.mxu0
        %2939 = vrot.lane.b32.xlu0 %v2935, 44
        %v2940 = vpop.permute.xlu0 %2939
        %vm2942 = vcmask 392544
        %2943 = vst.msk [vmem:[#allocation2] sm:$0xff] %vm2942, %v2940
        %v2944 = vld [vmem:[#allocation2] sm:$0xff]
        %v2945 = vld [vmem:[%s19] sm:$0xff]
        %v2946 = vld [vmem:[%s19 + $0x8] sm:$0xff]
        %v2947 = vld [vmem:[%s19 + $0x10] sm:$0xff]
        %v2948 = vld [vmem:[%s19 + $0x18] sm:$0xff]
        %v2949 = vld [vmem:[%s19 + $0x20] sm:$0xff]
        %v2950 = vld [vmem:[%s19 + $0x28] sm:$0xff]
        %v2951 = vld [vmem:[%s20] sm:$0x1]
        %v2953 = vlaneseq
        %v2954 = vshrl.u32 %v2953, 7
        %v2955 = vsub.s32 0, %v2954
        %v2956 = vrot.slane %v2951, %v2955
        %vm2958 = vcmask 392192
        %v2960 = vsel %vm2958, %v2944, 0
        %2962 = vmatprep.subr.mxu0 0.0
        %2963 = vmatpush1.msra.mxu0 0.0
        %2964 = vmatprep.subr.mxu0 0.0
        %2965 = vmatpush1.msra.mxu0 0.0
        %2966 = vmatprep.subr.mxu0 0.0
        %2967 = vmatpush1.msra.mxu0 0.0
        %2968 = vmatprep.subr.mxu0 0.0
        %2969 = vmatpush1.msra.mxu0 0.0
        %2970 = vmatprep.subr.mxu0 0.0
        %2971 = vmatpush1.msra.mxu0 0.0
        %2972 = vmatprep.subr.mxu0 0.0
        %2973 = vmatpush1.msra.mxu0 0.0
        %2974 = vmatprep.subr.mxu0 0.0
        %2975 = vmatpush1.msra.mxu0 0.0
        %2976 = vmatprep.subr.mxu0 0.0
        %2977 = vmatpush1.msra.mxu0 0.0
        %2978 = vmatprep.subr.mxu0 0.0
        %2979 = vmatpush1.msra.mxu0 0.0
        %2980 = vmatprep.subr.mxu0 0.0
        %2981 = vmatpush1.msra.mxu0 0.0
        %2982 = vmatprep.subr.mxu0 0.0
        %2983 = vmatpush1.msra.mxu0 %v2950
        %2984 = vmatprep.subr.mxu0 0.0
        %2985 = vmatpush1.msra.mxu0 %v2949
        %2986 = vmatprep.subr.mxu0 0.0
        %2987 = vmatpush1.msra.mxu0 %v2948
        %2988 = vmatprep.subr.mxu0 0.0
        %2989 = vmatpush1.msra.mxu0 %v2947
        %2990 = vmatprep.subr.mxu0 0.0
        %2991 = vmatpush1.msra.mxu0 %v2946
        %2992 = vmatprep.subr.mxu0 0.0
        %2993 = vmatpush1.msra.mxu0 %v2945
        %2994 = vmatprep.subr.mxu0 0.0
        %2995 = vmatpush2.msra.mxu0 0.0
        %2996 = vmatprep.subr.mxu0 0.0
        %2997 = vmatpush2.msra.mxu0 0.0
        %2998 = vmatprep.subr.mxu0 0.0
        %2999 = vmatpush2.msra.mxu0 0.0
        %3000 = vmatprep.subr.mxu0 0.0
        %3001 = vmatpush2.msra.mxu0 0.0
        %3002 = vmatprep.subr.mxu0 0.0
        %3003 = vmatpush2.msra.mxu0 0.0
        %3004 = vmatprep.subr.mxu0 0.0
        %3005 = vmatpush2.msra.mxu0 0.0
        %3006 = vmatprep.subr.mxu0 0.0
        %3007 = vmatpush2.msra.mxu0 0.0
        %3008 = vmatprep.subr.mxu0 0.0
        %3009 = vmatpush2.msra.mxu0 0.0
        %3010 = vmatprep.subr.mxu0 0.0
        %3011 = vmatpush2.msra.mxu0 0.0
        %3012 = vmatprep.subr.mxu0 0.0
        %3013 = vmatpush2.msra.mxu0 0.0
        %3014 = vmatprep.subr.mxu0 0.0
        %3015 = vmatpush2.msra.mxu0 0.0
        %3016 = vmatprep.subr.mxu0 0.0
        %3017 = vmatpush2.msra.mxu0 0.0
        %3018 = vmatprep.subr.mxu0 0.0
        %3019 = vmatpush2.msra.mxu0 0.0
        %3020 = vmatprep.subr.mxu0 0.0
        %3021 = vmatpush2.msra.mxu0 0.0
        %3022 = vmatprep.subr.mxu0 0.0
        %3023 = vmatpush2.msra.mxu0 0.0
        %3024 = vmatprep.subr.mxu0 0.0
        %3025 = vmatpush2.msra.mxu0 0.0
        %3026 = vmatprep.mubr.f32.mxu0 0.0
        %3027 = vmatmul.mubr.f32.gmra.mxu0 %v2960
        %v3028 = vpop.f32.mrf.mxu0
        %v3029 = vadd.f32 %v2956, %v3028
        %v3030 = vpop.f32.mrf.mxu0
        %3031 = vdwg.mxu0
        %v3032 = vadd.f32 %v3029, %v1029
        %v3033 = vsel %vm1045, %v3032, 0.0
        %3034 = vadd.xlane.f32.xlu0 %v3033
        %v3035 = vpop.xlane.xlu0 %3034
        %v3036 = vrcp.pop 32.0
        %v3037 = vmul.f32 %v3035, %v3036
        %v3038 = vsub.f32 %v3032, %v3037
        %v3039 = vmul.f32 %v3038, %v3038
        %v3040 = vsel %vm1045, %v3039, 0.0
        %3041 = vadd.xlane.f32.xlu0 %v3040
        %v3042 = vpop.xlane.xlu0 %3041
        %v3043 = vmul.f32 %v3042, %v3036
        %v3044 = vadd.f32 %v3043, 1e-12
        %v3045 = vrsqrt.pop %v3044
        %v3046 = vmul.f32 %v3038, %v3045
        %v3047 = vld [vmem:[%s21] sm:$0x1]
        %v3049 = vlaneseq
        %v3050 = vshrl.u32 %v3049, 7
        %v3051 = vsub.s32 0, %v3050
        %v3052 = vrot.slane %v3047, %v3051
        %v3054 = vmul.f32 %v3046, %v3052
        %v3055 = vld [vmem:[%s22] sm:$0x1]
        %v3057 = vlaneseq
        %v3058 = vshrl.u32 %v3057, 7
        %v3059 = vsub.s32 0, %v3058
        %v3060 = vrot.slane %v3055, %v3059
        %v3062 = vadd.f32 %v3054, %v3060
        %3063 = vst.msk [vmem:[%s1010] sm:$0xff] %vm1045, %v3062
        %s3064 = sand.u32 %s582, 1
        %s3065 = scalar_lea.sflag [#allocation5], %s3064
        %s3066 = sand.u32 %s582, 1
        %s3067 = smul.addr %s3066, 8
        %s3068 = scalar_lea.vmem [#allocation18], %s3067
        %s3069 = sand.u32 %s56, 1
        %s3070 = scalar_lea.sflag [#allocation20], %s3069
        %s3071 = sand.u32 %s608, 1
        %s3072 = smul.addr %s3071, 32
        %s3073 = scalar_lea.vmem [#allocation19], %s3072
        %s3074 = sand.u32 %s56, 1
        %s3075 = scalar_lea.sflag [#allocation20], %s3074
        %s3076 = sand.u32 %s634, 1
        %s3077 = smul.addr %s3076, 32
        %s3078 = scalar_lea.vmem [#allocation21], %s3077
        // Predicated region
        $region149: #{tpu_custom_call.1} parent=111 // pred_check
          %p3079 = pneg %p592
        $region150: #{tpu_custom_call.1} parent=111 // pred_check_branch
          %3081 = sbr.rel (%p3079) target = $region152
        $region151: #{tpu_custom_call.1} parent=111 // pred_region
          %s3083 = ssub.s32 128, 128
          %3084 = vsyncadd %s3065, %s3083
          %s3085 = smul.addr %s56, 128
          %s3086 = scalar_lea.hbm %s23, %s3085
          %s3088 = sshll.u32 %s3068, 4
          %s3089 = int_to_ptr.vmem [resolvable:$true] %s3088
          %3091 = dma.vmem_to_hbm [thread:$0]  %s3089, 128, %s3086, %s3065
        $region152: #{tpu_custom_call.1} parent=111 // pred_fallthru
          _
        // Predicated region
        $region153: #{tpu_custom_call.1} parent=111 // pred_check
          %p3092 = pneg %p618
        $region154: #{tpu_custom_call.1} parent=111 // pred_check_branch
          %3094 = sbr.rel (%p3092) target = $region156
        $region155: #{tpu_custom_call.1} parent=111 // pred_region
          %s3096 = ssub.s32 512, 512
          %3097 = vsyncadd %s3070, %s3096
          %s3098 = smul.addr %s56, 4
          %s3099 = smul.addr %s3098, 128
          %s3100 = scalar_lea.hbm %s24, %s3099
          %s3101 = sshll.u32 %s3073, 4
          %s3102 = int_to_ptr.vmem [resolvable:$true] %s3101
          %3107 = dma.vmem_to_hbm [thread:$0]  %s3102, 512, %s3100, %s3070, 128, 128, 8
        $region156: #{tpu_custom_call.1} parent=111 // pred_fallthru
          _
        // Predicated region
        $region157: #{tpu_custom_call.1} parent=111 // pred_check
          %p3108 = pneg %p644
        $region158: #{tpu_custom_call.1} parent=111 // pred_check_branch
          %3110 = sbr.rel (%p3108) target = $region160
        $region159: #{tpu_custom_call.1} parent=111 // pred_region
          %s3112 = ssub.s32 512, 512
          %3113 = vsyncadd %s3075, %s3112
          %s3114 = smul.addr %s56, 4
          %s3115 = smul.addr %s3114, 128
          %s3116 = scalar_lea.hbm %s25, %s3115
          %s3117 = sshll.u32 %s3078, 4
          %s3118 = int_to_ptr.vmem [resolvable:$true] %s3117
          %3123 = dma.vmem_to_hbm [thread:$0]  %s3118, 512, %s3116, %s3075, 128, 128, 8
        $region160: #{tpu_custom_call.1} parent=111 // pred_fallthru
          _
      $region112: #{tpu_custom_call.1} parent=5 // pred_fallthru
        _
      %p3124 = scmp.le.s32.totalorder 2, %s51
      // Predicated region
      $region161: #{tpu_custom_call.1} parent=5 // pred_check
        %p3125 = pneg %p3124
      $region162: #{tpu_custom_call.1} parent=5 // pred_check_branch
        %3127 = sbr.rel (%p3125) target = $region164
      $region163: #{tpu_custom_call.1} parent=5 // pred_region
        %s3128 = ssub.s32 %s51, 2
        // Predicated region
        $region165: #{tpu_custom_call.1} parent=163 // pred_check
          %p3129 = pneg %p598
        $region166: #{tpu_custom_call.1} parent=163 // pred_check_branch
          %3131 = sbr.rel (%p3129) target = $region168
        $region167: #{tpu_custom_call.1} parent=163 // pred_region
          %s3132 = sand.u32 %s583, 1
          %s3133 = scalar_lea.sflag [#allocation5], %s3132
          %s3134 = sand.u32 %s583, 1
          %s3135 = smul.addr %s3134, 8
          %s3136 = scalar_lea.vmem [#allocation18], %s3135
          %3137 = dma.done %s3133, 128
        $region168: #{tpu_custom_call.1} parent=163 // pred_fallthru
          _
        // Predicated region
        $region169: #{tpu_custom_call.1} parent=163 // pred_check
          %p3138 = pneg %p624
        $region170: #{tpu_custom_call.1} parent=163 // pred_check_branch
          %3140 = sbr.rel (%p3138) target = $region172
        $region171: #{tpu_custom_call.1} parent=163 // pred_region
          %s3141 = sand.u32 %s57, 1
          %s3142 = scalar_lea.sflag [#allocation20], %s3141
          %s3143 = sand.u32 %s609, 1
          %s3144 = smul.addr %s3143, 32
          %s3145 = scalar_lea.vmem [#allocation19], %s3144
          %3146 = dma.done %s3142, 512
        $region172: #{tpu_custom_call.1} parent=163 // pred_fallthru
          _
        // Predicated region
        $region173: #{tpu_custom_call.1} parent=163 // pred_check
          %p3147 = pneg %p650
        $region174: #{tpu_custom_call.1} parent=163 // pred_check_branch
          %3149 = sbr.rel (%p3147) target = $region176
        $region175: #{tpu_custom_call.1} parent=163 // pred_region
          %s3150 = sand.u32 %s57, 1
          %s3151 = scalar_lea.sflag [#allocation20], %s3150
          %s3152 = sand.u32 %s635, 1
          %s3153 = smul.addr %s3152, 32
          %s3154 = scalar_lea.vmem [#allocation21], %s3153
          %3155 = dma.done %s3151, 512
        $region176: #{tpu_custom_call.1} parent=163 // pred_fallthru
          _
      $region164: #{tpu_custom_call.1} parent=5 // pred_fallthru
        _
    $region6: #{tpu_custom_call.1} parent=1 // loop_footer
      %s55 = sadd.s32 1, %s51
    $region7: #{tpu_custom_call.1} parent=1 // loop_footer_branch
      %50 = sbr.rel target = $region3
    $region8: #{tpu_custom_call.1} parent=1 // loop_exit
      _
    %3156 = vsyncpa [#allocation4], 1
    %s3157 = scalar_lea.sflag [#allocation4], 1
    %3158 = vsyncpa %s3157, 1
    %3159 = vsyncpa [#allocation7], 1
    %s3160 = scalar_lea.sflag [#allocation7], 1
    %3161 = vsyncpa %s3160, 1
    %3162 = vsyncpa [#allocation10], 1
    %s3163 = scalar_lea.sflag [#allocation10], 1
    %3164 = vsyncpa %s3163, 1
    %3165 = vsyncpa [#allocation13], 1
    %s3166 = scalar_lea.sflag [#allocation13], 1
    %3167 = vsyncpa %s3166, 1
    %3168 = vsyncpa [#allocation16], 1
    %3169 = vsyncpa [#allocation5], 1
    %s3170 = scalar_lea.sflag [#allocation5], 1
    %3171 = vsyncpa %s3170, 1
    %3172 = vsyncpa [#allocation20], 1
    %s3173 = scalar_lea.sflag [#allocation20], 1
    %3174 = vsyncpa %s3173, 1

</llo_original>
